<compile_context>
chip_gen: v6e
topology: v6e:2x2x1
jax: 0.10.0
libtpu: 0.0.40
codegen_flags: <defaults>
</compile_context>

<pallas_src>
import jax
import jax.numpy as jnp
from jax.experimental import pallas as pl
from jax.experimental.pallas import tpu as pltpu

EPS = 1e-5
_TM_CAP = 1024          # max rows per GEMM / BN tile


def _pick_tm(m, cap=_TM_CAP):
    """Largest row tile <= cap that divides m (fallback: single block)."""
    if m <= cap:
        return m
    t = cap
    while t > 8 and m % t != 0:
        t //= 2
    return t if m % t == 0 else m


# ----------------------------- Pallas kernels -----------------------------

def _matmul_stats_kernel(a_ref, b_ref, y_ref, stats_ref):
    """y = A @ B (bf16 in, f32 out) + per-column sum / sum-of-squares."""
    y = jnp.dot(a_ref[...], b_ref[...], preferred_element_type=jnp.float32)
    y_ref[...] = y
    stats_ref[0:1, :] = jnp.sum(y, axis=0, keepdims=True)
    stats_ref[1:2, :] = jnp.sum(y * y, axis=0, keepdims=True)


def _matmul_bias_tanh_kernel(a_ref, b_ref, bias_ref, y_ref):
    """y = tanh(A @ B + bias) with f32 accumulation."""
    y = jnp.dot(a_ref[...], b_ref[...], preferred_element_type=jnp.float32)
    y_ref[...] = jnp.tanh(y + bias_ref[...])


def _bn_relu_kernel(x_ref, scale_ref, shift_ref, o_ref):
    """Fused (x * scale + shift) -> ReLU, all f32."""
    o_ref[...] = jnp.maximum(x_ref[...] * scale_ref[...] + shift_ref[...], 0.0)


# ----------------------------- Pallas wrappers -----------------------------

def batched_matmul_stats(a, b):
    """a: (P, M, K) bf16, b: (P, K, N) bf16 ->
       y: (P, M, N) f32, stats: (P, M//tm, 2, N) f32 (rows: sum, sumsq)."""
    P, M, K = a.shape
    N = b.shape[2]
    tm = _pick_tm(M)
    n_i = M // tm
    y, stats = pl.pallas_call(
        _matmul_stats_kernel,
        out_shape=(jax.ShapeDtypeStruct((P, M, N), jnp.float32),
                   jax.ShapeDtypeStruct((P, n_i, 2, N), jnp.float32)),
        grid_spec=pltpu.PrefetchScalarGridSpec(
            num_scalar_prefetch=0,
            grid=(P, n_i),
            in_specs=[
                pl.BlockSpec((None, tm, K), lambda p, i: (p, i, 0)),
                pl.BlockSpec((None, K, N), lambda p, i: (p, 0, 0)),
            ],
            out_specs=(
                pl.BlockSpec((None, tm, N), lambda p, i: (p, i, 0)),
                pl.BlockSpec((None, None, 2, N), lambda p, i: (p, i, 0, 0)),
            ),
        ),
        compiler_params=pltpu.CompilerParams(
            dimension_semantics=("parallel", "parallel")),
    )(a, b)
    return y, stats


def batched_matmul_bias_tanh(a, b, bias):
    """a: (P, M, K) bf16, b: (P, K, N) bf16, bias: (N,) f32 -> (P, M, N) f32."""
    P, M, K = a.shape
    N = b.shape[2]
    tm = _pick_tm(M)
    return pl.pallas_call(
        _matmul_bias_tanh_kernel,
        out_shape=jax.ShapeDtypeStruct((P, M, N), jnp.float32),
        grid_spec=pltpu.PrefetchScalarGridSpec(
            num_scalar_prefetch=0,
            grid=(P, M // tm),
            in_specs=[
                pl.BlockSpec((None, tm, K), lambda p, i: (p, i, 0)),
                pl.BlockSpec((None, K, N), lambda p, i: (p, 0, 0)),
                pl.BlockSpec((1, N), lambda p, i: (0, 0)),
            ],
            out_specs=pl.BlockSpec((None, tm, N), lambda p, i: (p, i, 0)),
        ),
        compiler_params=pltpu.CompilerParams(
            dimension_semantics=("parallel", "parallel")),
    )(a, b, bias.reshape(1, N).astype(jnp.float32))


def bn_relu(x2d, scale, shift):
    """x2d: (M, C) f32; per-column scale/shift; fused affine + ReLU."""
    M, C = x2d.shape
    tm = _pick_tm(M)
    return pl.pallas_call(
        _bn_relu_kernel,
        out_shape=jax.ShapeDtypeStruct((M, C), jnp.float32),
        grid_spec=pltpu.PrefetchScalarGridSpec(
            num_scalar_prefetch=0,
            grid=(M // tm,),
            in_specs=[pl.BlockSpec((tm, C), lambda i: (i, 0)),
                      pl.BlockSpec((1, C), lambda i: (0, 0)),
                      pl.BlockSpec((1, C), lambda i: (0, 0))],
            out_specs=pl.BlockSpec((tm, C), lambda i: (i, 0)),
        ),
        compiler_params=pltpu.CompilerParams(dimension_semantics=("parallel",)),
    )(x2d, scale.reshape(1, C), shift.reshape(1, C))


# ------------------ ConvTranspose2d building blocks (JAX glue) -------------

def _polyphase_operands(x_nhwc, w_torch):
    """stride=2 / pad=1 / k=4 ConvTranspose2d, decomposed by output parity.

    out[:, 2r+py, 2c+px, :] = sum_{dy,dx in {0,1}} x_pad[:, r+py+dy, c+px+dx, :]
                               @ W[:, :, 3-py-2dy, 3-px-2dx]
    Returns A: (4, N*H*W, 4*Cin) bf16, B: (4, 4*Cin, Cout) bf16.
    Phase order (py, px) row-major; K order (dy, dx, ci).
    """
    N, H, W, Cin = x_nhwc.shape
    Cout = w_torch.shape[1]
    xp = jnp.pad(x_nhwc.astype(jnp.bfloat16), ((0, 0), (1, 1), (1, 1), (0, 0)))
    pats, wmats = [], []
    for py in (0, 1):
        for px in (0, 1):
            taps = [xp[:, py + dy:py + dy + H, px + dx:px + dx + W, :]
                    for dy in (0, 1) for dx in (0, 1)]
            pats.append(jnp.stack(taps, axis=3).reshape(N * H * W, 4 * Cin))
            wmats.append(jnp.concatenate(
                [w_torch[:, :, 3 - py - 2 * dy, 3 - px - 2 * dx]
                 for dy in (0, 1) for dx in (0, 1)], axis=0))
    A = jnp.stack(pats, axis=0)
    B = jnp.stack(wmats, axis=0).astype(jnp.bfloat16)
    return A, B, (N, H, W, Cout)


def _interleave_phases(y, N, H, W, C):
    """(4, N*H*W, C) phase-major -> (N, 2H, 2W, C) spatial layout."""
    y = y.reshape(2, 2, N, H, W, C)
    y = jnp.transpose(y, (2, 3, 0, 4, 1, 5))
    return y.reshape(N, 2 * H, 2 * W, C)


def _bn_scale_shift(sum_c, sumsq_c, count, gamma, beta):
    """Train-mode BatchNorm affine from batch stats (biased var, eps=1e-5)."""
    mean = sum_c / count
    var = jnp.maximum(sumsq_c / count - mean * mean, 0.0)
    scale = gamma * jax.lax.rsqrt(var + EPS)
    return scale, beta - mean * scale


# --------------------------------- Layers ----------------------------------

def _first_block(x_nhwc, w, gamma, beta):
    """ConvTranspose2d(k=4, s=1, p=0) on the 1x1 latent + BN + ReLU.
    Conv bias (if any) is omitted: it cancels exactly under batch-stats BN."""
    N, H, W, Cin = x_nhwc.shape
    assert H == 1 and W == 1, "DCGAN generator expects a 1x1 spatial latent"
    Cout = w.shape[1]
    A = x_nhwc.reshape(1, N, Cin).astype(jnp.bfloat16)
    B = jnp.transpose(w, (0, 2, 3, 1)).reshape(1, Cin, 16 * Cout)
    B = B.astype(jnp.bfloat16)
    y, stats = batched_matmul_stats(A, B)              # y: (1, N, 16*Cout)
    st = stats.reshape(2, 16, Cout).sum(axis=1)        # per-channel sums
    scale, shift = _bn_scale_shift(st[0], st[1], float(N * 16), gamma, beta)
    y2 = bn_relu(y.reshape(N, 16 * Cout),
                 jnp.tile(scale, 16), jnp.tile(shift, 16))
    return y2.reshape(N, 4, 4, Cout)


def _projection_block(x_nhwc, w, gamma, beta):
    """ConvTranspose2d(k=4, s=2, p=1, bias-free) + BatchNorm2d(train) + ReLU."""
    A, B, (N, H, W, Cout) = _polyphase_operands(x_nhwc, w)
    M = N * H * W
    y, stats = batched_matmul_stats(A, B)              # y: (4, M, Cout)
    st = stats.reshape(-1, 2, Cout).sum(axis=0)        # (2, Cout)
    scale, shift = _bn_scale_shift(st[0], st[1], float(4 * M), gamma, beta)
    y2 = bn_relu(y.reshape(4 * M, Cout), scale, shift)
    return _interleave_phases(y2.reshape(4, M, Cout), N, H, W, Cout)


def _final_block(x_nhwc, w, b):
    """ConvTranspose2d(k=4, s=2, p=1) + bias + Tanh fused into the GEMM."""
    A, B, (N, H, W, Cout) = _polyphase_operands(x_nhwc, w)
    y = batched_matmul_bias_tanh(A, B, b)              # (4, N*H*W, Cout)
    return _interleave_phases(y, N, H, W, Cout)


# ------------------------------- Generator ---------------------------------

def _generator_forward(x_nchw, params):
    x = jnp.transpose(x_nchw, (0, 2, 3, 1)).astype(jnp.float32)   # NCHW -> NHWC
    blk0 = params["blocks"][0]
    x = _first_block(x, blk0["w"], blk0["gamma"], blk0["beta"])
    for blk in params["blocks"][1:]:
        x = _projection_block(x, blk["w"], blk["gamma"], blk["beta"])
    y = _final_block(x, params["last"]["w"], params["last"]["b"])
    return jnp.transpose(y, (0, 3, 1, 2))                          # NHWC -> NCHW


generator_forward = jax.jit(_generator_forward)


def init_generator_params(key, in_channels, channels_img, features_g):
    """Deterministic DCGAN-style N(0, 0.02) init; BN gamma=1, beta=0."""
    specs = [
        (in_channels,     features_g * 16),
        (features_g * 16, features_g * 8),
        (features_g * 8,  features_g * 4),
        (features_g * 4,  features_g * 2),
    ]
    blocks = []
    for ci, co in specs:
        key, kw = jax.random.split(key)
        blocks.append(dict(
            w=0.02 * jax.random.normal(kw, (ci, co, 4, 4), jnp.float32),
            gamma=jnp.ones((co,), jnp.float32),
            beta=jnp.zeros((co,), jnp.float32)))
    key, kw, kb = jax.random.split(key, 3)
    last = dict(
        w=0.02 * jax.random.normal(
            kw, (features_g * 2, channels_img, 4, 4), jnp.float32),
        b=0.01 * jax.random.normal(kb, (channels_img,), jnp.float32))
    return dict(blocks=blocks, last=last)


if __name__ == "__main__":
    batch, in_channels, features_g, channels_img = 2, 16, 4, 3
    key = jax.random.PRNGKey(0)
    kx, kp = jax.random.split(key)
    # DCGAN generator consumes a 1x1 spatial latent.
    x = jax.random.normal(kx, (batch, in_channels, 1, 1), jnp.float32)
    params = init_generator_params(kp, in_channels, channels_img, features_g)

    out = generator_forward(x, params)
    out = jax.block_until_ready(out)
    assert out.shape == (batch, channels_img, 64, 64), out.shape
    assert bool(jnp.all(jnp.isfinite(out)))
    assert bool(jnp.all(jnp.abs(out) <= 1.0 + 1e-6))   # tanh output range
    print("KERNEL_OK")
</pallas_src>

<mosaic_0001>
module attributes {stable_mosaic.version = 11 : i64} {
  func.func @_matmul_stats_kernel(%arg0: i32, %arg1: i32, %arg2: memref<1x2x16xbf16, #tpu.memory_space<vmem>>, %arg3: memref<1x16x1024xbf16, #tpu.memory_space<vmem>>, %arg4: memref<1x2x1024xf32, #tpu.memory_space<vmem>>, %arg5: memref<1x1x2x1024xf32, #tpu.memory_space<vmem>>) attributes {dimension_semantics = [#tpu.dimension_semantics<parallel>, #tpu.dimension_semantics<parallel>], iteration_bounds = array<i64: 1, 1>, scalar_prefetch = 0 : i64, scratch_operands = 0 : i64, tpu.core_type = #tpu.core_type<tc>, window_params = [{transform_indices = @transform_0, window_bounds = array<i64: 1, 2, 16>}, {transform_indices = @transform_1, window_bounds = array<i64: 1, 16, 1024>}, {transform_indices = @transform_2, window_bounds = array<i64: 1, 2, 1024>}, {transform_indices = @transform_3, window_bounds = array<i64: 1, 1, 2, 1024>}]} {
    %c0 = arith.constant 0 : index
    %c0_0 = arith.constant 0 : index
    %c0_1 = arith.constant 0 : index
    %0 = vector.load %arg2[%c0, %c0_0, %c0_1] : memref<1x2x16xbf16, #tpu.memory_space<vmem>>, vector<1x2x16xbf16>
    %1 = vector.shape_cast %0 : vector<1x2x16xbf16> to vector<2x16xbf16>
    %c0_2 = arith.constant 0 : index
    %c0_3 = arith.constant 0 : index
    %c0_4 = arith.constant 0 : index
    %2 = vector.load %arg3[%c0_2, %c0_3, %c0_4] : memref<1x16x1024xbf16, #tpu.memory_space<vmem>>, vector<1x16x1024xbf16>
    %3 = vector.shape_cast %2 : vector<1x16x1024xbf16> to vector<16x1024xbf16>
    %cst = arith.constant dense<0.000000e+00> : vector<2x1024xf32>
    %4 = tpu.matmul %1, %3, %cst {dimension_numbers = #tpu.dot_dimension_numbers<[1], [0], [0], [1], [0, 0, 1, 1], [], []>} : vector<2x16xbf16>, vector<16x1024xbf16>, vector<2x1024xf32> -> vector<2x1024xf32>
    %c0_5 = arith.constant 0 : index
    %c0_6 = arith.constant 0 : index
    %c0_7 = arith.constant 0 : index
    %5 = vector.load %arg4[%c0_5, %c0_6, %c0_7] : memref<1x2x1024xf32, #tpu.memory_space<vmem>>, vector<1x2x1024xf32>
    %6 = vector.shape_cast %5 : vector<1x2x1024xf32> to vector<2x1024xf32>
    %7 = vector.shape_cast %4 : vector<2x1024xf32> to vector<1x2x1024xf32>
    tpu.vector_store %arg4[%c0_5, %c0_6, %c0_7], %7 {strides = array<i32>} : memref<1x2x1024xf32, #tpu.memory_space<vmem>>, vector<1x2x1024xf32>,
    %cst_8 = arith.constant dense<0.000000e+00> : vector<1024xf32>
    %8 = vector.multi_reduction <add>, %4, %cst_8 [0] : vector<2x1024xf32> to vector<1024xf32>
    %9 = vector.shape_cast %8 : vector<1024xf32> to vector<1x1024xf32>
    %c0_9 = arith.constant 0 : index
    %c0_10 = arith.constant 0 : index
    %c0_11 = arith.constant 0 : index
    %c0_12 = arith.constant 0 : index
    %10 = vector.load %arg5[%c0_9, %c0_10, %c0_11, %c0_12] : memref<1x1x2x1024xf32, #tpu.memory_space<vmem>>, vector<1x1x1x1024xf32>
    %11 = vector.shape_cast %10 : vector<1x1x1x1024xf32> to vector<1x1024xf32>
    %12 = vector.shape_cast %9 : vector<1x1024xf32> to vector<1x1x1x1024xf32>
    tpu.vector_store %arg5[%c0_9, %c0_10, %c0_11, %c0_12], %12 {strides = array<i32>} : memref<1x1x2x1024xf32, #tpu.memory_space<vmem>>, vector<1x1x1x1024xf32>,
    %13 = arith.mulf %4, %4 : vector<2x1024xf32>
    %cst_13 = arith.constant dense<0.000000e+00> : vector<1024xf32>
    %14 = vector.multi_reduction <add>, %13, %cst_13 [0] : vector<2x1024xf32> to vector<1024xf32>
    %15 = vector.shape_cast %14 : vector<1024xf32> to vector<1x1024xf32>
    %c0_14 = arith.constant 0 : index
    %c0_15 = arith.constant 0 : index
    %c1 = arith.constant 1 : index
    %c0_16 = arith.constant 0 : index
    %16 = vector.load %arg5[%c0_14, %c0_15, %c1, %c0_16] : memref<1x1x2x1024xf32, #tpu.memory_space<vmem>>, vector<1x1x1x1024xf32>
    %17 = vector.shape_cast %16 : vector<1x1x1x1024xf32> to vector<1x1024xf32>
    %18 = vector.shape_cast %15 : vector<1x1024xf32> to vector<1x1x1x1024xf32>
    tpu.vector_store %arg5[%c0_14, %c0_15, %c1, %c0_16], %18 {strides = array<i32>} : memref<1x1x2x1024xf32, #tpu.memory_space<vmem>>, vector<1x1x1x1024xf32>,
    return
  }
  func.func @transform_0(%arg0: i32, %arg1: i32) -> (i32, i32, i32) {
    %c0_i32 = arith.constant 0 : i32
    %c0_i32_0 = arith.constant 0 : i32
    return %arg0, %arg1, %c0_i32 : i32, i32, i32
  }
  func.func @transform_1(%arg0: i32, %arg1: i32) -> (i32, i32, i32) {
    %c0_i32 = arith.constant 0 : i32
    %c0_i32_0 = arith.constant 0 : i32
    %c0_i32_1 = arith.constant 0 : i32
    return %arg0, %c0_i32, %c0_i32_0 : i32, i32, i32
  }
  func.func @transform_2(%arg0: i32, %arg1: i32) -> (i32, i32, i32) {
    %c0_i32 = arith.constant 0 : i32
    %c0_i32_0 = arith.constant 0 : i32
    return %arg0, %arg1, %c0_i32 : i32, i32, i32
  }
  func.func @transform_3(%arg0: i32, %arg1: i32) -> (i32, i32, i32, i32) {
    %c0_i32 = arith.constant 0 : i32
    %c0_i32_0 = arith.constant 0 : i32
    %c0_i32_1 = arith.constant 0 : i32
    return %arg0, %arg1, %c0_i32, %c0_i32_0 : i32, i32, i32, i32
  }
}

module attributes {stable_mosaic.version = 11 : i64} {
  func.func @_bn_relu_kernel(%arg0: i32, %arg1: memref<2x1024xf32, #tpu.memory_space<vmem>>, %arg2: memref<1x1024xf32, #tpu.memory_space<vmem>>, %arg3: memref<1x1024xf32, #tpu.memory_space<vmem>>, %arg4: memref<2x1024xf32, #tpu.memory_space<vmem>>) attributes {dimension_semantics = [#tpu.dimension_semantics<parallel>], iteration_bounds = array<i64: 1>, scalar_prefetch = 0 : i64, scratch_operands = 0 : i64, tpu.core_type = #tpu.core_type<tc>, window_params = [{transform_indices = @transform_0, window_bounds = array<i64: 2, 1024>}, {pipeline_mode = #tpu.pipeline_mode<synchronous>, transform_indices = @transform_1, window_bounds = array<i64: 1, 1024>}, {pipeline_mode = #tpu.pipeline_mode<synchronous>, transform_indices = @transform_2, window_bounds = array<i64: 1, 1024>}, {transform_indices = @transform_3, window_bounds = array<i64: 2, 1024>}]} {
    %c0 = arith.constant 0 : index
    %c0_0 = arith.constant 0 : index
    %0 = vector.load %arg1[%c0, %c0_0] : memref<2x1024xf32, #tpu.memory_space<vmem>>, vector<2x1024xf32>
    %c0_1 = arith.constant 0 : index
    %c0_2 = arith.constant 0 : index
    %1 = vector.load %arg2[%c0_1, %c0_2] : memref<1x1024xf32, #tpu.memory_space<vmem>>, vector<1x1024xf32>
    %2 = vector.broadcast %1 : vector<1x1024xf32> to vector<2x1024xf32>
    %3 = arith.mulf %0, %2 : vector<2x1024xf32>
    %c0_3 = arith.constant 0 : index
    %c0_4 = arith.constant 0 : index
    %4 = vector.load %arg3[%c0_3, %c0_4] : memref<1x1024xf32, #tpu.memory_space<vmem>>, vector<1x1024xf32>
    %5 = vector.broadcast %4 : vector<1x1024xf32> to vector<2x1024xf32>
    %6 = arith.addf %3, %5 : vector<2x1024xf32>
    %cst = arith.constant 0.000000e+00 : f32
    %7 = vector.broadcast %cst : f32 to vector<2x1024xf32>
    %8 = arith.maximumf %6, %7 : vector<2x1024xf32>
    %c0_5 = arith.constant 0 : index
    %c0_6 = arith.constant 0 : index
    %9 = vector.load %arg4[%c0_5, %c0_6] : memref<2x1024xf32, #tpu.memory_space<vmem>>, vector<2x1024xf32>
    tpu.vector_store %arg4[%c0_5, %c0_6], %8 {strides = array<i32>} : memref<2x1024xf32, #tpu.memory_space<vmem>>, vector<2x1024xf32>,
    return
  }
  func.func @transform_0(%arg0: i32) -> (i32, i32) {
    %c0_i32 = arith.constant 0 : i32
    %c0_i32_0 = arith.constant 0 : i32
    return %arg0, %c0_i32 : i32, i32
  }
  func.func @transform_1(%arg0: i32) -> (i32, i32) {
    %c0_i32 = arith.constant 0 : i32
    %c0_i32_0 = arith.constant 0 : i32
    %c0_i32_1 = arith.constant 0 : i32
    return %c0_i32, %c0_i32_0 : i32, i32
  }
  func.func @transform_2(%arg0: i32) -> (i32, i32) {
    %c0_i32 = arith.constant 0 : i32
    %c0_i32_0 = arith.constant 0 : i32
    %c0_i32_1 = arith.constant 0 : i32
    return %c0_i32, %c0_i32_0 : i32, i32
  }
  func.func @transform_3(%arg0: i32) -> (i32, i32) {
    %c0_i32 = arith.constant 0 : i32
    %c0_i32_0 = arith.constant 0 : i32
    return %arg0, %c0_i32 : i32, i32
  }
}

module attributes {stable_mosaic.version = 11 : i64} {
  func.func @_matmul_stats_kernel(%arg0: i32, %arg1: i32, %arg2: memref<1x32x256xbf16, #tpu.memory_space<vmem>>, %arg3: memref<1x256x32xbf16, #tpu.memory_space<vmem>>, %arg4: memref<1x32x32xf32, #tpu.memory_space<vmem>>, %arg5: memref<1x1x2x32xf32, #tpu.memory_space<vmem>>) attributes {dimension_semantics = [#tpu.dimension_semantics<parallel>, #tpu.dimension_semantics<parallel>], iteration_bounds = array<i64: 4, 1>, scalar_prefetch = 0 : i64, scratch_operands = 0 : i64, tpu.core_type = #tpu.core_type<tc>, window_params = [{transform_indices = @transform_0, window_bounds = array<i64: 1, 32, 256>}, {transform_indices = @transform_1, window_bounds = array<i64: 1, 256, 32>}, {transform_indices = @transform_2, window_bounds = array<i64: 1, 32, 32>}, {transform_indices = @transform_3, window_bounds = array<i64: 1, 1, 2, 32>}]} {
    %c0 = arith.constant 0 : index
    %c0_0 = arith.constant 0 : index
    %c0_1 = arith.constant 0 : index
    %0 = vector.load %arg2[%c0, %c0_0, %c0_1] : memref<1x32x256xbf16, #tpu.memory_space<vmem>>, vector<1x32x256xbf16>
    %1 = vector.shape_cast %0 : vector<1x32x256xbf16> to vector<32x256xbf16>
    %c0_2 = arith.constant 0 : index
    %c0_3 = arith.constant 0 : index
    %c0_4 = arith.constant 0 : index
    %2 = vector.load %arg3[%c0_2, %c0_3, %c0_4] : memref<1x256x32xbf16, #tpu.memory_space<vmem>>, vector<1x256x32xbf16>
    %3 = vector.shape_cast %2 : vector<1x256x32xbf16> to vector<256x32xbf16>
    %cst = arith.constant dense<0.000000e+00> : vector<32x32xf32>
    %4 = tpu.matmul %1, %3, %cst {dimension_numbers = #tpu.dot_dimension_numbers<[1], [0], [0], [1], [0, 0, 1, 1], [], []>} : vector<32x256xbf16>, vector<256x32xbf16>, vector<32x32xf32> -> vector<32x32xf32>
    %c0_5 = arith.constant 0 : index
    %c0_6 = arith.constant 0 : index
    %c0_7 = arith.constant 0 : index
    %5 = vector.load %arg4[%c0_5, %c0_6, %c0_7] : memref<1x32x32xf32, #tpu.memory_space<vmem>>, vector<1x32x32xf32>
    %6 = vector.shape_cast %5 : vector<1x32x32xf32> to vector<32x32xf32>
    %7 = vector.shape_cast %4 : vector<32x32xf32> to vector<1x32x32xf32>
    tpu.vector_store %arg4[%c0_5, %c0_6, %c0_7], %7 {strides = array<i32>} : memref<1x32x32xf32, #tpu.memory_space<vmem>>, vector<1x32x32xf32>,
    %cst_8 = arith.constant dense<0.000000e+00> : vector<32xf32>
    %8 = vector.multi_reduction <add>, %4, %cst_8 [0] : vector<32x32xf32> to vector<32xf32>
    %9 = vector.shape_cast %8 : vector<32xf32> to vector<1x32xf32>
    %c0_9 = arith.constant 0 : index
    %c0_10 = arith.constant 0 : index
    %c0_11 = arith.constant 0 : index
    %c0_12 = arith.constant 0 : index
    %10 = vector.load %arg5[%c0_9, %c0_10, %c0_11, %c0_12] : memref<1x1x2x32xf32, #tpu.memory_space<vmem>>, vector<1x1x1x32xf32>
    %11 = vector.shape_cast %10 : vector<1x1x1x32xf32> to vector<1x32xf32>
    %12 = vector.shape_cast %9 : vector<1x32xf32> to vector<1x1x1x32xf32>
    tpu.vector_store %arg5[%c0_9, %c0_10, %c0_11, %c0_12], %12 {strides = array<i32>} : memref<1x1x2x32xf32, #tpu.memory_space<vmem>>, vector<1x1x1x32xf32>,
    %13 = arith.mulf %4, %4 : vector<32x32xf32>
    %cst_13 = arith.constant dense<0.000000e+00> : vector<32xf32>
    %14 = vector.multi_reduction <add>, %13, %cst_13 [0] : vector<32x32xf32> to vector<32xf32>
    %15 = vector.shape_cast %14 : vector<32xf32> to vector<1x32xf32>
    %c0_14 = arith.constant 0 : index
    %c0_15 = arith.constant 0 : index
    %c1 = arith.constant 1 : index
    %c0_16 = arith.constant 0 : index
    %16 = vector.load %arg5[%c0_14, %c0_15, %c1, %c0_16] : memref<1x1x2x32xf32, #tpu.memory_space<vmem>>, vector<1x1x1x32xf32>
    %17 = vector.shape_cast %16 : vector<1x1x1x32xf32> to vector<1x32xf32>
    %18 = vector.shape_cast %15 : vector<1x32xf32> to vector<1x1x1x32xf32>
    tpu.vector_store %arg5[%c0_14, %c0_15, %c1, %c0_16], %18 {strides = array<i32>} : memref<1x1x2x32xf32, #tpu.memory_space<vmem>>, vector<1x1x1x32xf32>,
    return
  }
  func.func @transform_0(%arg0: i32, %arg1: i32) -> (i32, i32, i32) {
    %c0_i32 = arith.constant 0 : i32
    %c0_i32_0 = arith.constant 0 : i32
    return %arg0, %arg1, %c0_i32 : i32, i32, i32
  }
  func.func @transform_1(%arg0: i32, %arg1: i32) -> (i32, i32, i32) {
    %c0_i32 = arith.constant 0 : i32
    %c0_i32_0 = arith.constant 0 : i32
    %c0_i32_1 = arith.constant 0 : i32
    return %arg0, %c0_i32, %c0_i32_0 : i32, i32, i32
  }
  func.func @transform_2(%arg0: i32, %arg1: i32) -> (i32, i32, i32) {
    %c0_i32 = arith.constant 0 : i32
    %c0_i32_0 = arith.constant 0 : i32
    return %arg0, %arg1, %c0_i32 : i32, i32, i32
  }
  func.func @transform_3(%arg0: i32, %arg1: i32) -> (i32, i32, i32, i32) {
    %c0_i32 = arith.constant 0 : i32
    %c0_i32_0 = arith.constant 0 : i32
    %c0_i32_1 = arith.constant 0 : i32
    return %arg0, %arg1, %c0_i32, %c0_i32_0 : i32, i32, i32, i32
  }
}

module attributes {stable_mosaic.version = 11 : i64} {
  func.func @_bn_relu_kernel(%arg0: i32, %arg1: memref<128x32xf32, #tpu.memory_space<vmem>>, %arg2: memref<1x32xf32, #tpu.memory_space<vmem>>, %arg3: memref<1x32xf32, #tpu.memory_space<vmem>>, %arg4: memref<128x32xf32, #tpu.memory_space<vmem>>) attributes {dimension_semantics = [#tpu.dimension_semantics<parallel>], iteration_bounds = array<i64: 1>, scalar_prefetch = 0 : i64, scratch_operands = 0 : i64, tpu.core_type = #tpu.core_type<tc>, window_params = [{transform_indices = @transform_0, window_bounds = array<i64: 128, 32>}, {pipeline_mode = #tpu.pipeline_mode<synchronous>, transform_indices = @transform_1, window_bounds = array<i64: 1, 32>}, {pipeline_mode = #tpu.pipeline_mode<synchronous>, transform_indices = @transform_2, window_bounds = array<i64: 1, 32>}, {transform_indices = @transform_3, window_bounds = array<i64: 128, 32>}]} {
    %c0 = arith.constant 0 : index
    %c0_0 = arith.constant 0 : index
    %0 = vector.load %arg1[%c0, %c0_0] : memref<128x32xf32, #tpu.memory_space<vmem>>, vector<128x32xf32>
    %c0_1 = arith.constant 0 : index
    %c0_2 = arith.constant 0 : index
    %1 = vector.load %arg2[%c0_1, %c0_2] : memref<1x32xf32, #tpu.memory_space<vmem>>, vector<1x32xf32>
    %2 = vector.broadcast %1 : vector<1x32xf32> to vector<128x32xf32>
    %3 = arith.mulf %0, %2 : vector<128x32xf32>
    %c0_3 = arith.constant 0 : index
    %c0_4 = arith.constant 0 : index
    %4 = vector.load %arg3[%c0_3, %c0_4] : memref<1x32xf32, #tpu.memory_space<vmem>>, vector<1x32xf32>
    %5 = vector.broadcast %4 : vector<1x32xf32> to vector<128x32xf32>
    %6 = arith.addf %3, %5 : vector<128x32xf32>
    %cst = arith.constant 0.000000e+00 : f32
    %7 = vector.broadcast %cst : f32 to vector<128x32xf32>
    %8 = arith.maximumf %6, %7 : vector<128x32xf32>
    %c0_5 = arith.constant 0 : index
    %c0_6 = arith.constant 0 : index
    %9 = vector.load %arg4[%c0_5, %c0_6] : memref<128x32xf32, #tpu.memory_space<vmem>>, vector<128x32xf32>
    tpu.vector_store %arg4[%c0_5, %c0_6], %8 {strides = array<i32>} : memref<128x32xf32, #tpu.memory_space<vmem>>, vector<128x32xf32>,
    return
  }
  func.func @transform_0(%arg0: i32) -> (i32, i32) {
    %c0_i32 = arith.constant 0 : i32
    %c0_i32_0 = arith.constant 0 : i32
    return %arg0, %c0_i32 : i32, i32
  }
  func.func @transform_1(%arg0: i32) -> (i32, i32) {
    %c0_i32 = arith.constant 0 : i32
    %c0_i32_0 = arith.constant 0 : i32
    %c0_i32_1 = arith.constant 0 : i32
    return %c0_i32, %c0_i32_0 : i32, i32
  }
  func.func @transform_2(%arg0: i32) -> (i32, i32) {
    %c0_i32 = arith.constant 0 : i32
    %c0_i32_0 = arith.constant 0 : i32
    %c0_i32_1 = arith.constant 0 : i32
    return %c0_i32, %c0_i32_0 : i32, i32
  }
  func.func @transform_3(%arg0: i32) -> (i32, i32) {
    %c0_i32 = arith.constant 0 : i32
    %c0_i32_0 = arith.constant 0 : i32
    return %arg0, %c0_i32 : i32, i32
  }
}

module attributes {stable_mosaic.version = 11 : i64} {
  func.func @_matmul_stats_kernel(%arg0: i32, %arg1: i32, %arg2: memref<1x128x128xbf16, #tpu.memory_space<vmem>>, %arg3: memref<1x128x16xbf16, #tpu.memory_space<vmem>>, %arg4: memref<1x128x16xf32, #tpu.memory_space<vmem>>, %arg5: memref<1x1x2x16xf32, #tpu.memory_space<vmem>>) attributes {dimension_semantics = [#tpu.dimension_semantics<parallel>, #tpu.dimension_semantics<parallel>], iteration_bounds = array<i64: 4, 1>, scalar_prefetch = 0 : i64, scratch_operands = 0 : i64, tpu.core_type = #tpu.core_type<tc>, window_params = [{transform_indices = @transform_0, window_bounds = array<i64: 1, 128, 128>}, {transform_indices = @transform_1, window_bounds = array<i64: 1, 128, 16>}, {transform_indices = @transform_2, window_bounds = array<i64: 1, 128, 16>}, {transform_indices = @transform_3, window_bounds = array<i64: 1, 1, 2, 16>}]} {
    %c0 = arith.constant 0 : index
    %c0_0 = arith.constant 0 : index
    %c0_1 = arith.constant 0 : index
    %0 = vector.load %arg2[%c0, %c0_0, %c0_1] : memref<1x128x128xbf16, #tpu.memory_space<vmem>>, vector<1x128x128xbf16>
    %1 = vector.shape_cast %0 : vector<1x128x128xbf16> to vector<128x128xbf16>
    %c0_2 = arith.constant 0 : index
    %c0_3 = arith.constant 0 : index
    %c0_4 = arith.constant 0 : index
    %2 = vector.load %arg3[%c0_2, %c0_3, %c0_4] : memref<1x128x16xbf16, #tpu.memory_space<vmem>>, vector<1x128x16xbf16>
    %3 = vector.shape_cast %2 : vector<1x128x16xbf16> to vector<128x16xbf16>
    %cst = arith.constant dense<0.000000e+00> : vector<128x16xf32>
    %4 = tpu.matmul %1, %3, %cst {dimension_numbers = #tpu.dot_dimension_numbers<[1], [0], [0], [1], [0, 0, 1, 1], [], []>} : vector<128x128xbf16>, vector<128x16xbf16>, vector<128x16xf32> -> vector<128x16xf32>
    %c0_5 = arith.constant 0 : index
    %c0_6 = arith.constant 0 : index
    %c0_7 = arith.constant 0 : index
    %5 = vector.load %arg4[%c0_5, %c0_6, %c0_7] : memref<1x128x16xf32, #tpu.memory_space<vmem>>, vector<1x128x16xf32>
    %6 = vector.shape_cast %5 : vector<1x128x16xf32> to vector<128x16xf32>
    %7 = vector.shape_cast %4 : vector<128x16xf32> to vector<1x128x16xf32>
    tpu.vector_store %arg4[%c0_5, %c0_6, %c0_7], %7 {strides = array<i32>} : memref<1x128x16xf32, #tpu.memory_space<vmem>>, vector<1x128x16xf32>,
    %cst_8 = arith.constant dense<0.000000e+00> : vector<16xf32>
    %8 = vector.multi_reduction <add>, %4, %cst_8 [0] : vector<128x16xf32> to vector<16xf32>
    %9 = vector.shape_cast %8 : vector<16xf32> to vector<1x16xf32>
    %c0_9 = arith.constant 0 : index
    %c0_10 = arith.constant 0 : index
    %c0_11 = arith.constant 0 : index
    %c0_12 = arith.constant 0 : index
    %10 = vector.load %arg5[%c0_9, %c0_10, %c0_11, %c0_12] : memref<1x1x2x16xf32, #tpu.memory_space<vmem>>, vector<1x1x1x16xf32>
    %11 = vector.shape_cast %10 : vector<1x1x1x16xf32> to vector<1x16xf32>
    %12 = vector.shape_cast %9 : vector<1x16xf32> to vector<1x1x1x16xf32>
    tpu.vector_store %arg5[%c0_9, %c0_10, %c0_11, %c0_12], %12 {strides = array<i32>} : memref<1x1x2x16xf32, #tpu.memory_space<vmem>>, vector<1x1x1x16xf32>,
    %13 = arith.mulf %4, %4 : vector<128x16xf32>
    %cst_13 = arith.constant dense<0.000000e+00> : vector<16xf32>
    %14 = vector.multi_reduction <add>, %13, %cst_13 [0] : vector<128x16xf32> to vector<16xf32>
    %15 = vector.shape_cast %14 : vector<16xf32> to vector<1x16xf32>
    %c0_14 = arith.constant 0 : index
    %c0_15 = arith.constant 0 : index
    %c1 = arith.constant 1 : index
    %c0_16 = arith.constant 0 : index
    %16 = vector.load %arg5[%c0_14, %c0_15, %c1, %c0_16] : memref<1x1x2x16xf32, #tpu.memory_space<vmem>>, vector<1x1x1x16xf32>
    %17 = vector.shape_cast %16 : vector<1x1x1x16xf32> to vector<1x16xf32>
    %18 = vector.shape_cast %15 : vector<1x16xf32> to vector<1x1x1x16xf32>
    tpu.vector_store %arg5[%c0_14, %c0_15, %c1, %c0_16], %18 {strides = array<i32>} : memref<1x1x2x16xf32, #tpu.memory_space<vmem>>, vector<1x1x1x16xf32>,
    return
  }
  func.func @transform_0(%arg0: i32, %arg1: i32) -> (i32, i32, i32) {
    %c0_i32 = arith.constant 0 : i32
    %c0_i32_0 = arith.constant 0 : i32
    return %arg0, %arg1, %c0_i32 : i32, i32, i32
  }
  func.func @transform_1(%arg0: i32, %arg1: i32) -> (i32, i32, i32) {
    %c0_i32 = arith.constant 0 : i32
    %c0_i32_0 = arith.constant 0 : i32
    %c0_i32_1 = arith.constant 0 : i32
    return %arg0, %c0_i32, %c0_i32_0 : i32, i32, i32
  }
  func.func @transform_2(%arg0: i32, %arg1: i32) -> (i32, i32, i32) {
    %c0_i32 = arith.constant 0 : i32
    %c0_i32_0 = arith.constant 0 : i32
    return %arg0, %arg1, %c0_i32 : i32, i32, i32
  }
  func.func @transform_3(%arg0: i32, %arg1: i32) -> (i32, i32, i32, i32) {
    %c0_i32 = arith.constant 0 : i32
    %c0_i32_0 = arith.constant 0 : i32
    %c0_i32_1 = arith.constant 0 : i32
    return %arg0, %arg1, %c0_i32, %c0_i32_0 : i32, i32, i32, i32
  }
}

module attributes {stable_mosaic.version = 11 : i64} {
  func.func @_bn_relu_kernel(%arg0: i32, %arg1: memref<512x16xf32, #tpu.memory_space<vmem>>, %arg2: memref<1x16xf32, #tpu.memory_space<vmem>>, %arg3: memref<1x16xf32, #tpu.memory_space<vmem>>, %arg4: memref<512x16xf32, #tpu.memory_space<vmem>>) attributes {dimension_semantics = [#tpu.dimension_semantics<parallel>], iteration_bounds = array<i64: 1>, scalar_prefetch = 0 : i64, scratch_operands = 0 : i64, tpu.core_type = #tpu.core_type<tc>, window_params = [{transform_indices = @transform_0, window_bounds = array<i64: 512, 16>}, {pipeline_mode = #tpu.pipeline_mode<synchronous>, transform_indices = @transform_1, window_bounds = array<i64: 1, 16>}, {pipeline_mode = #tpu.pipeline_mode<synchronous>, transform_indices = @transform_2, window_bounds = array<i64: 1, 16>}, {transform_indices = @transform_3, window_bounds = array<i64: 512, 16>}]} {
    %c0 = arith.constant 0 : index
    %c0_0 = arith.constant 0 : index
    %0 = vector.load %arg1[%c0, %c0_0] : memref<512x16xf32, #tpu.memory_space<vmem>>, vector<512x16xf32>
    %c0_1 = arith.constant 0 : index
    %c0_2 = arith.constant 0 : index
    %1 = vector.load %arg2[%c0_1, %c0_2] : memref<1x16xf32, #tpu.memory_space<vmem>>, vector<1x16xf32>
    %2 = vector.broadcast %1 : vector<1x16xf32> to vector<512x16xf32>
    %3 = arith.mulf %0, %2 : vector<512x16xf32>
    %c0_3 = arith.constant 0 : index
    %c0_4 = arith.constant 0 : index
    %4 = vector.load %arg3[%c0_3, %c0_4] : memref<1x16xf32, #tpu.memory_space<vmem>>, vector<1x16xf32>
    %5 = vector.broadcast %4 : vector<1x16xf32> to vector<512x16xf32>
    %6 = arith.addf %3, %5 : vector<512x16xf32>
    %cst = arith.constant 0.000000e+00 : f32
    %7 = vector.broadcast %cst : f32 to vector<512x16xf32>
    %8 = arith.maximumf %6, %7 : vector<512x16xf32>
    %c0_5 = arith.constant 0 : index
    %c0_6 = arith.constant 0 : index
    %9 = vector.load %arg4[%c0_5, %c0_6] : memref<512x16xf32, #tpu.memory_space<vmem>>, vector<512x16xf32>
    tpu.vector_store %arg4[%c0_5, %c0_6], %8 {strides = array<i32>} : memref<512x16xf32, #tpu.memory_space<vmem>>, vector<512x16xf32>,
    return
  }
  func.func @transform_0(%arg0: i32) -> (i32, i32) {
    %c0_i32 = arith.constant 0 : i32
    %c0_i32_0 = arith.constant 0 : i32
    return %arg0, %c0_i32 : i32, i32
  }
  func.func @transform_1(%arg0: i32) -> (i32, i32) {
    %c0_i32 = arith.constant 0 : i32
    %c0_i32_0 = arith.constant 0 : i32
    %c0_i32_1 = arith.constant 0 : i32
    return %c0_i32, %c0_i32_0 : i32, i32
  }
  func.func @transform_2(%arg0: i32) -> (i32, i32) {
    %c0_i32 = arith.constant 0 : i32
    %c0_i32_0 = arith.constant 0 : i32
    %c0_i32_1 = arith.constant 0 : i32
    return %c0_i32, %c0_i32_0 : i32, i32
  }
  func.func @transform_3(%arg0: i32) -> (i32, i32) {
    %c0_i32 = arith.constant 0 : i32
    %c0_i32_0 = arith.constant 0 : i32
    return %arg0, %c0_i32 : i32, i32
  }
}

module attributes {stable_mosaic.version = 11 : i64} {
  func.func @_matmul_stats_kernel(%arg0: i32, %arg1: i32, %arg2: memref<1x512x64xbf16, #tpu.memory_space<vmem>>, %arg3: memref<1x64x8xbf16, #tpu.memory_space<vmem>>, %arg4: memref<1x512x8xf32, #tpu.memory_space<vmem>>, %arg5: memref<1x1x2x8xf32, #tpu.memory_space<vmem>>) attributes {dimension_semantics = [#tpu.dimension_semantics<parallel>, #tpu.dimension_semantics<parallel>], iteration_bounds = array<i64: 4, 1>, scalar_prefetch = 0 : i64, scratch_operands = 0 : i64, tpu.core_type = #tpu.core_type<tc>, window_params = [{transform_indices = @transform_0, window_bounds = array<i64: 1, 512, 64>}, {transform_indices = @transform_1, window_bounds = array<i64: 1, 64, 8>}, {transform_indices = @transform_2, window_bounds = array<i64: 1, 512, 8>}, {transform_indices = @transform_3, window_bounds = array<i64: 1, 1, 2, 8>}]} {
    %c0 = arith.constant 0 : index
    %c0_0 = arith.constant 0 : index
    %c0_1 = arith.constant 0 : index
    %0 = vector.load %arg2[%c0, %c0_0, %c0_1] : memref<1x512x64xbf16, #tpu.memory_space<vmem>>, vector<1x512x64xbf16>
    %1 = vector.shape_cast %0 : vector<1x512x64xbf16> to vector<512x64xbf16>
    %c0_2 = arith.constant 0 : index
    %c0_3 = arith.constant 0 : index
    %c0_4 = arith.constant 0 : index
    %2 = vector.load %arg3[%c0_2, %c0_3, %c0_4] : memref<1x64x8xbf16, #tpu.memory_space<vmem>>, vector<1x64x8xbf16>
    %3 = vector.shape_cast %2 : vector<1x64x8xbf16> to vector<64x8xbf16>
    %cst = arith.constant dense<0.000000e+00> : vector<512x8xf32>
    %4 = tpu.matmul %1, %3, %cst {dimension_numbers = #tpu.dot_dimension_numbers<[1], [0], [0], [1], [0, 0, 1, 1], [], []>} : vector<512x64xbf16>, vector<64x8xbf16>, vector<512x8xf32> -> vector<512x8xf32>
    %c0_5 = arith.constant 0 : index
    %c0_6 = arith.constant 0 : index
    %c0_7 = arith.constant 0 : index
    %5 = vector.load %arg4[%c0_5, %c0_6, %c0_7] : memref<1x512x8xf32, #tpu.memory_space<vmem>>, vector<1x512x8xf32>
    %6 = vector.shape_cast %5 : vector<1x512x8xf32> to vector<512x8xf32>
    %7 = vector.shape_cast %4 : vector<512x8xf32> to vector<1x512x8xf32>
    tpu.vector_store %arg4[%c0_5, %c0_6, %c0_7], %7 {strides = array<i32>} : memref<1x512x8xf32, #tpu.memory_space<vmem>>, vector<1x512x8xf32>,
    %cst_8 = arith.constant dense<0.000000e+00> : vector<8xf32>
    %8 = vector.multi_reduction <add>, %4, %cst_8 [0] : vector<512x8xf32> to vector<8xf32>
    %9 = vector.shape_cast %8 : vector<8xf32> to vector<1x8xf32>
    %c0_9 = arith.constant 0 : index
    %c0_10 = arith.constant 0 : index
    %c0_11 = arith.constant 0 : index
    %c0_12 = arith.constant 0 : index
    %10 = vector.load %arg5[%c0_9, %c0_10, %c0_11, %c0_12] : memref<1x1x2x8xf32, #tpu.memory_space<vmem>>, vector<1x1x1x8xf32>
    %11 = vector.shape_cast %10 : vector<1x1x1x8xf32> to vector<1x8xf32>
    %12 = vector.shape_cast %9 : vector<1x8xf32> to vector<1x1x1x8xf32>
    tpu.vector_store %arg5[%c0_9, %c0_10, %c0_11, %c0_12], %12 {strides = array<i32>} : memref<1x1x2x8xf32, #tpu.memory_space<vmem>>, vector<1x1x1x8xf32>,
    %13 = arith.mulf %4, %4 : vector<512x8xf32>
    %cst_13 = arith.constant dense<0.000000e+00> : vector<8xf32>
    %14 = vector.multi_reduction <add>, %13, %cst_13 [0] : vector<512x8xf32> to vector<8xf32>
    %15 = vector.shape_cast %14 : vector<8xf32> to vector<1x8xf32>
    %c0_14 = arith.constant 0 : index
    %c0_15 = arith.constant 0 : index
    %c1 = arith.constant 1 : index
    %c0_16 = arith.constant 0 : index
    %16 = vector.load %arg5[%c0_14, %c0_15, %c1, %c0_16] : memref<1x1x2x8xf32, #tpu.memory_space<vmem>>, vector<1x1x1x8xf32>
    %17 = vector.shape_cast %16 : vector<1x1x1x8xf32> to vector<1x8xf32>
    %18 = vector.shape_cast %15 : vector<1x8xf32> to vector<1x1x1x8xf32>
    tpu.vector_store %arg5[%c0_14, %c0_15, %c1, %c0_16], %18 {strides = array<i32>} : memref<1x1x2x8xf32, #tpu.memory_space<vmem>>, vector<1x1x1x8xf32>,
    return
  }
  func.func @transform_0(%arg0: i32, %arg1: i32) -> (i32, i32, i32) {
    %c0_i32 = arith.constant 0 : i32
    %c0_i32_0 = arith.constant 0 : i32
    return %arg0, %arg1, %c0_i32 : i32, i32, i32
  }
  func.func @transform_1(%arg0: i32, %arg1: i32) -> (i32, i32, i32) {
    %c0_i32 = arith.constant 0 : i32
    %c0_i32_0 = arith.constant 0 : i32
    %c0_i32_1 = arith.constant 0 : i32
    return %arg0, %c0_i32, %c0_i32_0 : i32, i32, i32
  }
  func.func @transform_2(%arg0: i32, %arg1: i32) -> (i32, i32, i32) {
    %c0_i32 = arith.constant 0 : i32
    %c0_i32_0 = arith.constant 0 : i32
    return %arg0, %arg1, %c0_i32 : i32, i32, i32
  }
  func.func @transform_3(%arg0: i32, %arg1: i32) -> (i32, i32, i32, i32) {
    %c0_i32 = arith.constant 0 : i32
    %c0_i32_0 = arith.constant 0 : i32
    %c0_i32_1 = arith.constant 0 : i32
    return %arg0, %arg1, %c0_i32, %c0_i32_0 : i32, i32, i32, i32
  }
}

module attributes {stable_mosaic.version = 11 : i64} {
  func.func @_bn_relu_kernel(%arg0: i32, %arg1: memref<1024x8xf32, #tpu.memory_space<vmem>>, %arg2: memref<1x8xf32, #tpu.memory_space<vmem>>, %arg3: memref<1x8xf32, #tpu.memory_space<vmem>>, %arg4: memref<1024x8xf32, #tpu.memory_space<vmem>>) attributes {dimension_semantics = [#tpu.dimension_semantics<parallel>], iteration_bounds = array<i64: 2>, scalar_prefetch = 0 : i64, scratch_operands = 0 : i64, tpu.core_type = #tpu.core_type<tc>, window_params = [{transform_indices = @transform_0, window_bounds = array<i64: 1024, 8>}, {pipeline_mode = #tpu.pipeline_mode<synchronous>, transform_indices = @transform_1, window_bounds = array<i64: 1, 8>}, {pipeline_mode = #tpu.pipeline_mode<synchronous>, transform_indices = @transform_2, window_bounds = array<i64: 1, 8>}, {transform_indices = @transform_3, window_bounds = array<i64: 1024, 8>}]} {
    %c0 = arith.constant 0 : index
    %c0_0 = arith.constant 0 : index
    %0 = vector.load %arg1[%c0, %c0_0] : memref<1024x8xf32, #tpu.memory_space<vmem>>, vector<1024x8xf32>
    %c0_1 = arith.constant 0 : index
    %c0_2 = arith.constant 0 : index
    %1 = vector.load %arg2[%c0_1, %c0_2] : memref<1x8xf32, #tpu.memory_space<vmem>>, vector<1x8xf32>
    %2 = vector.broadcast %1 : vector<1x8xf32> to vector<1024x8xf32>
    %3 = arith.mulf %0, %2 : vector<1024x8xf32>
    %c0_3 = arith.constant 0 : index
    %c0_4 = arith.constant 0 : index
    %4 = vector.load %arg3[%c0_3, %c0_4] : memref<1x8xf32, #tpu.memory_space<vmem>>, vector<1x8xf32>
    %5 = vector.broadcast %4 : vector<1x8xf32> to vector<1024x8xf32>
    %6 = arith.addf %3, %5 : vector<1024x8xf32>
    %cst = arith.constant 0.000000e+00 : f32
    %7 = vector.broadcast %cst : f32 to vector<1024x8xf32>
    %8 = arith.maximumf %6, %7 : vector<1024x8xf32>
    %c0_5 = arith.constant 0 : index
    %c0_6 = arith.constant 0 : index
    %9 = vector.load %arg4[%c0_5, %c0_6] : memref<1024x8xf32, #tpu.memory_space<vmem>>, vector<1024x8xf32>
    tpu.vector_store %arg4[%c0_5, %c0_6], %8 {strides = array<i32>} : memref<1024x8xf32, #tpu.memory_space<vmem>>, vector<1024x8xf32>,
    return
  }
  func.func @transform_0(%arg0: i32) -> (i32, i32) {
    %c0_i32 = arith.constant 0 : i32
    %c0_i32_0 = arith.constant 0 : i32
    return %arg0, %c0_i32 : i32, i32
  }
  func.func @transform_1(%arg0: i32) -> (i32, i32) {
    %c0_i32 = arith.constant 0 : i32
    %c0_i32_0 = arith.constant 0 : i32
    %c0_i32_1 = arith.constant 0 : i32
    return %c0_i32, %c0_i32_0 : i32, i32
  }
  func.func @transform_2(%arg0: i32) -> (i32, i32) {
    %c0_i32 = arith.constant 0 : i32
    %c0_i32_0 = arith.constant 0 : i32
    %c0_i32_1 = arith.constant 0 : i32
    return %c0_i32, %c0_i32_0 : i32, i32
  }
  func.func @transform_3(%arg0: i32) -> (i32, i32) {
    %c0_i32 = arith.constant 0 : i32
    %c0_i32_0 = arith.constant 0 : i32
    return %arg0, %c0_i32 : i32, i32
  }
}

module attributes {stable_mosaic.version = 11 : i64} {
  func.func @_matmul_bias_tanh_kernel(%arg0: i32, %arg1: i32, %arg2: memref<1x1024x32xbf16, #tpu.memory_space<vmem>>, %arg3: memref<1x32x3xbf16, #tpu.memory_space<vmem>>, %arg4: memref<1x3xf32, #tpu.memory_space<vmem>>, %arg5: memref<1x1024x3xf32, #tpu.memory_space<vmem>>) attributes {dimension_semantics = [#tpu.dimension_semantics<parallel>, #tpu.dimension_semantics<parallel>], iteration_bounds = array<i64: 4, 2>, scalar_prefetch = 0 : i64, scratch_operands = 0 : i64, tpu.core_type = #tpu.core_type<tc>, window_params = [{transform_indices = @transform_0, window_bounds = array<i64: 1, 1024, 32>}, {transform_indices = @transform_1, window_bounds = array<i64: 1, 32, 3>}, {pipeline_mode = #tpu.pipeline_mode<synchronous>, transform_indices = @transform_2, window_bounds = array<i64: 1, 3>}, {transform_indices = @transform_3, window_bounds = array<i64: 1, 1024, 3>}]} {
    %c0 = arith.constant 0 : index
    %c0_0 = arith.constant 0 : index
    %c0_1 = arith.constant 0 : index
    %0 = vector.load %arg2[%c0, %c0_0, %c0_1] : memref<1x1024x32xbf16, #tpu.memory_space<vmem>>, vector<1x1024x32xbf16>
    %1 = vector.shape_cast %0 : vector<1x1024x32xbf16> to vector<1024x32xbf16>
    %c0_2 = arith.constant 0 : index
    %c0_3 = arith.constant 0 : index
    %c0_4 = arith.constant 0 : index
    %2 = vector.load %arg3[%c0_2, %c0_3, %c0_4] : memref<1x32x3xbf16, #tpu.memory_space<vmem>>, vector<1x32x3xbf16>
    %3 = vector.shape_cast %2 : vector<1x32x3xbf16> to vector<32x3xbf16>
    %cst = arith.constant dense<0.000000e+00> : vector<1024x3xf32>
    %4 = tpu.matmul %1, %3, %cst {dimension_numbers = #tpu.dot_dimension_numbers<[1], [0], [0], [1], [0, 0, 1, 1], [], []>} : vector<1024x32xbf16>, vector<32x3xbf16>, vector<1024x3xf32> -> vector<1024x3xf32>
    %c0_5 = arith.constant 0 : index
    %c0_6 = arith.constant 0 : index
    %5 = vector.load %arg4[%c0_5, %c0_6] : memref<1x3xf32, #tpu.memory_space<vmem>>, vector<1x3xf32>
    %6 = vector.broadcast %5 : vector<1x3xf32> to vector<1024x3xf32>
    %7 = arith.addf %4, %6 : vector<1024x3xf32>
    %8 = math.tanh %7 : vector<1024x3xf32>
    %c0_7 = arith.constant 0 : index
    %c0_8 = arith.constant 0 : index
    %c0_9 = arith.constant 0 : index
    %9 = vector.load %arg5[%c0_7, %c0_8, %c0_9] : memref<1x1024x3xf32, #tpu.memory_space<vmem>>, vector<1x1024x3xf32>
    %10 = vector.shape_cast %9 : vector<1x1024x3xf32> to vector<1024x3xf32>
    %11 = vector.shape_cast %8 : vector<1024x3xf32> to vector<1x1024x3xf32>
    tpu.vector_store %arg5[%c0_7, %c0_8, %c0_9], %11 {strides = array<i32>} : memref<1x1024x3xf32, #tpu.memory_space<vmem>>, vector<1x1024x3xf32>,
    return
  }
  func.func @transform_0(%arg0: i32, %arg1: i32) -> (i32, i32, i32) {
    %c0_i32 = arith.constant 0 : i32
    %c0_i32_0 = arith.constant 0 : i32
    return %arg0, %arg1, %c0_i32 : i32, i32, i32
  }
  func.func @transform_1(%arg0: i32, %arg1: i32) -> (i32, i32, i32) {
    %c0_i32 = arith.constant 0 : i32
    %c0_i32_0 = arith.constant 0 : i32
    %c0_i32_1 = arith.constant 0 : i32
    return %arg0, %c0_i32, %c0_i32_0 : i32, i32, i32
  }
  func.func @transform_2(%arg0: i32, %arg1: i32) -> (i32, i32) {
    %c0_i32 = arith.constant 0 : i32
    %c0_i32_0 = arith.constant 0 : i32
    %c0_i32_1 = arith.constant 0 : i32
    return %c0_i32, %c0_i32_0 : i32, i32
  }
  func.func @transform_3(%arg0: i32, %arg1: i32) -> (i32, i32, i32) {
    %c0_i32 = arith.constant 0 : i32
    %c0_i32_0 = arith.constant 0 : i32
    return %arg0, %arg1, %c0_i32 : i32, i32, i32
  }
}

</mosaic_0001>

<llo_original>
// kernel: tile.13
$region0: #{tile.13}
  #allocation0 [shape = 's32[1]{0}', space=sflag, size = 0x4, scoped, tag = 'scoped memory for tile.13']
  %s0 = inlined_call_operand.vmem [shape: f32[64], index: 0, kind: input, shape index: {}]
  %s1 = inlined_call_operand.vmem [shape: f32[16,64], index: 1, kind: output, shape index: {}]
  // Predicated region
  $region2: #{tile.13} parent=0 // pred_check
    _
  $region3: #{tile.13} parent=0 // pred_check_branch
    %3 = sbr.rel (0) target = $region5
  $region4: #{tile.13} parent=0 // pred_region
    _
  $region5: #{tile.13} parent=0 // pred_fallthru
    _
  %v4 = vld [vmem:[%s0] ss:$0 sm:$0xff]
  %5 = vst [vmem:[%s1] sm:$0xff] %v4
  %s6 = scalar_lea.vmem %s1, 8
  %7 = vst [vmem:[%s6] sm:$0xff] %v4

// kernel: tile.18
$region0: #{tile.18}
  %s0 = inlined_call_operand.vmem [shape: f32[16,64], index: 0, kind: input, shape index: {}]
  %s1 = inlined_call_operand.vmem [shape: f32[1,1024], index: 1, kind: output, shape index: {}]
  $region1: #{tile.18} parent=0
    #allocation0 [shape = 'u8[32768]{0}', space=vmem, size = 0x8000, scoped, tag = 'scoped mem for output reshape']
    %v2 = vld [vmem:[%s0] ss:$2 sm:$0xff]
    %vm3 = vcmask 523264
    %4 = vst.msk [vmem:[#allocation0] ss:$8 sm:$0xf] %vm3, %v2
    %5 = vst.msk [vmem:[#allocation0] ss:$8 sm:$0xf0] %vm3, %v2
    %s6 = scalar_lea.vmem %s0, 1
    %v7 = vld [vmem:[%s6] ss:$2 sm:$0xff]
    %8 = vrot.lane.b32.xlu0 %v7, 64
    %v9 = vpop.permute.xlu0 %8
    %vm10 = vcmask 1048064
    %11 = vst.msk [vmem:[#allocation0] ss:$8 sm:$0xf] %vm10, %v9
    %12 = vst.msk [vmem:[#allocation0] ss:$8 sm:$0xf0] %vm10, %v9
    %s14 = sshll.u32 1, 1
    %s15 = ssub.s32 %s14, 1
    %v17 = vld [vmem:[#allocation0] sm:%s15]
    %s18 = sshll.u32 1, 1
    %s19 = ssub.s32 %s18, 1
    %20 = vst [vmem:[%s1] sm:%s19] %v17
    %s21 = scalar_lea.vmem [#allocation0], 8
    %v22 = vld [vmem:[%s21] sm:%s15]
    %s23 = sshll.u32 1, 1
    %s24 = ssub.s32 %s23, 1
    %s25 = scalar_lea.vmem %s1, 1
    %26 = vst [vmem:[%s25] sm:%s24] %v22
    %s27 = scalar_lea.vmem [#allocation0], 16
    %v28 = vld [vmem:[%s27] sm:%s15]
    %s29 = sshll.u32 1, 1
    %s30 = ssub.s32 %s29, 1
    %s31 = smul.addr 1, 2
    %s32 = scalar_lea.vmem %s1, %s31
    %33 = vst [vmem:[%s32] sm:%s30] %v28
    %s34 = scalar_lea.vmem [#allocation0], 24
    %v35 = vld [vmem:[%s34] sm:%s15]
    %s36 = sshll.u32 1, 1
    %s37 = ssub.s32 %s36, 1
    %s38 = smul.addr 1, 3
    %s39 = scalar_lea.vmem %s1, %s38
    %40 = vst [vmem:[%s39] sm:%s37] %v35
    %s41 = scalar_lea.vmem [#allocation0], 32
    %v42 = vld [vmem:[%s41] sm:%s15]
    %s43 = sshll.u32 1, 1
    %s44 = ssub.s32 %s43, 1
    %s45 = smul.addr 1, 4
    %s46 = scalar_lea.vmem %s1, %s45
    %47 = vst [vmem:[%s46] sm:%s44] %v42
    %s48 = scalar_lea.vmem [#allocation0], 40
    %v49 = vld [vmem:[%s48] sm:%s15]
    %s50 = sshll.u32 1, 1
    %s51 = ssub.s32 %s50, 1
    %s52 = smul.addr 1, 5
    %s53 = scalar_lea.vmem %s1, %s52
    %54 = vst [vmem:[%s53] sm:%s51] %v49
    %s55 = scalar_lea.vmem [#allocation0], 48
    %v56 = vld [vmem:[%s55] sm:%s15]
    %s57 = sshll.u32 1, 1
    %s58 = ssub.s32 %s57, 1
    %s59 = smul.addr 1, 6
    %s60 = scalar_lea.vmem %s1, %s59
    %61 = vst [vmem:[%s60] sm:%s58] %v56
    %s62 = scalar_lea.vmem [#allocation0], 56
    %v63 = vld [vmem:[%s62] sm:%s15]
    %s64 = sshll.u32 1, 1
    %s65 = ssub.s32 %s64, 1
    %s66 = smul.addr 1, 7
    %s67 = scalar_lea.vmem %s1, %s66
    %68 = vst [vmem:[%s67] sm:%s65] %v63

// kernel: _generator_forward.10
$region0: #{_generator_forward.10}
  #allocation0 [shape = 'u32[]', space=smem, size = 0x4, offset = 0x4, fixed_abs, tag = 'smem constant byte address 0x4 - core index']
  #allocation1 [shape = 'u32[144,128]{1,0:T(1,128)}', space=vmem, size = 0x12000, scoped, tag = 'internal scratch']
  %s0 = inlined_call_operand.vmem [shape: f32[2,1024], index: 0, kind: input, shape index: {}]
  %s1 = inlined_call_operand.vmem [shape: f32[1,1024], index: 1, kind: input, shape index: {}]
  %s2 = inlined_call_operand.vmem [shape: f32[1,1024], index: 2, kind: input, shape index: {}]
  %s3 = inlined_call_operand.vmem [shape: f32[2,1024], index: 3, kind: output, shape index: {}]
  %s4 = sld [smem:[#allocation0]]
  $region22: #{_generator_forward.10} parent=0
    _
  %s6 = ssub.s32 1, %s4
  %s7 = scalar_select 0, %s6, %s4
  // Predicated region
  $region2: #{_generator_forward.10} parent=0 // pred_check
    _
  $region3: #{_generator_forward.10} parent=0 // pred_check_branch
    %9 = sbr.rel (0) target = $region5
  $region4: #{_generator_forward.10} parent=0 // pred_region
    _
  $region5: #{_generator_forward.10} parent=0 // pred_fallthru
    _
  // Predicated region
  $region6: #{_generator_forward.10} parent=0 // pred_check
    _
  $region7: #{_generator_forward.10} parent=0 // pred_check_branch
    %11 = sbr.rel (0) target = $region9
  $region8: #{_generator_forward.10} parent=0 // pred_region
    _
  $region9: #{_generator_forward.10} parent=0 // pred_fallthru
    _
  // Predicated region
  $region10: #{_generator_forward.10} parent=0 // pred_check
    _
  $region11: #{_generator_forward.10} parent=0 // pred_check_branch
    %13 = sbr.rel (0) target = $region13
  $region12: #{_generator_forward.10} parent=0 // pred_region
    _
  $region13: #{_generator_forward.10} parent=0 // pred_fallthru
    _
  %v14 = vld [vmem:[%s0] sm:$0xff]
  %v15 = vld [vmem:[%s0 + $0x8] sm:$0xff]
  %v16 = vld [vmem:[%s1] sm:$0xff]
  %v18 = vlaneseq
  %v19 = vshrl.u32 %v18, 7
  %v20 = vsub.s32 0, %v19
  %v21 = vrot.slane %v16, %v20
  %v22 = vlaneseq
  %v23 = vshrl.u32 %v22, 7
  %v24 = vsub.s32 1, %v23
  %v25 = vrot.slane %v16, %v24
  %v26 = vlaneseq
  %v27 = vshrl.u32 %v26, 7
  %v28 = vsub.s32 2, %v27
  %v29 = vrot.slane %v16, %v28
  %v30 = vlaneseq
  %v31 = vshrl.u32 %v30, 7
  %v32 = vsub.s32 3, %v31
  %v33 = vrot.slane %v16, %v32
  %v34 = vlaneseq
  %v35 = vshrl.u32 %v34, 7
  %v36 = vsub.s32 4, %v35
  %v37 = vrot.slane %v16, %v36
  %v38 = vlaneseq
  %v39 = vshrl.u32 %v38, 7
  %v40 = vsub.s32 5, %v39
  %v41 = vrot.slane %v16, %v40
  %v42 = vlaneseq
  %v43 = vshrl.u32 %v42, 7
  %v44 = vsub.s32 6, %v43
  %v45 = vrot.slane %v16, %v44
  %v46 = vlaneseq
  %v47 = vshrl.u32 %v46, 7
  %v48 = vsub.s32 7, %v47
  %v49 = vrot.slane %v16, %v48
  %v50 = vcombine.low %v21, %v25
  %v51 = vcombine.low %v29, %v33
  %v53 = vunpack.c.l.s4 1983009808
  %v54 = vunpack.c.0.s8 %v53
  %v55 = vlaneseq
  %v56 = vshrl.u32 %v55, 7
  %v57 = vsub.s32 %v54, %v56
  %v58 = vrot.slane %v50, %v57
  %v60 = vunpack.c.l.s4 1983009808
  %v61 = vunpack.c.0.s8 %v60
  %v62 = vlaneseq
  %v63 = vshrl.u32 %v62, 7
  %v64 = vsub.s32 %v61, %v63
  %v65 = vrot.slane %v51, %v64
  %v66 = vcombine.low %v58, %v65
  %v67 = vcombine.low %v37, %v41
  %v68 = vcombine.low %v45, %v49
  %v70 = vunpack.c.l.s4 1983009808
  %v71 = vunpack.c.0.s8 %v70
  %v72 = vlaneseq
  %v73 = vshrl.u32 %v72, 7
  %v74 = vsub.s32 %v71, %v73
  %v75 = vrot.slane %v67, %v74
  %v77 = vunpack.c.l.s4 1983009808
  %v78 = vunpack.c.0.s8 %v77
  %v79 = vlaneseq
  %v80 = vshrl.u32 %v79, 7
  %v81 = vsub.s32 %v78, %v80
  %v82 = vrot.slane %v68, %v81
  %v83 = vcombine.low %v75, %v82
  %v86 = vmul.f32 %v14, %v66
  %v87 = vmul.f32 %v15, %v83
  %v88 = vld [vmem:[%s2] sm:$0xff]
  %v90 = vlaneseq
  %v91 = vshrl.u32 %v90, 7
  %v92 = vsub.s32 0, %v91
  %v93 = vrot.slane %v88, %v92
  %v94 = vlaneseq
  %v95 = vshrl.u32 %v94, 7
  %v96 = vsub.s32 1, %v95
  %v97 = vrot.slane %v88, %v96
  %v98 = vlaneseq
  %v99 = vshrl.u32 %v98, 7
  %v100 = vsub.s32 2, %v99
  %v101 = vrot.slane %v88, %v100
  %v102 = vlaneseq
  %v103 = vshrl.u32 %v102, 7
  %v104 = vsub.s32 3, %v103
  %v105 = vrot.slane %v88, %v104
  %v106 = vlaneseq
  %v107 = vshrl.u32 %v106, 7
  %v108 = vsub.s32 4, %v107
  %v109 = vrot.slane %v88, %v108
  %v110 = vlaneseq
  %v111 = vshrl.u32 %v110, 7
  %v112 = vsub.s32 5, %v111
  %v113 = vrot.slane %v88, %v112
  %v114 = vlaneseq
  %v115 = vshrl.u32 %v114, 7
  %v116 = vsub.s32 6, %v115
  %v117 = vrot.slane %v88, %v116
  %v118 = vlaneseq
  %v119 = vshrl.u32 %v118, 7
  %v120 = vsub.s32 7, %v119
  %v121 = vrot.slane %v88, %v120
  %v122 = vcombine.low %v93, %v97
  %v123 = vcombine.low %v101, %v105
  %v125 = vunpack.c.l.s4 1983009808
  %v126 = vunpack.c.0.s8 %v125
  %v127 = vlaneseq
  %v128 = vshrl.u32 %v127, 7
  %v129 = vsub.s32 %v126, %v128
  %v130 = vrot.slane %v122, %v129
  %v132 = vunpack.c.l.s4 1983009808
  %v133 = vunpack.c.0.s8 %v132
  %v134 = vlaneseq
  %v135 = vshrl.u32 %v134, 7
  %v136 = vsub.s32 %v133, %v135
  %v137 = vrot.slane %v123, %v136
  %v138 = vcombine.low %v130, %v137
  %v139 = vcombine.low %v109, %v113
  %v140 = vcombine.low %v117, %v121
  %v142 = vunpack.c.l.s4 1983009808
  %v143 = vunpack.c.0.s8 %v142
  %v144 = vlaneseq
  %v145 = vshrl.u32 %v144, 7
  %v146 = vsub.s32 %v143, %v145
  %v147 = vrot.slane %v139, %v146
  %v149 = vunpack.c.l.s4 1983009808
  %v150 = vunpack.c.0.s8 %v149
  %v151 = vlaneseq
  %v152 = vshrl.u32 %v151, 7
  %v153 = vsub.s32 %v150, %v152
  %v154 = vrot.slane %v140, %v153
  %v155 = vcombine.low %v147, %v154
  %v158 = vadd.f32 %v86, %v138
  %v159 = vadd.f32 %v87, %v155
  %v160 = vmax.f32 %v158, 0.0
  %v161 = vmax.f32 %v159, 0.0
  %162 = vst [vmem:[%s3] sm:$0xff] %v160
  %163 = vst [vmem:[%s3 + $0x8] sm:$0xff] %v161
  // Predicated region
  $region14: #{_generator_forward.10} parent=0 // pred_check
    _
  $region15: #{_generator_forward.10} parent=0 // pred_check_branch
    %165 = sbr.rel (0) target = $region17
  $region16: #{_generator_forward.10} parent=0 // pred_region
    _
  $region17: #{_generator_forward.10} parent=0 // pred_fallthru
    _
  // Predicated region
  $region18: #{_generator_forward.10} parent=0 // pred_check
    _
  $region19: #{_generator_forward.10} parent=0 // pred_check_branch
    %167 = sbr.rel (0) target = $region21
  $region20: #{_generator_forward.10} parent=0 // pred_region
    _
  $region21: #{_generator_forward.10} parent=0 // pred_fallthru
    _

// kernel: _generator_forward.9
$region0: #{_generator_forward.9}
  #allocation0 [shape = 'u32[]', space=smem, size = 0x4, offset = 0x4, fixed_abs, tag = 'smem constant byte address 0x4 - core index']
  #allocation1 [shape = 'u32[144,128]{1,0:T(1,128)}', space=vmem, size = 0x12000, scoped, tag = 'internal scratch']
  %s0 = inlined_call_operand.vmem [shape: bf16[1,2,16], index: 0, kind: input, shape index: {}]
  %s1 = inlined_call_operand.vmem [shape: bf16[1,16,1024], index: 1, kind: input, shape index: {}]
  %s2 = inlined_call_operand.vmem [shape: f32[1,2,1024], index: 2, kind: output, shape index: {0}]
  %s3 = inlined_call_operand.vmem [shape: f32[1,1,2,1024], index: 3, kind: output, shape index: {1}]
  %4 = xla_tuple %s2, %s3
  %s5 = sld [smem:[#allocation0]]
  $region26: #{_generator_forward.9} parent=0
    _
  %s7 = ssub.s32 1, %s5
  %s8 = scalar_select 0, %s7, %s5
  // Predicated region
  $region2: #{_generator_forward.9} parent=0 // pred_check
    _
  $region3: #{_generator_forward.9} parent=0 // pred_check_branch
    %10 = sbr.rel (0) target = $region5
  $region4: #{_generator_forward.9} parent=0 // pred_region
    _
  $region5: #{_generator_forward.9} parent=0 // pred_fallthru
    _
  // Predicated region
  $region6: #{_generator_forward.9} parent=0 // pred_check
    _
  $region7: #{_generator_forward.9} parent=0 // pred_check_branch
    %12 = sbr.rel (0) target = $region9
  $region8: #{_generator_forward.9} parent=0 // pred_region
    _
  $region9: #{_generator_forward.9} parent=0 // pred_fallthru
    _
  %v14 = vld [vmem:[%s0] sm:$0x1]
  %v15 = vld [vmem:[%s1] sm:$0xff]
  %v16 = vld [vmem:[%s1 + $0x8] sm:$0xff]
  %v17 = vld [vmem:[%s1 + $0x10] sm:$0xff]
  %v18 = vld [vmem:[%s1 + $0x18] sm:$0xff]
  %v19 = vld [vmem:[%s1 + $0x20] sm:$0xff]
  %v20 = vld [vmem:[%s1 + $0x28] sm:$0xff]
  %v21 = vld [vmem:[%s1 + $0x30] sm:$0xff]
  %v22 = vld [vmem:[%s1 + $0x38] sm:$0xff]
  %v31 = vunpack.c.l.b16 %v15
  %v32 = vunpack.c.h.b16 %v15
  %v33 = vunpack.c.l.b16 %v16
  %v34 = vunpack.c.h.b16 %v16
  %v35 = vunpack.c.l.b16 %v17
  %v36 = vunpack.c.h.b16 %v17
  %v37 = vunpack.c.l.b16 %v18
  %v38 = vunpack.c.h.b16 %v18
  %v39 = vunpack.c.l.b16 %v19
  %v40 = vunpack.c.h.b16 %v19
  %v41 = vunpack.c.l.b16 %v20
  %v42 = vunpack.c.h.b16 %v20
  %v43 = vunpack.c.l.b16 %v21
  %v44 = vunpack.c.h.b16 %v21
  %v45 = vunpack.c.l.b16 %v22
  %v46 = vunpack.c.h.b16 %v22
  %v47 = vpack.c.b16 %v39, %v31
  %v48 = vpack.c.b16 %v40, %v32
  %v49 = vpack.c.b16 %v41, %v33
  %v50 = vpack.c.b16 %v42, %v34
  %v51 = vpack.c.b16 %v43, %v35
  %v52 = vpack.c.b16 %v44, %v36
  %v53 = vpack.c.b16 %v45, %v37
  %v54 = vpack.c.b16 %v46, %v38
  %vm63 = vcmask 130048
  %v65 = vsel %vm63, %v14, 0
  %67 = vmatprep.subr.bf16.mxu0 0
  %68 = vmatpush1.bf16.msra.mxu0 0
  %69 = vmatprep.subr.bf16.mxu0 0
  %70 = vmatpush1.bf16.msra.mxu0 0
  %71 = vmatprep.subr.bf16.mxu0 0
  %72 = vmatpush1.bf16.msra.mxu0 0
  %73 = vmatprep.subr.bf16.mxu0 0
  %74 = vmatpush1.bf16.msra.mxu0 0
  %75 = vmatprep.subr.bf16.mxu0 0
  %76 = vmatpush1.bf16.msra.mxu0 0
  %77 = vmatprep.subr.bf16.mxu0 0
  %78 = vmatpush1.bf16.msra.mxu0 0
  %79 = vmatprep.subr.bf16.mxu0 0
  %80 = vmatpush1.bf16.msra.mxu0 0
  %81 = vmatprep.subr.bf16.mxu0 %v48
  %82 = vmatpush1.bf16.msra.mxu0 %v47
  %83 = vmatprep.subr.bf16.mxu0 0
  %84 = vmatpush2.bf16.msra.mxu0 0
  %85 = vmatprep.subr.bf16.mxu0 0
  %86 = vmatpush2.bf16.msra.mxu0 0
  %87 = vmatprep.subr.bf16.mxu0 0
  %88 = vmatpush2.bf16.msra.mxu0 0
  %89 = vmatprep.subr.bf16.mxu0 0
  %90 = vmatpush2.bf16.msra.mxu0 0
  %91 = vmatprep.subr.bf16.mxu0 0
  %92 = vmatpush2.bf16.msra.mxu0 0
  %93 = vmatprep.subr.bf16.mxu0 0
  %94 = vmatpush2.bf16.msra.mxu0 0
  %95 = vmatprep.subr.bf16.mxu0 0
  %96 = vmatpush2.bf16.msra.mxu0 0
  %97 = vmatprep.subr.bf16.mxu0 0
  %98 = vmatpush2.bf16.msra.mxu0 0
  %99 = vmatprep.mubr.bf16.mxu0 0
  %100 = vmatmul.mubr.bf16.gmra.mxu0 %v65
  %v101 = vpop.f32.mrf.mxu0
  %v102 = vadd.f32 0.0, %v101
  %v103 = vpop.f32.mrf.mxu0
  %v104 = vadd.f32 0.0, %v103
  %v105 = vpop.f32.mrf.mxu0
  %v106 = vpop.f32.mrf.mxu0
  %107 = vdwg.mxu0
  %108 = vmatprep.subr.bf16.mxu0 0
  %109 = vmatpush1.bf16.msra.mxu0 0
  %110 = vmatprep.subr.bf16.mxu0 0
  %111 = vmatpush1.bf16.msra.mxu0 0
  %112 = vmatprep.subr.bf16.mxu0 0
  %113 = vmatpush1.bf16.msra.mxu0 0
  %114 = vmatprep.subr.bf16.mxu0 0
  %115 = vmatpush1.bf16.msra.mxu0 0
  %116 = vmatprep.subr.bf16.mxu0 0
  %117 = vmatpush1.bf16.msra.mxu0 0
  %118 = vmatprep.subr.bf16.mxu0 0
  %119 = vmatpush1.bf16.msra.mxu0 0
  %120 = vmatprep.subr.bf16.mxu0 0
  %121 = vmatpush1.bf16.msra.mxu0 0
  %122 = vmatprep.subr.bf16.mxu0 %v50
  %123 = vmatpush1.bf16.msra.mxu0 %v49
  %124 = vmatprep.subr.bf16.mxu0 0
  %125 = vmatpush2.bf16.msra.mxu0 0
  %126 = vmatprep.subr.bf16.mxu0 0
  %127 = vmatpush2.bf16.msra.mxu0 0
  %128 = vmatprep.subr.bf16.mxu0 0
  %129 = vmatpush2.bf16.msra.mxu0 0
  %130 = vmatprep.subr.bf16.mxu0 0
  %131 = vmatpush2.bf16.msra.mxu0 0
  %132 = vmatprep.subr.bf16.mxu0 0
  %133 = vmatpush2.bf16.msra.mxu0 0
  %134 = vmatprep.subr.bf16.mxu0 0
  %135 = vmatpush2.bf16.msra.mxu0 0
  %136 = vmatprep.subr.bf16.mxu0 0
  %137 = vmatpush2.bf16.msra.mxu0 0
  %138 = vmatprep.subr.bf16.mxu0 0
  %139 = vmatpush2.bf16.msra.mxu0 0
  %140 = vmatprep.mubr.bf16.mxu0 0
  %141 = vmatmul.mubr.bf16.gmra.mxu0 %v65
  %v142 = vpop.f32.mrf.mxu0
  %v143 = vadd.f32 0.0, %v142
  %v144 = vpop.f32.mrf.mxu0
  %v145 = vadd.f32 0.0, %v144
  %v146 = vpop.f32.mrf.mxu0
  %v147 = vpop.f32.mrf.mxu0
  %148 = vdwg.mxu0
  %149 = vmatprep.subr.bf16.mxu0 0
  %150 = vmatpush1.bf16.msra.mxu0 0
  %151 = vmatprep.subr.bf16.mxu0 0
  %152 = vmatpush1.bf16.msra.mxu0 0
  %153 = vmatprep.subr.bf16.mxu0 0
  %154 = vmatpush1.bf16.msra.mxu0 0
  %155 = vmatprep.subr.bf16.mxu0 0
  %156 = vmatpush1.bf16.msra.mxu0 0
  %157 = vmatprep.subr.bf16.mxu0 0
  %158 = vmatpush1.bf16.msra.mxu0 0
  %159 = vmatprep.subr.bf16.mxu0 0
  %160 = vmatpush1.bf16.msra.mxu0 0
  %161 = vmatprep.subr.bf16.mxu0 0
  %162 = vmatpush1.bf16.msra.mxu0 0
  %163 = vmatprep.subr.bf16.mxu0 %v52
  %164 = vmatpush1.bf16.msra.mxu0 %v51
  %165 = vmatprep.subr.bf16.mxu0 0
  %166 = vmatpush2.bf16.msra.mxu0 0
  %167 = vmatprep.subr.bf16.mxu0 0
  %168 = vmatpush2.bf16.msra.mxu0 0
  %169 = vmatprep.subr.bf16.mxu0 0
  %170 = vmatpush2.bf16.msra.mxu0 0
  %171 = vmatprep.subr.bf16.mxu0 0
  %172 = vmatpush2.bf16.msra.mxu0 0
  %173 = vmatprep.subr.bf16.mxu0 0
  %174 = vmatpush2.bf16.msra.mxu0 0
  %175 = vmatprep.subr.bf16.mxu0 0
  %176 = vmatpush2.bf16.msra.mxu0 0
  %177 = vmatprep.subr.bf16.mxu0 0
  %178 = vmatpush2.bf16.msra.mxu0 0
  %179 = vmatprep.subr.bf16.mxu0 0
  %180 = vmatpush2.bf16.msra.mxu0 0
  %181 = vmatprep.mubr.bf16.mxu0 0
  %182 = vmatmul.mubr.bf16.gmra.mxu0 %v65
  %v183 = vpop.f32.mrf.mxu0
  %v184 = vadd.f32 0.0, %v183
  %v185 = vpop.f32.mrf.mxu0
  %v186 = vadd.f32 0.0, %v185
  %v187 = vpop.f32.mrf.mxu0
  %v188 = vpop.f32.mrf.mxu0
  %189 = vdwg.mxu0
  %190 = vmatprep.subr.bf16.mxu0 0
  %191 = vmatpush1.bf16.msra.mxu0 0
  %192 = vmatprep.subr.bf16.mxu0 0
  %193 = vmatpush1.bf16.msra.mxu0 0
  %194 = vmatprep.subr.bf16.mxu0 0
  %195 = vmatpush1.bf16.msra.mxu0 0
  %196 = vmatprep.subr.bf16.mxu0 0
  %197 = vmatpush1.bf16.msra.mxu0 0
  %198 = vmatprep.subr.bf16.mxu0 0
  %199 = vmatpush1.bf16.msra.mxu0 0
  %200 = vmatprep.subr.bf16.mxu0 0
  %201 = vmatpush1.bf16.msra.mxu0 0
  %202 = vmatprep.subr.bf16.mxu0 0
  %203 = vmatpush1.bf16.msra.mxu0 0
  %204 = vmatprep.subr.bf16.mxu0 %v54
  %205 = vmatpush1.bf16.msra.mxu0 %v53
  %206 = vmatprep.subr.bf16.mxu0 0
  %207 = vmatpush2.bf16.msra.mxu0 0
  %208 = vmatprep.subr.bf16.mxu0 0
  %209 = vmatpush2.bf16.msra.mxu0 0
  %210 = vmatprep.subr.bf16.mxu0 0
  %211 = vmatpush2.bf16.msra.mxu0 0
  %212 = vmatprep.subr.bf16.mxu0 0
  %213 = vmatpush2.bf16.msra.mxu0 0
  %214 = vmatprep.subr.bf16.mxu0 0
  %215 = vmatpush2.bf16.msra.mxu0 0
  %216 = vmatprep.subr.bf16.mxu0 0
  %217 = vmatpush2.bf16.msra.mxu0 0
  %218 = vmatprep.subr.bf16.mxu0 0
  %219 = vmatpush2.bf16.msra.mxu0 0
  %220 = vmatprep.subr.bf16.mxu0 0
  %221 = vmatpush2.bf16.msra.mxu0 0
  %222 = vmatprep.mubr.bf16.mxu0 0
  %223 = vmatmul.mubr.bf16.gmra.mxu0 %v65
  %v224 = vpop.f32.mrf.mxu0
  %v225 = vadd.f32 0.0, %v224
  %v226 = vpop.f32.mrf.mxu0
  %v227 = vadd.f32 0.0, %v226
  %v228 = vpop.f32.mrf.mxu0
  %v229 = vpop.f32.mrf.mxu0
  %230 = vdwg.mxu0
  %v239 = vcombine.low %v102, %v104
  %v240 = vcombine.low %v143, %v145
  %v242 = vunpack.c.l.s4 1983009808
  %v243 = vunpack.c.0.s8 %v242
  %v244 = vlaneseq
  %v245 = vshrl.u32 %v244, 7
  %v246 = vsub.s32 %v243, %v245
  %v247 = vrot.slane %v239, %v246
  %v249 = vunpack.c.l.s4 1983009808
  %v250 = vunpack.c.0.s8 %v249
  %v251 = vlaneseq
  %v252 = vshrl.u32 %v251, 7
  %v253 = vsub.s32 %v250, %v252
  %v254 = vrot.slane %v240, %v253
  %v255 = vcombine.low %v247, %v254
  %v256 = vcombine.low %v184, %v186
  %v257 = vcombine.low %v225, %v227
  %v259 = vunpack.c.l.s4 1983009808
  %v260 = vunpack.c.0.s8 %v259
  %v261 = vlaneseq
  %v262 = vshrl.u32 %v261, 7
  %v263 = vsub.s32 %v260, %v262
  %v264 = vrot.slane %v256, %v263
  %v266 = vunpack.c.l.s4 1983009808
  %v267 = vunpack.c.0.s8 %v266
  %v268 = vlaneseq
  %v269 = vshrl.u32 %v268, 7
  %v270 = vsub.s32 %v267, %v269
  %v271 = vrot.slane %v257, %v270
  %v272 = vcombine.low %v264, %v271
  %275 = vst [vmem:[%s2] sm:$0xff] %v255
  %276 = vst [vmem:[%s2 + $0x8] sm:$0xff] %v272
  %vm277 = vcmask 1041408
  %v278 = vsel %vm277, %v102, 0.0
  %v279 = vrot.slane %v278, 4
  %v280 = vadd.f32 %v278, %v279
  %v281 = vrot.slane %v280, 2
  %v282 = vadd.f32 %v280, %v281
  %v283 = vrot.slane %v282, 1
  %v284 = vadd.f32 %v282, %v283
  %v285 = vsel %vm277, %v104, 0.0
  %v286 = vrot.slane %v285, 4
  %v287 = vadd.f32 %v285, %v286
  %v288 = vrot.slane %v287, 2
  %v289 = vadd.f32 %v287, %v288
  %v290 = vrot.slane %v289, 1
  %v291 = vadd.f32 %v289, %v290
  %v292 = vsel %vm277, %v143, 0.0
  %v293 = vrot.slane %v292, 4
  %v294 = vadd.f32 %v292, %v293
  %v295 = vrot.slane %v294, 2
  %v296 = vadd.f32 %v294, %v295
  %v297 = vrot.slane %v296, 1
  %v298 = vadd.f32 %v296, %v297
  %v299 = vsel %vm277, %v145, 0.0
  %v300 = vrot.slane %v299, 4
  %v301 = vadd.f32 %v299, %v300
  %v302 = vrot.slane %v301, 2
  %v303 = vadd.f32 %v301, %v302
  %v304 = vrot.slane %v303, 1
  %v305 = vadd.f32 %v303, %v304
  %v306 = vsel %vm277, %v184, 0.0
  %v307 = vrot.slane %v306, 4
  %v308 = vadd.f32 %v306, %v307
  %v309 = vrot.slane %v308, 2
  %v310 = vadd.f32 %v308, %v309
  %v311 = vrot.slane %v310, 1
  %v312 = vadd.f32 %v310, %v311
  %v313 = vsel %vm277, %v186, 0.0
  %v314 = vrot.slane %v313, 4
  %v315 = vadd.f32 %v313, %v314
  %v316 = vrot.slane %v315, 2
  %v317 = vadd.f32 %v315, %v316
  %v318 = vrot.slane %v317, 1
  %v319 = vadd.f32 %v317, %v318
  %v320 = vsel %vm277, %v225, 0.0
  %v321 = vrot.slane %v320, 4
  %v322 = vadd.f32 %v320, %v321
  %v323 = vrot.slane %v322, 2
  %v324 = vadd.f32 %v322, %v323
  %v325 = vrot.slane %v324, 1
  %v326 = vadd.f32 %v324, %v325
  %v327 = vsel %vm277, %v227, 0.0
  %v328 = vrot.slane %v327, 4
  %v329 = vadd.f32 %v327, %v328
  %v330 = vrot.slane %v329, 2
  %v331 = vadd.f32 %v329, %v330
  %v332 = vrot.slane %v331, 1
  %v333 = vadd.f32 %v331, %v332
  %v342 = vcombine.low %v284, %v291
  %v343 = vcombine.low %v298, %v305
  %v344 = vcombine.low %v312, %v319
  %v345 = vcombine.low %v326, %v333
  %v347 = vunpack.c.l.s4 1966171168
  %v348 = vunpack.c.0.s8 %v347
  %v349 = vlaneseq
  %v350 = vshrl.u32 %v349, 7
  %v351 = vsub.s32 %v348, %v350
  %v352 = vrot.slane %v342, %v351
  %v354 = vunpack.c.l.s4 1966171168
  %v355 = vunpack.c.0.s8 %v354
  %v356 = vlaneseq
  %v357 = vshrl.u32 %v356, 7
  %v358 = vsub.s32 %v355, %v357
  %v359 = vrot.slane %v343, %v358
  %v361 = vunpack.c.l.s4 1966171168
  %v362 = vunpack.c.0.s8 %v361
  %v363 = vlaneseq
  %v364 = vshrl.u32 %v363, 7
  %v365 = vsub.s32 %v362, %v364
  %v366 = vrot.slane %v344, %v365
  %v368 = vunpack.c.l.s4 1966171168
  %v369 = vunpack.c.0.s8 %v368
  %v370 = vlaneseq
  %v371 = vshrl.u32 %v370, 7
  %v372 = vsub.s32 %v369, %v371
  %v373 = vrot.slane %v345, %v372
  %v374 = vcombine.low %v352, %v359
  %v375 = vcombine.low %v366, %v373
  %v377 = vunpack.c.l.s4 1966171168
  %v378 = vunpack.c.0.s8 %v377
  %v379 = vlaneseq
  %v380 = vshrl.u32 %v379, 7
  %v381 = vsub.s32 %v378, %v380
  %v382 = vrot.slane %v374, %v381
  %v384 = vunpack.c.l.s4 1966171168
  %v385 = vunpack.c.0.s8 %v384
  %v386 = vlaneseq
  %v387 = vshrl.u32 %v386, 7
  %v388 = vsub.s32 %v385, %v387
  %v389 = vrot.slane %v375, %v388
  %v390 = vcombine.low %v382, %v389
  %392 = vst [vmem:[%s3] ss:$2 sm:$0xff] %v390
  %v393 = vmul.f32 %v102, %v102
  %v394 = vmul.f32 %v104, %v104
  %v395 = vmul.f32 %v143, %v143
  %v396 = vmul.f32 %v145, %v145
  %v397 = vmul.f32 %v184, %v184
  %v398 = vmul.f32 %v186, %v186
  %v399 = vmul.f32 %v225, %v225
  %v400 = vmul.f32 %v227, %v227
  %v401 = vsel %vm277, %v393, 0.0
  %v402 = vrot.slane %v401, 4
  %v403 = vadd.f32 %v401, %v402
  %v404 = vrot.slane %v403, 2
  %v405 = vadd.f32 %v403, %v404
  %v406 = vrot.slane %v405, 1
  %v407 = vadd.f32 %v405, %v406
  %v408 = vsel %vm277, %v394, 0.0
  %v409 = vrot.slane %v408, 4
  %v410 = vadd.f32 %v408, %v409
  %v411 = vrot.slane %v410, 2
  %v412 = vadd.f32 %v410, %v411
  %v413 = vrot.slane %v412, 1
  %v414 = vadd.f32 %v412, %v413
  %v415 = vsel %vm277, %v395, 0.0
  %v416 = vrot.slane %v415, 4
  %v417 = vadd.f32 %v415, %v416
  %v418 = vrot.slane %v417, 2
  %v419 = vadd.f32 %v417, %v418
  %v420 = vrot.slane %v419, 1
  %v421 = vadd.f32 %v419, %v420
  %v422 = vsel %vm277, %v396, 0.0
  %v423 = vrot.slane %v422, 4
  %v424 = vadd.f32 %v422, %v423
  %v425 = vrot.slane %v424, 2
  %v426 = vadd.f32 %v424, %v425
  %v427 = vrot.slane %v426, 1
  %v428 = vadd.f32 %v426, %v427
  %v429 = vsel %vm277, %v397, 0.0
  %v430 = vrot.slane %v429, 4
  %v431 = vadd.f32 %v429, %v430
  %v432 = vrot.slane %v431, 2
  %v433 = vadd.f32 %v431, %v432
  %v434 = vrot.slane %v433, 1
  %v435 = vadd.f32 %v433, %v434
  %v436 = vsel %vm277, %v398, 0.0
  %v437 = vrot.slane %v436, 4
  %v438 = vadd.f32 %v436, %v437
  %v439 = vrot.slane %v438, 2
  %v440 = vadd.f32 %v438, %v439
  %v441 = vrot.slane %v440, 1
  %v442 = vadd.f32 %v440, %v441
  %v443 = vsel %vm277, %v399, 0.0
  %v444 = vrot.slane %v443, 4
  %v445 = vadd.f32 %v443, %v444
  %v446 = vrot.slane %v445, 2
  %v447 = vadd.f32 %v445, %v446
  %v448 = vrot.slane %v447, 1
  %v449 = vadd.f32 %v447, %v448
  %v450 = vsel %vm277, %v400, 0.0
  %v451 = vrot.slane %v450, 4
  %v452 = vadd.f32 %v450, %v451
  %v453 = vrot.slane %v452, 2
  %v454 = vadd.f32 %v452, %v453
  %v455 = vrot.slane %v454, 1
  %v456 = vadd.f32 %v454, %v455
  %v465 = vcombine.low %v407, %v414
  %v466 = vcombine.low %v421, %v428
  %v467 = vcombine.low %v435, %v442
  %v468 = vcombine.low %v449, %v456
  %v470 = vunpack.c.l.s4 1966171168
  %v471 = vunpack.c.0.s8 %v470
  %v472 = vlaneseq
  %v473 = vshrl.u32 %v472, 7
  %v474 = vsub.s32 %v471, %v473
  %v475 = vrot.slane %v465, %v474
  %v477 = vunpack.c.l.s4 1966171168
  %v478 = vunpack.c.0.s8 %v477
  %v479 = vlaneseq
  %v480 = vshrl.u32 %v479, 7
  %v481 = vsub.s32 %v478, %v480
  %v482 = vrot.slane %v466, %v481
  %v484 = vunpack.c.l.s4 1966171168
  %v485 = vunpack.c.0.s8 %v484
  %v486 = vlaneseq
  %v487 = vshrl.u32 %v486, 7
  %v488 = vsub.s32 %v485, %v487
  %v489 = vrot.slane %v467, %v488
  %v491 = vunpack.c.l.s4 1966171168
  %v492 = vunpack.c.0.s8 %v491
  %v493 = vlaneseq
  %v494 = vshrl.u32 %v493, 7
  %v495 = vsub.s32 %v492, %v494
  %v496 = vrot.slane %v468, %v495
  %v497 = vcombine.low %v475, %v482
  %v498 = vcombine.low %v489, %v496
  %v500 = vunpack.c.l.s4 1966171168
  %v501 = vunpack.c.0.s8 %v500
  %v502 = vlaneseq
  %v503 = vshrl.u32 %v502, 7
  %v504 = vsub.s32 %v501, %v503
  %v505 = vrot.slane %v497, %v504
  %v507 = vunpack.c.l.s4 1966171168
  %v508 = vunpack.c.0.s8 %v507
  %v509 = vlaneseq
  %v510 = vshrl.u32 %v509, 7
  %v511 = vsub.s32 %v508, %v510
  %v512 = vrot.slane %v498, %v511
  %v513 = vcombine.low %v505, %v512
  %s515 = scalar_lea.vmem %s3, 1
  %516 = vst [vmem:[%s515] ss:$2 sm:$0xff] %v513
  // Predicated region
  $region10: #{_generator_forward.9} parent=0 // pred_check
    _
  $region11: #{_generator_forward.9} parent=0 // pred_check_branch
    %518 = sbr.rel (0) target = $region13
  $region12: #{_generator_forward.9} parent=0 // pred_region
    _
  $region13: #{_generator_forward.9} parent=0 // pred_fallthru
    _
  // Predicated region
  $region14: #{_generator_forward.9} parent=0 // pred_check
    _
  $region15: #{_generator_forward.9} parent=0 // pred_check_branch
    %520 = sbr.rel (0) target = $region17
  $region16: #{_generator_forward.9} parent=0 // pred_region
    _
  $region17: #{_generator_forward.9} parent=0 // pred_fallthru
    _
  // Predicated region
  $region18: #{_generator_forward.9} parent=0 // pred_check
    _
  $region19: #{_generator_forward.9} parent=0 // pred_check_branch
    %522 = sbr.rel (0) target = $region21
  $region20: #{_generator_forward.9} parent=0 // pred_region
    _
  $region21: #{_generator_forward.9} parent=0 // pred_fallthru
    _
  // Predicated region
  $region22: #{_generator_forward.9} parent=0 // pred_check
    _
  $region23: #{_generator_forward.9} parent=0 // pred_check_branch
    %524 = sbr.rel (0) target = $region25
  $region24: #{_generator_forward.9} parent=0 // pred_region
    _
  $region25: #{_generator_forward.9} parent=0 // pred_fallthru
    _

// kernel: _generator_forward.11
$region0: #{_generator_forward.11}
  #allocation0 [shape = 'u32[]', space=smem, size = 0x4, offset = 0x4, fixed_abs, tag = 'smem constant byte address 0x4 - core index']
  #allocation1 [shape = 'u32[144,128]{1,0:T(1,128)}', space=vmem, size = 0x12000, scoped, tag = 'internal scratch']
  %s0 = inlined_call_operand.vmem [shape: bf16[4,32,256], index: 0, kind: input, shape index: {}]
  %s1 = inlined_call_operand.vmem [shape: bf16[4,256,32], index: 1, kind: input, shape index: {}]
  %s2 = inlined_call_operand.vmem [shape: f32[4,32,32], index: 2, kind: output, shape index: {0}]
  %s3 = inlined_call_operand.vmem [shape: f32[4,1,2,32], index: 3, kind: output, shape index: {1}]
  %4 = xla_tuple %s2, %s3
  %s5 = sld [smem:[#allocation0]]
  $region49: #{_generator_forward.11} parent=0
    _
  %s7 = ssub.s32 1, %s5
  %s8 = scalar_select 0, %s7, %s5
  loop: start=0, step=1, limit=6
  $region2: #{_generator_forward.11} parent=0 // loop_pre_header
    _
  $region3: #{_generator_forward.11} parent=0 // loop_header
    %s10 = sphi 0, %s14
    %p11 = scmp.ge.s32.totalorder %s10, 6
    %s17 = sphi 0, %s29
    %s18 = sphi 0, %s25
    %s19 = sphi 0, %s17
    %s20 = sphi 0, %s18
    %s21 = sphi 0, %s19
    %s22 = sphi 0, %s20
    %s34 = sphi 0, %s36
    %s37 = sphi 0, %s34
    %s38 = sphi 0, %s37
    %s54 = sphi 0, %s38
    %s60 = sphi 0, %s62
    %s63 = sphi 0, %s60
    %s64 = sphi 0, %s63
    %s80 = sphi 0, %s64
    %s88 = sphi 0, %s90
    %s91 = sphi 0, %s88
    %s92 = sphi 0, %s91
    %s108 = sphi 0, %s92
    %s116 = sphi 0, %s118
    %s119 = sphi 0, %s116
    %s120 = sphi 0, %s119
    %s136 = sphi 0, %s120
  $region4: #{_generator_forward.11} parent=0 // loop_header_branch
    %13 = sbr.rel (%p11) target = $region8
  $region5: #{_generator_forward.11} parent=0 // loop_body
    %s15 = ssub.s32 %s10, 1
    %s16 = ssub.s32 %s10, 2
    %s23 = sadd.s32 1, %s18
    %p24 = scmp.ge.s32.totalorder %s23, 1
    %s25 = scalar_select %p24, 0, %s23
    %s26 = sadd.s32 1, %s17
    %s27 = scalar_select %p24, %s26, %s17
    %p28 = scmp.ge.s32.totalorder %s27, 4
    %s29 = scalar_select %p28, 0, %s27
    %s30 = ssub.s32 %s17, %s29
    %s31 = ssub.s32 %s18, %s25
    %s32 = sor.u32 %s30, %s31
    %p33 = scmp.eq.s32.totalorder %s32, 0
    %s35 = sadd.s32 %s34, 1
    %s36 = scalar_select %p33, %s34, %s35
    %p39 = pneg %p33
    %p40 = scmp.eq.s32.totalorder %s10, 3
    %p41 = por %p39, %p40
    %p42 = scmp.ne.s32.totalorder %s34, %s37
    %p43 = scmp.eq.s32.totalorder %s10, 0
    %p44 = por %p42, %p43
    %p45 = scmp.ne.s32.totalorder %s34, %s37
    %p46 = scmp.eq.s32.totalorder %s15, 3
    %p47 = por %p45, %p46
    %p48 = scmp.ne.s32.totalorder %s37, %s38
    %p49 = scmp.eq.s32.totalorder %s15, 0
    %p50 = por %p48, %p49
    %p51 = scmp.ne.s32.totalorder %s37, %s38
    %p52 = scmp.eq.s32.totalorder %s16, 3
    %p53 = por %p51, %p52
    %p55 = scmp.ne.s32.totalorder %s38, %s54
    %p56 = scmp.eq.s32.totalorder %s16, 0
    %p57 = por %p55, %p56
    %s58 = ssub.s32 %s17, %s29
    %p59 = scmp.eq.s32.totalorder %s58, 0
    %s61 = sadd.s32 %s60, 1
    %s62 = scalar_select %p59, %s60, %s61
    %p65 = pneg %p59
    %p66 = scmp.eq.s32.totalorder %s10, 3
    %p67 = por %p65, %p66
    %p68 = scmp.ne.s32.totalorder %s60, %s63
    %p69 = scmp.eq.s32.totalorder %s10, 0
    %p70 = por %p68, %p69
    %p71 = scmp.ne.s32.totalorder %s60, %s63
    %p72 = scmp.eq.s32.totalorder %s15, 3
    %p73 = por %p71, %p72
    %p74 = scmp.ne.s32.totalorder %s63, %s64
    %p75 = scmp.eq.s32.totalorder %s15, 0
    %p76 = por %p74, %p75
    %p77 = scmp.ne.s32.totalorder %s63, %s64
    %p78 = scmp.eq.s32.totalorder %s16, 3
    %p79 = por %p77, %p78
    %p81 = scmp.ne.s32.totalorder %s64, %s80
    %p82 = scmp.eq.s32.totalorder %s16, 0
    %p83 = por %p81, %p82
    %s84 = ssub.s32 %s17, %s29
    %s85 = ssub.s32 %s18, %s25
    %s86 = sor.u32 %s84, %s85
    %p87 = scmp.eq.s32.totalorder %s86, 0
    %s89 = sadd.s32 %s88, 1
    %s90 = scalar_select %p87, %s88, %s89
    %p93 = pneg %p87
    %p94 = scmp.eq.s32.totalorder %s10, 3
    %p95 = por %p93, %p94
    %p96 = scmp.ne.s32.totalorder %s88, %s91
    %p97 = scmp.eq.s32.totalorder %s10, 0
    %p98 = por %p96, %p97
    %p99 = scmp.ne.s32.totalorder %s88, %s91
    %p100 = scmp.eq.s32.totalorder %s15, 3
    %p101 = por %p99, %p100
    %p102 = scmp.ne.s32.totalorder %s91, %s92
    %p103 = scmp.eq.s32.totalorder %s15, 0
    %p104 = por %p102, %p103
    %p105 = scmp.ne.s32.totalorder %s91, %s92
    %p106 = scmp.eq.s32.totalorder %s16, 3
    %p107 = por %p105, %p106
    %p109 = scmp.ne.s32.totalorder %s92, %s108
    %p110 = scmp.eq.s32.totalorder %s16, 0
    %p111 = por %p109, %p110
    %s112 = ssub.s32 %s17, %s29
    %s113 = ssub.s32 %s18, %s25
    %s114 = sor.u32 %s112, %s113
    %p115 = scmp.eq.s32.totalorder %s114, 0
    %s117 = sadd.s32 %s116, 1
    %s118 = scalar_select %p115, %s116, %s117
    %p121 = pneg %p115
    %p122 = scmp.eq.s32.totalorder %s10, 3
    %p123 = por %p121, %p122
    %p124 = scmp.ne.s32.totalorder %s116, %s119
    %p125 = scmp.eq.s32.totalorder %s10, 0
    %p126 = por %p124, %p125
    %p127 = scmp.ne.s32.totalorder %s116, %s119
    %p128 = scmp.eq.s32.totalorder %s15, 3
    %p129 = por %p127, %p128
    %p130 = scmp.ne.s32.totalorder %s119, %s120
    %p131 = scmp.eq.s32.totalorder %s15, 0
    %p132 = por %p130, %p131
    %p133 = scmp.ne.s32.totalorder %s119, %s120
    %p134 = scmp.eq.s32.totalorder %s16, 3
    %p135 = por %p133, %p134
    %p137 = scmp.ne.s32.totalorder %s120, %s136
    %p138 = scmp.eq.s32.totalorder %s16, 0
    %p139 = por %p137, %p138
    %p140 = scmp.le.s32.totalorder 1, %s10
    %p141 = scmp.lt.s32.totalorder %s10, 5
    %p142 = pnand %p140, %p141
    %p143 = pneg %p142
    // Predicated region
    $region9: #{_generator_forward.11} parent=5 // pred_check
      _
    $region10: #{_generator_forward.11} parent=5 // pred_check_branch
      %145 = sbr.rel (%p142) target = $region12
    $region11: #{_generator_forward.11} parent=5 // pred_region
      %s146 = ssub.s32 %s10, 1
    $region12: #{_generator_forward.11} parent=5 // pred_fallthru
      _
    %p147 = scmp.lt.s32.totalorder %s10, 4
    // Predicated region
    $region13: #{_generator_forward.11} parent=5 // pred_check
      %p148 = pneg %p147
    $region14: #{_generator_forward.11} parent=5 // pred_check_branch
      %150 = sbr.rel (%p148) target = $region16
    $region15: #{_generator_forward.11} parent=5 // pred_region
      // Predicated region
      $region17: #{_generator_forward.11} parent=15 // pred_check
        %p151 = pneg %p44
      $region18: #{_generator_forward.11} parent=15 // pred_check_branch
        %153 = sbr.rel (%p151) target = $region20
      $region19: #{_generator_forward.11} parent=15 // pred_region
        %s154 = smul.u32 4, %s18
        %p155 = scmp.lt.s32.totalorder %s17, 3
        %s156 = scalar_select %p155, %s17, 3
        %p157 = scmp.lt.s32.totalorder %s154, 3
        %s158 = scalar_select %p157, %s154, 3
        %s159 = smul.addr %s158, 2
        %s160 = smul.addr %s156, 8
        %s161 = sadd.s32 %s159, %s160
        %s162 = smul.addr %s161, 4
        %s163 = scalar_lea.vmem %s0, %s162
        %s164 = smul.u32 4, %s18
      $region20: #{_generator_forward.11} parent=15 // pred_fallthru
        _
      // Predicated region
      $region21: #{_generator_forward.11} parent=15 // pred_check
        %p165 = pneg %p70
      $region22: #{_generator_forward.11} parent=15 // pred_check_branch
        %167 = sbr.rel (%p165) target = $region24
      $region23: #{_generator_forward.11} parent=15 // pred_region
        %p168 = scmp.lt.s32.totalorder %s17, 3
        %s169 = scalar_select %p168, %s17, 3
        %s170 = smul.addr %s169, 32
        %s171 = smul.addr %s170, 4
        %s172 = scalar_lea.vmem %s1, %s171
      $region24: #{_generator_forward.11} parent=15 // pred_fallthru
        _
    $region16: #{_generator_forward.11} parent=5 // pred_fallthru
      _
    %p173 = scmp.le.s32.totalorder 1, %s10
    %p174 = scmp.lt.s32.totalorder %s10, 5
    %p175 = pnand %p173, %p174
    %p176 = pneg %p175
    // Predicated region
    $region25: #{_generator_forward.11} parent=5 // pred_check
      _
    $region26: #{_generator_forward.11} parent=5 // pred_check_branch
      %178 = sbr.rel (%p175) target = $region28
    $region27: #{_generator_forward.11} parent=5 // pred_region
      %s179 = ssub.s32 %s10, 1
      %s180 = smul.u32 4, %s20
      %p181 = scmp.lt.s32.totalorder %s19, 3
      %s182 = scalar_select %p181, %s19, 3
      %p183 = scmp.lt.s32.totalorder %s180, 3
      %s184 = scalar_select %p183, %s180, 3
      %s185 = smul.addr %s184, 2
      %s186 = smul.addr %s182, 8
      %s187 = sadd.s32 %s185, %s186
      %s188 = smul.addr %s187, 4
      %s189 = scalar_lea.vmem %s0, %s188
      %p190 = pneg %p50
      %p191 = pneg %p47
      %p192 = scmp.lt.s32.totalorder %s19, 3
      %s193 = scalar_select %p192, %s19, 3
      %s194 = smul.addr %s193, 32
      %s195 = smul.addr %s194, 4
      %s196 = scalar_lea.vmem %s1, %s195
      %p197 = pneg %p76
      %p198 = pneg %p73
      %p199 = pneg %p104
      %p200 = pneg %p101
      %s201 = smul.u32 4, %s20
      %p202 = scmp.lt.s32.totalorder %s19, 3
      %s203 = scalar_select %p202, %s19, 3
      %p204 = scmp.lt.s32.totalorder %s201, 3
      %s205 = scalar_select %p204, %s201, 3
      %s206 = smul.addr %s203, 4
      %s207 = sadd.s32 %s205, %s206
      %s208 = smul.addr %s207, 8
      %s209 = scalar_lea.vmem %s2, %s208
      %p210 = pneg %p132
      %p211 = pneg %p129
      %p212 = scmp.lt.s32.totalorder %s19, 3
      %s213 = scalar_select %p212, %s19, 3
      %p214 = scmp.lt.s32.totalorder %s20, 0
      %s215 = scalar_select %p214, %s20, 0
      %s216 = sadd.s32 %s215, %s213
      %s217 = smul.addr %s216, 2
      %s218 = scalar_lea.vmem %s3, %s217
      %s219 = smul.u32 4, %s20
      %p220 = scmp.lt.s32.totalorder %s19, 3
      %s221 = scalar_select %p220, %s19, 3
      %p222 = scmp.lt.s32.totalorder %s219, 3
      %s223 = scalar_select %p222, %s219, 3
      %s224 = smul.addr %s223, 2
      %s225 = smul.addr %s221, 8
      %s226 = sadd.s32 %s224, %s225
      %s227 = smul.addr %s226, 4
      %s228 = scalar_lea.vmem %s0, %s227
      %s229 = smul.u32 4, %s20
      %p230 = scmp.lt.s32.totalorder %s19, 3
      %s231 = scalar_select %p230, %s19, 3
      %s232 = smul.addr %s231, 32
      %s233 = smul.addr %s232, 4
      %s234 = scalar_lea.vmem %s1, %s233
      %s235 = smul.u32 4, %s20
      %p236 = scmp.lt.s32.totalorder %s19, 3
      %s237 = scalar_select %p236, %s19, 3
      %p238 = scmp.lt.s32.totalorder %s235, 3
      %s239 = scalar_select %p238, %s235, 3
      %s240 = smul.addr %s237, 4
      %s241 = sadd.s32 %s239, %s240
      %s242 = smul.addr %s241, 8
      %s243 = scalar_lea.vmem %s2, %s242
      %s244 = smul.u32 4, %s20
      %p245 = scmp.lt.s32.totalorder %s19, 3
      %s246 = scalar_select %p245, %s19, 3
      %p247 = scmp.lt.s32.totalorder %s20, 0
      %s248 = scalar_select %p247, %s20, 0
      %s249 = sadd.s32 %s248, %s246
      %s250 = smul.addr %s249, 2
      %s251 = scalar_lea.vmem %s3, %s250
      %v253 = vld [vmem:[%s228] sm:$0xff]
      %v254 = vld [vmem:[%s228 + $0x8] sm:$0xff]
      %v255 = vld [vmem:[%s228 + $0x10] sm:$0xff]
      %v256 = vld [vmem:[%s228 + $0x18] sm:$0xff]
      %v257 = vld [vmem:[%s234] sm:$0xf]
      %v258 = vld [vmem:[%s234 + $0x4] sm:$0xf]
      %v259 = vld [vmem:[%s234 + $0x8] sm:$0xf]
      %v260 = vld [vmem:[%s234 + $0xc] sm:$0xf]
      %v261 = vld [vmem:[%s234 + $0x10] sm:$0xf]
      %v262 = vld [vmem:[%s234 + $0x14] sm:$0xf]
      %v263 = vld [vmem:[%s234 + $0x18] sm:$0xf]
      %v264 = vld [vmem:[%s234 + $0x1c] sm:$0xf]
      %v265 = vld [vmem:[%s234 + $0x20] sm:$0xf]
      %v266 = vld [vmem:[%s234 + $0x24] sm:$0xf]
      %v267 = vld [vmem:[%s234 + $0x28] sm:$0xf]
      %v268 = vld [vmem:[%s234 + $0x2c] sm:$0xf]
      %v269 = vld [vmem:[%s234 + $0x30] sm:$0xf]
      %v270 = vld [vmem:[%s234 + $0x34] sm:$0xf]
      %v271 = vld [vmem:[%s234 + $0x38] sm:$0xf]
      %v272 = vld [vmem:[%s234 + $0x3c] sm:$0xf]
      %v273 = vld [vmem:[%s234 + $0x40] sm:$0xf]
      %v274 = vld [vmem:[%s234 + $0x44] sm:$0xf]
      %v275 = vld [vmem:[%s234 + $0x48] sm:$0xf]
      %v276 = vld [vmem:[%s234 + $0x4c] sm:$0xf]
      %v277 = vld [vmem:[%s234 + $0x50] sm:$0xf]
      %v278 = vld [vmem:[%s234 + $0x54] sm:$0xf]
      %v279 = vld [vmem:[%s234 + $0x58] sm:$0xf]
      %v280 = vld [vmem:[%s234 + $0x5c] sm:$0xf]
      %v281 = vld [vmem:[%s234 + $0x60] sm:$0xf]
      %v282 = vld [vmem:[%s234 + $0x64] sm:$0xf]
      %v283 = vld [vmem:[%s234 + $0x68] sm:$0xf]
      %v284 = vld [vmem:[%s234 + $0x6c] sm:$0xf]
      %v285 = vld [vmem:[%s234 + $0x70] sm:$0xf]
      %v286 = vld [vmem:[%s234 + $0x74] sm:$0xf]
      %v287 = vld [vmem:[%s234 + $0x78] sm:$0xf]
      %v288 = vld [vmem:[%s234 + $0x7c] sm:$0xf]
      %v293 = vunpack.c.l.b16 %v253
      %v294 = vunpack.c.h.b16 %v253
      %v295 = vunpack.c.l.b16 %v254
      %v296 = vunpack.c.h.b16 %v254
      %v297 = vunpack.c.l.b16 %v255
      %v298 = vunpack.c.h.b16 %v255
      %v299 = vunpack.c.l.b16 %v256
      %v300 = vunpack.c.h.b16 %v256
      %v301 = vpack.c.b16 %v295, %v293
      %v302 = vpack.c.b16 %v296, %v294
      %v303 = vpack.c.b16 %v299, %v297
      %v304 = vpack.c.b16 %v300, %v298
      %v341 = vunpack.c.l.b16 %v257
      %v342 = vunpack.c.l.b16 %v258
      %v343 = vunpack.c.l.b16 %v259
      %v344 = vunpack.c.l.b16 %v260
      %v345 = vunpack.c.l.b16 %v261
      %v346 = vunpack.c.l.b16 %v262
      %v347 = vunpack.c.l.b16 %v263
      %v348 = vunpack.c.l.b16 %v264
      %v349 = vunpack.c.l.b16 %v265
      %v350 = vunpack.c.l.b16 %v266
      %v351 = vunpack.c.l.b16 %v267
      %v352 = vunpack.c.l.b16 %v268
      %v353 = vunpack.c.l.b16 %v269
      %v354 = vunpack.c.l.b16 %v270
      %v355 = vunpack.c.l.b16 %v271
      %v356 = vunpack.c.l.b16 %v272
      %v357 = vunpack.c.l.b16 %v273
      %v358 = vunpack.c.l.b16 %v274
      %v359 = vunpack.c.l.b16 %v275
      %v360 = vunpack.c.l.b16 %v276
      %v361 = vunpack.c.l.b16 %v277
      %v362 = vunpack.c.l.b16 %v278
      %v363 = vunpack.c.l.b16 %v279
      %v364 = vunpack.c.l.b16 %v280
      %v365 = vunpack.c.l.b16 %v281
      %v366 = vunpack.c.l.b16 %v282
      %v367 = vunpack.c.l.b16 %v283
      %v368 = vunpack.c.l.b16 %v284
      %v369 = vunpack.c.l.b16 %v285
      %v370 = vunpack.c.l.b16 %v286
      %v371 = vunpack.c.l.b16 %v287
      %v372 = vunpack.c.l.b16 %v288
      %v373 = vpack.c.b16 %v342, %v341
      %v374 = vpack.c.b16 %v344, %v343
      %v375 = vpack.c.b16 %v346, %v345
      %v376 = vpack.c.b16 %v348, %v347
      %v377 = vpack.c.b16 %v350, %v349
      %v378 = vpack.c.b16 %v352, %v351
      %v379 = vpack.c.b16 %v354, %v353
      %v380 = vpack.c.b16 %v356, %v355
      %v381 = vpack.c.b16 %v358, %v357
      %v382 = vpack.c.b16 %v360, %v359
      %v383 = vpack.c.b16 %v362, %v361
      %v384 = vpack.c.b16 %v364, %v363
      %v385 = vpack.c.b16 %v366, %v365
      %v386 = vpack.c.b16 %v368, %v367
      %v387 = vpack.c.b16 %v370, %v369
      %v388 = vpack.c.b16 %v372, %v371
      %405 = vmatprep.subr.bf16.mxu0 0
      %406 = vmatpush1.bf16.msra.mxu0 %v380
      %407 = vmatprep.subr.bf16.mxu0 0
      %408 = vmatpush1.bf16.msra.mxu0 %v379
      %409 = vmatprep.subr.bf16.mxu0 0
      %410 = vmatpush1.bf16.msra.mxu0 %v378
      %411 = vmatprep.subr.bf16.mxu0 0
      %412 = vmatpush1.bf16.msra.mxu0 %v377
      %413 = vmatprep.subr.bf16.mxu0 0
      %414 = vmatpush1.bf16.msra.mxu0 %v376
      %415 = vmatprep.subr.bf16.mxu0 0
      %416 = vmatpush1.bf16.msra.mxu0 %v375
      %417 = vmatprep.subr.bf16.mxu0 0
      %418 = vmatpush1.bf16.msra.mxu0 %v374
      %419 = vmatprep.subr.bf16.mxu0 0
      %420 = vmatpush1.bf16.msra.mxu0 %v373
      %421 = vmatprep.subr.bf16.mxu0 0
      %422 = vmatpush2.bf16.msra.mxu0 %v388
      %423 = vmatprep.subr.bf16.mxu0 0
      %424 = vmatpush2.bf16.msra.mxu0 %v387
      %425 = vmatprep.subr.bf16.mxu0 0
      %426 = vmatpush2.bf16.msra.mxu0 %v386
      %427 = vmatprep.subr.bf16.mxu0 0
      %428 = vmatpush2.bf16.msra.mxu0 %v385
      %429 = vmatprep.subr.bf16.mxu0 0
      %430 = vmatpush2.bf16.msra.mxu0 %v384
      %431 = vmatprep.subr.bf16.mxu0 0
      %432 = vmatpush2.bf16.msra.mxu0 %v383
      %433 = vmatprep.subr.bf16.mxu0 0
      %434 = vmatpush2.bf16.msra.mxu0 %v382
      %435 = vmatprep.subr.bf16.mxu0 0
      %436 = vmatpush2.bf16.msra.mxu0 %v381
      %437 = vmatprep.mubr.bf16.mxu0 %v302
      %438 = vmatmul.mubr.bf16.gmra.mxu0 %v301
      %v439 = vpop.f32.mrf.mxu0
      %v440 = vadd.f32 0.0, %v439
      %v441 = vpop.f32.mrf.mxu0
      %v442 = vpop.f32.mrf.mxu0
      %v443 = vadd.f32 0.0, %v442
      %v444 = vpop.f32.mrf.mxu0
      %445 = vmatprep.mubr.bf16.mxu0 %v304
      %446 = vmatmul.mubr.bf16.gmra.mxu0 %v303
      %v447 = vpop.f32.mrf.mxu0
      %v448 = vadd.f32 0.0, %v447
      %v449 = vpop.f32.mrf.mxu0
      %v450 = vpop.f32.mrf.mxu0
      %v451 = vadd.f32 0.0, %v450
      %v452 = vpop.f32.mrf.mxu0
      %453 = vdwg.mxu0
      %vm454 = vcmask 261120
      %455 = vst.msk [vmem:[%s243] sm:$0xff] %vm454, %v440
      %456 = vst.msk [vmem:[%s243 + $0x8] sm:$0xff] %vm454, %v443
      %457 = vst.msk [vmem:[%s243 + $0x10] sm:$0xff] %vm454, %v448
      %458 = vst.msk [vmem:[%s243 + $0x18] sm:$0xff] %vm454, %v451
      %v459 = vsel %vm454, %v440, 0.0
      %v460 = vsel %vm454, %v443, 0.0
      %v461 = vadd.f32 %v459, %v460
      %v462 = vsel %vm454, %v448, 0.0
      %v463 = vadd.f32 %v461, %v462
      %v464 = vsel %vm454, %v451, 0.0
      %v465 = vadd.f32 %v463, %v464
      %v466 = vrot.slane %v465, 4
      %v467 = vadd.f32 %v465, %v466
      %v468 = vrot.slane %v467, 2
      %v469 = vadd.f32 %v467, %v468
      %v470 = vrot.slane %v469, 1
      %v471 = vadd.f32 %v469, %v470
      %vm472 = vcmask 253952
      %473 = vst.msk [vmem:[%s251] sm:$0x1] %vm472, %v471
      %v474 = vmul.f32 %v440, %v440
      %v475 = vmul.f32 %v443, %v443
      %v476 = vmul.f32 %v448, %v448
      %v477 = vmul.f32 %v451, %v451
      %v478 = vsel %vm454, %v474, 0.0
      %v479 = vsel %vm454, %v475, 0.0
      %v480 = vadd.f32 %v478, %v479
      %v481 = vsel %vm454, %v476, 0.0
      %v482 = vadd.f32 %v480, %v481
      %v483 = vsel %vm454, %v477, 0.0
      %v484 = vadd.f32 %v482, %v483
      %v485 = vrot.slane %v484, 4
      %v486 = vadd.f32 %v484, %v485
      %v487 = vrot.slane %v486, 2
      %v488 = vadd.f32 %v486, %v487
      %v489 = vrot.slane %v488, 1
      %v490 = vadd.f32 %v488, %v489
      %491 = vst.msk [vmem:[%s251 + $0x1] sm:$0x1] %vm472, %v490
      %s492 = smul.u32 4, %s20
      %p493 = scmp.lt.s32.totalorder %s19, 3
      %s494 = scalar_select %p493, %s19, 3
      %p495 = scmp.lt.s32.totalorder %s492, 3
      %s496 = scalar_select %p495, %s492, 3
      %s497 = smul.addr %s494, 4
      %s498 = sadd.s32 %s496, %s497
      %s499 = smul.addr %s498, 8
      %s500 = scalar_lea.vmem %s2, %s499
      %p501 = scmp.lt.s32.totalorder %s19, 3
      %s502 = scalar_select %p501, %s19, 3
      %p503 = scmp.lt.s32.totalorder %s20, 0
      %s504 = scalar_select %p503, %s20, 0
      %s505 = sadd.s32 %s504, %s502
      %s506 = smul.addr %s505, 2
      %s507 = scalar_lea.vmem %s3, %s506
      // Predicated region
      $region29: #{_generator_forward.11} parent=27 // pred_check
        %p508 = pneg %p101
      $region30: #{_generator_forward.11} parent=27 // pred_check_branch
        %510 = sbr.rel (%p508) target = $region32
      $region31: #{_generator_forward.11} parent=27 // pred_region
        %s511 = smul.u32 4, %s20
      $region32: #{_generator_forward.11} parent=27 // pred_fallthru
        _
      // Predicated region
      $region33: #{_generator_forward.11} parent=27 // pred_check
        %p512 = pneg %p129
      $region34: #{_generator_forward.11} parent=27 // pred_check_branch
        %514 = sbr.rel (%p512) target = $region36
      $region35: #{_generator_forward.11} parent=27 // pred_region
        _
      $region36: #{_generator_forward.11} parent=27 // pred_fallthru
        _
    $region28: #{_generator_forward.11} parent=5 // pred_fallthru
      _
    %p515 = scmp.le.s32.totalorder 2, %s10
    // Predicated region
    $region37: #{_generator_forward.11} parent=5 // pred_check
      %p516 = pneg %p515
    $region38: #{_generator_forward.11} parent=5 // pred_check_branch
      %518 = sbr.rel (%p516) target = $region40
    $region39: #{_generator_forward.11} parent=5 // pred_region
      %s519 = ssub.s32 %s10, 2
      // Predicated region
      $region41: #{_generator_forward.11} parent=39 // pred_check
        %p520 = pneg %p107
      $region42: #{_generator_forward.11} parent=39 // pred_check_branch
        %522 = sbr.rel (%p520) target = $region44
      $region43: #{_generator_forward.11} parent=39 // pred_region
        %s523 = smul.u32 4, %s22
        %p524 = scmp.lt.s32.totalorder %s21, 3
        %s525 = scalar_select %p524, %s21, 3
        %p526 = scmp.lt.s32.totalorder %s523, 3
        %s527 = scalar_select %p526, %s523, 3
        %s528 = smul.addr %s525, 4
        %s529 = sadd.s32 %s527, %s528
        %s530 = smul.addr %s529, 8
        %s531 = scalar_lea.vmem %s2, %s530
      $region44: #{_generator_forward.11} parent=39 // pred_fallthru
        _
      // Predicated region
      $region45: #{_generator_forward.11} parent=39 // pred_check
        %p532 = pneg %p135
      $region46: #{_generator_forward.11} parent=39 // pred_check_branch
        %534 = sbr.rel (%p532) target = $region48
      $region47: #{_generator_forward.11} parent=39 // pred_region
        %p535 = scmp.lt.s32.totalorder %s21, 3
        %s536 = scalar_select %p535, %s21, 3
        %p537 = scmp.lt.s32.totalorder %s22, 0
        %s538 = scalar_select %p537, %s22, 0
        %s539 = sadd.s32 %s538, %s536
        %s540 = smul.addr %s539, 2
        %s541 = scalar_lea.vmem %s3, %s540
      $region48: #{_generator_forward.11} parent=39 // pred_fallthru
        _
    $region40: #{_generator_forward.11} parent=5 // pred_fallthru
      _
  $region6: #{_generator_forward.11} parent=0 // loop_footer
    %s14 = sadd.s32 1, %s10
  $region7: #{_generator_forward.11} parent=0 // loop_footer_branch
    %9 = sbr.rel target = $region3
  $region8: #{_generator_forward.11} parent=0 // loop_exit
    _

// kernel: _generator_forward.12
$region0: #{_generator_forward.12}
  #allocation0 [shape = 'u32[]', space=smem, size = 0x4, offset = 0x4, fixed_abs, tag = 'smem constant byte address 0x4 - core index']
  #allocation1 [shape = 'u32[144,128]{1,0:T(1,128)}', space=vmem, size = 0x12000, scoped, tag = 'internal scratch']
  %s0 = inlined_call_operand.vmem [shape: f32[128,32], index: 0, kind: input, shape index: {}]
  %s1 = inlined_call_operand.vmem [shape: f32[1,32], index: 1, kind: input, shape index: {}]
  %s2 = inlined_call_operand.vmem [shape: f32[1,32], index: 2, kind: input, shape index: {}]
  %s3 = inlined_call_operand.vmem [shape: f32[128,32], index: 3, kind: output, shape index: {}]
  %s4 = sld [smem:[#allocation0]]
  $region22: #{_generator_forward.12} parent=0
    _
  %s6 = ssub.s32 1, %s4
  %s7 = scalar_select 0, %s6, %s4
  // Predicated region
  $region2: #{_generator_forward.12} parent=0 // pred_check
    _
  $region3: #{_generator_forward.12} parent=0 // pred_check_branch
    %9 = sbr.rel (0) target = $region5
  $region4: #{_generator_forward.12} parent=0 // pred_region
    _
  $region5: #{_generator_forward.12} parent=0 // pred_fallthru
    _
  // Predicated region
  $region6: #{_generator_forward.12} parent=0 // pred_check
    _
  $region7: #{_generator_forward.12} parent=0 // pred_check_branch
    %11 = sbr.rel (0) target = $region9
  $region8: #{_generator_forward.12} parent=0 // pred_region
    _
  $region9: #{_generator_forward.12} parent=0 // pred_fallthru
    _
  // Predicated region
  $region10: #{_generator_forward.12} parent=0 // pred_check
    _
  $region11: #{_generator_forward.12} parent=0 // pred_check_branch
    %13 = sbr.rel (0) target = $region13
  $region12: #{_generator_forward.12} parent=0 // pred_region
    _
  $region13: #{_generator_forward.12} parent=0 // pred_fallthru
    _
  %v14 = vld [vmem:[%s0] sm:$0xff]
  %v15 = vld [vmem:[%s0 + $0x8] sm:$0xff]
  %v16 = vld [vmem:[%s0 + $0x10] sm:$0xff]
  %v17 = vld [vmem:[%s0 + $0x18] sm:$0xff]
  %v18 = vld [vmem:[%s0 + $0x20] sm:$0xff]
  %v19 = vld [vmem:[%s0 + $0x28] sm:$0xff]
  %v20 = vld [vmem:[%s0 + $0x30] sm:$0xff]
  %v21 = vld [vmem:[%s0 + $0x38] sm:$0xff]
  %v22 = vld [vmem:[%s0 + $0x40] sm:$0xff]
  %v23 = vld [vmem:[%s0 + $0x48] sm:$0xff]
  %v24 = vld [vmem:[%s0 + $0x50] sm:$0xff]
  %v25 = vld [vmem:[%s0 + $0x58] sm:$0xff]
  %v26 = vld [vmem:[%s0 + $0x60] sm:$0xff]
  %v27 = vld [vmem:[%s0 + $0x68] sm:$0xff]
  %v28 = vld [vmem:[%s0 + $0x70] sm:$0xff]
  %v29 = vld [vmem:[%s0 + $0x78] sm:$0xff]
  %v30 = vld [vmem:[%s1] sm:$0x1]
  %v32 = vlaneseq
  %v33 = vshrl.u32 %v32, 7
  %v34 = vsub.s32 0, %v33
  %v35 = vrot.slane %v30, %v34
  %v37 = vmul.f32 %v14, %v35
  %v38 = vmul.f32 %v15, %v35
  %v39 = vmul.f32 %v16, %v35
  %v40 = vmul.f32 %v17, %v35
  %v41 = vmul.f32 %v18, %v35
  %v42 = vmul.f32 %v19, %v35
  %v43 = vmul.f32 %v20, %v35
  %v44 = vmul.f32 %v21, %v35
  %v45 = vmul.f32 %v22, %v35
  %v46 = vmul.f32 %v23, %v35
  %v47 = vmul.f32 %v24, %v35
  %v48 = vmul.f32 %v25, %v35
  %v49 = vmul.f32 %v26, %v35
  %v50 = vmul.f32 %v27, %v35
  %v51 = vmul.f32 %v28, %v35
  %v52 = vmul.f32 %v29, %v35
  %v53 = vld [vmem:[%s2] sm:$0x1]
  %v55 = vlaneseq
  %v56 = vshrl.u32 %v55, 7
  %v57 = vsub.s32 0, %v56
  %v58 = vrot.slane %v53, %v57
  %v60 = vadd.f32 %v37, %v58
  %v61 = vadd.f32 %v38, %v58
  %v62 = vadd.f32 %v39, %v58
  %v63 = vadd.f32 %v40, %v58
  %v64 = vadd.f32 %v41, %v58
  %v65 = vadd.f32 %v42, %v58
  %v66 = vadd.f32 %v43, %v58
  %v67 = vadd.f32 %v44, %v58
  %v68 = vadd.f32 %v45, %v58
  %v69 = vadd.f32 %v46, %v58
  %v70 = vadd.f32 %v47, %v58
  %v71 = vadd.f32 %v48, %v58
  %v72 = vadd.f32 %v49, %v58
  %v73 = vadd.f32 %v50, %v58
  %v74 = vadd.f32 %v51, %v58
  %v75 = vadd.f32 %v52, %v58
  %v76 = vmax.f32 %v60, 0.0
  %v77 = vmax.f32 %v61, 0.0
  %v78 = vmax.f32 %v62, 0.0
  %v79 = vmax.f32 %v63, 0.0
  %v80 = vmax.f32 %v64, 0.0
  %v81 = vmax.f32 %v65, 0.0
  %v82 = vmax.f32 %v66, 0.0
  %v83 = vmax.f32 %v67, 0.0
  %v84 = vmax.f32 %v68, 0.0
  %v85 = vmax.f32 %v69, 0.0
  %v86 = vmax.f32 %v70, 0.0
  %v87 = vmax.f32 %v71, 0.0
  %v88 = vmax.f32 %v72, 0.0
  %v89 = vmax.f32 %v73, 0.0
  %v90 = vmax.f32 %v74, 0.0
  %v91 = vmax.f32 %v75, 0.0
  %vm92 = vcmask 261120
  %93 = vst.msk [vmem:[%s3] sm:$0xff] %vm92, %v76
  %94 = vst.msk [vmem:[%s3 + $0x8] sm:$0xff] %vm92, %v77
  %95 = vst.msk [vmem:[%s3 + $0x10] sm:$0xff] %vm92, %v78
  %96 = vst.msk [vmem:[%s3 + $0x18] sm:$0xff] %vm92, %v79
  %97 = vst.msk [vmem:[%s3 + $0x20] sm:$0xff] %vm92, %v80
  %98 = vst.msk [vmem:[%s3 + $0x28] sm:$0xff] %vm92, %v81
  %99 = vst.msk [vmem:[%s3 + $0x30] sm:$0xff] %vm92, %v82
  %100 = vst.msk [vmem:[%s3 + $0x38] sm:$0xff] %vm92, %v83
  %101 = vst.msk [vmem:[%s3 + $0x40] sm:$0xff] %vm92, %v84
  %102 = vst.msk [vmem:[%s3 + $0x48] sm:$0xff] %vm92, %v85
  %103 = vst.msk [vmem:[%s3 + $0x50] sm:$0xff] %vm92, %v86
  %104 = vst.msk [vmem:[%s3 + $0x58] sm:$0xff] %vm92, %v87
  %105 = vst.msk [vmem:[%s3 + $0x60] sm:$0xff] %vm92, %v88
  %106 = vst.msk [vmem:[%s3 + $0x68] sm:$0xff] %vm92, %v89
  %107 = vst.msk [vmem:[%s3 + $0x70] sm:$0xff] %vm92, %v90
  %108 = vst.msk [vmem:[%s3 + $0x78] sm:$0xff] %vm92, %v91
  // Predicated region
  $region14: #{_generator_forward.12} parent=0 // pred_check
    _
  $region15: #{_generator_forward.12} parent=0 // pred_check_branch
    %110 = sbr.rel (0) target = $region17
  $region16: #{_generator_forward.12} parent=0 // pred_region
    _
  $region17: #{_generator_forward.12} parent=0 // pred_fallthru
    _
  // Predicated region
  $region18: #{_generator_forward.12} parent=0 // pred_check
    _
  $region19: #{_generator_forward.12} parent=0 // pred_check_branch
    %112 = sbr.rel (0) target = $region21
  $region20: #{_generator_forward.12} parent=0 // pred_region
    _
  $region21: #{_generator_forward.12} parent=0 // pred_fallthru
    _

// kernel: _generator_forward.13
$region0: #{_generator_forward.13}
  #allocation0 [shape = 'u32[]', space=smem, size = 0x4, offset = 0x4, fixed_abs, tag = 'smem constant byte address 0x4 - core index']
  #allocation1 [shape = 'u32[144,128]{1,0:T(1,128)}', space=vmem, size = 0x12000, scoped, tag = 'internal scratch']
  %s0 = inlined_call_operand.vmem [shape: bf16[4,128,128], index: 0, kind: input, shape index: {}]
  %s1 = inlined_call_operand.vmem [shape: bf16[4,128,16], index: 1, kind: input, shape index: {}]
  %s2 = inlined_call_operand.vmem [shape: f32[4,128,16], index: 2, kind: output, shape index: {0}]
  %s3 = inlined_call_operand.vmem [shape: f32[4,1,2,16], index: 3, kind: output, shape index: {1}]
  %4 = xla_tuple %s2, %s3
  %s5 = sld [smem:[#allocation0]]
  $region49: #{_generator_forward.13} parent=0
    _
  %s7 = ssub.s32 1, %s5
  %s8 = scalar_select 0, %s7, %s5
  loop: start=0, step=1, limit=6
  $region2: #{_generator_forward.13} parent=0 // loop_pre_header
    _
  $region3: #{_generator_forward.13} parent=0 // loop_header
    %s10 = sphi 0, %s14
    %p11 = scmp.ge.s32.totalorder %s10, 6
    %s17 = sphi 0, %s29
    %s18 = sphi 0, %s25
    %s19 = sphi 0, %s17
    %s20 = sphi 0, %s18
    %s21 = sphi 0, %s19
    %s22 = sphi 0, %s20
    %s34 = sphi 0, %s36
    %s37 = sphi 0, %s34
    %s38 = sphi 0, %s37
    %s54 = sphi 0, %s38
    %s60 = sphi 0, %s62
    %s63 = sphi 0, %s60
    %s64 = sphi 0, %s63
    %s80 = sphi 0, %s64
    %s88 = sphi 0, %s90
    %s91 = sphi 0, %s88
    %s92 = sphi 0, %s91
    %s108 = sphi 0, %s92
    %s116 = sphi 0, %s118
    %s119 = sphi 0, %s116
    %s120 = sphi 0, %s119
    %s136 = sphi 0, %s120
  $region4: #{_generator_forward.13} parent=0 // loop_header_branch
    %13 = sbr.rel (%p11) target = $region8
  $region5: #{_generator_forward.13} parent=0 // loop_body
    %s15 = ssub.s32 %s10, 1
    %s16 = ssub.s32 %s10, 2
    %s23 = sadd.s32 1, %s18
    %p24 = scmp.ge.s32.totalorder %s23, 1
    %s25 = scalar_select %p24, 0, %s23
    %s26 = sadd.s32 1, %s17
    %s27 = scalar_select %p24, %s26, %s17
    %p28 = scmp.ge.s32.totalorder %s27, 4
    %s29 = scalar_select %p28, 0, %s27
    %s30 = ssub.s32 %s17, %s29
    %s31 = ssub.s32 %s18, %s25
    %s32 = sor.u32 %s30, %s31
    %p33 = scmp.eq.s32.totalorder %s32, 0
    %s35 = sadd.s32 %s34, 1
    %s36 = scalar_select %p33, %s34, %s35
    %p39 = pneg %p33
    %p40 = scmp.eq.s32.totalorder %s10, 3
    %p41 = por %p39, %p40
    %p42 = scmp.ne.s32.totalorder %s34, %s37
    %p43 = scmp.eq.s32.totalorder %s10, 0
    %p44 = por %p42, %p43
    %p45 = scmp.ne.s32.totalorder %s34, %s37
    %p46 = scmp.eq.s32.totalorder %s15, 3
    %p47 = por %p45, %p46
    %p48 = scmp.ne.s32.totalorder %s37, %s38
    %p49 = scmp.eq.s32.totalorder %s15, 0
    %p50 = por %p48, %p49
    %p51 = scmp.ne.s32.totalorder %s37, %s38
    %p52 = scmp.eq.s32.totalorder %s16, 3
    %p53 = por %p51, %p52
    %p55 = scmp.ne.s32.totalorder %s38, %s54
    %p56 = scmp.eq.s32.totalorder %s16, 0
    %p57 = por %p55, %p56
    %s58 = ssub.s32 %s17, %s29
    %p59 = scmp.eq.s32.totalorder %s58, 0
    %s61 = sadd.s32 %s60, 1
    %s62 = scalar_select %p59, %s60, %s61
    %p65 = pneg %p59
    %p66 = scmp.eq.s32.totalorder %s10, 3
    %p67 = por %p65, %p66
    %p68 = scmp.ne.s32.totalorder %s60, %s63
    %p69 = scmp.eq.s32.totalorder %s10, 0
    %p70 = por %p68, %p69
    %p71 = scmp.ne.s32.totalorder %s60, %s63
    %p72 = scmp.eq.s32.totalorder %s15, 3
    %p73 = por %p71, %p72
    %p74 = scmp.ne.s32.totalorder %s63, %s64
    %p75 = scmp.eq.s32.totalorder %s15, 0
    %p76 = por %p74, %p75
    %p77 = scmp.ne.s32.totalorder %s63, %s64
    %p78 = scmp.eq.s32.totalorder %s16, 3
    %p79 = por %p77, %p78
    %p81 = scmp.ne.s32.totalorder %s64, %s80
    %p82 = scmp.eq.s32.totalorder %s16, 0
    %p83 = por %p81, %p82
    %s84 = ssub.s32 %s17, %s29
    %s85 = ssub.s32 %s18, %s25
    %s86 = sor.u32 %s84, %s85
    %p87 = scmp.eq.s32.totalorder %s86, 0
    %s89 = sadd.s32 %s88, 1
    %s90 = scalar_select %p87, %s88, %s89
    %p93 = pneg %p87
    %p94 = scmp.eq.s32.totalorder %s10, 3
    %p95 = por %p93, %p94
    %p96 = scmp.ne.s32.totalorder %s88, %s91
    %p97 = scmp.eq.s32.totalorder %s10, 0
    %p98 = por %p96, %p97
    %p99 = scmp.ne.s32.totalorder %s88, %s91
    %p100 = scmp.eq.s32.totalorder %s15, 3
    %p101 = por %p99, %p100
    %p102 = scmp.ne.s32.totalorder %s91, %s92
    %p103 = scmp.eq.s32.totalorder %s15, 0
    %p104 = por %p102, %p103
    %p105 = scmp.ne.s32.totalorder %s91, %s92
    %p106 = scmp.eq.s32.totalorder %s16, 3
    %p107 = por %p105, %p106
    %p109 = scmp.ne.s32.totalorder %s92, %s108
    %p110 = scmp.eq.s32.totalorder %s16, 0
    %p111 = por %p109, %p110
    %s112 = ssub.s32 %s17, %s29
    %s113 = ssub.s32 %s18, %s25
    %s114 = sor.u32 %s112, %s113
    %p115 = scmp.eq.s32.totalorder %s114, 0
    %s117 = sadd.s32 %s116, 1
    %s118 = scalar_select %p115, %s116, %s117
    %p121 = pneg %p115
    %p122 = scmp.eq.s32.totalorder %s10, 3
    %p123 = por %p121, %p122
    %p124 = scmp.ne.s32.totalorder %s116, %s119
    %p125 = scmp.eq.s32.totalorder %s10, 0
    %p126 = por %p124, %p125
    %p127 = scmp.ne.s32.totalorder %s116, %s119
    %p128 = scmp.eq.s32.totalorder %s15, 3
    %p129 = por %p127, %p128
    %p130 = scmp.ne.s32.totalorder %s119, %s120
    %p131 = scmp.eq.s32.totalorder %s15, 0
    %p132 = por %p130, %p131
    %p133 = scmp.ne.s32.totalorder %s119, %s120
    %p134 = scmp.eq.s32.totalorder %s16, 3
    %p135 = por %p133, %p134
    %p137 = scmp.ne.s32.totalorder %s120, %s136
    %p138 = scmp.eq.s32.totalorder %s16, 0
    %p139 = por %p137, %p138
    %p140 = scmp.le.s32.totalorder 1, %s10
    %p141 = scmp.lt.s32.totalorder %s10, 5
    %p142 = pnand %p140, %p141
    %p143 = pneg %p142
    // Predicated region
    $region9: #{_generator_forward.13} parent=5 // pred_check
      _
    $region10: #{_generator_forward.13} parent=5 // pred_check_branch
      %145 = sbr.rel (%p142) target = $region12
    $region11: #{_generator_forward.13} parent=5 // pred_region
      %s146 = ssub.s32 %s10, 1
    $region12: #{_generator_forward.13} parent=5 // pred_fallthru
      _
    %p147 = scmp.lt.s32.totalorder %s10, 4
    // Predicated region
    $region13: #{_generator_forward.13} parent=5 // pred_check
      %p148 = pneg %p147
    $region14: #{_generator_forward.13} parent=5 // pred_check_branch
      %150 = sbr.rel (%p148) target = $region16
    $region15: #{_generator_forward.13} parent=5 // pred_region
      // Predicated region
      $region17: #{_generator_forward.13} parent=15 // pred_check
        %p151 = pneg %p44
      $region18: #{_generator_forward.13} parent=15 // pred_check_branch
        %153 = sbr.rel (%p151) target = $region20
      $region19: #{_generator_forward.13} parent=15 // pred_region
        %s154 = smul.u32 16, %s18
        %p155 = scmp.lt.s32.totalorder %s17, 3
        %s156 = scalar_select %p155, %s17, 3
        %p157 = scmp.lt.s32.totalorder %s154, 15
        %s158 = scalar_select %p157, %s154, 15
        %s159 = smul.addr %s156, 16
        %s160 = sadd.s32 %s158, %s159
        %s161 = smul.addr %s160, 4
        %s162 = scalar_lea.vmem %s0, %s161
        %s163 = smul.u32 16, %s18
      $region20: #{_generator_forward.13} parent=15 // pred_fallthru
        _
      // Predicated region
      $region21: #{_generator_forward.13} parent=15 // pred_check
        %p164 = pneg %p70
      $region22: #{_generator_forward.13} parent=15 // pred_check_branch
        %166 = sbr.rel (%p164) target = $region24
      $region23: #{_generator_forward.13} parent=15 // pred_region
        %p167 = scmp.lt.s32.totalorder %s17, 3
        %s168 = scalar_select %p167, %s17, 3
        %s169 = smul.addr %s168, 16
        %s170 = smul.addr %s169, 4
        %s171 = scalar_lea.vmem %s1, %s170
      $region24: #{_generator_forward.13} parent=15 // pred_fallthru
        _
    $region16: #{_generator_forward.13} parent=5 // pred_fallthru
      _
    %p172 = scmp.le.s32.totalorder 1, %s10
    %p173 = scmp.lt.s32.totalorder %s10, 5
    %p174 = pnand %p172, %p173
    %p175 = pneg %p174
    // Predicated region
    $region25: #{_generator_forward.13} parent=5 // pred_check
      _
    $region26: #{_generator_forward.13} parent=5 // pred_check_branch
      %177 = sbr.rel (%p174) target = $region28
    $region27: #{_generator_forward.13} parent=5 // pred_region
      %s178 = ssub.s32 %s10, 1
      %s179 = smul.u32 16, %s20
      %p180 = scmp.lt.s32.totalorder %s19, 3
      %s181 = scalar_select %p180, %s19, 3
      %p182 = scmp.lt.s32.totalorder %s179, 15
      %s183 = scalar_select %p182, %s179, 15
      %s184 = smul.addr %s181, 16
      %s185 = sadd.s32 %s183, %s184
      %s186 = smul.addr %s185, 4
      %s187 = scalar_lea.vmem %s0, %s186
      %p188 = pneg %p50
      %p189 = pneg %p47
      %p190 = scmp.lt.s32.totalorder %s19, 3
      %s191 = scalar_select %p190, %s19, 3
      %s192 = smul.addr %s191, 16
      %s193 = smul.addr %s192, 4
      %s194 = scalar_lea.vmem %s1, %s193
      %p195 = pneg %p76
      %p196 = pneg %p73
      %p197 = pneg %p104
      %p198 = pneg %p101
      %s199 = smul.u32 16, %s20
      %p200 = scmp.lt.s32.totalorder %s19, 3
      %s201 = scalar_select %p200, %s19, 3
      %p202 = scmp.lt.s32.totalorder %s199, 15
      %s203 = scalar_select %p202, %s199, 15
      %s204 = smul.addr %s201, 16
      %s205 = sadd.s32 %s203, %s204
      %s206 = smul.addr %s205, 8
      %s207 = scalar_lea.vmem %s2, %s206
      %p208 = pneg %p132
      %p209 = pneg %p129
      %p210 = scmp.lt.s32.totalorder %s19, 3
      %s211 = scalar_select %p210, %s19, 3
      %p212 = scmp.lt.s32.totalorder %s20, 0
      %s213 = scalar_select %p212, %s20, 0
      %s214 = sadd.s32 %s213, %s211
      %s215 = smul.addr %s214, 2
      %s216 = scalar_lea.vmem %s3, %s215
      %s217 = smul.u32 16, %s20
      %p218 = scmp.lt.s32.totalorder %s19, 3
      %s219 = scalar_select %p218, %s19, 3
      %p220 = scmp.lt.s32.totalorder %s217, 15
      %s221 = scalar_select %p220, %s217, 15
      %s222 = smul.addr %s219, 16
      %s223 = sadd.s32 %s221, %s222
      %s224 = smul.addr %s223, 4
      %s225 = scalar_lea.vmem %s0, %s224
      %s226 = smul.u32 16, %s20
      %p227 = scmp.lt.s32.totalorder %s19, 3
      %s228 = scalar_select %p227, %s19, 3
      %s229 = smul.addr %s228, 16
      %s230 = smul.addr %s229, 4
      %s231 = scalar_lea.vmem %s1, %s230
      %s232 = smul.u32 16, %s20
      %p233 = scmp.lt.s32.totalorder %s19, 3
      %s234 = scalar_select %p233, %s19, 3
      %p235 = scmp.lt.s32.totalorder %s232, 15
      %s236 = scalar_select %p235, %s232, 15
      %s237 = smul.addr %s234, 16
      %s238 = sadd.s32 %s236, %s237
      %s239 = smul.addr %s238, 8
      %s240 = scalar_lea.vmem %s2, %s239
      %s241 = smul.u32 16, %s20
      %p242 = scmp.lt.s32.totalorder %s19, 3
      %s243 = scalar_select %p242, %s19, 3
      %p244 = scmp.lt.s32.totalorder %s20, 0
      %s245 = scalar_select %p244, %s20, 0
      %s246 = sadd.s32 %s245, %s243
      %s247 = smul.addr %s246, 2
      %s248 = scalar_lea.vmem %s3, %s247
      %v250 = vld [vmem:[%s225] sm:$0xf]
      %v251 = vld [vmem:[%s225 + $0x4] sm:$0xf]
      %v252 = vld [vmem:[%s225 + $0x8] sm:$0xf]
      %v253 = vld [vmem:[%s225 + $0xc] sm:$0xf]
      %v254 = vld [vmem:[%s225 + $0x10] sm:$0xf]
      %v255 = vld [vmem:[%s225 + $0x14] sm:$0xf]
      %v256 = vld [vmem:[%s225 + $0x18] sm:$0xf]
      %v257 = vld [vmem:[%s225 + $0x1c] sm:$0xf]
      %v258 = vld [vmem:[%s225 + $0x20] sm:$0xf]
      %v259 = vld [vmem:[%s225 + $0x24] sm:$0xf]
      %v260 = vld [vmem:[%s225 + $0x28] sm:$0xf]
      %v261 = vld [vmem:[%s225 + $0x2c] sm:$0xf]
      %v262 = vld [vmem:[%s225 + $0x30] sm:$0xf]
      %v263 = vld [vmem:[%s225 + $0x34] sm:$0xf]
      %v264 = vld [vmem:[%s225 + $0x38] sm:$0xf]
      %v265 = vld [vmem:[%s225 + $0x3c] sm:$0xf]
      %v266 = vld [vmem:[%s231] sm:$0xf]
      %v267 = vld [vmem:[%s231 + $0x4] sm:$0xf]
      %v268 = vld [vmem:[%s231 + $0x8] sm:$0xf]
      %v269 = vld [vmem:[%s231 + $0xc] sm:$0xf]
      %v270 = vld [vmem:[%s231 + $0x10] sm:$0xf]
      %v271 = vld [vmem:[%s231 + $0x14] sm:$0xf]
      %v272 = vld [vmem:[%s231 + $0x18] sm:$0xf]
      %v273 = vld [vmem:[%s231 + $0x1c] sm:$0xf]
      %v274 = vld [vmem:[%s231 + $0x20] sm:$0xf]
      %v275 = vld [vmem:[%s231 + $0x24] sm:$0xf]
      %v276 = vld [vmem:[%s231 + $0x28] sm:$0xf]
      %v277 = vld [vmem:[%s231 + $0x2c] sm:$0xf]
      %v278 = vld [vmem:[%s231 + $0x30] sm:$0xf]
      %v279 = vld [vmem:[%s231 + $0x34] sm:$0xf]
      %v280 = vld [vmem:[%s231 + $0x38] sm:$0xf]
      %v281 = vld [vmem:[%s231 + $0x3c] sm:$0xf]
      %v298 = vunpack.c.l.b16 %v250
      %v299 = vunpack.c.l.b16 %v251
      %v300 = vunpack.c.l.b16 %v252
      %v301 = vunpack.c.l.b16 %v253
      %v302 = vunpack.c.l.b16 %v254
      %v303 = vunpack.c.l.b16 %v255
      %v304 = vunpack.c.l.b16 %v256
      %v305 = vunpack.c.l.b16 %v257
      %v306 = vunpack.c.l.b16 %v258
      %v307 = vunpack.c.l.b16 %v259
      %v308 = vunpack.c.l.b16 %v260
      %v309 = vunpack.c.l.b16 %v261
      %v310 = vunpack.c.l.b16 %v262
      %v311 = vunpack.c.l.b16 %v263
      %v312 = vunpack.c.l.b16 %v264
      %v313 = vunpack.c.l.b16 %v265
      %v314 = vpack.c.b16 %v299, %v298
      %v315 = vpack.c.b16 %v301, %v300
      %v316 = vpack.c.b16 %v303, %v302
      %v317 = vpack.c.b16 %v305, %v304
      %v318 = vpack.c.b16 %v307, %v306
      %v319 = vpack.c.b16 %v309, %v308
      %v320 = vpack.c.b16 %v311, %v310
      %v321 = vpack.c.b16 %v313, %v312
      %v346 = vunpack.c.l.b16 %v266
      %v347 = vunpack.c.l.b16 %v267
      %v348 = vunpack.c.l.b16 %v268
      %v349 = vunpack.c.l.b16 %v269
      %v350 = vunpack.c.l.b16 %v270
      %v351 = vunpack.c.l.b16 %v271
      %v352 = vunpack.c.l.b16 %v272
      %v353 = vunpack.c.l.b16 %v273
      %v354 = vunpack.c.l.b16 %v274
      %v355 = vunpack.c.l.b16 %v275
      %v356 = vunpack.c.l.b16 %v276
      %v357 = vunpack.c.l.b16 %v277
      %v358 = vunpack.c.l.b16 %v278
      %v359 = vunpack.c.l.b16 %v279
      %v360 = vunpack.c.l.b16 %v280
      %v361 = vunpack.c.l.b16 %v281
      %v362 = vpack.c.b16 %v347, %v346
      %v363 = vpack.c.b16 %v349, %v348
      %v364 = vpack.c.b16 %v351, %v350
      %v365 = vpack.c.b16 %v353, %v352
      %v366 = vpack.c.b16 %v355, %v354
      %v367 = vpack.c.b16 %v357, %v356
      %v368 = vpack.c.b16 %v359, %v358
      %v369 = vpack.c.b16 %v361, %v360
      %378 = vmatprep.subr.bf16.mxu0 0
      %379 = vmatpush1.bf16.msra.mxu0 %v369
      %380 = vmatprep.subr.bf16.mxu0 0
      %381 = vmatpush1.bf16.msra.mxu0 %v368
      %382 = vmatprep.subr.bf16.mxu0 0
      %383 = vmatpush1.bf16.msra.mxu0 %v367
      %384 = vmatprep.subr.bf16.mxu0 0
      %385 = vmatpush1.bf16.msra.mxu0 %v366
      %386 = vmatprep.subr.bf16.mxu0 0
      %387 = vmatpush1.bf16.msra.mxu0 %v365
      %388 = vmatprep.subr.bf16.mxu0 0
      %389 = vmatpush1.bf16.msra.mxu0 %v364
      %390 = vmatprep.subr.bf16.mxu0 0
      %391 = vmatpush1.bf16.msra.mxu0 %v363
      %392 = vmatprep.subr.bf16.mxu0 0
      %393 = vmatpush1.bf16.msra.mxu0 %v362
      %394 = vmatprep.subr.bf16.mxu0 0
      %395 = vmatpush2.bf16.msra.mxu0 0
      %396 = vmatprep.subr.bf16.mxu0 0
      %397 = vmatpush2.bf16.msra.mxu0 0
      %398 = vmatprep.subr.bf16.mxu0 0
      %399 = vmatpush2.bf16.msra.mxu0 0
      %400 = vmatprep.subr.bf16.mxu0 0
      %401 = vmatpush2.bf16.msra.mxu0 0
      %402 = vmatprep.subr.bf16.mxu0 0
      %403 = vmatpush2.bf16.msra.mxu0 0
      %404 = vmatprep.subr.bf16.mxu0 0
      %405 = vmatpush2.bf16.msra.mxu0 0
      %406 = vmatprep.subr.bf16.mxu0 0
      %407 = vmatpush2.bf16.msra.mxu0 0
      %408 = vmatprep.subr.bf16.mxu0 0
      %409 = vmatpush2.bf16.msra.mxu0 0
      %410 = vmatprep.mubr.bf16.mxu0 0
      %411 = vmatmul.mubr.bf16.gmra.mxu0 %v314
      %v412 = vpop.f32.mrf.mxu0
      %v413 = vadd.f32 0.0, %v412
      %v414 = vpop.f32.mrf.mxu0
      %v415 = vpop.f32.mrf.mxu0
      %v416 = vadd.f32 0.0, %v415
      %v417 = vpop.f32.mrf.mxu0
      %418 = vmatprep.mubr.bf16.mxu0 0
      %419 = vmatmul.mubr.bf16.gmra.mxu0 %v315
      %v420 = vpop.f32.mrf.mxu0
      %v421 = vadd.f32 0.0, %v420
      %v422 = vpop.f32.mrf.mxu0
      %v423 = vpop.f32.mrf.mxu0
      %v424 = vadd.f32 0.0, %v423
      %v425 = vpop.f32.mrf.mxu0
      %426 = vmatprep.mubr.bf16.mxu0 0
      %427 = vmatmul.mubr.bf16.gmra.mxu0 %v316
      %v428 = vpop.f32.mrf.mxu0
      %v429 = vadd.f32 0.0, %v428
      %v430 = vpop.f32.mrf.mxu0
      %v431 = vpop.f32.mrf.mxu0
      %v432 = vadd.f32 0.0, %v431
      %v433 = vpop.f32.mrf.mxu0
      %434 = vmatprep.mubr.bf16.mxu0 0
      %435 = vmatmul.mubr.bf16.gmra.mxu0 %v317
      %v436 = vpop.f32.mrf.mxu0
      %v437 = vadd.f32 0.0, %v436
      %v438 = vpop.f32.mrf.mxu0
      %v439 = vpop.f32.mrf.mxu0
      %v440 = vadd.f32 0.0, %v439
      %v441 = vpop.f32.mrf.mxu0
      %442 = vmatprep.mubr.bf16.mxu0 0
      %443 = vmatmul.mubr.bf16.gmra.mxu0 %v318
      %v444 = vpop.f32.mrf.mxu0
      %v445 = vadd.f32 0.0, %v444
      %v446 = vpop.f32.mrf.mxu0
      %v447 = vpop.f32.mrf.mxu0
      %v448 = vadd.f32 0.0, %v447
      %v449 = vpop.f32.mrf.mxu0
      %450 = vmatprep.mubr.bf16.mxu0 0
      %451 = vmatmul.mubr.bf16.gmra.mxu0 %v319
      %v452 = vpop.f32.mrf.mxu0
      %v453 = vadd.f32 0.0, %v452
      %v454 = vpop.f32.mrf.mxu0
      %v455 = vpop.f32.mrf.mxu0
      %v456 = vadd.f32 0.0, %v455
      %v457 = vpop.f32.mrf.mxu0
      %458 = vmatprep.mubr.bf16.mxu0 0
      %459 = vmatmul.mubr.bf16.gmra.mxu0 %v320
      %v460 = vpop.f32.mrf.mxu0
      %v461 = vadd.f32 0.0, %v460
      %v462 = vpop.f32.mrf.mxu0
      %v463 = vpop.f32.mrf.mxu0
      %v464 = vadd.f32 0.0, %v463
      %v465 = vpop.f32.mrf.mxu0
      %466 = vmatprep.mubr.bf16.mxu0 0
      %467 = vmatmul.mubr.bf16.gmra.mxu0 %v321
      %v468 = vpop.f32.mrf.mxu0
      %v469 = vadd.f32 0.0, %v468
      %v470 = vpop.f32.mrf.mxu0
      %v471 = vpop.f32.mrf.mxu0
      %v472 = vadd.f32 0.0, %v471
      %v473 = vpop.f32.mrf.mxu0
      %474 = vdwg.mxu0
      %vm475 = vcmask 130048
      %476 = vst.msk [vmem:[%s240] sm:$0xff] %vm475, %v413
      %477 = vst.msk [vmem:[%s240 + $0x8] sm:$0xff] %vm475, %v416
      %478 = vst.msk [vmem:[%s240 + $0x10] sm:$0xff] %vm475, %v421
      %479 = vst.msk [vmem:[%s240 + $0x18] sm:$0xff] %vm475, %v424
      %480 = vst.msk [vmem:[%s240 + $0x20] sm:$0xff] %vm475, %v429
      %481 = vst.msk [vmem:[%s240 + $0x28] sm:$0xff] %vm475, %v432
      %482 = vst.msk [vmem:[%s240 + $0x30] sm:$0xff] %vm475, %v437
      %483 = vst.msk [vmem:[%s240 + $0x38] sm:$0xff] %vm475, %v440
      %484 = vst.msk [vmem:[%s240 + $0x40] sm:$0xff] %vm475, %v445
      %485 = vst.msk [vmem:[%s240 + $0x48] sm:$0xff] %vm475, %v448
      %486 = vst.msk [vmem:[%s240 + $0x50] sm:$0xff] %vm475, %v453
      %487 = vst.msk [vmem:[%s240 + $0x58] sm:$0xff] %vm475, %v456
      %488 = vst.msk [vmem:[%s240 + $0x60] sm:$0xff] %vm475, %v461
      %489 = vst.msk [vmem:[%s240 + $0x68] sm:$0xff] %vm475, %v464
      %490 = vst.msk [vmem:[%s240 + $0x70] sm:$0xff] %vm475, %v469
      %491 = vst.msk [vmem:[%s240 + $0x78] sm:$0xff] %vm475, %v472
      %v492 = vsel %vm475, %v413, 0.0
      %v493 = vsel %vm475, %v416, 0.0
      %v494 = vadd.f32 %v492, %v493
      %v495 = vsel %vm475, %v421, 0.0
      %v496 = vadd.f32 %v494, %v495
      %v497 = vsel %vm475, %v424, 0.0
      %v498 = vadd.f32 %v496, %v497
      %v499 = vsel %vm475, %v429, 0.0
      %v500 = vadd.f32 %v498, %v499
      %v501 = vsel %vm475, %v432, 0.0
      %v502 = vadd.f32 %v500, %v501
      %v503 = vsel %vm475, %v437, 0.0
      %v504 = vadd.f32 %v502, %v503
      %v505 = vsel %vm475, %v440, 0.0
      %v506 = vadd.f32 %v504, %v505
      %v507 = vsel %vm475, %v445, 0.0
      %v508 = vadd.f32 %v506, %v507
      %v509 = vsel %vm475, %v448, 0.0
      %v510 = vadd.f32 %v508, %v509
      %v511 = vsel %vm475, %v453, 0.0
      %v512 = vadd.f32 %v510, %v511
      %v513 = vsel %vm475, %v456, 0.0
      %v514 = vadd.f32 %v512, %v513
      %v515 = vsel %vm475, %v461, 0.0
      %v516 = vadd.f32 %v514, %v515
      %v517 = vsel %vm475, %v464, 0.0
      %v518 = vadd.f32 %v516, %v517
      %v519 = vsel %vm475, %v469, 0.0
      %v520 = vadd.f32 %v518, %v519
      %v521 = vsel %vm475, %v472, 0.0
      %v522 = vadd.f32 %v520, %v521
      %v523 = vrot.slane %v522, 4
      %v524 = vadd.f32 %v522, %v523
      %v525 = vrot.slane %v524, 2
      %v526 = vadd.f32 %v524, %v525
      %v527 = vrot.slane %v526, 1
      %v528 = vadd.f32 %v526, %v527
      %vm529 = vcmask 122880
      %530 = vst.msk [vmem:[%s248] sm:$0x1] %vm529, %v528
      %v531 = vmul.f32 %v413, %v413
      %v532 = vmul.f32 %v416, %v416
      %v533 = vmul.f32 %v421, %v421
      %v534 = vmul.f32 %v424, %v424
      %v535 = vmul.f32 %v429, %v429
      %v536 = vmul.f32 %v432, %v432
      %v537 = vmul.f32 %v437, %v437
      %v538 = vmul.f32 %v440, %v440
      %v539 = vmul.f32 %v445, %v445
      %v540 = vmul.f32 %v448, %v448
      %v541 = vmul.f32 %v453, %v453
      %v542 = vmul.f32 %v456, %v456
      %v543 = vmul.f32 %v461, %v461
      %v544 = vmul.f32 %v464, %v464
      %v545 = vmul.f32 %v469, %v469
      %v546 = vmul.f32 %v472, %v472
      %v547 = vsel %vm475, %v531, 0.0
      %v548 = vsel %vm475, %v532, 0.0
      %v549 = vadd.f32 %v547, %v548
      %v550 = vsel %vm475, %v533, 0.0
      %v551 = vadd.f32 %v549, %v550
      %v552 = vsel %vm475, %v534, 0.0
      %v553 = vadd.f32 %v551, %v552
      %v554 = vsel %vm475, %v535, 0.0
      %v555 = vadd.f32 %v553, %v554
      %v556 = vsel %vm475, %v536, 0.0
      %v557 = vadd.f32 %v555, %v556
      %v558 = vsel %vm475, %v537, 0.0
      %v559 = vadd.f32 %v557, %v558
      %v560 = vsel %vm475, %v538, 0.0
      %v561 = vadd.f32 %v559, %v560
      %v562 = vsel %vm475, %v539, 0.0
      %v563 = vadd.f32 %v561, %v562
      %v564 = vsel %vm475, %v540, 0.0
      %v565 = vadd.f32 %v563, %v564
      %v566 = vsel %vm475, %v541, 0.0
      %v567 = vadd.f32 %v565, %v566
      %v568 = vsel %vm475, %v542, 0.0
      %v569 = vadd.f32 %v567, %v568
      %v570 = vsel %vm475, %v543, 0.0
      %v571 = vadd.f32 %v569, %v570
      %v572 = vsel %vm475, %v544, 0.0
      %v573 = vadd.f32 %v571, %v572
      %v574 = vsel %vm475, %v545, 0.0
      %v575 = vadd.f32 %v573, %v574
      %v576 = vsel %vm475, %v546, 0.0
      %v577 = vadd.f32 %v575, %v576
      %v578 = vrot.slane %v577, 4
      %v579 = vadd.f32 %v577, %v578
      %v580 = vrot.slane %v579, 2
      %v581 = vadd.f32 %v579, %v580
      %v582 = vrot.slane %v581, 1
      %v583 = vadd.f32 %v581, %v582
      %584 = vst.msk [vmem:[%s248 + $0x1] sm:$0x1] %vm529, %v583
      %s585 = smul.u32 16, %s20
      %p586 = scmp.lt.s32.totalorder %s19, 3
      %s587 = scalar_select %p586, %s19, 3
      %p588 = scmp.lt.s32.totalorder %s585, 15
      %s589 = scalar_select %p588, %s585, 15
      %s590 = smul.addr %s587, 16
      %s591 = sadd.s32 %s589, %s590
      %s592 = smul.addr %s591, 8
      %s593 = scalar_lea.vmem %s2, %s592
      %p594 = scmp.lt.s32.totalorder %s19, 3
      %s595 = scalar_select %p594, %s19, 3
      %p596 = scmp.lt.s32.totalorder %s20, 0
      %s597 = scalar_select %p596, %s20, 0
      %s598 = sadd.s32 %s597, %s595
      %s599 = smul.addr %s598, 2
      %s600 = scalar_lea.vmem %s3, %s599
      // Predicated region
      $region29: #{_generator_forward.13} parent=27 // pred_check
        %p601 = pneg %p101
      $region30: #{_generator_forward.13} parent=27 // pred_check_branch
        %603 = sbr.rel (%p601) target = $region32
      $region31: #{_generator_forward.13} parent=27 // pred_region
        %s604 = smul.u32 16, %s20
      $region32: #{_generator_forward.13} parent=27 // pred_fallthru
        _
      // Predicated region
      $region33: #{_generator_forward.13} parent=27 // pred_check
        %p605 = pneg %p129
      $region34: #{_generator_forward.13} parent=27 // pred_check_branch
        %607 = sbr.rel (%p605) target = $region36
      $region35: #{_generator_forward.13} parent=27 // pred_region
        _
      $region36: #{_generator_forward.13} parent=27 // pred_fallthru
        _
    $region28: #{_generator_forward.13} parent=5 // pred_fallthru
      _
    %p608 = scmp.le.s32.totalorder 2, %s10
    // Predicated region
    $region37: #{_generator_forward.13} parent=5 // pred_check
      %p609 = pneg %p608
    $region38: #{_generator_forward.13} parent=5 // pred_check_branch
      %611 = sbr.rel (%p609) target = $region40
    $region39: #{_generator_forward.13} parent=5 // pred_region
      %s612 = ssub.s32 %s10, 2
      // Predicated region
      $region41: #{_generator_forward.13} parent=39 // pred_check
        %p613 = pneg %p107
      $region42: #{_generator_forward.13} parent=39 // pred_check_branch
        %615 = sbr.rel (%p613) target = $region44
      $region43: #{_generator_forward.13} parent=39 // pred_region
        %s616 = smul.u32 16, %s22
        %p617 = scmp.lt.s32.totalorder %s21, 3
        %s618 = scalar_select %p617, %s21, 3
        %p619 = scmp.lt.s32.totalorder %s616, 15
        %s620 = scalar_select %p619, %s616, 15
        %s621 = smul.addr %s618, 16
        %s622 = sadd.s32 %s620, %s621
        %s623 = smul.addr %s622, 8
        %s624 = scalar_lea.vmem %s2, %s623
      $region44: #{_generator_forward.13} parent=39 // pred_fallthru
        _
      // Predicated region
      $region45: #{_generator_forward.13} parent=39 // pred_check
        %p625 = pneg %p135
      $region46: #{_generator_forward.13} parent=39 // pred_check_branch
        %627 = sbr.rel (%p625) target = $region48
      $region47: #{_generator_forward.13} parent=39 // pred_region
        %p628 = scmp.lt.s32.totalorder %s21, 3
        %s629 = scalar_select %p628, %s21, 3
        %p630 = scmp.lt.s32.totalorder %s22, 0
        %s631 = scalar_select %p630, %s22, 0
        %s632 = sadd.s32 %s631, %s629
        %s633 = smul.addr %s632, 2
        %s634 = scalar_lea.vmem %s3, %s633
      $region48: #{_generator_forward.13} parent=39 // pred_fallthru
        _
    $region40: #{_generator_forward.13} parent=5 // pred_fallthru
      _
  $region6: #{_generator_forward.13} parent=0 // loop_footer
    %s14 = sadd.s32 1, %s10
  $region7: #{_generator_forward.13} parent=0 // loop_footer_branch
    %9 = sbr.rel target = $region3
  $region8: #{_generator_forward.13} parent=0 // loop_exit
    _

// kernel: _generator_forward.14
$region0: #{_generator_forward.14}
  #allocation0 [shape = 'u32[]', space=smem, size = 0x4, offset = 0x4, fixed_abs, tag = 'smem constant byte address 0x4 - core index']
  #allocation1 [shape = 'u32[144,128]{1,0:T(1,128)}', space=vmem, size = 0x12000, scoped, tag = 'internal scratch']
  %s0 = inlined_call_operand.vmem [shape: f32[512,16], index: 0, kind: input, shape index: {}]
  %s1 = inlined_call_operand.vmem [shape: f32[1,16], index: 1, kind: input, shape index: {}]
  %s2 = inlined_call_operand.vmem [shape: f32[1,16], index: 2, kind: input, shape index: {}]
  %s3 = inlined_call_operand.vmem [shape: f32[512,16], index: 3, kind: output, shape index: {}]
  %s4 = sld [smem:[#allocation0]]
  $region22: #{_generator_forward.14} parent=0
    _
  %s6 = ssub.s32 1, %s4
  %s7 = scalar_select 0, %s6, %s4
  // Predicated region
  $region2: #{_generator_forward.14} parent=0 // pred_check
    _
  $region3: #{_generator_forward.14} parent=0 // pred_check_branch
    %9 = sbr.rel (0) target = $region5
  $region4: #{_generator_forward.14} parent=0 // pred_region
    _
  $region5: #{_generator_forward.14} parent=0 // pred_fallthru
    _
  // Predicated region
  $region6: #{_generator_forward.14} parent=0 // pred_check
    _
  $region7: #{_generator_forward.14} parent=0 // pred_check_branch
    %11 = sbr.rel (0) target = $region9
  $region8: #{_generator_forward.14} parent=0 // pred_region
    _
  $region9: #{_generator_forward.14} parent=0 // pred_fallthru
    _
  // Predicated region
  $region10: #{_generator_forward.14} parent=0 // pred_check
    _
  $region11: #{_generator_forward.14} parent=0 // pred_check_branch
    %13 = sbr.rel (0) target = $region13
  $region12: #{_generator_forward.14} parent=0 // pred_region
    _
  $region13: #{_generator_forward.14} parent=0 // pred_fallthru
    _
  %v14 = vld [vmem:[%s0] sm:$0xff]
  %v15 = vld [vmem:[%s0 + $0x8] sm:$0xff]
  %v16 = vld [vmem:[%s0 + $0x10] sm:$0xff]
  %v17 = vld [vmem:[%s0 + $0x18] sm:$0xff]
  %v18 = vld [vmem:[%s0 + $0x20] sm:$0xff]
  %v19 = vld [vmem:[%s0 + $0x28] sm:$0xff]
  %v20 = vld [vmem:[%s0 + $0x30] sm:$0xff]
  %v21 = vld [vmem:[%s0 + $0x38] sm:$0xff]
  %v22 = vld [vmem:[%s0 + $0x40] sm:$0xff]
  %v23 = vld [vmem:[%s0 + $0x48] sm:$0xff]
  %v24 = vld [vmem:[%s0 + $0x50] sm:$0xff]
  %v25 = vld [vmem:[%s0 + $0x58] sm:$0xff]
  %v26 = vld [vmem:[%s0 + $0x60] sm:$0xff]
  %v27 = vld [vmem:[%s0 + $0x68] sm:$0xff]
  %v28 = vld [vmem:[%s0 + $0x70] sm:$0xff]
  %v29 = vld [vmem:[%s0 + $0x78] sm:$0xff]
  %v30 = vld [vmem:[%s0 + $0x80] sm:$0xff]
  %v31 = vld [vmem:[%s0 + $0x88] sm:$0xff]
  %v32 = vld [vmem:[%s0 + $0x90] sm:$0xff]
  %v33 = vld [vmem:[%s0 + $0x98] sm:$0xff]
  %v34 = vld [vmem:[%s0 + $0xa0] sm:$0xff]
  %v35 = vld [vmem:[%s0 + $0xa8] sm:$0xff]
  %v36 = vld [vmem:[%s0 + $0xb0] sm:$0xff]
  %v37 = vld [vmem:[%s0 + $0xb8] sm:$0xff]
  %v38 = vld [vmem:[%s0 + $0xc0] sm:$0xff]
  %v39 = vld [vmem:[%s0 + $0xc8] sm:$0xff]
  %v40 = vld [vmem:[%s0 + $0xd0] sm:$0xff]
  %v41 = vld [vmem:[%s0 + $0xd8] sm:$0xff]
  %v42 = vld [vmem:[%s0 + $0xe0] sm:$0xff]
  %v43 = vld [vmem:[%s0 + $0xe8] sm:$0xff]
  %v44 = vld [vmem:[%s0 + $0xf0] sm:$0xff]
  %v45 = vld [vmem:[%s0 + $0xf8] sm:$0xff]
  %v46 = vld [vmem:[%s0 + $0x100] sm:$0xff]
  %v47 = vld [vmem:[%s0 + $0x108] sm:$0xff]
  %v48 = vld [vmem:[%s0 + $0x110] sm:$0xff]
  %v49 = vld [vmem:[%s0 + $0x118] sm:$0xff]
  %v50 = vld [vmem:[%s0 + $0x120] sm:$0xff]
  %v51 = vld [vmem:[%s0 + $0x128] sm:$0xff]
  %v52 = vld [vmem:[%s0 + $0x130] sm:$0xff]
  %v53 = vld [vmem:[%s0 + $0x138] sm:$0xff]
  %v54 = vld [vmem:[%s0 + $0x140] sm:$0xff]
  %v55 = vld [vmem:[%s0 + $0x148] sm:$0xff]
  %v56 = vld [vmem:[%s0 + $0x150] sm:$0xff]
  %v57 = vld [vmem:[%s0 + $0x158] sm:$0xff]
  %v58 = vld [vmem:[%s0 + $0x160] sm:$0xff]
  %v59 = vld [vmem:[%s0 + $0x168] sm:$0xff]
  %v60 = vld [vmem:[%s0 + $0x170] sm:$0xff]
  %v61 = vld [vmem:[%s0 + $0x178] sm:$0xff]
  %v62 = vld [vmem:[%s0 + $0x180] sm:$0xff]
  %v63 = vld [vmem:[%s0 + $0x188] sm:$0xff]
  %v64 = vld [vmem:[%s0 + $0x190] sm:$0xff]
  %v65 = vld [vmem:[%s0 + $0x198] sm:$0xff]
  %v66 = vld [vmem:[%s0 + $0x1a0] sm:$0xff]
  %v67 = vld [vmem:[%s0 + $0x1a8] sm:$0xff]
  %v68 = vld [vmem:[%s0 + $0x1b0] sm:$0xff]
  %v69 = vld [vmem:[%s0 + $0x1b8] sm:$0xff]
  %v70 = vld [vmem:[%s0 + $0x1c0] sm:$0xff]
  %v71 = vld [vmem:[%s0 + $0x1c8] sm:$0xff]
  %v72 = vld [vmem:[%s0 + $0x1d0] sm:$0xff]
  %v73 = vld [vmem:[%s0 + $0x1d8] sm:$0xff]
  %v74 = vld [vmem:[%s0 + $0x1e0] sm:$0xff]
  %v75 = vld [vmem:[%s0 + $0x1e8] sm:$0xff]
  %v76 = vld [vmem:[%s0 + $0x1f0] sm:$0xff]
  %v77 = vld [vmem:[%s0 + $0x1f8] sm:$0xff]
  %v78 = vld [vmem:[%s1] sm:$0x1]
  %v80 = vlaneseq
  %v81 = vshrl.u32 %v80, 7
  %v82 = vsub.s32 0, %v81
  %v83 = vrot.slane %v78, %v82
  %v85 = vmul.f32 %v14, %v83
  %v86 = vmul.f32 %v15, %v83
  %v87 = vmul.f32 %v16, %v83
  %v88 = vmul.f32 %v17, %v83
  %v89 = vmul.f32 %v18, %v83
  %v90 = vmul.f32 %v19, %v83
  %v91 = vmul.f32 %v20, %v83
  %v92 = vmul.f32 %v21, %v83
  %v93 = vmul.f32 %v22, %v83
  %v94 = vmul.f32 %v23, %v83
  %v95 = vmul.f32 %v24, %v83
  %v96 = vmul.f32 %v25, %v83
  %v97 = vmul.f32 %v26, %v83
  %v98 = vmul.f32 %v27, %v83
  %v99 = vmul.f32 %v28, %v83
  %v100 = vmul.f32 %v29, %v83
  %v101 = vmul.f32 %v30, %v83
  %v102 = vmul.f32 %v31, %v83
  %v103 = vmul.f32 %v32, %v83
  %v104 = vmul.f32 %v33, %v83
  %v105 = vmul.f32 %v34, %v83
  %v106 = vmul.f32 %v35, %v83
  %v107 = vmul.f32 %v36, %v83
  %v108 = vmul.f32 %v37, %v83
  %v109 = vmul.f32 %v38, %v83
  %v110 = vmul.f32 %v39, %v83
  %v111 = vmul.f32 %v40, %v83
  %v112 = vmul.f32 %v41, %v83
  %v113 = vmul.f32 %v42, %v83
  %v114 = vmul.f32 %v43, %v83
  %v115 = vmul.f32 %v44, %v83
  %v116 = vmul.f32 %v45, %v83
  %v117 = vmul.f32 %v46, %v83
  %v118 = vmul.f32 %v47, %v83
  %v119 = vmul.f32 %v48, %v83
  %v120 = vmul.f32 %v49, %v83
  %v121 = vmul.f32 %v50, %v83
  %v122 = vmul.f32 %v51, %v83
  %v123 = vmul.f32 %v52, %v83
  %v124 = vmul.f32 %v53, %v83
  %v125 = vmul.f32 %v54, %v83
  %v126 = vmul.f32 %v55, %v83
  %v127 = vmul.f32 %v56, %v83
  %v128 = vmul.f32 %v57, %v83
  %v129 = vmul.f32 %v58, %v83
  %v130 = vmul.f32 %v59, %v83
  %v131 = vmul.f32 %v60, %v83
  %v132 = vmul.f32 %v61, %v83
  %v133 = vmul.f32 %v62, %v83
  %v134 = vmul.f32 %v63, %v83
  %v135 = vmul.f32 %v64, %v83
  %v136 = vmul.f32 %v65, %v83
  %v137 = vmul.f32 %v66, %v83
  %v138 = vmul.f32 %v67, %v83
  %v139 = vmul.f32 %v68, %v83
  %v140 = vmul.f32 %v69, %v83
  %v141 = vmul.f32 %v70, %v83
  %v142 = vmul.f32 %v71, %v83
  %v143 = vmul.f32 %v72, %v83
  %v144 = vmul.f32 %v73, %v83
  %v145 = vmul.f32 %v74, %v83
  %v146 = vmul.f32 %v75, %v83
  %v147 = vmul.f32 %v76, %v83
  %v148 = vmul.f32 %v77, %v83
  %v149 = vld [vmem:[%s2] sm:$0x1]
  %v151 = vlaneseq
  %v152 = vshrl.u32 %v151, 7
  %v153 = vsub.s32 0, %v152
  %v154 = vrot.slane %v149, %v153
  %v156 = vadd.f32 %v85, %v154
  %v157 = vadd.f32 %v86, %v154
  %v158 = vadd.f32 %v87, %v154
  %v159 = vadd.f32 %v88, %v154
  %v160 = vadd.f32 %v89, %v154
  %v161 = vadd.f32 %v90, %v154
  %v162 = vadd.f32 %v91, %v154
  %v163 = vadd.f32 %v92, %v154
  %v164 = vadd.f32 %v93, %v154
  %v165 = vadd.f32 %v94, %v154
  %v166 = vadd.f32 %v95, %v154
  %v167 = vadd.f32 %v96, %v154
  %v168 = vadd.f32 %v97, %v154
  %v169 = vadd.f32 %v98, %v154
  %v170 = vadd.f32 %v99, %v154
  %v171 = vadd.f32 %v100, %v154
  %v172 = vadd.f32 %v101, %v154
  %v173 = vadd.f32 %v102, %v154
  %v174 = vadd.f32 %v103, %v154
  %v175 = vadd.f32 %v104, %v154
  %v176 = vadd.f32 %v105, %v154
  %v177 = vadd.f32 %v106, %v154
  %v178 = vadd.f32 %v107, %v154
  %v179 = vadd.f32 %v108, %v154
  %v180 = vadd.f32 %v109, %v154
  %v181 = vadd.f32 %v110, %v154
  %v182 = vadd.f32 %v111, %v154
  %v183 = vadd.f32 %v112, %v154
  %v184 = vadd.f32 %v113, %v154
  %v185 = vadd.f32 %v114, %v154
  %v186 = vadd.f32 %v115, %v154
  %v187 = vadd.f32 %v116, %v154
  %v188 = vadd.f32 %v117, %v154
  %v189 = vadd.f32 %v118, %v154
  %v190 = vadd.f32 %v119, %v154
  %v191 = vadd.f32 %v120, %v154
  %v192 = vadd.f32 %v121, %v154
  %v193 = vadd.f32 %v122, %v154
  %v194 = vadd.f32 %v123, %v154
  %v195 = vadd.f32 %v124, %v154
  %v196 = vadd.f32 %v125, %v154
  %v197 = vadd.f32 %v126, %v154
  %v198 = vadd.f32 %v127, %v154
  %v199 = vadd.f32 %v128, %v154
  %v200 = vadd.f32 %v129, %v154
  %v201 = vadd.f32 %v130, %v154
  %v202 = vadd.f32 %v131, %v154
  %v203 = vadd.f32 %v132, %v154
  %v204 = vadd.f32 %v133, %v154
  %v205 = vadd.f32 %v134, %v154
  %v206 = vadd.f32 %v135, %v154
  %v207 = vadd.f32 %v136, %v154
  %v208 = vadd.f32 %v137, %v154
  %v209 = vadd.f32 %v138, %v154
  %v210 = vadd.f32 %v139, %v154
  %v211 = vadd.f32 %v140, %v154
  %v212 = vadd.f32 %v141, %v154
  %v213 = vadd.f32 %v142, %v154
  %v214 = vadd.f32 %v143, %v154
  %v215 = vadd.f32 %v144, %v154
  %v216 = vadd.f32 %v145, %v154
  %v217 = vadd.f32 %v146, %v154
  %v218 = vadd.f32 %v147, %v154
  %v219 = vadd.f32 %v148, %v154
  %v220 = vmax.f32 %v156, 0.0
  %v221 = vmax.f32 %v157, 0.0
  %v222 = vmax.f32 %v158, 0.0
  %v223 = vmax.f32 %v159, 0.0
  %v224 = vmax.f32 %v160, 0.0
  %v225 = vmax.f32 %v161, 0.0
  %v226 = vmax.f32 %v162, 0.0
  %v227 = vmax.f32 %v163, 0.0
  %v228 = vmax.f32 %v164, 0.0
  %v229 = vmax.f32 %v165, 0.0
  %v230 = vmax.f32 %v166, 0.0
  %v231 = vmax.f32 %v167, 0.0
  %v232 = vmax.f32 %v168, 0.0
  %v233 = vmax.f32 %v169, 0.0
  %v234 = vmax.f32 %v170, 0.0
  %v235 = vmax.f32 %v171, 0.0
  %v236 = vmax.f32 %v172, 0.0
  %v237 = vmax.f32 %v173, 0.0
  %v238 = vmax.f32 %v174, 0.0
  %v239 = vmax.f32 %v175, 0.0
  %v240 = vmax.f32 %v176, 0.0
  %v241 = vmax.f32 %v177, 0.0
  %v242 = vmax.f32 %v178, 0.0
  %v243 = vmax.f32 %v179, 0.0
  %v244 = vmax.f32 %v180, 0.0
  %v245 = vmax.f32 %v181, 0.0
  %v246 = vmax.f32 %v182, 0.0
  %v247 = vmax.f32 %v183, 0.0
  %v248 = vmax.f32 %v184, 0.0
  %v249 = vmax.f32 %v185, 0.0
  %v250 = vmax.f32 %v186, 0.0
  %v251 = vmax.f32 %v187, 0.0
  %v252 = vmax.f32 %v188, 0.0
  %v253 = vmax.f32 %v189, 0.0
  %v254 = vmax.f32 %v190, 0.0
  %v255 = vmax.f32 %v191, 0.0
  %v256 = vmax.f32 %v192, 0.0
  %v257 = vmax.f32 %v193, 0.0
  %v258 = vmax.f32 %v194, 0.0
  %v259 = vmax.f32 %v195, 0.0
  %v260 = vmax.f32 %v196, 0.0
  %v261 = vmax.f32 %v197, 0.0
  %v262 = vmax.f32 %v198, 0.0
  %v263 = vmax.f32 %v199, 0.0
  %v264 = vmax.f32 %v200, 0.0
  %v265 = vmax.f32 %v201, 0.0
  %v266 = vmax.f32 %v202, 0.0
  %v267 = vmax.f32 %v203, 0.0
  %v268 = vmax.f32 %v204, 0.0
  %v269 = vmax.f32 %v205, 0.0
  %v270 = vmax.f32 %v206, 0.0
  %v271 = vmax.f32 %v207, 0.0
  %v272 = vmax.f32 %v208, 0.0
  %v273 = vmax.f32 %v209, 0.0
  %v274 = vmax.f32 %v210, 0.0
  %v275 = vmax.f32 %v211, 0.0
  %v276 = vmax.f32 %v212, 0.0
  %v277 = vmax.f32 %v213, 0.0
  %v278 = vmax.f32 %v214, 0.0
  %v279 = vmax.f32 %v215, 0.0
  %v280 = vmax.f32 %v216, 0.0
  %v281 = vmax.f32 %v217, 0.0
  %v282 = vmax.f32 %v218, 0.0
  %v283 = vmax.f32 %v219, 0.0
  %vm284 = vcmask 130048
  %285 = vst.msk [vmem:[%s3] sm:$0xff] %vm284, %v220
  %286 = vst.msk [vmem:[%s3 + $0x8] sm:$0xff] %vm284, %v221
  %287 = vst.msk [vmem:[%s3 + $0x10] sm:$0xff] %vm284, %v222
  %288 = vst.msk [vmem:[%s3 + $0x18] sm:$0xff] %vm284, %v223
  %289 = vst.msk [vmem:[%s3 + $0x20] sm:$0xff] %vm284, %v224
  %290 = vst.msk [vmem:[%s3 + $0x28] sm:$0xff] %vm284, %v225
  %291 = vst.msk [vmem:[%s3 + $0x30] sm:$0xff] %vm284, %v226
  %292 = vst.msk [vmem:[%s3 + $0x38] sm:$0xff] %vm284, %v227
  %293 = vst.msk [vmem:[%s3 + $0x40] sm:$0xff] %vm284, %v228
  %294 = vst.msk [vmem:[%s3 + $0x48] sm:$0xff] %vm284, %v229
  %295 = vst.msk [vmem:[%s3 + $0x50] sm:$0xff] %vm284, %v230
  %296 = vst.msk [vmem:[%s3 + $0x58] sm:$0xff] %vm284, %v231
  %297 = vst.msk [vmem:[%s3 + $0x60] sm:$0xff] %vm284, %v232
  %298 = vst.msk [vmem:[%s3 + $0x68] sm:$0xff] %vm284, %v233
  %299 = vst.msk [vmem:[%s3 + $0x70] sm:$0xff] %vm284, %v234
  %300 = vst.msk [vmem:[%s3 + $0x78] sm:$0xff] %vm284, %v235
  %301 = vst.msk [vmem:[%s3 + $0x80] sm:$0xff] %vm284, %v236
  %302 = vst.msk [vmem:[%s3 + $0x88] sm:$0xff] %vm284, %v237
  %303 = vst.msk [vmem:[%s3 + $0x90] sm:$0xff] %vm284, %v238
  %304 = vst.msk [vmem:[%s3 + $0x98] sm:$0xff] %vm284, %v239
  %305 = vst.msk [vmem:[%s3 + $0xa0] sm:$0xff] %vm284, %v240
  %306 = vst.msk [vmem:[%s3 + $0xa8] sm:$0xff] %vm284, %v241
  %307 = vst.msk [vmem:[%s3 + $0xb0] sm:$0xff] %vm284, %v242
  %308 = vst.msk [vmem:[%s3 + $0xb8] sm:$0xff] %vm284, %v243
  %309 = vst.msk [vmem:[%s3 + $0xc0] sm:$0xff] %vm284, %v244
  %310 = vst.msk [vmem:[%s3 + $0xc8] sm:$0xff] %vm284, %v245
  %311 = vst.msk [vmem:[%s3 + $0xd0] sm:$0xff] %vm284, %v246
  %312 = vst.msk [vmem:[%s3 + $0xd8] sm:$0xff] %vm284, %v247
  %313 = vst.msk [vmem:[%s3 + $0xe0] sm:$0xff] %vm284, %v248
  %314 = vst.msk [vmem:[%s3 + $0xe8] sm:$0xff] %vm284, %v249
  %315 = vst.msk [vmem:[%s3 + $0xf0] sm:$0xff] %vm284, %v250
  %316 = vst.msk [vmem:[%s3 + $0xf8] sm:$0xff] %vm284, %v251
  %317 = vst.msk [vmem:[%s3 + $0x100] sm:$0xff] %vm284, %v252
  %318 = vst.msk [vmem:[%s3 + $0x108] sm:$0xff] %vm284, %v253
  %319 = vst.msk [vmem:[%s3 + $0x110] sm:$0xff] %vm284, %v254
  %320 = vst.msk [vmem:[%s3 + $0x118] sm:$0xff] %vm284, %v255
  %321 = vst.msk [vmem:[%s3 + $0x120] sm:$0xff] %vm284, %v256
  %322 = vst.msk [vmem:[%s3 + $0x128] sm:$0xff] %vm284, %v257
  %323 = vst.msk [vmem:[%s3 + $0x130] sm:$0xff] %vm284, %v258
  %324 = vst.msk [vmem:[%s3 + $0x138] sm:$0xff] %vm284, %v259
  %325 = vst.msk [vmem:[%s3 + $0x140] sm:$0xff] %vm284, %v260
  %326 = vst.msk [vmem:[%s3 + $0x148] sm:$0xff] %vm284, %v261
  %327 = vst.msk [vmem:[%s3 + $0x150] sm:$0xff] %vm284, %v262
  %328 = vst.msk [vmem:[%s3 + $0x158] sm:$0xff] %vm284, %v263
  %329 = vst.msk [vmem:[%s3 + $0x160] sm:$0xff] %vm284, %v264
  %330 = vst.msk [vmem:[%s3 + $0x168] sm:$0xff] %vm284, %v265
  %331 = vst.msk [vmem:[%s3 + $0x170] sm:$0xff] %vm284, %v266
  %332 = vst.msk [vmem:[%s3 + $0x178] sm:$0xff] %vm284, %v267
  %333 = vst.msk [vmem:[%s3 + $0x180] sm:$0xff] %vm284, %v268
  %334 = vst.msk [vmem:[%s3 + $0x188] sm:$0xff] %vm284, %v269
  %335 = vst.msk [vmem:[%s3 + $0x190] sm:$0xff] %vm284, %v270
  %336 = vst.msk [vmem:[%s3 + $0x198] sm:$0xff] %vm284, %v271
  %337 = vst.msk [vmem:[%s3 + $0x1a0] sm:$0xff] %vm284, %v272
  %338 = vst.msk [vmem:[%s3 + $0x1a8] sm:$0xff] %vm284, %v273
  %339 = vst.msk [vmem:[%s3 + $0x1b0] sm:$0xff] %vm284, %v274
  %340 = vst.msk [vmem:[%s3 + $0x1b8] sm:$0xff] %vm284, %v275
  %341 = vst.msk [vmem:[%s3 + $0x1c0] sm:$0xff] %vm284, %v276
  %342 = vst.msk [vmem:[%s3 + $0x1c8] sm:$0xff] %vm284, %v277
  %343 = vst.msk [vmem:[%s3 + $0x1d0] sm:$0xff] %vm284, %v278
  %344 = vst.msk [vmem:[%s3 + $0x1d8] sm:$0xff] %vm284, %v279
  %345 = vst.msk [vmem:[%s3 + $0x1e0] sm:$0xff] %vm284, %v280
  %346 = vst.msk [vmem:[%s3 + $0x1e8] sm:$0xff] %vm284, %v281
  %347 = vst.msk [vmem:[%s3 + $0x1f0] sm:$0xff] %vm284, %v282
  %348 = vst.msk [vmem:[%s3 + $0x1f8] sm:$0xff] %vm284, %v283
  // Predicated region
  $region14: #{_generator_forward.14} parent=0 // pred_check
    _
  $region15: #{_generator_forward.14} parent=0 // pred_check_branch
    %350 = sbr.rel (0) target = $region17
  $region16: #{_generator_forward.14} parent=0 // pred_region
    _
  $region17: #{_generator_forward.14} parent=0 // pred_fallthru
    _
  // Predicated region
  $region18: #{_generator_forward.14} parent=0 // pred_check
    _
  $region19: #{_generator_forward.14} parent=0 // pred_check_branch
    %352 = sbr.rel (0) target = $region21
  $region20: #{_generator_forward.14} parent=0 // pred_region
    _
  $region21: #{_generator_forward.14} parent=0 // pred_fallthru
    _

// kernel: _generator_forward.15
$region0: #{_generator_forward.15}
  #allocation0 [shape = 'u32[]', space=smem, size = 0x4, offset = 0x4, fixed_abs, tag = 'smem constant byte address 0x4 - core index']
  #allocation1 [shape = 'u32[144,128]{1,0:T(1,128)}', space=vmem, size = 0x12000, scoped, tag = 'internal scratch']
  %s0 = inlined_call_operand.vmem [shape: bf16[4,512,64], index: 0, kind: input, shape index: {}]
  %s1 = inlined_call_operand.vmem [shape: bf16[4,64,8], index: 1, kind: input, shape index: {}]
  %s2 = inlined_call_operand.vmem [shape: f32[4,512,8], index: 2, kind: output, shape index: {0}]
  %s3 = inlined_call_operand.vmem [shape: f32[4,1,2,8], index: 3, kind: output, shape index: {1}]
  %4 = xla_tuple %s2, %s3
  %s5 = sld [smem:[#allocation0]]
  $region49: #{_generator_forward.15} parent=0
    _
  %s7 = ssub.s32 1, %s5
  %s8 = scalar_select 0, %s7, %s5
  loop: start=0, step=1, limit=6
  $region2: #{_generator_forward.15} parent=0 // loop_pre_header
    _
  $region3: #{_generator_forward.15} parent=0 // loop_header
    %s10 = sphi 0, %s14
    %p11 = scmp.ge.s32.totalorder %s10, 6
    %s17 = sphi 0, %s29
    %s18 = sphi 0, %s25
    %s19 = sphi 0, %s17
    %s20 = sphi 0, %s18
    %s21 = sphi 0, %s19
    %s22 = sphi 0, %s20
    %s34 = sphi 0, %s36
    %s37 = sphi 0, %s34
    %s38 = sphi 0, %s37
    %s54 = sphi 0, %s38
    %s60 = sphi 0, %s62
    %s63 = sphi 0, %s60
    %s64 = sphi 0, %s63
    %s80 = sphi 0, %s64
    %s88 = sphi 0, %s90
    %s91 = sphi 0, %s88
    %s92 = sphi 0, %s91
    %s108 = sphi 0, %s92
    %s116 = sphi 0, %s118
    %s119 = sphi 0, %s116
    %s120 = sphi 0, %s119
    %s136 = sphi 0, %s120
  $region4: #{_generator_forward.15} parent=0 // loop_header_branch
    %13 = sbr.rel (%p11) target = $region8
  $region5: #{_generator_forward.15} parent=0 // loop_body
    %s15 = ssub.s32 %s10, 1
    %s16 = ssub.s32 %s10, 2
    %s23 = sadd.s32 1, %s18
    %p24 = scmp.ge.s32.totalorder %s23, 1
    %s25 = scalar_select %p24, 0, %s23
    %s26 = sadd.s32 1, %s17
    %s27 = scalar_select %p24, %s26, %s17
    %p28 = scmp.ge.s32.totalorder %s27, 4
    %s29 = scalar_select %p28, 0, %s27
    %s30 = ssub.s32 %s17, %s29
    %s31 = ssub.s32 %s18, %s25
    %s32 = sor.u32 %s30, %s31
    %p33 = scmp.eq.s32.totalorder %s32, 0
    %s35 = sadd.s32 %s34, 1
    %s36 = scalar_select %p33, %s34, %s35
    %p39 = pneg %p33
    %p40 = scmp.eq.s32.totalorder %s10, 3
    %p41 = por %p39, %p40
    %p42 = scmp.ne.s32.totalorder %s34, %s37
    %p43 = scmp.eq.s32.totalorder %s10, 0
    %p44 = por %p42, %p43
    %p45 = scmp.ne.s32.totalorder %s34, %s37
    %p46 = scmp.eq.s32.totalorder %s15, 3
    %p47 = por %p45, %p46
    %p48 = scmp.ne.s32.totalorder %s37, %s38
    %p49 = scmp.eq.s32.totalorder %s15, 0
    %p50 = por %p48, %p49
    %p51 = scmp.ne.s32.totalorder %s37, %s38
    %p52 = scmp.eq.s32.totalorder %s16, 3
    %p53 = por %p51, %p52
    %p55 = scmp.ne.s32.totalorder %s38, %s54
    %p56 = scmp.eq.s32.totalorder %s16, 0
    %p57 = por %p55, %p56
    %s58 = ssub.s32 %s17, %s29
    %p59 = scmp.eq.s32.totalorder %s58, 0
    %s61 = sadd.s32 %s60, 1
    %s62 = scalar_select %p59, %s60, %s61
    %p65 = pneg %p59
    %p66 = scmp.eq.s32.totalorder %s10, 3
    %p67 = por %p65, %p66
    %p68 = scmp.ne.s32.totalorder %s60, %s63
    %p69 = scmp.eq.s32.totalorder %s10, 0
    %p70 = por %p68, %p69
    %p71 = scmp.ne.s32.totalorder %s60, %s63
    %p72 = scmp.eq.s32.totalorder %s15, 3
    %p73 = por %p71, %p72
    %p74 = scmp.ne.s32.totalorder %s63, %s64
    %p75 = scmp.eq.s32.totalorder %s15, 0
    %p76 = por %p74, %p75
    %p77 = scmp.ne.s32.totalorder %s63, %s64
    %p78 = scmp.eq.s32.totalorder %s16, 3
    %p79 = por %p77, %p78
    %p81 = scmp.ne.s32.totalorder %s64, %s80
    %p82 = scmp.eq.s32.totalorder %s16, 0
    %p83 = por %p81, %p82
    %s84 = ssub.s32 %s17, %s29
    %s85 = ssub.s32 %s18, %s25
    %s86 = sor.u32 %s84, %s85
    %p87 = scmp.eq.s32.totalorder %s86, 0
    %s89 = sadd.s32 %s88, 1
    %s90 = scalar_select %p87, %s88, %s89
    %p93 = pneg %p87
    %p94 = scmp.eq.s32.totalorder %s10, 3
    %p95 = por %p93, %p94
    %p96 = scmp.ne.s32.totalorder %s88, %s91
    %p97 = scmp.eq.s32.totalorder %s10, 0
    %p98 = por %p96, %p97
    %p99 = scmp.ne.s32.totalorder %s88, %s91
    %p100 = scmp.eq.s32.totalorder %s15, 3
    %p101 = por %p99, %p100
    %p102 = scmp.ne.s32.totalorder %s91, %s92
    %p103 = scmp.eq.s32.totalorder %s15, 0
    %p104 = por %p102, %p103
    %p105 = scmp.ne.s32.totalorder %s91, %s92
    %p106 = scmp.eq.s32.totalorder %s16, 3
    %p107 = por %p105, %p106
    %p109 = scmp.ne.s32.totalorder %s92, %s108
    %p110 = scmp.eq.s32.totalorder %s16, 0
    %p111 = por %p109, %p110
    %s112 = ssub.s32 %s17, %s29
    %s113 = ssub.s32 %s18, %s25
    %s114 = sor.u32 %s112, %s113
    %p115 = scmp.eq.s32.totalorder %s114, 0
    %s117 = sadd.s32 %s116, 1
    %s118 = scalar_select %p115, %s116, %s117
    %p121 = pneg %p115
    %p122 = scmp.eq.s32.totalorder %s10, 3
    %p123 = por %p121, %p122
    %p124 = scmp.ne.s32.totalorder %s116, %s119
    %p125 = scmp.eq.s32.totalorder %s10, 0
    %p126 = por %p124, %p125
    %p127 = scmp.ne.s32.totalorder %s116, %s119
    %p128 = scmp.eq.s32.totalorder %s15, 3
    %p129 = por %p127, %p128
    %p130 = scmp.ne.s32.totalorder %s119, %s120
    %p131 = scmp.eq.s32.totalorder %s15, 0
    %p132 = por %p130, %p131
    %p133 = scmp.ne.s32.totalorder %s119, %s120
    %p134 = scmp.eq.s32.totalorder %s16, 3
    %p135 = por %p133, %p134
    %p137 = scmp.ne.s32.totalorder %s120, %s136
    %p138 = scmp.eq.s32.totalorder %s16, 0
    %p139 = por %p137, %p138
    %p140 = scmp.le.s32.totalorder 1, %s10
    %p141 = scmp.lt.s32.totalorder %s10, 5
    %p142 = pnand %p140, %p141
    %p143 = pneg %p142
    // Predicated region
    $region9: #{_generator_forward.15} parent=5 // pred_check
      _
    $region10: #{_generator_forward.15} parent=5 // pred_check_branch
      %145 = sbr.rel (%p142) target = $region12
    $region11: #{_generator_forward.15} parent=5 // pred_region
      %s146 = ssub.s32 %s10, 1
    $region12: #{_generator_forward.15} parent=5 // pred_fallthru
      _
    %p147 = scmp.lt.s32.totalorder %s10, 4
    // Predicated region
    $region13: #{_generator_forward.15} parent=5 // pred_check
      %p148 = pneg %p147
    $region14: #{_generator_forward.15} parent=5 // pred_check_branch
      %150 = sbr.rel (%p148) target = $region16
    $region15: #{_generator_forward.15} parent=5 // pred_region
      // Predicated region
      $region17: #{_generator_forward.15} parent=15 // pred_check
        %p151 = pneg %p44
      $region18: #{_generator_forward.15} parent=15 // pred_check_branch
        %153 = sbr.rel (%p151) target = $region20
      $region19: #{_generator_forward.15} parent=15 // pred_region
        %s154 = smul.u32 64, %s18
        %p155 = scmp.lt.s32.totalorder %s17, 3
        %s156 = scalar_select %p155, %s17, 3
        %p157 = scmp.lt.s32.totalorder %s154, 63
        %s158 = scalar_select %p157, %s154, 63
        %s159 = smul.addr %s156, 64
        %s160 = sadd.s32 %s158, %s159
        %s161 = smul.addr %s160, 4
        %s162 = scalar_lea.vmem %s0, %s161
        %s163 = smul.u32 64, %s18
      $region20: #{_generator_forward.15} parent=15 // pred_fallthru
        _
      // Predicated region
      $region21: #{_generator_forward.15} parent=15 // pred_check
        %p164 = pneg %p70
      $region22: #{_generator_forward.15} parent=15 // pred_check_branch
        %166 = sbr.rel (%p164) target = $region24
      $region23: #{_generator_forward.15} parent=15 // pred_region
        %p167 = scmp.lt.s32.totalorder %s17, 3
        %s168 = scalar_select %p167, %s17, 3
        %s169 = smul.addr %s168, 8
        %s170 = smul.addr %s169, 4
        %s171 = scalar_lea.vmem %s1, %s170
      $region24: #{_generator_forward.15} parent=15 // pred_fallthru
        _
    $region16: #{_generator_forward.15} parent=5 // pred_fallthru
      _
    %p172 = scmp.le.s32.totalorder 1, %s10
    %p173 = scmp.lt.s32.totalorder %s10, 5
    %p174 = pnand %p172, %p173
    %p175 = pneg %p174
    // Predicated region
    $region25: #{_generator_forward.15} parent=5 // pred_check
      _
    $region26: #{_generator_forward.15} parent=5 // pred_check_branch
      %177 = sbr.rel (%p174) target = $region28
    $region27: #{_generator_forward.15} parent=5 // pred_region
      %s178 = ssub.s32 %s10, 1
      %s179 = smul.u32 64, %s20
      %p180 = scmp.lt.s32.totalorder %s19, 3
      %s181 = scalar_select %p180, %s19, 3
      %p182 = scmp.lt.s32.totalorder %s179, 63
      %s183 = scalar_select %p182, %s179, 63
      %s184 = smul.addr %s181, 64
      %s185 = sadd.s32 %s183, %s184
      %s186 = smul.addr %s185, 4
      %s187 = scalar_lea.vmem %s0, %s186
      %p188 = pneg %p50
      %p189 = pneg %p47
      %p190 = scmp.lt.s32.totalorder %s19, 3
      %s191 = scalar_select %p190, %s19, 3
      %s192 = smul.addr %s191, 8
      %s193 = smul.addr %s192, 4
      %s194 = scalar_lea.vmem %s1, %s193
      %p195 = pneg %p76
      %p196 = pneg %p73
      %p197 = pneg %p104
      %p198 = pneg %p101
      %s199 = smul.u32 64, %s20
      %p200 = scmp.lt.s32.totalorder %s19, 3
      %s201 = scalar_select %p200, %s19, 3
      %p202 = scmp.lt.s32.totalorder %s199, 63
      %s203 = scalar_select %p202, %s199, 63
      %s204 = smul.addr %s201, 64
      %s205 = sadd.s32 %s203, %s204
      %s206 = smul.addr %s205, 8
      %s207 = scalar_lea.vmem %s2, %s206
      %p208 = pneg %p132
      %p209 = pneg %p129
      %p210 = scmp.lt.s32.totalorder %s19, 3
      %s211 = scalar_select %p210, %s19, 3
      %p212 = scmp.lt.s32.totalorder %s20, 0
      %s213 = scalar_select %p212, %s20, 0
      %s214 = sadd.s32 %s213, %s211
      %s215 = smul.addr %s214, 2
      %s216 = scalar_lea.vmem %s3, %s215
      %s217 = smul.u32 64, %s20
      %p218 = scmp.lt.s32.totalorder %s19, 3
      %s219 = scalar_select %p218, %s19, 3
      %p220 = scmp.lt.s32.totalorder %s217, 63
      %s221 = scalar_select %p220, %s217, 63
      %s222 = smul.addr %s219, 64
      %s223 = sadd.s32 %s221, %s222
      %s224 = smul.addr %s223, 4
      %s225 = scalar_lea.vmem %s0, %s224
      %s226 = smul.u32 64, %s20
      %p227 = scmp.lt.s32.totalorder %s19, 3
      %s228 = scalar_select %p227, %s19, 3
      %s229 = smul.addr %s228, 8
      %s230 = smul.addr %s229, 4
      %s231 = scalar_lea.vmem %s1, %s230
      %s232 = smul.u32 64, %s20
      %p233 = scmp.lt.s32.totalorder %s19, 3
      %s234 = scalar_select %p233, %s19, 3
      %p235 = scmp.lt.s32.totalorder %s232, 63
      %s236 = scalar_select %p235, %s232, 63
      %s237 = smul.addr %s234, 64
      %s238 = sadd.s32 %s236, %s237
      %s239 = smul.addr %s238, 8
      %s240 = scalar_lea.vmem %s2, %s239
      %s241 = smul.u32 64, %s20
      %p242 = scmp.lt.s32.totalorder %s19, 3
      %s243 = scalar_select %p242, %s19, 3
      %p244 = scmp.lt.s32.totalorder %s20, 0
      %s245 = scalar_select %p244, %s20, 0
      %s246 = sadd.s32 %s245, %s243
      %s247 = smul.addr %s246, 2
      %s248 = scalar_lea.vmem %s3, %s247
      %v250 = vld [vmem:[%s225] sm:$0xf]
      %v251 = vld [vmem:[%s225 + $0x4] sm:$0xf]
      %v252 = vld [vmem:[%s225 + $0x8] sm:$0xf]
      %v253 = vld [vmem:[%s225 + $0xc] sm:$0xf]
      %v254 = vld [vmem:[%s225 + $0x10] sm:$0xf]
      %v255 = vld [vmem:[%s225 + $0x14] sm:$0xf]
      %v256 = vld [vmem:[%s225 + $0x18] sm:$0xf]
      %v257 = vld [vmem:[%s225 + $0x1c] sm:$0xf]
      %v258 = vld [vmem:[%s225 + $0x20] sm:$0xf]
      %v259 = vld [vmem:[%s225 + $0x24] sm:$0xf]
      %v260 = vld [vmem:[%s225 + $0x28] sm:$0xf]
      %v261 = vld [vmem:[%s225 + $0x2c] sm:$0xf]
      %v262 = vld [vmem:[%s225 + $0x30] sm:$0xf]
      %v263 = vld [vmem:[%s225 + $0x34] sm:$0xf]
      %v264 = vld [vmem:[%s225 + $0x38] sm:$0xf]
      %v265 = vld [vmem:[%s225 + $0x3c] sm:$0xf]
      %v266 = vld [vmem:[%s225 + $0x40] sm:$0xf]
      %v267 = vld [vmem:[%s225 + $0x44] sm:$0xf]
      %v268 = vld [vmem:[%s225 + $0x48] sm:$0xf]
      %v269 = vld [vmem:[%s225 + $0x4c] sm:$0xf]
      %v270 = vld [vmem:[%s225 + $0x50] sm:$0xf]
      %v271 = vld [vmem:[%s225 + $0x54] sm:$0xf]
      %v272 = vld [vmem:[%s225 + $0x58] sm:$0xf]
      %v273 = vld [vmem:[%s225 + $0x5c] sm:$0xf]
      %v274 = vld [vmem:[%s225 + $0x60] sm:$0xf]
      %v275 = vld [vmem:[%s225 + $0x64] sm:$0xf]
      %v276 = vld [vmem:[%s225 + $0x68] sm:$0xf]
      %v277 = vld [vmem:[%s225 + $0x6c] sm:$0xf]
      %v278 = vld [vmem:[%s225 + $0x70] sm:$0xf]
      %v279 = vld [vmem:[%s225 + $0x74] sm:$0xf]
      %v280 = vld [vmem:[%s225 + $0x78] sm:$0xf]
      %v281 = vld [vmem:[%s225 + $0x7c] sm:$0xf]
      %v282 = vld [vmem:[%s225 + $0x80] sm:$0xf]
      %v283 = vld [vmem:[%s225 + $0x84] sm:$0xf]
      %v284 = vld [vmem:[%s225 + $0x88] sm:$0xf]
      %v285 = vld [vmem:[%s225 + $0x8c] sm:$0xf]
      %v286 = vld [vmem:[%s225 + $0x90] sm:$0xf]
      %v287 = vld [vmem:[%s225 + $0x94] sm:$0xf]
      %v288 = vld [vmem:[%s225 + $0x98] sm:$0xf]
      %v289 = vld [vmem:[%s225 + $0x9c] sm:$0xf]
      %v290 = vld [vmem:[%s225 + $0xa0] sm:$0xf]
      %v291 = vld [vmem:[%s225 + $0xa4] sm:$0xf]
      %v292 = vld [vmem:[%s225 + $0xa8] sm:$0xf]
      %v293 = vld [vmem:[%s225 + $0xac] sm:$0xf]
      %v294 = vld [vmem:[%s225 + $0xb0] sm:$0xf]
      %v295 = vld [vmem:[%s225 + $0xb4] sm:$0xf]
      %v296 = vld [vmem:[%s225 + $0xb8] sm:$0xf]
      %v297 = vld [vmem:[%s225 + $0xbc] sm:$0xf]
      %v298 = vld [vmem:[%s225 + $0xc0] sm:$0xf]
      %v299 = vld [vmem:[%s225 + $0xc4] sm:$0xf]
      %v300 = vld [vmem:[%s225 + $0xc8] sm:$0xf]
      %v301 = vld [vmem:[%s225 + $0xcc] sm:$0xf]
      %v302 = vld [vmem:[%s225 + $0xd0] sm:$0xf]
      %v303 = vld [vmem:[%s225 + $0xd4] sm:$0xf]
      %v304 = vld [vmem:[%s225 + $0xd8] sm:$0xf]
      %v305 = vld [vmem:[%s225 + $0xdc] sm:$0xf]
      %v306 = vld [vmem:[%s225 + $0xe0] sm:$0xf]
      %v307 = vld [vmem:[%s225 + $0xe4] sm:$0xf]
      %v308 = vld [vmem:[%s225 + $0xe8] sm:$0xf]
      %v309 = vld [vmem:[%s225 + $0xec] sm:$0xf]
      %v310 = vld [vmem:[%s225 + $0xf0] sm:$0xf]
      %v311 = vld [vmem:[%s225 + $0xf4] sm:$0xf]
      %v312 = vld [vmem:[%s225 + $0xf8] sm:$0xf]
      %v313 = vld [vmem:[%s225 + $0xfc] sm:$0xf]
      %v314 = vld [vmem:[%s231] sm:$0xf]
      %v315 = vld [vmem:[%s231 + $0x4] sm:$0xf]
      %v316 = vld [vmem:[%s231 + $0x8] sm:$0xf]
      %v317 = vld [vmem:[%s231 + $0xc] sm:$0xf]
      %v318 = vld [vmem:[%s231 + $0x10] sm:$0xf]
      %v319 = vld [vmem:[%s231 + $0x14] sm:$0xf]
      %v320 = vld [vmem:[%s231 + $0x18] sm:$0xf]
      %v321 = vld [vmem:[%s231 + $0x1c] sm:$0xf]
      %v386 = vunpack.c.l.b16 %v250
      %v387 = vunpack.c.l.b16 %v251
      %v388 = vunpack.c.l.b16 %v252
      %v389 = vunpack.c.l.b16 %v253
      %v390 = vunpack.c.l.b16 %v254
      %v391 = vunpack.c.l.b16 %v255
      %v392 = vunpack.c.l.b16 %v256
      %v393 = vunpack.c.l.b16 %v257
      %v394 = vunpack.c.l.b16 %v258
      %v395 = vunpack.c.l.b16 %v259
      %v396 = vunpack.c.l.b16 %v260
      %v397 = vunpack.c.l.b16 %v261
      %v398 = vunpack.c.l.b16 %v262
      %v399 = vunpack.c.l.b16 %v263
      %v400 = vunpack.c.l.b16 %v264
      %v401 = vunpack.c.l.b16 %v265
      %v402 = vunpack.c.l.b16 %v266
      %v403 = vunpack.c.l.b16 %v267
      %v404 = vunpack.c.l.b16 %v268
      %v405 = vunpack.c.l.b16 %v269
      %v406 = vunpack.c.l.b16 %v270
      %v407 = vunpack.c.l.b16 %v271
      %v408 = vunpack.c.l.b16 %v272
      %v409 = vunpack.c.l.b16 %v273
      %v410 = vunpack.c.l.b16 %v274
      %v411 = vunpack.c.l.b16 %v275
      %v412 = vunpack.c.l.b16 %v276
      %v413 = vunpack.c.l.b16 %v277
      %v414 = vunpack.c.l.b16 %v278
      %v415 = vunpack.c.l.b16 %v279
      %v416 = vunpack.c.l.b16 %v280
      %v417 = vunpack.c.l.b16 %v281
      %v418 = vunpack.c.l.b16 %v282
      %v419 = vunpack.c.l.b16 %v283
      %v420 = vunpack.c.l.b16 %v284
      %v421 = vunpack.c.l.b16 %v285
      %v422 = vunpack.c.l.b16 %v286
      %v423 = vunpack.c.l.b16 %v287
      %v424 = vunpack.c.l.b16 %v288
      %v425 = vunpack.c.l.b16 %v289
      %v426 = vunpack.c.l.b16 %v290
      %v427 = vunpack.c.l.b16 %v291
      %v428 = vunpack.c.l.b16 %v292
      %v429 = vunpack.c.l.b16 %v293
      %v430 = vunpack.c.l.b16 %v294
      %v431 = vunpack.c.l.b16 %v295
      %v432 = vunpack.c.l.b16 %v296
      %v433 = vunpack.c.l.b16 %v297
      %v434 = vunpack.c.l.b16 %v298
      %v435 = vunpack.c.l.b16 %v299
      %v436 = vunpack.c.l.b16 %v300
      %v437 = vunpack.c.l.b16 %v301
      %v438 = vunpack.c.l.b16 %v302
      %v439 = vunpack.c.l.b16 %v303
      %v440 = vunpack.c.l.b16 %v304
      %v441 = vunpack.c.l.b16 %v305
      %v442 = vunpack.c.l.b16 %v306
      %v443 = vunpack.c.l.b16 %v307
      %v444 = vunpack.c.l.b16 %v308
      %v445 = vunpack.c.l.b16 %v309
      %v446 = vunpack.c.l.b16 %v310
      %v447 = vunpack.c.l.b16 %v311
      %v448 = vunpack.c.l.b16 %v312
      %v449 = vunpack.c.l.b16 %v313
      %v450 = vpack.c.b16 %v387, %v386
      %v451 = vpack.c.b16 %v389, %v388
      %v452 = vpack.c.b16 %v391, %v390
      %v453 = vpack.c.b16 %v393, %v392
      %v454 = vpack.c.b16 %v395, %v394
      %v455 = vpack.c.b16 %v397, %v396
      %v456 = vpack.c.b16 %v399, %v398
      %v457 = vpack.c.b16 %v401, %v400
      %v458 = vpack.c.b16 %v403, %v402
      %v459 = vpack.c.b16 %v405, %v404
      %v460 = vpack.c.b16 %v407, %v406
      %v461 = vpack.c.b16 %v409, %v408
      %v462 = vpack.c.b16 %v411, %v410
      %v463 = vpack.c.b16 %v413, %v412
      %v464 = vpack.c.b16 %v415, %v414
      %v465 = vpack.c.b16 %v417, %v416
      %v466 = vpack.c.b16 %v419, %v418
      %v467 = vpack.c.b16 %v421, %v420
      %v468 = vpack.c.b16 %v423, %v422
      %v469 = vpack.c.b16 %v425, %v424
      %v470 = vpack.c.b16 %v427, %v426
      %v471 = vpack.c.b16 %v429, %v428
      %v472 = vpack.c.b16 %v431, %v430
      %v473 = vpack.c.b16 %v433, %v432
      %v474 = vpack.c.b16 %v435, %v434
      %v475 = vpack.c.b16 %v437, %v436
      %v476 = vpack.c.b16 %v439, %v438
      %v477 = vpack.c.b16 %v441, %v440
      %v478 = vpack.c.b16 %v443, %v442
      %v479 = vpack.c.b16 %v445, %v444
      %v480 = vpack.c.b16 %v447, %v446
      %v481 = vpack.c.b16 %v449, %v448
      %v490 = vunpack.c.l.b16 %v314
      %v491 = vunpack.c.l.b16 %v315
      %v492 = vunpack.c.l.b16 %v316
      %v493 = vunpack.c.l.b16 %v317
      %v494 = vunpack.c.l.b16 %v318
      %v495 = vunpack.c.l.b16 %v319
      %v496 = vunpack.c.l.b16 %v320
      %v497 = vunpack.c.l.b16 %v321
      %v498 = vpack.c.b16 %v491, %v490
      %v499 = vpack.c.b16 %v493, %v492
      %v500 = vpack.c.b16 %v495, %v494
      %v501 = vpack.c.b16 %v497, %v496
      %vm506 = vcmask 523264
      %v508 = vsel %vm506, %v450, 0
      %v511 = vsel %vm506, %v451, 0
      %v514 = vsel %vm506, %v452, 0
      %v517 = vsel %vm506, %v453, 0
      %v520 = vsel %vm506, %v454, 0
      %v523 = vsel %vm506, %v455, 0
      %v526 = vsel %vm506, %v456, 0
      %v529 = vsel %vm506, %v457, 0
      %v532 = vsel %vm506, %v458, 0
      %v535 = vsel %vm506, %v459, 0
      %v538 = vsel %vm506, %v460, 0
      %v541 = vsel %vm506, %v461, 0
      %v544 = vsel %vm506, %v462, 0
      %v547 = vsel %vm506, %v463, 0
      %v550 = vsel %vm506, %v464, 0
      %v553 = vsel %vm506, %v465, 0
      %v556 = vsel %vm506, %v466, 0
      %v559 = vsel %vm506, %v467, 0
      %v562 = vsel %vm506, %v468, 0
      %v565 = vsel %vm506, %v469, 0
      %v568 = vsel %vm506, %v470, 0
      %v571 = vsel %vm506, %v471, 0
      %v574 = vsel %vm506, %v472, 0
      %v577 = vsel %vm506, %v473, 0
      %v580 = vsel %vm506, %v474, 0
      %v583 = vsel %vm506, %v475, 0
      %v586 = vsel %vm506, %v476, 0
      %v589 = vsel %vm506, %v477, 0
      %v592 = vsel %vm506, %v478, 0
      %v595 = vsel %vm506, %v479, 0
      %v598 = vsel %vm506, %v480, 0
      %v601 = vsel %vm506, %v481, 0
      %603 = vmatprep.subr.bf16.mxu0 0
      %604 = vmatpush1.bf16.msra.mxu0 0
      %605 = vmatprep.subr.bf16.mxu0 0
      %606 = vmatpush1.bf16.msra.mxu0 0
      %607 = vmatprep.subr.bf16.mxu0 0
      %608 = vmatpush1.bf16.msra.mxu0 0
      %609 = vmatprep.subr.bf16.mxu0 0
      %610 = vmatpush1.bf16.msra.mxu0 0
      %611 = vmatprep.subr.bf16.mxu0 0
      %612 = vmatpush1.bf16.msra.mxu0 %v501
      %613 = vmatprep.subr.bf16.mxu0 0
      %614 = vmatpush1.bf16.msra.mxu0 %v500
      %615 = vmatprep.subr.bf16.mxu0 0
      %616 = vmatpush1.bf16.msra.mxu0 %v499
      %617 = vmatprep.subr.bf16.mxu0 0
      %618 = vmatpush1.bf16.msra.mxu0 %v498
      %619 = vmatprep.subr.bf16.mxu0 0
      %620 = vmatpush2.bf16.msra.mxu0 0
      %621 = vmatprep.subr.bf16.mxu0 0
      %622 = vmatpush2.bf16.msra.mxu0 0
      %623 = vmatprep.subr.bf16.mxu0 0
      %624 = vmatpush2.bf16.msra.mxu0 0
      %625 = vmatprep.subr.bf16.mxu0 0
      %626 = vmatpush2.bf16.msra.mxu0 0
      %627 = vmatprep.subr.bf16.mxu0 0
      %628 = vmatpush2.bf16.msra.mxu0 0
      %629 = vmatprep.subr.bf16.mxu0 0
      %630 = vmatpush2.bf16.msra.mxu0 0
      %631 = vmatprep.subr.bf16.mxu0 0
      %632 = vmatpush2.bf16.msra.mxu0 0
      %633 = vmatprep.subr.bf16.mxu0 0
      %634 = vmatpush2.bf16.msra.mxu0 0
      %635 = vmatprep.mubr.bf16.mxu0 0
      %636 = vmatmul.mubr.bf16.gmra.mxu0 %v508
      %v637 = vpop.f32.mrf.mxu0
      %v638 = vadd.f32 0.0, %v637
      %v639 = vpop.f32.mrf.mxu0
      %v640 = vpop.f32.mrf.mxu0
      %v641 = vadd.f32 0.0, %v640
      %v642 = vpop.f32.mrf.mxu0
      %643 = vmatprep.mubr.bf16.mxu0 0
      %644 = vmatmul.mubr.bf16.gmra.mxu0 %v511
      %v645 = vpop.f32.mrf.mxu0
      %v646 = vadd.f32 0.0, %v645
      %v647 = vpop.f32.mrf.mxu0
      %v648 = vpop.f32.mrf.mxu0
      %v649 = vadd.f32 0.0, %v648
      %v650 = vpop.f32.mrf.mxu0
      %651 = vmatprep.mubr.bf16.mxu0 0
      %652 = vmatmul.mubr.bf16.gmra.mxu0 %v514
      %v653 = vpop.f32.mrf.mxu0
      %v654 = vadd.f32 0.0, %v653
      %v655 = vpop.f32.mrf.mxu0
      %v656 = vpop.f32.mrf.mxu0
      %v657 = vadd.f32 0.0, %v656
      %v658 = vpop.f32.mrf.mxu0
      %659 = vmatprep.mubr.bf16.mxu0 0
      %660 = vmatmul.mubr.bf16.gmra.mxu0 %v517
      %v661 = vpop.f32.mrf.mxu0
      %v662 = vadd.f32 0.0, %v661
      %v663 = vpop.f32.mrf.mxu0
      %v664 = vpop.f32.mrf.mxu0
      %v665 = vadd.f32 0.0, %v664
      %v666 = vpop.f32.mrf.mxu0
      %667 = vmatprep.mubr.bf16.mxu0 0
      %668 = vmatmul.mubr.bf16.gmra.mxu0 %v520
      %v669 = vpop.f32.mrf.mxu0
      %v670 = vadd.f32 0.0, %v669
      %v671 = vpop.f32.mrf.mxu0
      %v672 = vpop.f32.mrf.mxu0
      %v673 = vadd.f32 0.0, %v672
      %v674 = vpop.f32.mrf.mxu0
      %675 = vmatprep.mubr.bf16.mxu0 0
      %676 = vmatmul.mubr.bf16.gmra.mxu0 %v523
      %v677 = vpop.f32.mrf.mxu0
      %v678 = vadd.f32 0.0, %v677
      %v679 = vpop.f32.mrf.mxu0
      %v680 = vpop.f32.mrf.mxu0
      %v681 = vadd.f32 0.0, %v680
      %v682 = vpop.f32.mrf.mxu0
      %683 = vmatprep.mubr.bf16.mxu0 0
      %684 = vmatmul.mubr.bf16.gmra.mxu0 %v526
      %v685 = vpop.f32.mrf.mxu0
      %v686 = vadd.f32 0.0, %v685
      %v687 = vpop.f32.mrf.mxu0
      %v688 = vpop.f32.mrf.mxu0
      %v689 = vadd.f32 0.0, %v688
      %v690 = vpop.f32.mrf.mxu0
      %691 = vmatprep.mubr.bf16.mxu0 0
      %692 = vmatmul.mubr.bf16.gmra.mxu0 %v529
      %v693 = vpop.f32.mrf.mxu0
      %v694 = vadd.f32 0.0, %v693
      %v695 = vpop.f32.mrf.mxu0
      %v696 = vpop.f32.mrf.mxu0
      %v697 = vadd.f32 0.0, %v696
      %v698 = vpop.f32.mrf.mxu0
      %699 = vmatprep.mubr.bf16.mxu0 0
      %700 = vmatmul.mubr.bf16.gmra.mxu0 %v532
      %v701 = vpop.f32.mrf.mxu0
      %v702 = vadd.f32 0.0, %v701
      %v703 = vpop.f32.mrf.mxu0
      %v704 = vpop.f32.mrf.mxu0
      %v705 = vadd.f32 0.0, %v704
      %v706 = vpop.f32.mrf.mxu0
      %707 = vmatprep.mubr.bf16.mxu0 0
      %708 = vmatmul.mubr.bf16.gmra.mxu0 %v535
      %v709 = vpop.f32.mrf.mxu0
      %v710 = vadd.f32 0.0, %v709
      %v711 = vpop.f32.mrf.mxu0
      %v712 = vpop.f32.mrf.mxu0
      %v713 = vadd.f32 0.0, %v712
      %v714 = vpop.f32.mrf.mxu0
      %715 = vmatprep.mubr.bf16.mxu0 0
      %716 = vmatmul.mubr.bf16.gmra.mxu0 %v538
      %v717 = vpop.f32.mrf.mxu0
      %v718 = vadd.f32 0.0, %v717
      %v719 = vpop.f32.mrf.mxu0
      %v720 = vpop.f32.mrf.mxu0
      %v721 = vadd.f32 0.0, %v720
      %v722 = vpop.f32.mrf.mxu0
      %723 = vmatprep.mubr.bf16.mxu0 0
      %724 = vmatmul.mubr.bf16.gmra.mxu0 %v541
      %v725 = vpop.f32.mrf.mxu0
      %v726 = vadd.f32 0.0, %v725
      %v727 = vpop.f32.mrf.mxu0
      %v728 = vpop.f32.mrf.mxu0
      %v729 = vadd.f32 0.0, %v728
      %v730 = vpop.f32.mrf.mxu0
      %731 = vmatprep.mubr.bf16.mxu0 0
      %732 = vmatmul.mubr.bf16.gmra.mxu0 %v544
      %v733 = vpop.f32.mrf.mxu0
      %v734 = vadd.f32 0.0, %v733
      %v735 = vpop.f32.mrf.mxu0
      %v736 = vpop.f32.mrf.mxu0
      %v737 = vadd.f32 0.0, %v736
      %v738 = vpop.f32.mrf.mxu0
      %739 = vmatprep.mubr.bf16.mxu0 0
      %740 = vmatmul.mubr.bf16.gmra.mxu0 %v547
      %v741 = vpop.f32.mrf.mxu0
      %v742 = vadd.f32 0.0, %v741
      %v743 = vpop.f32.mrf.mxu0
      %v744 = vpop.f32.mrf.mxu0
      %v745 = vadd.f32 0.0, %v744
      %v746 = vpop.f32.mrf.mxu0
      %747 = vmatprep.mubr.bf16.mxu0 0
      %748 = vmatmul.mubr.bf16.gmra.mxu0 %v550
      %v749 = vpop.f32.mrf.mxu0
      %v750 = vadd.f32 0.0, %v749
      %v751 = vpop.f32.mrf.mxu0
      %v752 = vpop.f32.mrf.mxu0
      %v753 = vadd.f32 0.0, %v752
      %v754 = vpop.f32.mrf.mxu0
      %755 = vmatprep.mubr.bf16.mxu0 0
      %756 = vmatmul.mubr.bf16.gmra.mxu0 %v553
      %v757 = vpop.f32.mrf.mxu0
      %v758 = vadd.f32 0.0, %v757
      %v759 = vpop.f32.mrf.mxu0
      %v760 = vpop.f32.mrf.mxu0
      %v761 = vadd.f32 0.0, %v760
      %v762 = vpop.f32.mrf.mxu0
      %763 = vmatprep.mubr.bf16.mxu0 0
      %764 = vmatmul.mubr.bf16.gmra.mxu0 %v556
      %v765 = vpop.f32.mrf.mxu0
      %v766 = vadd.f32 0.0, %v765
      %v767 = vpop.f32.mrf.mxu0
      %v768 = vpop.f32.mrf.mxu0
      %v769 = vadd.f32 0.0, %v768
      %v770 = vpop.f32.mrf.mxu0
      %771 = vmatprep.mubr.bf16.mxu0 0
      %772 = vmatmul.mubr.bf16.gmra.mxu0 %v559
      %v773 = vpop.f32.mrf.mxu0
      %v774 = vadd.f32 0.0, %v773
      %v775 = vpop.f32.mrf.mxu0
      %v776 = vpop.f32.mrf.mxu0
      %v777 = vadd.f32 0.0, %v776
      %v778 = vpop.f32.mrf.mxu0
      %779 = vmatprep.mubr.bf16.mxu0 0
      %780 = vmatmul.mubr.bf16.gmra.mxu0 %v562
      %v781 = vpop.f32.mrf.mxu0
      %v782 = vadd.f32 0.0, %v781
      %v783 = vpop.f32.mrf.mxu0
      %v784 = vpop.f32.mrf.mxu0
      %v785 = vadd.f32 0.0, %v784
      %v786 = vpop.f32.mrf.mxu0
      %787 = vmatprep.mubr.bf16.mxu0 0
      %788 = vmatmul.mubr.bf16.gmra.mxu0 %v565
      %v789 = vpop.f32.mrf.mxu0
      %v790 = vadd.f32 0.0, %v789
      %v791 = vpop.f32.mrf.mxu0
      %v792 = vpop.f32.mrf.mxu0
      %v793 = vadd.f32 0.0, %v792
      %v794 = vpop.f32.mrf.mxu0
      %795 = vmatprep.mubr.bf16.mxu0 0
      %796 = vmatmul.mubr.bf16.gmra.mxu0 %v568
      %v797 = vpop.f32.mrf.mxu0
      %v798 = vadd.f32 0.0, %v797
      %v799 = vpop.f32.mrf.mxu0
      %v800 = vpop.f32.mrf.mxu0
      %v801 = vadd.f32 0.0, %v800
      %v802 = vpop.f32.mrf.mxu0
      %803 = vmatprep.mubr.bf16.mxu0 0
      %804 = vmatmul.mubr.bf16.gmra.mxu0 %v571
      %v805 = vpop.f32.mrf.mxu0
      %v806 = vadd.f32 0.0, %v805
      %v807 = vpop.f32.mrf.mxu0
      %v808 = vpop.f32.mrf.mxu0
      %v809 = vadd.f32 0.0, %v808
      %v810 = vpop.f32.mrf.mxu0
      %811 = vmatprep.mubr.bf16.mxu0 0
      %812 = vmatmul.mubr.bf16.gmra.mxu0 %v574
      %v813 = vpop.f32.mrf.mxu0
      %v814 = vadd.f32 0.0, %v813
      %v815 = vpop.f32.mrf.mxu0
      %v816 = vpop.f32.mrf.mxu0
      %v817 = vadd.f32 0.0, %v816
      %v818 = vpop.f32.mrf.mxu0
      %819 = vmatprep.mubr.bf16.mxu0 0
      %820 = vmatmul.mubr.bf16.gmra.mxu0 %v577
      %v821 = vpop.f32.mrf.mxu0
      %v822 = vadd.f32 0.0, %v821
      %v823 = vpop.f32.mrf.mxu0
      %v824 = vpop.f32.mrf.mxu0
      %v825 = vadd.f32 0.0, %v824
      %v826 = vpop.f32.mrf.mxu0
      %827 = vmatprep.mubr.bf16.mxu0 0
      %828 = vmatmul.mubr.bf16.gmra.mxu0 %v580
      %v829 = vpop.f32.mrf.mxu0
      %v830 = vadd.f32 0.0, %v829
      %v831 = vpop.f32.mrf.mxu0
      %v832 = vpop.f32.mrf.mxu0
      %v833 = vadd.f32 0.0, %v832
      %v834 = vpop.f32.mrf.mxu0
      %835 = vmatprep.mubr.bf16.mxu0 0
      %836 = vmatmul.mubr.bf16.gmra.mxu0 %v583
      %v837 = vpop.f32.mrf.mxu0
      %v838 = vadd.f32 0.0, %v837
      %v839 = vpop.f32.mrf.mxu0
      %v840 = vpop.f32.mrf.mxu0
      %v841 = vadd.f32 0.0, %v840
      %v842 = vpop.f32.mrf.mxu0
      %843 = vmatprep.mubr.bf16.mxu0 0
      %844 = vmatmul.mubr.bf16.gmra.mxu0 %v586
      %v845 = vpop.f32.mrf.mxu0
      %v846 = vadd.f32 0.0, %v845
      %v847 = vpop.f32.mrf.mxu0
      %v848 = vpop.f32.mrf.mxu0
      %v849 = vadd.f32 0.0, %v848
      %v850 = vpop.f32.mrf.mxu0
      %851 = vmatprep.mubr.bf16.mxu0 0
      %852 = vmatmul.mubr.bf16.gmra.mxu0 %v589
      %v853 = vpop.f32.mrf.mxu0
      %v854 = vadd.f32 0.0, %v853
      %v855 = vpop.f32.mrf.mxu0
      %v856 = vpop.f32.mrf.mxu0
      %v857 = vadd.f32 0.0, %v856
      %v858 = vpop.f32.mrf.mxu0
      %859 = vmatprep.mubr.bf16.mxu0 0
      %860 = vmatmul.mubr.bf16.gmra.mxu0 %v592
      %v861 = vpop.f32.mrf.mxu0
      %v862 = vadd.f32 0.0, %v861
      %v863 = vpop.f32.mrf.mxu0
      %v864 = vpop.f32.mrf.mxu0
      %v865 = vadd.f32 0.0, %v864
      %v866 = vpop.f32.mrf.mxu0
      %867 = vmatprep.mubr.bf16.mxu0 0
      %868 = vmatmul.mubr.bf16.gmra.mxu0 %v595
      %v869 = vpop.f32.mrf.mxu0
      %v870 = vadd.f32 0.0, %v869
      %v871 = vpop.f32.mrf.mxu0
      %v872 = vpop.f32.mrf.mxu0
      %v873 = vadd.f32 0.0, %v872
      %v874 = vpop.f32.mrf.mxu0
      %875 = vmatprep.mubr.bf16.mxu0 0
      %876 = vmatmul.mubr.bf16.gmra.mxu0 %v598
      %v877 = vpop.f32.mrf.mxu0
      %v878 = vadd.f32 0.0, %v877
      %v879 = vpop.f32.mrf.mxu0
      %v880 = vpop.f32.mrf.mxu0
      %v881 = vadd.f32 0.0, %v880
      %v882 = vpop.f32.mrf.mxu0
      %883 = vmatprep.mubr.bf16.mxu0 0
      %884 = vmatmul.mubr.bf16.gmra.mxu0 %v601
      %v885 = vpop.f32.mrf.mxu0
      %v886 = vadd.f32 0.0, %v885
      %v887 = vpop.f32.mrf.mxu0
      %v888 = vpop.f32.mrf.mxu0
      %v889 = vadd.f32 0.0, %v888
      %v890 = vpop.f32.mrf.mxu0
      %891 = vdwg.mxu0
      %vm892 = vcmask 64512
      %893 = vst.msk [vmem:[%s240] sm:$0xff] %vm892, %v638
      %894 = vst.msk [vmem:[%s240 + $0x8] sm:$0xff] %vm892, %v641
      %895 = vst.msk [vmem:[%s240 + $0x10] sm:$0xff] %vm892, %v646
      %896 = vst.msk [vmem:[%s240 + $0x18] sm:$0xff] %vm892, %v649
      %897 = vst.msk [vmem:[%s240 + $0x20] sm:$0xff] %vm892, %v654
      %898 = vst.msk [vmem:[%s240 + $0x28] sm:$0xff] %vm892, %v657
      %899 = vst.msk [vmem:[%s240 + $0x30] sm:$0xff] %vm892, %v662
      %900 = vst.msk [vmem:[%s240 + $0x38] sm:$0xff] %vm892, %v665
      %901 = vst.msk [vmem:[%s240 + $0x40] sm:$0xff] %vm892, %v670
      %902 = vst.msk [vmem:[%s240 + $0x48] sm:$0xff] %vm892, %v673
      %903 = vst.msk [vmem:[%s240 + $0x50] sm:$0xff] %vm892, %v678
      %904 = vst.msk [vmem:[%s240 + $0x58] sm:$0xff] %vm892, %v681
      %905 = vst.msk [vmem:[%s240 + $0x60] sm:$0xff] %vm892, %v686
      %906 = vst.msk [vmem:[%s240 + $0x68] sm:$0xff] %vm892, %v689
      %907 = vst.msk [vmem:[%s240 + $0x70] sm:$0xff] %vm892, %v694
      %908 = vst.msk [vmem:[%s240 + $0x78] sm:$0xff] %vm892, %v697
      %909 = vst.msk [vmem:[%s240 + $0x80] sm:$0xff] %vm892, %v702
      %910 = vst.msk [vmem:[%s240 + $0x88] sm:$0xff] %vm892, %v705
      %911 = vst.msk [vmem:[%s240 + $0x90] sm:$0xff] %vm892, %v710
      %912 = vst.msk [vmem:[%s240 + $0x98] sm:$0xff] %vm892, %v713
      %913 = vst.msk [vmem:[%s240 + $0xa0] sm:$0xff] %vm892, %v718
      %914 = vst.msk [vmem:[%s240 + $0xa8] sm:$0xff] %vm892, %v721
      %915 = vst.msk [vmem:[%s240 + $0xb0] sm:$0xff] %vm892, %v726
      %916 = vst.msk [vmem:[%s240 + $0xb8] sm:$0xff] %vm892, %v729
      %917 = vst.msk [vmem:[%s240 + $0xc0] sm:$0xff] %vm892, %v734
      %918 = vst.msk [vmem:[%s240 + $0xc8] sm:$0xff] %vm892, %v737
      %919 = vst.msk [vmem:[%s240 + $0xd0] sm:$0xff] %vm892, %v742
      %920 = vst.msk [vmem:[%s240 + $0xd8] sm:$0xff] %vm892, %v745
      %921 = vst.msk [vmem:[%s240 + $0xe0] sm:$0xff] %vm892, %v750
      %922 = vst.msk [vmem:[%s240 + $0xe8] sm:$0xff] %vm892, %v753
      %923 = vst.msk [vmem:[%s240 + $0xf0] sm:$0xff] %vm892, %v758
      %924 = vst.msk [vmem:[%s240 + $0xf8] sm:$0xff] %vm892, %v761
      %925 = vst.msk [vmem:[%s240 + $0x100] sm:$0xff] %vm892, %v766
      %926 = vst.msk [vmem:[%s240 + $0x108] sm:$0xff] %vm892, %v769
      %927 = vst.msk [vmem:[%s240 + $0x110] sm:$0xff] %vm892, %v774
      %928 = vst.msk [vmem:[%s240 + $0x118] sm:$0xff] %vm892, %v777
      %929 = vst.msk [vmem:[%s240 + $0x120] sm:$0xff] %vm892, %v782
      %930 = vst.msk [vmem:[%s240 + $0x128] sm:$0xff] %vm892, %v785
      %931 = vst.msk [vmem:[%s240 + $0x130] sm:$0xff] %vm892, %v790
      %932 = vst.msk [vmem:[%s240 + $0x138] sm:$0xff] %vm892, %v793
      %933 = vst.msk [vmem:[%s240 + $0x140] sm:$0xff] %vm892, %v798
      %934 = vst.msk [vmem:[%s240 + $0x148] sm:$0xff] %vm892, %v801
      %935 = vst.msk [vmem:[%s240 + $0x150] sm:$0xff] %vm892, %v806
      %936 = vst.msk [vmem:[%s240 + $0x158] sm:$0xff] %vm892, %v809
      %937 = vst.msk [vmem:[%s240 + $0x160] sm:$0xff] %vm892, %v814
      %938 = vst.msk [vmem:[%s240 + $0x168] sm:$0xff] %vm892, %v817
      %939 = vst.msk [vmem:[%s240 + $0x170] sm:$0xff] %vm892, %v822
      %940 = vst.msk [vmem:[%s240 + $0x178] sm:$0xff] %vm892, %v825
      %941 = vst.msk [vmem:[%s240 + $0x180] sm:$0xff] %vm892, %v830
      %942 = vst.msk [vmem:[%s240 + $0x188] sm:$0xff] %vm892, %v833
      %943 = vst.msk [vmem:[%s240 + $0x190] sm:$0xff] %vm892, %v838
      %944 = vst.msk [vmem:[%s240 + $0x198] sm:$0xff] %vm892, %v841
      %945 = vst.msk [vmem:[%s240 + $0x1a0] sm:$0xff] %vm892, %v846
      %946 = vst.msk [vmem:[%s240 + $0x1a8] sm:$0xff] %vm892, %v849
      %947 = vst.msk [vmem:[%s240 + $0x1b0] sm:$0xff] %vm892, %v854
      %948 = vst.msk [vmem:[%s240 + $0x1b8] sm:$0xff] %vm892, %v857
      %949 = vst.msk [vmem:[%s240 + $0x1c0] sm:$0xff] %vm892, %v862
      %950 = vst.msk [vmem:[%s240 + $0x1c8] sm:$0xff] %vm892, %v865
      %951 = vst.msk [vmem:[%s240 + $0x1d0] sm:$0xff] %vm892, %v870
      %952 = vst.msk [vmem:[%s240 + $0x1d8] sm:$0xff] %vm892, %v873
      %953 = vst.msk [vmem:[%s240 + $0x1e0] sm:$0xff] %vm892, %v878
      %954 = vst.msk [vmem:[%s240 + $0x1e8] sm:$0xff] %vm892, %v881
      %955 = vst.msk [vmem:[%s240 + $0x1f0] sm:$0xff] %vm892, %v886
      %956 = vst.msk [vmem:[%s240 + $0x1f8] sm:$0xff] %vm892, %v889
      %v957 = vsel %vm892, %v638, 0.0
      %v958 = vsel %vm892, %v641, 0.0
      %v959 = vadd.f32 %v957, %v958
      %v960 = vsel %vm892, %v646, 0.0
      %v961 = vadd.f32 %v959, %v960
      %v962 = vsel %vm892, %v649, 0.0
      %v963 = vadd.f32 %v961, %v962
      %v964 = vsel %vm892, %v654, 0.0
      %v965 = vadd.f32 %v963, %v964
      %v966 = vsel %vm892, %v657, 0.0
      %v967 = vadd.f32 %v965, %v966
      %v968 = vsel %vm892, %v662, 0.0
      %v969 = vadd.f32 %v967, %v968
      %v970 = vsel %vm892, %v665, 0.0
      %v971 = vadd.f32 %v969, %v970
      %v972 = vsel %vm892, %v670, 0.0
      %v973 = vadd.f32 %v971, %v972
      %v974 = vsel %vm892, %v673, 0.0
      %v975 = vadd.f32 %v973, %v974
      %v976 = vsel %vm892, %v678, 0.0
      %v977 = vadd.f32 %v975, %v976
      %v978 = vsel %vm892, %v681, 0.0
      %v979 = vadd.f32 %v977, %v978
      %v980 = vsel %vm892, %v686, 0.0
      %v981 = vadd.f32 %v979, %v980
      %v982 = vsel %vm892, %v689, 0.0
      %v983 = vadd.f32 %v981, %v982
      %v984 = vsel %vm892, %v694, 0.0
      %v985 = vadd.f32 %v983, %v984
      %v986 = vsel %vm892, %v697, 0.0
      %v987 = vadd.f32 %v985, %v986
      %v988 = vsel %vm892, %v702, 0.0
      %v989 = vadd.f32 %v987, %v988
      %v990 = vsel %vm892, %v705, 0.0
      %v991 = vadd.f32 %v989, %v990
      %v992 = vsel %vm892, %v710, 0.0
      %v993 = vadd.f32 %v991, %v992
      %v994 = vsel %vm892, %v713, 0.0
      %v995 = vadd.f32 %v993, %v994
      %v996 = vsel %vm892, %v718, 0.0
      %v997 = vadd.f32 %v995, %v996
      %v998 = vsel %vm892, %v721, 0.0
      %v999 = vadd.f32 %v997, %v998
      %v1000 = vsel %vm892, %v726, 0.0
      %v1001 = vadd.f32 %v999, %v1000
      %v1002 = vsel %vm892, %v729, 0.0
      %v1003 = vadd.f32 %v1001, %v1002
      %v1004 = vsel %vm892, %v734, 0.0
      %v1005 = vadd.f32 %v1003, %v1004
      %v1006 = vsel %vm892, %v737, 0.0
      %v1007 = vadd.f32 %v1005, %v1006
      %v1008 = vsel %vm892, %v742, 0.0
      %v1009 = vadd.f32 %v1007, %v1008
      %v1010 = vsel %vm892, %v745, 0.0
      %v1011 = vadd.f32 %v1009, %v1010
      %v1012 = vsel %vm892, %v750, 0.0
      %v1013 = vadd.f32 %v1011, %v1012
      %v1014 = vsel %vm892, %v753, 0.0
      %v1015 = vadd.f32 %v1013, %v1014
      %v1016 = vsel %vm892, %v758, 0.0
      %v1017 = vadd.f32 %v1015, %v1016
      %v1018 = vsel %vm892, %v761, 0.0
      %v1019 = vadd.f32 %v1017, %v1018
      %v1020 = vsel %vm892, %v766, 0.0
      %v1021 = vadd.f32 %v1019, %v1020
      %v1022 = vsel %vm892, %v769, 0.0
      %v1023 = vadd.f32 %v1021, %v1022
      %v1024 = vsel %vm892, %v774, 0.0
      %v1025 = vadd.f32 %v1023, %v1024
      %v1026 = vsel %vm892, %v777, 0.0
      %v1027 = vadd.f32 %v1025, %v1026
      %v1028 = vsel %vm892, %v782, 0.0
      %v1029 = vadd.f32 %v1027, %v1028
      %v1030 = vsel %vm892, %v785, 0.0
      %v1031 = vadd.f32 %v1029, %v1030
      %v1032 = vsel %vm892, %v790, 0.0
      %v1033 = vadd.f32 %v1031, %v1032
      %v1034 = vsel %vm892, %v793, 0.0
      %v1035 = vadd.f32 %v1033, %v1034
      %v1036 = vsel %vm892, %v798, 0.0
      %v1037 = vadd.f32 %v1035, %v1036
      %v1038 = vsel %vm892, %v801, 0.0
      %v1039 = vadd.f32 %v1037, %v1038
      %v1040 = vsel %vm892, %v806, 0.0
      %v1041 = vadd.f32 %v1039, %v1040
      %v1042 = vsel %vm892, %v809, 0.0
      %v1043 = vadd.f32 %v1041, %v1042
      %v1044 = vsel %vm892, %v814, 0.0
      %v1045 = vadd.f32 %v1043, %v1044
      %v1046 = vsel %vm892, %v817, 0.0
      %v1047 = vadd.f32 %v1045, %v1046
      %v1048 = vsel %vm892, %v822, 0.0
      %v1049 = vadd.f32 %v1047, %v1048
      %v1050 = vsel %vm892, %v825, 0.0
      %v1051 = vadd.f32 %v1049, %v1050
      %v1052 = vsel %vm892, %v830, 0.0
      %v1053 = vadd.f32 %v1051, %v1052
      %v1054 = vsel %vm892, %v833, 0.0
      %v1055 = vadd.f32 %v1053, %v1054
      %v1056 = vsel %vm892, %v838, 0.0
      %v1057 = vadd.f32 %v1055, %v1056
      %v1058 = vsel %vm892, %v841, 0.0
      %v1059 = vadd.f32 %v1057, %v1058
      %v1060 = vsel %vm892, %v846, 0.0
      %v1061 = vadd.f32 %v1059, %v1060
      %v1062 = vsel %vm892, %v849, 0.0
      %v1063 = vadd.f32 %v1061, %v1062
      %v1064 = vsel %vm892, %v854, 0.0
      %v1065 = vadd.f32 %v1063, %v1064
      %v1066 = vsel %vm892, %v857, 0.0
      %v1067 = vadd.f32 %v1065, %v1066
      %v1068 = vsel %vm892, %v862, 0.0
      %v1069 = vadd.f32 %v1067, %v1068
      %v1070 = vsel %vm892, %v865, 0.0
      %v1071 = vadd.f32 %v1069, %v1070
      %v1072 = vsel %vm892, %v870, 0.0
      %v1073 = vadd.f32 %v1071, %v1072
      %v1074 = vsel %vm892, %v873, 0.0
      %v1075 = vadd.f32 %v1073, %v1074
      %v1076 = vsel %vm892, %v878, 0.0
      %v1077 = vadd.f32 %v1075, %v1076
      %v1078 = vsel %vm892, %v881, 0.0
      %v1079 = vadd.f32 %v1077, %v1078
      %v1080 = vsel %vm892, %v886, 0.0
      %v1081 = vadd.f32 %v1079, %v1080
      %v1082 = vsel %vm892, %v889, 0.0
      %v1083 = vadd.f32 %v1081, %v1082
      %v1084 = vrot.slane %v1083, 4
      %v1085 = vadd.f32 %v1083, %v1084
      %v1086 = vrot.slane %v1085, 2
      %v1087 = vadd.f32 %v1085, %v1086
      %v1088 = vrot.slane %v1087, 1
      %v1089 = vadd.f32 %v1087, %v1088
      %vm1090 = vcmask 57344
      %1091 = vst.msk [vmem:[%s248] sm:$0x1] %vm1090, %v1089
      %v1092 = vmul.f32 %v638, %v638
      %v1093 = vmul.f32 %v641, %v641
      %v1094 = vmul.f32 %v646, %v646
      %v1095 = vmul.f32 %v649, %v649
      %v1096 = vmul.f32 %v654, %v654
      %v1097 = vmul.f32 %v657, %v657
      %v1098 = vmul.f32 %v662, %v662
      %v1099 = vmul.f32 %v665, %v665
      %v1100 = vmul.f32 %v670, %v670
      %v1101 = vmul.f32 %v673, %v673
      %v1102 = vmul.f32 %v678, %v678
      %v1103 = vmul.f32 %v681, %v681
      %v1104 = vmul.f32 %v686, %v686
      %v1105 = vmul.f32 %v689, %v689
      %v1106 = vmul.f32 %v694, %v694
      %v1107 = vmul.f32 %v697, %v697
      %v1108 = vmul.f32 %v702, %v702
      %v1109 = vmul.f32 %v705, %v705
      %v1110 = vmul.f32 %v710, %v710
      %v1111 = vmul.f32 %v713, %v713
      %v1112 = vmul.f32 %v718, %v718
      %v1113 = vmul.f32 %v721, %v721
      %v1114 = vmul.f32 %v726, %v726
      %v1115 = vmul.f32 %v729, %v729
      %v1116 = vmul.f32 %v734, %v734
      %v1117 = vmul.f32 %v737, %v737
      %v1118 = vmul.f32 %v742, %v742
      %v1119 = vmul.f32 %v745, %v745
      %v1120 = vmul.f32 %v750, %v750
      %v1121 = vmul.f32 %v753, %v753
      %v1122 = vmul.f32 %v758, %v758
      %v1123 = vmul.f32 %v761, %v761
      %v1124 = vmul.f32 %v766, %v766
      %v1125 = vmul.f32 %v769, %v769
      %v1126 = vmul.f32 %v774, %v774
      %v1127 = vmul.f32 %v777, %v777
      %v1128 = vmul.f32 %v782, %v782
      %v1129 = vmul.f32 %v785, %v785
      %v1130 = vmul.f32 %v790, %v790
      %v1131 = vmul.f32 %v793, %v793
      %v1132 = vmul.f32 %v798, %v798
      %v1133 = vmul.f32 %v801, %v801
      %v1134 = vmul.f32 %v806, %v806
      %v1135 = vmul.f32 %v809, %v809
      %v1136 = vmul.f32 %v814, %v814
      %v1137 = vmul.f32 %v817, %v817
      %v1138 = vmul.f32 %v822, %v822
      %v1139 = vmul.f32 %v825, %v825
      %v1140 = vmul.f32 %v830, %v830
      %v1141 = vmul.f32 %v833, %v833
      %v1142 = vmul.f32 %v838, %v838
      %v1143 = vmul.f32 %v841, %v841
      %v1144 = vmul.f32 %v846, %v846
      %v1145 = vmul.f32 %v849, %v849
      %v1146 = vmul.f32 %v854, %v854
      %v1147 = vmul.f32 %v857, %v857
      %v1148 = vmul.f32 %v862, %v862
      %v1149 = vmul.f32 %v865, %v865
      %v1150 = vmul.f32 %v870, %v870
      %v1151 = vmul.f32 %v873, %v873
      %v1152 = vmul.f32 %v878, %v878
      %v1153 = vmul.f32 %v881, %v881
      %v1154 = vmul.f32 %v886, %v886
      %v1155 = vmul.f32 %v889, %v889
      %v1156 = vsel %vm892, %v1092, 0.0
      %v1157 = vsel %vm892, %v1093, 0.0
      %v1158 = vadd.f32 %v1156, %v1157
      %v1159 = vsel %vm892, %v1094, 0.0
      %v1160 = vadd.f32 %v1158, %v1159
      %v1161 = vsel %vm892, %v1095, 0.0
      %v1162 = vadd.f32 %v1160, %v1161
      %v1163 = vsel %vm892, %v1096, 0.0
      %v1164 = vadd.f32 %v1162, %v1163
      %v1165 = vsel %vm892, %v1097, 0.0
      %v1166 = vadd.f32 %v1164, %v1165
      %v1167 = vsel %vm892, %v1098, 0.0
      %v1168 = vadd.f32 %v1166, %v1167
      %v1169 = vsel %vm892, %v1099, 0.0
      %v1170 = vadd.f32 %v1168, %v1169
      %v1171 = vsel %vm892, %v1100, 0.0
      %v1172 = vadd.f32 %v1170, %v1171
      %v1173 = vsel %vm892, %v1101, 0.0
      %v1174 = vadd.f32 %v1172, %v1173
      %v1175 = vsel %vm892, %v1102, 0.0
      %v1176 = vadd.f32 %v1174, %v1175
      %v1177 = vsel %vm892, %v1103, 0.0
      %v1178 = vadd.f32 %v1176, %v1177
      %v1179 = vsel %vm892, %v1104, 0.0
      %v1180 = vadd.f32 %v1178, %v1179
      %v1181 = vsel %vm892, %v1105, 0.0
      %v1182 = vadd.f32 %v1180, %v1181
      %v1183 = vsel %vm892, %v1106, 0.0
      %v1184 = vadd.f32 %v1182, %v1183
      %v1185 = vsel %vm892, %v1107, 0.0
      %v1186 = vadd.f32 %v1184, %v1185
      %v1187 = vsel %vm892, %v1108, 0.0
      %v1188 = vadd.f32 %v1186, %v1187
      %v1189 = vsel %vm892, %v1109, 0.0
      %v1190 = vadd.f32 %v1188, %v1189
      %v1191 = vsel %vm892, %v1110, 0.0
      %v1192 = vadd.f32 %v1190, %v1191
      %v1193 = vsel %vm892, %v1111, 0.0
      %v1194 = vadd.f32 %v1192, %v1193
      %v1195 = vsel %vm892, %v1112, 0.0
      %v1196 = vadd.f32 %v1194, %v1195
      %v1197 = vsel %vm892, %v1113, 0.0
      %v1198 = vadd.f32 %v1196, %v1197
      %v1199 = vsel %vm892, %v1114, 0.0
      %v1200 = vadd.f32 %v1198, %v1199
      %v1201 = vsel %vm892, %v1115, 0.0
      %v1202 = vadd.f32 %v1200, %v1201
      %v1203 = vsel %vm892, %v1116, 0.0
      %v1204 = vadd.f32 %v1202, %v1203
      %v1205 = vsel %vm892, %v1117, 0.0
      %v1206 = vadd.f32 %v1204, %v1205
      %v1207 = vsel %vm892, %v1118, 0.0
      %v1208 = vadd.f32 %v1206, %v1207
      %v1209 = vsel %vm892, %v1119, 0.0
      %v1210 = vadd.f32 %v1208, %v1209
      %v1211 = vsel %vm892, %v1120, 0.0
      %v1212 = vadd.f32 %v1210, %v1211
      %v1213 = vsel %vm892, %v1121, 0.0
      %v1214 = vadd.f32 %v1212, %v1213
      %v1215 = vsel %vm892, %v1122, 0.0
      %v1216 = vadd.f32 %v1214, %v1215
      %v1217 = vsel %vm892, %v1123, 0.0
      %v1218 = vadd.f32 %v1216, %v1217
      %v1219 = vsel %vm892, %v1124, 0.0
      %v1220 = vadd.f32 %v1218, %v1219
      %v1221 = vsel %vm892, %v1125, 0.0
      %v1222 = vadd.f32 %v1220, %v1221
      %v1223 = vsel %vm892, %v1126, 0.0
      %v1224 = vadd.f32 %v1222, %v1223
      %v1225 = vsel %vm892, %v1127, 0.0
      %v1226 = vadd.f32 %v1224, %v1225
      %v1227 = vsel %vm892, %v1128, 0.0
      %v1228 = vadd.f32 %v1226, %v1227
      %v1229 = vsel %vm892, %v1129, 0.0
      %v1230 = vadd.f32 %v1228, %v1229
      %v1231 = vsel %vm892, %v1130, 0.0
      %v1232 = vadd.f32 %v1230, %v1231
      %v1233 = vsel %vm892, %v1131, 0.0
      %v1234 = vadd.f32 %v1232, %v1233
      %v1235 = vsel %vm892, %v1132, 0.0
      %v1236 = vadd.f32 %v1234, %v1235
      %v1237 = vsel %vm892, %v1133, 0.0
      %v1238 = vadd.f32 %v1236, %v1237
      %v1239 = vsel %vm892, %v1134, 0.0
      %v1240 = vadd.f32 %v1238, %v1239
      %v1241 = vsel %vm892, %v1135, 0.0
      %v1242 = vadd.f32 %v1240, %v1241
      %v1243 = vsel %vm892, %v1136, 0.0
      %v1244 = vadd.f32 %v1242, %v1243
      %v1245 = vsel %vm892, %v1137, 0.0
      %v1246 = vadd.f32 %v1244, %v1245
      %v1247 = vsel %vm892, %v1138, 0.0
      %v1248 = vadd.f32 %v1246, %v1247
      %v1249 = vsel %vm892, %v1139, 0.0
      %v1250 = vadd.f32 %v1248, %v1249
      %v1251 = vsel %vm892, %v1140, 0.0
      %v1252 = vadd.f32 %v1250, %v1251
      %v1253 = vsel %vm892, %v1141, 0.0
      %v1254 = vadd.f32 %v1252, %v1253
      %v1255 = vsel %vm892, %v1142, 0.0
      %v1256 = vadd.f32 %v1254, %v1255
      %v1257 = vsel %vm892, %v1143, 0.0
      %v1258 = vadd.f32 %v1256, %v1257
      %v1259 = vsel %vm892, %v1144, 0.0
      %v1260 = vadd.f32 %v1258, %v1259
      %v1261 = vsel %vm892, %v1145, 0.0
      %v1262 = vadd.f32 %v1260, %v1261
      %v1263 = vsel %vm892, %v1146, 0.0
      %v1264 = vadd.f32 %v1262, %v1263
      %v1265 = vsel %vm892, %v1147, 0.0
      %v1266 = vadd.f32 %v1264, %v1265
      %v1267 = vsel %vm892, %v1148, 0.0
      %v1268 = vadd.f32 %v1266, %v1267
      %v1269 = vsel %vm892, %v1149, 0.0
      %v1270 = vadd.f32 %v1268, %v1269
      %v1271 = vsel %vm892, %v1150, 0.0
      %v1272 = vadd.f32 %v1270, %v1271
      %v1273 = vsel %vm892, %v1151, 0.0
      %v1274 = vadd.f32 %v1272, %v1273
      %v1275 = vsel %vm892, %v1152, 0.0
      %v1276 = vadd.f32 %v1274, %v1275
      %v1277 = vsel %vm892, %v1153, 0.0
      %v1278 = vadd.f32 %v1276, %v1277
      %v1279 = vsel %vm892, %v1154, 0.0
      %v1280 = vadd.f32 %v1278, %v1279
      %v1281 = vsel %vm892, %v1155, 0.0
      %v1282 = vadd.f32 %v1280, %v1281
      %v1283 = vrot.slane %v1282, 4
      %v1284 = vadd.f32 %v1282, %v1283
      %v1285 = vrot.slane %v1284, 2
      %v1286 = vadd.f32 %v1284, %v1285
      %v1287 = vrot.slane %v1286, 1
      %v1288 = vadd.f32 %v1286, %v1287
      %1289 = vst.msk [vmem:[%s248 + $0x1] sm:$0x1] %vm1090, %v1288
      %s1290 = smul.u32 64, %s20
      %p1291 = scmp.lt.s32.totalorder %s19, 3
      %s1292 = scalar_select %p1291, %s19, 3
      %p1293 = scmp.lt.s32.totalorder %s1290, 63
      %s1294 = scalar_select %p1293, %s1290, 63
      %s1295 = smul.addr %s1292, 64
      %s1296 = sadd.s32 %s1294, %s1295
      %s1297 = smul.addr %s1296, 8
      %s1298 = scalar_lea.vmem %s2, %s1297
      %p1299 = scmp.lt.s32.totalorder %s19, 3
      %s1300 = scalar_select %p1299, %s19, 3
      %p1301 = scmp.lt.s32.totalorder %s20, 0
      %s1302 = scalar_select %p1301, %s20, 0
      %s1303 = sadd.s32 %s1302, %s1300
      %s1304 = smul.addr %s1303, 2
      %s1305 = scalar_lea.vmem %s3, %s1304
      // Predicated region
      $region29: #{_generator_forward.15} parent=27 // pred_check
        %p1306 = pneg %p101
      $region30: #{_generator_forward.15} parent=27 // pred_check_branch
        %1308 = sbr.rel (%p1306) target = $region32
      $region31: #{_generator_forward.15} parent=27 // pred_region
        %s1309 = smul.u32 64, %s20
      $region32: #{_generator_forward.15} parent=27 // pred_fallthru
        _
      // Predicated region
      $region33: #{_generator_forward.15} parent=27 // pred_check
        %p1310 = pneg %p129
      $region34: #{_generator_forward.15} parent=27 // pred_check_branch
        %1312 = sbr.rel (%p1310) target = $region36
      $region35: #{_generator_forward.15} parent=27 // pred_region
        _
      $region36: #{_generator_forward.15} parent=27 // pred_fallthru
        _
    $region28: #{_generator_forward.15} parent=5 // pred_fallthru
      _
    %p1313 = scmp.le.s32.totalorder 2, %s10
    // Predicated region
    $region37: #{_generator_forward.15} parent=5 // pred_check
      %p1314 = pneg %p1313
    $region38: #{_generator_forward.15} parent=5 // pred_check_branch
      %1316 = sbr.rel (%p1314) target = $region40
    $region39: #{_generator_forward.15} parent=5 // pred_region
      %s1317 = ssub.s32 %s10, 2
      // Predicated region
      $region41: #{_generator_forward.15} parent=39 // pred_check
        %p1318 = pneg %p107
      $region42: #{_generator_forward.15} parent=39 // pred_check_branch
        %1320 = sbr.rel (%p1318) target = $region44
      $region43: #{_generator_forward.15} parent=39 // pred_region
        %s1321 = smul.u32 64, %s22
        %p1322 = scmp.lt.s32.totalorder %s21, 3
        %s1323 = scalar_select %p1322, %s21, 3
        %p1324 = scmp.lt.s32.totalorder %s1321, 63
        %s1325 = scalar_select %p1324, %s1321, 63
        %s1326 = smul.addr %s1323, 64
        %s1327 = sadd.s32 %s1325, %s1326
        %s1328 = smul.addr %s1327, 8
        %s1329 = scalar_lea.vmem %s2, %s1328
      $region44: #{_generator_forward.15} parent=39 // pred_fallthru
        _
      // Predicated region
      $region45: #{_generator_forward.15} parent=39 // pred_check
        %p1330 = pneg %p135
      $region46: #{_generator_forward.15} parent=39 // pred_check_branch
        %1332 = sbr.rel (%p1330) target = $region48
      $region47: #{_generator_forward.15} parent=39 // pred_region
        %p1333 = scmp.lt.s32.totalorder %s21, 3
        %s1334 = scalar_select %p1333, %s21, 3
        %p1335 = scmp.lt.s32.totalorder %s22, 0
        %s1336 = scalar_select %p1335, %s22, 0
        %s1337 = sadd.s32 %s1336, %s1334
        %s1338 = smul.addr %s1337, 2
        %s1339 = scalar_lea.vmem %s3, %s1338
      $region48: #{_generator_forward.15} parent=39 // pred_fallthru
        _
    $region40: #{_generator_forward.15} parent=5 // pred_fallthru
      _
  $region6: #{_generator_forward.15} parent=0 // loop_footer
    %s14 = sadd.s32 1, %s10
  $region7: #{_generator_forward.15} parent=0 // loop_footer_branch
    %9 = sbr.rel target = $region3
  $region8: #{_generator_forward.15} parent=0 // loop_exit
    _

// kernel: _generator_forward.16
$region0: #{_generator_forward.16}
  #allocation0 [shape = 'u32[]', space=smem, size = 0x4, offset = 0x4, fixed_abs, tag = 'smem constant byte address 0x4 - core index']
  #allocation1 [shape = 'u32[144,128]{1,0:T(1,128)}', space=vmem, size = 0x12000, scoped, tag = 'internal scratch']
  %s0 = inlined_call_operand.vmem [shape: f32[2048,8], index: 0, kind: input, shape index: {}]
  %s1 = inlined_call_operand.vmem [shape: f32[1,8], index: 1, kind: input, shape index: {}]
  %s2 = inlined_call_operand.vmem [shape: f32[1,8], index: 2, kind: input, shape index: {}]
  %s3 = inlined_call_operand.vmem [shape: f32[2048,8], index: 3, kind: output, shape index: {}]
  %s4 = sld [smem:[#allocation0]]
  $region45: #{_generator_forward.16} parent=0
    _
  %s6 = ssub.s32 1, %s4
  %s7 = scalar_select 0, %s6, %s4
  loop: start=0, step=1, limit=4
  $region2: #{_generator_forward.16} parent=0 // loop_pre_header
    _
  $region3: #{_generator_forward.16} parent=0 // loop_header
    %s9 = sphi 0, %s13
    %p10 = scmp.ge.s32.totalorder %s9, 4
    %s19 = sphi 0, %s21
    %s22 = sphi 0, %s19
    %s23 = sphi 0, %s22
    %s39 = sphi 0, %s23
    %s43 = sphi 0, %s43
    %s45 = sphi 0, %s43
    %s46 = sphi 0, %s45
    %s60 = sphi 0, %s46
    %s64 = sphi 0, %s64
    %s66 = sphi 0, %s64
    %s67 = sphi 0, %s66
    %s81 = sphi 0, %s67
    %s87 = sphi 0, %s89
    %s90 = sphi 0, %s87
    %s91 = sphi 0, %s90
    %s107 = sphi 0, %s91
  $region4: #{_generator_forward.16} parent=0 // loop_header_branch
    %12 = sbr.rel (%p10) target = $region8
  $region5: #{_generator_forward.16} parent=0 // loop_body
    %s14 = ssub.s32 %s9, 1
    %s15 = ssub.s32 %s9, 2
    %s16 = sadd.s32 %s9, 1
    %s17 = ssub.s32 %s9, %s16
    %p18 = scmp.eq.s32.totalorder %s17, 0
    %s20 = sadd.s32 %s19, 1
    %s21 = scalar_select %p18, %s19, %s20
    %p24 = pneg %p18
    %p25 = scmp.eq.s32.totalorder %s9, 1
    %p26 = por %p24, %p25
    %p27 = scmp.ne.s32.totalorder %s19, %s22
    %p28 = scmp.eq.s32.totalorder %s9, 0
    %p29 = por %p27, %p28
    %p30 = scmp.ne.s32.totalorder %s19, %s22
    %p31 = scmp.eq.s32.totalorder %s14, 1
    %p32 = por %p30, %p31
    %p33 = scmp.ne.s32.totalorder %s22, %s23
    %p34 = scmp.eq.s32.totalorder %s14, 0
    %p35 = por %p33, %p34
    %p36 = scmp.ne.s32.totalorder %s22, %s23
    %p37 = scmp.eq.s32.totalorder %s15, 1
    %p38 = por %p36, %p37
    %p40 = scmp.ne.s32.totalorder %s23, %s39
    %p41 = scmp.eq.s32.totalorder %s15, 0
    %p42 = por %p40, %p41
    %s44 = sadd.s32 %s43, 1
    %p47 = scmp.eq.s32.totalorder %s9, 1
    %p48 = scmp.ne.s32.totalorder %s43, %s45
    %p49 = scmp.eq.s32.totalorder %s9, 0
    %p50 = por %p48, %p49
    %p51 = scmp.ne.s32.totalorder %s43, %s45
    %p52 = scmp.eq.s32.totalorder %s14, 1
    %p53 = por %p51, %p52
    %p54 = scmp.ne.s32.totalorder %s45, %s46
    %p55 = scmp.eq.s32.totalorder %s14, 0
    %p56 = por %p54, %p55
    %p57 = scmp.ne.s32.totalorder %s45, %s46
    %p58 = scmp.eq.s32.totalorder %s15, 1
    %p59 = por %p57, %p58
    %p61 = scmp.ne.s32.totalorder %s46, %s60
    %p62 = scmp.eq.s32.totalorder %s15, 0
    %p63 = por %p61, %p62
    %s65 = sadd.s32 %s64, 1
    %p68 = scmp.eq.s32.totalorder %s9, 1
    %p69 = scmp.ne.s32.totalorder %s64, %s66
    %p70 = scmp.eq.s32.totalorder %s9, 0
    %p71 = por %p69, %p70
    %p72 = scmp.ne.s32.totalorder %s64, %s66
    %p73 = scmp.eq.s32.totalorder %s14, 1
    %p74 = por %p72, %p73
    %p75 = scmp.ne.s32.totalorder %s66, %s67
    %p76 = scmp.eq.s32.totalorder %s14, 0
    %p77 = por %p75, %p76
    %p78 = scmp.ne.s32.totalorder %s66, %s67
    %p79 = scmp.eq.s32.totalorder %s15, 1
    %p80 = por %p78, %p79
    %p82 = scmp.ne.s32.totalorder %s67, %s81
    %p83 = scmp.eq.s32.totalorder %s15, 0
    %p84 = por %p82, %p83
    %s85 = ssub.s32 %s9, %s16
    %p86 = scmp.eq.s32.totalorder %s85, 0
    %s88 = sadd.s32 %s87, 1
    %s89 = scalar_select %p86, %s87, %s88
    %p92 = pneg %p86
    %p93 = scmp.eq.s32.totalorder %s9, 1
    %p94 = por %p92, %p93
    %p95 = scmp.ne.s32.totalorder %s87, %s90
    %p96 = scmp.eq.s32.totalorder %s9, 0
    %p97 = por %p95, %p96
    %p98 = scmp.ne.s32.totalorder %s87, %s90
    %p99 = scmp.eq.s32.totalorder %s14, 1
    %p100 = por %p98, %p99
    %p101 = scmp.ne.s32.totalorder %s90, %s91
    %p102 = scmp.eq.s32.totalorder %s14, 0
    %p103 = por %p101, %p102
    %p104 = scmp.ne.s32.totalorder %s90, %s91
    %p105 = scmp.eq.s32.totalorder %s15, 1
    %p106 = por %p104, %p105
    %p108 = scmp.ne.s32.totalorder %s91, %s107
    %p109 = scmp.eq.s32.totalorder %s15, 0
    %p110 = por %p108, %p109
    %p111 = scmp.le.s32.totalorder 1, %s9
    %p112 = scmp.lt.s32.totalorder %s9, 3
    %p113 = pnand %p111, %p112
    %p114 = pneg %p113
    // Predicated region
    $region9: #{_generator_forward.16} parent=5 // pred_check
      _
    $region10: #{_generator_forward.16} parent=5 // pred_check_branch
      %116 = sbr.rel (%p113) target = $region12
    $region11: #{_generator_forward.16} parent=5 // pred_region
      %s117 = ssub.s32 %s9, 1
      // Predicated region
      $region13: #{_generator_forward.16} parent=11 // pred_check
        %p118 = pneg %p56
      $region14: #{_generator_forward.16} parent=11 // pred_check_branch
        %120 = sbr.rel (%p118) target = $region16
      $region15: #{_generator_forward.16} parent=11 // pred_region
        _
      $region16: #{_generator_forward.16} parent=11 // pred_fallthru
        _
      // Predicated region
      $region17: #{_generator_forward.16} parent=11 // pred_check
        %p121 = pneg %p77
      $region18: #{_generator_forward.16} parent=11 // pred_check_branch
        %123 = sbr.rel (%p121) target = $region20
      $region19: #{_generator_forward.16} parent=11 // pred_region
        _
      $region20: #{_generator_forward.16} parent=11 // pred_fallthru
        _
    $region12: #{_generator_forward.16} parent=5 // pred_fallthru
      _
    %p124 = scmp.lt.s32.totalorder %s9, 2
    // Predicated region
    $region21: #{_generator_forward.16} parent=5 // pred_check
      %p125 = pneg %p124
    $region22: #{_generator_forward.16} parent=5 // pred_check_branch
      %127 = sbr.rel (%p125) target = $region24
    $region23: #{_generator_forward.16} parent=5 // pred_region
      // Predicated region
      $region25: #{_generator_forward.16} parent=23 // pred_check
        %p128 = pneg %p29
      $region26: #{_generator_forward.16} parent=23 // pred_check_branch
        %130 = sbr.rel (%p128) target = $region28
      $region27: #{_generator_forward.16} parent=23 // pred_region
        %s131 = smul.u32 128, %s9
        %p132 = scmp.lt.s32.totalorder %s131, 255
        %s133 = scalar_select %p132, %s131, 255
        %s134 = smul.addr %s133, 8
        %s135 = scalar_lea.vmem %s0, %s134
        %s136 = smul.u32 128, %s9
      $region28: #{_generator_forward.16} parent=23 // pred_fallthru
        _
    $region24: #{_generator_forward.16} parent=5 // pred_fallthru
      _
    %p137 = scmp.le.s32.totalorder 1, %s9
    %p138 = scmp.lt.s32.totalorder %s9, 3
    %p139 = pnand %p137, %p138
    %p140 = pneg %p139
    // Predicated region
    $region29: #{_generator_forward.16} parent=5 // pred_check
      _
    $region30: #{_generator_forward.16} parent=5 // pred_check_branch
      %142 = sbr.rel (%p139) target = $region32
    $region31: #{_generator_forward.16} parent=5 // pred_region
      %s143 = ssub.s32 %s9, 1
      %s144 = smul.u32 128, %s14
      %p145 = scmp.lt.s32.totalorder %s144, 255
      %s146 = scalar_select %p145, %s144, 255
      %s147 = smul.addr %s146, 8
      %s148 = scalar_lea.vmem %s0, %s147
      %p149 = pneg %p35
      %p150 = pneg %p32
      %p151 = pneg %p56
      %p152 = pneg %p53
      %p153 = pneg %p77
      %p154 = pneg %p74
      %p155 = pneg %p103
      %p156 = pneg %p100
      %s157 = smul.u32 128, %s14
      %p158 = scmp.lt.s32.totalorder %s157, 255
      %s159 = scalar_select %p158, %s157, 255
      %s160 = smul.addr %s159, 8
      %s161 = scalar_lea.vmem %s3, %s160
      %s162 = smul.u32 128, %s14
      %p163 = scmp.lt.s32.totalorder %s162, 255
      %s164 = scalar_select %p163, %s162, 255
      %s165 = smul.addr %s164, 8
      %s166 = scalar_lea.vmem %s0, %s165
      %s167 = smul.u32 128, %s14
      %s168 = smul.u32 128, %s14
      %p169 = scmp.lt.s32.totalorder %s168, 255
      %s170 = scalar_select %p169, %s168, 255
      %s171 = smul.addr %s170, 8
      %s172 = scalar_lea.vmem %s3, %s171
      %s173 = smul.u32 128, %s14
      %v174 = vld [vmem:[%s166] sm:$0xff]
      %v175 = vld [vmem:[%s166 + $0x8] sm:$0xff]
      %v176 = vld [vmem:[%s166 + $0x10] sm:$0xff]
      %v177 = vld [vmem:[%s166 + $0x18] sm:$0xff]
      %v178 = vld [vmem:[%s166 + $0x20] sm:$0xff]
      %v179 = vld [vmem:[%s166 + $0x28] sm:$0xff]
      %v180 = vld [vmem:[%s166 + $0x30] sm:$0xff]
      %v181 = vld [vmem:[%s166 + $0x38] sm:$0xff]
      %v182 = vld [vmem:[%s166 + $0x40] sm:$0xff]
      %v183 = vld [vmem:[%s166 + $0x48] sm:$0xff]
      %v184 = vld [vmem:[%s166 + $0x50] sm:$0xff]
      %v185 = vld [vmem:[%s166 + $0x58] sm:$0xff]
      %v186 = vld [vmem:[%s166 + $0x60] sm:$0xff]
      %v187 = vld [vmem:[%s166 + $0x68] sm:$0xff]
      %v188 = vld [vmem:[%s166 + $0x70] sm:$0xff]
      %v189 = vld [vmem:[%s166 + $0x78] sm:$0xff]
      %v190 = vld [vmem:[%s166 + $0x80] sm:$0xff]
      %v191 = vld [vmem:[%s166 + $0x88] sm:$0xff]
      %v192 = vld [vmem:[%s166 + $0x90] sm:$0xff]
      %v193 = vld [vmem:[%s166 + $0x98] sm:$0xff]
      %v194 = vld [vmem:[%s166 + $0xa0] sm:$0xff]
      %v195 = vld [vmem:[%s166 + $0xa8] sm:$0xff]
      %v196 = vld [vmem:[%s166 + $0xb0] sm:$0xff]
      %v197 = vld [vmem:[%s166 + $0xb8] sm:$0xff]
      %v198 = vld [vmem:[%s166 + $0xc0] sm:$0xff]
      %v199 = vld [vmem:[%s166 + $0xc8] sm:$0xff]
      %v200 = vld [vmem:[%s166 + $0xd0] sm:$0xff]
      %v201 = vld [vmem:[%s166 + $0xd8] sm:$0xff]
      %v202 = vld [vmem:[%s166 + $0xe0] sm:$0xff]
      %v203 = vld [vmem:[%s166 + $0xe8] sm:$0xff]
      %v204 = vld [vmem:[%s166 + $0xf0] sm:$0xff]
      %v205 = vld [vmem:[%s166 + $0xf8] sm:$0xff]
      %v206 = vld [vmem:[%s166 + $0x100] sm:$0xff]
      %v207 = vld [vmem:[%s166 + $0x108] sm:$0xff]
      %v208 = vld [vmem:[%s166 + $0x110] sm:$0xff]
      %v209 = vld [vmem:[%s166 + $0x118] sm:$0xff]
      %v210 = vld [vmem:[%s166 + $0x120] sm:$0xff]
      %v211 = vld [vmem:[%s166 + $0x128] sm:$0xff]
      %v212 = vld [vmem:[%s166 + $0x130] sm:$0xff]
      %v213 = vld [vmem:[%s166 + $0x138] sm:$0xff]
      %v214 = vld [vmem:[%s166 + $0x140] sm:$0xff]
      %v215 = vld [vmem:[%s166 + $0x148] sm:$0xff]
      %v216 = vld [vmem:[%s166 + $0x150] sm:$0xff]
      %v217 = vld [vmem:[%s166 + $0x158] sm:$0xff]
      %v218 = vld [vmem:[%s166 + $0x160] sm:$0xff]
      %v219 = vld [vmem:[%s166 + $0x168] sm:$0xff]
      %v220 = vld [vmem:[%s166 + $0x170] sm:$0xff]
      %v221 = vld [vmem:[%s166 + $0x178] sm:$0xff]
      %v222 = vld [vmem:[%s166 + $0x180] sm:$0xff]
      %v223 = vld [vmem:[%s166 + $0x188] sm:$0xff]
      %v224 = vld [vmem:[%s166 + $0x190] sm:$0xff]
      %v225 = vld [vmem:[%s166 + $0x198] sm:$0xff]
      %v226 = vld [vmem:[%s166 + $0x1a0] sm:$0xff]
      %v227 = vld [vmem:[%s166 + $0x1a8] sm:$0xff]
      %v228 = vld [vmem:[%s166 + $0x1b0] sm:$0xff]
      %v229 = vld [vmem:[%s166 + $0x1b8] sm:$0xff]
      %v230 = vld [vmem:[%s166 + $0x1c0] sm:$0xff]
      %v231 = vld [vmem:[%s166 + $0x1c8] sm:$0xff]
      %v232 = vld [vmem:[%s166 + $0x1d0] sm:$0xff]
      %v233 = vld [vmem:[%s166 + $0x1d8] sm:$0xff]
      %v234 = vld [vmem:[%s166 + $0x1e0] sm:$0xff]
      %v235 = vld [vmem:[%s166 + $0x1e8] sm:$0xff]
      %v236 = vld [vmem:[%s166 + $0x1f0] sm:$0xff]
      %v237 = vld [vmem:[%s166 + $0x1f8] sm:$0xff]
      %v238 = vld [vmem:[%s166 + $0x200] sm:$0xff]
      %v239 = vld [vmem:[%s166 + $0x208] sm:$0xff]
      %v240 = vld [vmem:[%s166 + $0x210] sm:$0xff]
      %v241 = vld [vmem:[%s166 + $0x218] sm:$0xff]
      %v242 = vld [vmem:[%s166 + $0x220] sm:$0xff]
      %v243 = vld [vmem:[%s166 + $0x228] sm:$0xff]
      %v244 = vld [vmem:[%s166 + $0x230] sm:$0xff]
      %v245 = vld [vmem:[%s166 + $0x238] sm:$0xff]
      %v246 = vld [vmem:[%s166 + $0x240] sm:$0xff]
      %v247 = vld [vmem:[%s166 + $0x248] sm:$0xff]
      %v248 = vld [vmem:[%s166 + $0x250] sm:$0xff]
      %v249 = vld [vmem:[%s166 + $0x258] sm:$0xff]
      %v250 = vld [vmem:[%s166 + $0x260] sm:$0xff]
      %v251 = vld [vmem:[%s166 + $0x268] sm:$0xff]
      %v252 = vld [vmem:[%s166 + $0x270] sm:$0xff]
      %v253 = vld [vmem:[%s166 + $0x278] sm:$0xff]
      %v254 = vld [vmem:[%s166 + $0x280] sm:$0xff]
      %v255 = vld [vmem:[%s166 + $0x288] sm:$0xff]
      %v256 = vld [vmem:[%s166 + $0x290] sm:$0xff]
      %v257 = vld [vmem:[%s166 + $0x298] sm:$0xff]
      %v258 = vld [vmem:[%s166 + $0x2a0] sm:$0xff]
      %v259 = vld [vmem:[%s166 + $0x2a8] sm:$0xff]
      %v260 = vld [vmem:[%s166 + $0x2b0] sm:$0xff]
      %v261 = vld [vmem:[%s166 + $0x2b8] sm:$0xff]
      %v262 = vld [vmem:[%s166 + $0x2c0] sm:$0xff]
      %v263 = vld [vmem:[%s166 + $0x2c8] sm:$0xff]
      %v264 = vld [vmem:[%s166 + $0x2d0] sm:$0xff]
      %v265 = vld [vmem:[%s166 + $0x2d8] sm:$0xff]
      %v266 = vld [vmem:[%s166 + $0x2e0] sm:$0xff]
      %v267 = vld [vmem:[%s166 + $0x2e8] sm:$0xff]
      %v268 = vld [vmem:[%s166 + $0x2f0] sm:$0xff]
      %v269 = vld [vmem:[%s166 + $0x2f8] sm:$0xff]
      %v270 = vld [vmem:[%s166 + $0x300] sm:$0xff]
      %v271 = vld [vmem:[%s166 + $0x308] sm:$0xff]
      %v272 = vld [vmem:[%s166 + $0x310] sm:$0xff]
      %v273 = vld [vmem:[%s166 + $0x318] sm:$0xff]
      %v274 = vld [vmem:[%s166 + $0x320] sm:$0xff]
      %v275 = vld [vmem:[%s166 + $0x328] sm:$0xff]
      %v276 = vld [vmem:[%s166 + $0x330] sm:$0xff]
      %v277 = vld [vmem:[%s166 + $0x338] sm:$0xff]
      %v278 = vld [vmem:[%s166 + $0x340] sm:$0xff]
      %v279 = vld [vmem:[%s166 + $0x348] sm:$0xff]
      %v280 = vld [vmem:[%s166 + $0x350] sm:$0xff]
      %v281 = vld [vmem:[%s166 + $0x358] sm:$0xff]
      %v282 = vld [vmem:[%s166 + $0x360] sm:$0xff]
      %v283 = vld [vmem:[%s166 + $0x368] sm:$0xff]
      %v284 = vld [vmem:[%s166 + $0x370] sm:$0xff]
      %v285 = vld [vmem:[%s166 + $0x378] sm:$0xff]
      %v286 = vld [vmem:[%s166 + $0x380] sm:$0xff]
      %v287 = vld [vmem:[%s166 + $0x388] sm:$0xff]
      %v288 = vld [vmem:[%s166 + $0x390] sm:$0xff]
      %v289 = vld [vmem:[%s166 + $0x398] sm:$0xff]
      %v290 = vld [vmem:[%s166 + $0x3a0] sm:$0xff]
      %v291 = vld [vmem:[%s166 + $0x3a8] sm:$0xff]
      %v292 = vld [vmem:[%s166 + $0x3b0] sm:$0xff]
      %v293 = vld [vmem:[%s166 + $0x3b8] sm:$0xff]
      %v294 = vld [vmem:[%s166 + $0x3c0] sm:$0xff]
      %v295 = vld [vmem:[%s166 + $0x3c8] sm:$0xff]
      %v296 = vld [vmem:[%s166 + $0x3d0] sm:$0xff]
      %v297 = vld [vmem:[%s166 + $0x3d8] sm:$0xff]
      %v298 = vld [vmem:[%s166 + $0x3e0] sm:$0xff]
      %v299 = vld [vmem:[%s166 + $0x3e8] sm:$0xff]
      %v300 = vld [vmem:[%s166 + $0x3f0] sm:$0xff]
      %v301 = vld [vmem:[%s166 + $0x3f8] sm:$0xff]
      %v302 = vld [vmem:[%s1] sm:$0x1]
      %v304 = vlaneseq
      %v305 = vshrl.u32 %v304, 7
      %v306 = vsub.s32 0, %v305
      %v307 = vrot.slane %v302, %v306
      %v309 = vmul.f32 %v174, %v307
      %v310 = vmul.f32 %v175, %v307
      %v311 = vmul.f32 %v176, %v307
      %v312 = vmul.f32 %v177, %v307
      %v313 = vmul.f32 %v178, %v307
      %v314 = vmul.f32 %v179, %v307
      %v315 = vmul.f32 %v180, %v307
      %v316 = vmul.f32 %v181, %v307
      %v317 = vmul.f32 %v182, %v307
      %v318 = vmul.f32 %v183, %v307
      %v319 = vmul.f32 %v184, %v307
      %v320 = vmul.f32 %v185, %v307
      %v321 = vmul.f32 %v186, %v307
      %v322 = vmul.f32 %v187, %v307
      %v323 = vmul.f32 %v188, %v307
      %v324 = vmul.f32 %v189, %v307
      %v325 = vmul.f32 %v190, %v307
      %v326 = vmul.f32 %v191, %v307
      %v327 = vmul.f32 %v192, %v307
      %v328 = vmul.f32 %v193, %v307
      %v329 = vmul.f32 %v194, %v307
      %v330 = vmul.f32 %v195, %v307
      %v331 = vmul.f32 %v196, %v307
      %v332 = vmul.f32 %v197, %v307
      %v333 = vmul.f32 %v198, %v307
      %v334 = vmul.f32 %v199, %v307
      %v335 = vmul.f32 %v200, %v307
      %v336 = vmul.f32 %v201, %v307
      %v337 = vmul.f32 %v202, %v307
      %v338 = vmul.f32 %v203, %v307
      %v339 = vmul.f32 %v204, %v307
      %v340 = vmul.f32 %v205, %v307
      %v341 = vmul.f32 %v206, %v307
      %v342 = vmul.f32 %v207, %v307
      %v343 = vmul.f32 %v208, %v307
      %v344 = vmul.f32 %v209, %v307
      %v345 = vmul.f32 %v210, %v307
      %v346 = vmul.f32 %v211, %v307
      %v347 = vmul.f32 %v212, %v307
      %v348 = vmul.f32 %v213, %v307
      %v349 = vmul.f32 %v214, %v307
      %v350 = vmul.f32 %v215, %v307
      %v351 = vmul.f32 %v216, %v307
      %v352 = vmul.f32 %v217, %v307
      %v353 = vmul.f32 %v218, %v307
      %v354 = vmul.f32 %v219, %v307
      %v355 = vmul.f32 %v220, %v307
      %v356 = vmul.f32 %v221, %v307
      %v357 = vmul.f32 %v222, %v307
      %v358 = vmul.f32 %v223, %v307
      %v359 = vmul.f32 %v224, %v307
      %v360 = vmul.f32 %v225, %v307
      %v361 = vmul.f32 %v226, %v307
      %v362 = vmul.f32 %v227, %v307
      %v363 = vmul.f32 %v228, %v307
      %v364 = vmul.f32 %v229, %v307
      %v365 = vmul.f32 %v230, %v307
      %v366 = vmul.f32 %v231, %v307
      %v367 = vmul.f32 %v232, %v307
      %v368 = vmul.f32 %v233, %v307
      %v369 = vmul.f32 %v234, %v307
      %v370 = vmul.f32 %v235, %v307
      %v371 = vmul.f32 %v236, %v307
      %v372 = vmul.f32 %v237, %v307
      %v373 = vmul.f32 %v238, %v307
      %v374 = vmul.f32 %v239, %v307
      %v375 = vmul.f32 %v240, %v307
      %v376 = vmul.f32 %v241, %v307
      %v377 = vmul.f32 %v242, %v307
      %v378 = vmul.f32 %v243, %v307
      %v379 = vmul.f32 %v244, %v307
      %v380 = vmul.f32 %v245, %v307
      %v381 = vmul.f32 %v246, %v307
      %v382 = vmul.f32 %v247, %v307
      %v383 = vmul.f32 %v248, %v307
      %v384 = vmul.f32 %v249, %v307
      %v385 = vmul.f32 %v250, %v307
      %v386 = vmul.f32 %v251, %v307
      %v387 = vmul.f32 %v252, %v307
      %v388 = vmul.f32 %v253, %v307
      %v389 = vmul.f32 %v254, %v307
      %v390 = vmul.f32 %v255, %v307
      %v391 = vmul.f32 %v256, %v307
      %v392 = vmul.f32 %v257, %v307
      %v393 = vmul.f32 %v258, %v307
      %v394 = vmul.f32 %v259, %v307
      %v395 = vmul.f32 %v260, %v307
      %v396 = vmul.f32 %v261, %v307
      %v397 = vmul.f32 %v262, %v307
      %v398 = vmul.f32 %v263, %v307
      %v399 = vmul.f32 %v264, %v307
      %v400 = vmul.f32 %v265, %v307
      %v401 = vmul.f32 %v266, %v307
      %v402 = vmul.f32 %v267, %v307
      %v403 = vmul.f32 %v268, %v307
      %v404 = vmul.f32 %v269, %v307
      %v405 = vmul.f32 %v270, %v307
      %v406 = vmul.f32 %v271, %v307
      %v407 = vmul.f32 %v272, %v307
      %v408 = vmul.f32 %v273, %v307
      %v409 = vmul.f32 %v274, %v307
      %v410 = vmul.f32 %v275, %v307
      %v411 = vmul.f32 %v276, %v307
      %v412 = vmul.f32 %v277, %v307
      %v413 = vmul.f32 %v278, %v307
      %v414 = vmul.f32 %v279, %v307
      %v415 = vmul.f32 %v280, %v307
      %v416 = vmul.f32 %v281, %v307
      %v417 = vmul.f32 %v282, %v307
      %v418 = vmul.f32 %v283, %v307
      %v419 = vmul.f32 %v284, %v307
      %v420 = vmul.f32 %v285, %v307
      %v421 = vmul.f32 %v286, %v307
      %v422 = vmul.f32 %v287, %v307
      %v423 = vmul.f32 %v288, %v307
      %v424 = vmul.f32 %v289, %v307
      %v425 = vmul.f32 %v290, %v307
      %v426 = vmul.f32 %v291, %v307
      %v427 = vmul.f32 %v292, %v307
      %v428 = vmul.f32 %v293, %v307
      %v429 = vmul.f32 %v294, %v307
      %v430 = vmul.f32 %v295, %v307
      %v431 = vmul.f32 %v296, %v307
      %v432 = vmul.f32 %v297, %v307
      %v433 = vmul.f32 %v298, %v307
      %v434 = vmul.f32 %v299, %v307
      %v435 = vmul.f32 %v300, %v307
      %v436 = vmul.f32 %v301, %v307
      %v437 = vld [vmem:[%s2] sm:$0x1]
      %v439 = vlaneseq
      %v440 = vshrl.u32 %v439, 7
      %v441 = vsub.s32 0, %v440
      %v442 = vrot.slane %v437, %v441
      %v444 = vadd.f32 %v309, %v442
      %v445 = vadd.f32 %v310, %v442
      %v446 = vadd.f32 %v311, %v442
      %v447 = vadd.f32 %v312, %v442
      %v448 = vadd.f32 %v313, %v442
      %v449 = vadd.f32 %v314, %v442
      %v450 = vadd.f32 %v315, %v442
      %v451 = vadd.f32 %v316, %v442
      %v452 = vadd.f32 %v317, %v442
      %v453 = vadd.f32 %v318, %v442
      %v454 = vadd.f32 %v319, %v442
      %v455 = vadd.f32 %v320, %v442
      %v456 = vadd.f32 %v321, %v442
      %v457 = vadd.f32 %v322, %v442
      %v458 = vadd.f32 %v323, %v442
      %v459 = vadd.f32 %v324, %v442
      %v460 = vadd.f32 %v325, %v442
      %v461 = vadd.f32 %v326, %v442
      %v462 = vadd.f32 %v327, %v442
      %v463 = vadd.f32 %v328, %v442
      %v464 = vadd.f32 %v329, %v442
      %v465 = vadd.f32 %v330, %v442
      %v466 = vadd.f32 %v331, %v442
      %v467 = vadd.f32 %v332, %v442
      %v468 = vadd.f32 %v333, %v442
      %v469 = vadd.f32 %v334, %v442
      %v470 = vadd.f32 %v335, %v442
      %v471 = vadd.f32 %v336, %v442
      %v472 = vadd.f32 %v337, %v442
      %v473 = vadd.f32 %v338, %v442
      %v474 = vadd.f32 %v339, %v442
      %v475 = vadd.f32 %v340, %v442
      %v476 = vadd.f32 %v341, %v442
      %v477 = vadd.f32 %v342, %v442
      %v478 = vadd.f32 %v343, %v442
      %v479 = vadd.f32 %v344, %v442
      %v480 = vadd.f32 %v345, %v442
      %v481 = vadd.f32 %v346, %v442
      %v482 = vadd.f32 %v347, %v442
      %v483 = vadd.f32 %v348, %v442
      %v484 = vadd.f32 %v349, %v442
      %v485 = vadd.f32 %v350, %v442
      %v486 = vadd.f32 %v351, %v442
      %v487 = vadd.f32 %v352, %v442
      %v488 = vadd.f32 %v353, %v442
      %v489 = vadd.f32 %v354, %v442
      %v490 = vadd.f32 %v355, %v442
      %v491 = vadd.f32 %v356, %v442
      %v492 = vadd.f32 %v357, %v442
      %v493 = vadd.f32 %v358, %v442
      %v494 = vadd.f32 %v359, %v442
      %v495 = vadd.f32 %v360, %v442
      %v496 = vadd.f32 %v361, %v442
      %v497 = vadd.f32 %v362, %v442
      %v498 = vadd.f32 %v363, %v442
      %v499 = vadd.f32 %v364, %v442
      %v500 = vadd.f32 %v365, %v442
      %v501 = vadd.f32 %v366, %v442
      %v502 = vadd.f32 %v367, %v442
      %v503 = vadd.f32 %v368, %v442
      %v504 = vadd.f32 %v369, %v442
      %v505 = vadd.f32 %v370, %v442
      %v506 = vadd.f32 %v371, %v442
      %v507 = vadd.f32 %v372, %v442
      %v508 = vadd.f32 %v373, %v442
      %v509 = vadd.f32 %v374, %v442
      %v510 = vadd.f32 %v375, %v442
      %v511 = vadd.f32 %v376, %v442
      %v512 = vadd.f32 %v377, %v442
      %v513 = vadd.f32 %v378, %v442
      %v514 = vadd.f32 %v379, %v442
      %v515 = vadd.f32 %v380, %v442
      %v516 = vadd.f32 %v381, %v442
      %v517 = vadd.f32 %v382, %v442
      %v518 = vadd.f32 %v383, %v442
      %v519 = vadd.f32 %v384, %v442
      %v520 = vadd.f32 %v385, %v442
      %v521 = vadd.f32 %v386, %v442
      %v522 = vadd.f32 %v387, %v442
      %v523 = vadd.f32 %v388, %v442
      %v524 = vadd.f32 %v389, %v442
      %v525 = vadd.f32 %v390, %v442
      %v526 = vadd.f32 %v391, %v442
      %v527 = vadd.f32 %v392, %v442
      %v528 = vadd.f32 %v393, %v442
      %v529 = vadd.f32 %v394, %v442
      %v530 = vadd.f32 %v395, %v442
      %v531 = vadd.f32 %v396, %v442
      %v532 = vadd.f32 %v397, %v442
      %v533 = vadd.f32 %v398, %v442
      %v534 = vadd.f32 %v399, %v442
      %v535 = vadd.f32 %v400, %v442
      %v536 = vadd.f32 %v401, %v442
      %v537 = vadd.f32 %v402, %v442
      %v538 = vadd.f32 %v403, %v442
      %v539 = vadd.f32 %v404, %v442
      %v540 = vadd.f32 %v405, %v442
      %v541 = vadd.f32 %v406, %v442
      %v542 = vadd.f32 %v407, %v442
      %v543 = vadd.f32 %v408, %v442
      %v544 = vadd.f32 %v409, %v442
      %v545 = vadd.f32 %v410, %v442
      %v546 = vadd.f32 %v411, %v442
      %v547 = vadd.f32 %v412, %v442
      %v548 = vadd.f32 %v413, %v442
      %v549 = vadd.f32 %v414, %v442
      %v550 = vadd.f32 %v415, %v442
      %v551 = vadd.f32 %v416, %v442
      %v552 = vadd.f32 %v417, %v442
      %v553 = vadd.f32 %v418, %v442
      %v554 = vadd.f32 %v419, %v442
      %v555 = vadd.f32 %v420, %v442
      %v556 = vadd.f32 %v421, %v442
      %v557 = vadd.f32 %v422, %v442
      %v558 = vadd.f32 %v423, %v442
      %v559 = vadd.f32 %v424, %v442
      %v560 = vadd.f32 %v425, %v442
      %v561 = vadd.f32 %v426, %v442
      %v562 = vadd.f32 %v427, %v442
      %v563 = vadd.f32 %v428, %v442
      %v564 = vadd.f32 %v429, %v442
      %v565 = vadd.f32 %v430, %v442
      %v566 = vadd.f32 %v431, %v442
      %v567 = vadd.f32 %v432, %v442
      %v568 = vadd.f32 %v433, %v442
      %v569 = vadd.f32 %v434, %v442
      %v570 = vadd.f32 %v435, %v442
      %v571 = vadd.f32 %v436, %v442
      %v572 = vmax.f32 %v444, 0.0
      %v573 = vmax.f32 %v445, 0.0
      %v574 = vmax.f32 %v446, 0.0
      %v575 = vmax.f32 %v447, 0.0
      %v576 = vmax.f32 %v448, 0.0
      %v577 = vmax.f32 %v449, 0.0
      %v578 = vmax.f32 %v450, 0.0
      %v579 = vmax.f32 %v451, 0.0
      %v580 = vmax.f32 %v452, 0.0
      %v581 = vmax.f32 %v453, 0.0
      %v582 = vmax.f32 %v454, 0.0
      %v583 = vmax.f32 %v455, 0.0
      %v584 = vmax.f32 %v456, 0.0
      %v585 = vmax.f32 %v457, 0.0
      %v586 = vmax.f32 %v458, 0.0
      %v587 = vmax.f32 %v459, 0.0
      %v588 = vmax.f32 %v460, 0.0
      %v589 = vmax.f32 %v461, 0.0
      %v590 = vmax.f32 %v462, 0.0
      %v591 = vmax.f32 %v463, 0.0
      %v592 = vmax.f32 %v464, 0.0
      %v593 = vmax.f32 %v465, 0.0
      %v594 = vmax.f32 %v466, 0.0
      %v595 = vmax.f32 %v467, 0.0
      %v596 = vmax.f32 %v468, 0.0
      %v597 = vmax.f32 %v469, 0.0
      %v598 = vmax.f32 %v470, 0.0
      %v599 = vmax.f32 %v471, 0.0
      %v600 = vmax.f32 %v472, 0.0
      %v601 = vmax.f32 %v473, 0.0
      %v602 = vmax.f32 %v474, 0.0
      %v603 = vmax.f32 %v475, 0.0
      %v604 = vmax.f32 %v476, 0.0
      %v605 = vmax.f32 %v477, 0.0
      %v606 = vmax.f32 %v478, 0.0
      %v607 = vmax.f32 %v479, 0.0
      %v608 = vmax.f32 %v480, 0.0
      %v609 = vmax.f32 %v481, 0.0
      %v610 = vmax.f32 %v482, 0.0
      %v611 = vmax.f32 %v483, 0.0
      %v612 = vmax.f32 %v484, 0.0
      %v613 = vmax.f32 %v485, 0.0
      %v614 = vmax.f32 %v486, 0.0
      %v615 = vmax.f32 %v487, 0.0
      %v616 = vmax.f32 %v488, 0.0
      %v617 = vmax.f32 %v489, 0.0
      %v618 = vmax.f32 %v490, 0.0
      %v619 = vmax.f32 %v491, 0.0
      %v620 = vmax.f32 %v492, 0.0
      %v621 = vmax.f32 %v493, 0.0
      %v622 = vmax.f32 %v494, 0.0
      %v623 = vmax.f32 %v495, 0.0
      %v624 = vmax.f32 %v496, 0.0
      %v625 = vmax.f32 %v497, 0.0
      %v626 = vmax.f32 %v498, 0.0
      %v627 = vmax.f32 %v499, 0.0
      %v628 = vmax.f32 %v500, 0.0
      %v629 = vmax.f32 %v501, 0.0
      %v630 = vmax.f32 %v502, 0.0
      %v631 = vmax.f32 %v503, 0.0
      %v632 = vmax.f32 %v504, 0.0
      %v633 = vmax.f32 %v505, 0.0
      %v634 = vmax.f32 %v506, 0.0
      %v635 = vmax.f32 %v507, 0.0
      %v636 = vmax.f32 %v508, 0.0
      %v637 = vmax.f32 %v509, 0.0
      %v638 = vmax.f32 %v510, 0.0
      %v639 = vmax.f32 %v511, 0.0
      %v640 = vmax.f32 %v512, 0.0
      %v641 = vmax.f32 %v513, 0.0
      %v642 = vmax.f32 %v514, 0.0
      %v643 = vmax.f32 %v515, 0.0
      %v644 = vmax.f32 %v516, 0.0
      %v645 = vmax.f32 %v517, 0.0
      %v646 = vmax.f32 %v518, 0.0
      %v647 = vmax.f32 %v519, 0.0
      %v648 = vmax.f32 %v520, 0.0
      %v649 = vmax.f32 %v521, 0.0
      %v650 = vmax.f32 %v522, 0.0
      %v651 = vmax.f32 %v523, 0.0
      %v652 = vmax.f32 %v524, 0.0
      %v653 = vmax.f32 %v525, 0.0
      %v654 = vmax.f32 %v526, 0.0
      %v655 = vmax.f32 %v527, 0.0
      %v656 = vmax.f32 %v528, 0.0
      %v657 = vmax.f32 %v529, 0.0
      %v658 = vmax.f32 %v530, 0.0
      %v659 = vmax.f32 %v531, 0.0
      %v660 = vmax.f32 %v532, 0.0
      %v661 = vmax.f32 %v533, 0.0
      %v662 = vmax.f32 %v534, 0.0
      %v663 = vmax.f32 %v535, 0.0
      %v664 = vmax.f32 %v536, 0.0
      %v665 = vmax.f32 %v537, 0.0
      %v666 = vmax.f32 %v538, 0.0
      %v667 = vmax.f32 %v539, 0.0
      %v668 = vmax.f32 %v540, 0.0
      %v669 = vmax.f32 %v541, 0.0
      %v670 = vmax.f32 %v542, 0.0
      %v671 = vmax.f32 %v543, 0.0
      %v672 = vmax.f32 %v544, 0.0
      %v673 = vmax.f32 %v545, 0.0
      %v674 = vmax.f32 %v546, 0.0
      %v675 = vmax.f32 %v547, 0.0
      %v676 = vmax.f32 %v548, 0.0
      %v677 = vmax.f32 %v549, 0.0
      %v678 = vmax.f32 %v550, 0.0
      %v679 = vmax.f32 %v551, 0.0
      %v680 = vmax.f32 %v552, 0.0
      %v681 = vmax.f32 %v553, 0.0
      %v682 = vmax.f32 %v554, 0.0
      %v683 = vmax.f32 %v555, 0.0
      %v684 = vmax.f32 %v556, 0.0
      %v685 = vmax.f32 %v557, 0.0
      %v686 = vmax.f32 %v558, 0.0
      %v687 = vmax.f32 %v559, 0.0
      %v688 = vmax.f32 %v560, 0.0
      %v689 = vmax.f32 %v561, 0.0
      %v690 = vmax.f32 %v562, 0.0
      %v691 = vmax.f32 %v563, 0.0
      %v692 = vmax.f32 %v564, 0.0
      %v693 = vmax.f32 %v565, 0.0
      %v694 = vmax.f32 %v566, 0.0
      %v695 = vmax.f32 %v567, 0.0
      %v696 = vmax.f32 %v568, 0.0
      %v697 = vmax.f32 %v569, 0.0
      %v698 = vmax.f32 %v570, 0.0
      %v699 = vmax.f32 %v571, 0.0
      %vm700 = vcmask 64512
      %701 = vst.msk [vmem:[%s172] sm:$0xff] %vm700, %v572
      %702 = vst.msk [vmem:[%s172 + $0x8] sm:$0xff] %vm700, %v573
      %703 = vst.msk [vmem:[%s172 + $0x10] sm:$0xff] %vm700, %v574
      %704 = vst.msk [vmem:[%s172 + $0x18] sm:$0xff] %vm700, %v575
      %705 = vst.msk [vmem:[%s172 + $0x20] sm:$0xff] %vm700, %v576
      %706 = vst.msk [vmem:[%s172 + $0x28] sm:$0xff] %vm700, %v577
      %707 = vst.msk [vmem:[%s172 + $0x30] sm:$0xff] %vm700, %v578
      %708 = vst.msk [vmem:[%s172 + $0x38] sm:$0xff] %vm700, %v579
      %709 = vst.msk [vmem:[%s172 + $0x40] sm:$0xff] %vm700, %v580
      %710 = vst.msk [vmem:[%s172 + $0x48] sm:$0xff] %vm700, %v581
      %711 = vst.msk [vmem:[%s172 + $0x50] sm:$0xff] %vm700, %v582
      %712 = vst.msk [vmem:[%s172 + $0x58] sm:$0xff] %vm700, %v583
      %713 = vst.msk [vmem:[%s172 + $0x60] sm:$0xff] %vm700, %v584
      %714 = vst.msk [vmem:[%s172 + $0x68] sm:$0xff] %vm700, %v585
      %715 = vst.msk [vmem:[%s172 + $0x70] sm:$0xff] %vm700, %v586
      %716 = vst.msk [vmem:[%s172 + $0x78] sm:$0xff] %vm700, %v587
      %717 = vst.msk [vmem:[%s172 + $0x80] sm:$0xff] %vm700, %v588
      %718 = vst.msk [vmem:[%s172 + $0x88] sm:$0xff] %vm700, %v589
      %719 = vst.msk [vmem:[%s172 + $0x90] sm:$0xff] %vm700, %v590
      %720 = vst.msk [vmem:[%s172 + $0x98] sm:$0xff] %vm700, %v591
      %721 = vst.msk [vmem:[%s172 + $0xa0] sm:$0xff] %vm700, %v592
      %722 = vst.msk [vmem:[%s172 + $0xa8] sm:$0xff] %vm700, %v593
      %723 = vst.msk [vmem:[%s172 + $0xb0] sm:$0xff] %vm700, %v594
      %724 = vst.msk [vmem:[%s172 + $0xb8] sm:$0xff] %vm700, %v595
      %725 = vst.msk [vmem:[%s172 + $0xc0] sm:$0xff] %vm700, %v596
      %726 = vst.msk [vmem:[%s172 + $0xc8] sm:$0xff] %vm700, %v597
      %727 = vst.msk [vmem:[%s172 + $0xd0] sm:$0xff] %vm700, %v598
      %728 = vst.msk [vmem:[%s172 + $0xd8] sm:$0xff] %vm700, %v599
      %729 = vst.msk [vmem:[%s172 + $0xe0] sm:$0xff] %vm700, %v600
      %730 = vst.msk [vmem:[%s172 + $0xe8] sm:$0xff] %vm700, %v601
      %731 = vst.msk [vmem:[%s172 + $0xf0] sm:$0xff] %vm700, %v602
      %732 = vst.msk [vmem:[%s172 + $0xf8] sm:$0xff] %vm700, %v603
      %733 = vst.msk [vmem:[%s172 + $0x100] sm:$0xff] %vm700, %v604
      %734 = vst.msk [vmem:[%s172 + $0x108] sm:$0xff] %vm700, %v605
      %735 = vst.msk [vmem:[%s172 + $0x110] sm:$0xff] %vm700, %v606
      %736 = vst.msk [vmem:[%s172 + $0x118] sm:$0xff] %vm700, %v607
      %737 = vst.msk [vmem:[%s172 + $0x120] sm:$0xff] %vm700, %v608
      %738 = vst.msk [vmem:[%s172 + $0x128] sm:$0xff] %vm700, %v609
      %739 = vst.msk [vmem:[%s172 + $0x130] sm:$0xff] %vm700, %v610
      %740 = vst.msk [vmem:[%s172 + $0x138] sm:$0xff] %vm700, %v611
      %741 = vst.msk [vmem:[%s172 + $0x140] sm:$0xff] %vm700, %v612
      %742 = vst.msk [vmem:[%s172 + $0x148] sm:$0xff] %vm700, %v613
      %743 = vst.msk [vmem:[%s172 + $0x150] sm:$0xff] %vm700, %v614
      %744 = vst.msk [vmem:[%s172 + $0x158] sm:$0xff] %vm700, %v615
      %745 = vst.msk [vmem:[%s172 + $0x160] sm:$0xff] %vm700, %v616
      %746 = vst.msk [vmem:[%s172 + $0x168] sm:$0xff] %vm700, %v617
      %747 = vst.msk [vmem:[%s172 + $0x170] sm:$0xff] %vm700, %v618
      %748 = vst.msk [vmem:[%s172 + $0x178] sm:$0xff] %vm700, %v619
      %749 = vst.msk [vmem:[%s172 + $0x180] sm:$0xff] %vm700, %v620
      %750 = vst.msk [vmem:[%s172 + $0x188] sm:$0xff] %vm700, %v621
      %751 = vst.msk [vmem:[%s172 + $0x190] sm:$0xff] %vm700, %v622
      %752 = vst.msk [vmem:[%s172 + $0x198] sm:$0xff] %vm700, %v623
      %753 = vst.msk [vmem:[%s172 + $0x1a0] sm:$0xff] %vm700, %v624
      %754 = vst.msk [vmem:[%s172 + $0x1a8] sm:$0xff] %vm700, %v625
      %755 = vst.msk [vmem:[%s172 + $0x1b0] sm:$0xff] %vm700, %v626
      %756 = vst.msk [vmem:[%s172 + $0x1b8] sm:$0xff] %vm700, %v627
      %757 = vst.msk [vmem:[%s172 + $0x1c0] sm:$0xff] %vm700, %v628
      %758 = vst.msk [vmem:[%s172 + $0x1c8] sm:$0xff] %vm700, %v629
      %759 = vst.msk [vmem:[%s172 + $0x1d0] sm:$0xff] %vm700, %v630
      %760 = vst.msk [vmem:[%s172 + $0x1d8] sm:$0xff] %vm700, %v631
      %761 = vst.msk [vmem:[%s172 + $0x1e0] sm:$0xff] %vm700, %v632
      %762 = vst.msk [vmem:[%s172 + $0x1e8] sm:$0xff] %vm700, %v633
      %763 = vst.msk [vmem:[%s172 + $0x1f0] sm:$0xff] %vm700, %v634
      %764 = vst.msk [vmem:[%s172 + $0x1f8] sm:$0xff] %vm700, %v635
      %765 = vst.msk [vmem:[%s172 + $0x200] sm:$0xff] %vm700, %v636
      %766 = vst.msk [vmem:[%s172 + $0x208] sm:$0xff] %vm700, %v637
      %767 = vst.msk [vmem:[%s172 + $0x210] sm:$0xff] %vm700, %v638
      %768 = vst.msk [vmem:[%s172 + $0x218] sm:$0xff] %vm700, %v639
      %769 = vst.msk [vmem:[%s172 + $0x220] sm:$0xff] %vm700, %v640
      %770 = vst.msk [vmem:[%s172 + $0x228] sm:$0xff] %vm700, %v641
      %771 = vst.msk [vmem:[%s172 + $0x230] sm:$0xff] %vm700, %v642
      %772 = vst.msk [vmem:[%s172 + $0x238] sm:$0xff] %vm700, %v643
      %773 = vst.msk [vmem:[%s172 + $0x240] sm:$0xff] %vm700, %v644
      %774 = vst.msk [vmem:[%s172 + $0x248] sm:$0xff] %vm700, %v645
      %775 = vst.msk [vmem:[%s172 + $0x250] sm:$0xff] %vm700, %v646
      %776 = vst.msk [vmem:[%s172 + $0x258] sm:$0xff] %vm700, %v647
      %777 = vst.msk [vmem:[%s172 + $0x260] sm:$0xff] %vm700, %v648
      %778 = vst.msk [vmem:[%s172 + $0x268] sm:$0xff] %vm700, %v649
      %779 = vst.msk [vmem:[%s172 + $0x270] sm:$0xff] %vm700, %v650
      %780 = vst.msk [vmem:[%s172 + $0x278] sm:$0xff] %vm700, %v651
      %781 = vst.msk [vmem:[%s172 + $0x280] sm:$0xff] %vm700, %v652
      %782 = vst.msk [vmem:[%s172 + $0x288] sm:$0xff] %vm700, %v653
      %783 = vst.msk [vmem:[%s172 + $0x290] sm:$0xff] %vm700, %v654
      %784 = vst.msk [vmem:[%s172 + $0x298] sm:$0xff] %vm700, %v655
      %785 = vst.msk [vmem:[%s172 + $0x2a0] sm:$0xff] %vm700, %v656
      %786 = vst.msk [vmem:[%s172 + $0x2a8] sm:$0xff] %vm700, %v657
      %787 = vst.msk [vmem:[%s172 + $0x2b0] sm:$0xff] %vm700, %v658
      %788 = vst.msk [vmem:[%s172 + $0x2b8] sm:$0xff] %vm700, %v659
      %789 = vst.msk [vmem:[%s172 + $0x2c0] sm:$0xff] %vm700, %v660
      %790 = vst.msk [vmem:[%s172 + $0x2c8] sm:$0xff] %vm700, %v661
      %791 = vst.msk [vmem:[%s172 + $0x2d0] sm:$0xff] %vm700, %v662
      %792 = vst.msk [vmem:[%s172 + $0x2d8] sm:$0xff] %vm700, %v663
      %793 = vst.msk [vmem:[%s172 + $0x2e0] sm:$0xff] %vm700, %v664
      %794 = vst.msk [vmem:[%s172 + $0x2e8] sm:$0xff] %vm700, %v665
      %795 = vst.msk [vmem:[%s172 + $0x2f0] sm:$0xff] %vm700, %v666
      %796 = vst.msk [vmem:[%s172 + $0x2f8] sm:$0xff] %vm700, %v667
      %797 = vst.msk [vmem:[%s172 + $0x300] sm:$0xff] %vm700, %v668
      %798 = vst.msk [vmem:[%s172 + $0x308] sm:$0xff] %vm700, %v669
      %799 = vst.msk [vmem:[%s172 + $0x310] sm:$0xff] %vm700, %v670
      %800 = vst.msk [vmem:[%s172 + $0x318] sm:$0xff] %vm700, %v671
      %801 = vst.msk [vmem:[%s172 + $0x320] sm:$0xff] %vm700, %v672
      %802 = vst.msk [vmem:[%s172 + $0x328] sm:$0xff] %vm700, %v673
      %803 = vst.msk [vmem:[%s172 + $0x330] sm:$0xff] %vm700, %v674
      %804 = vst.msk [vmem:[%s172 + $0x338] sm:$0xff] %vm700, %v675
      %805 = vst.msk [vmem:[%s172 + $0x340] sm:$0xff] %vm700, %v676
      %806 = vst.msk [vmem:[%s172 + $0x348] sm:$0xff] %vm700, %v677
      %807 = vst.msk [vmem:[%s172 + $0x350] sm:$0xff] %vm700, %v678
      %808 = vst.msk [vmem:[%s172 + $0x358] sm:$0xff] %vm700, %v679
      %809 = vst.msk [vmem:[%s172 + $0x360] sm:$0xff] %vm700, %v680
      %810 = vst.msk [vmem:[%s172 + $0x368] sm:$0xff] %vm700, %v681
      %811 = vst.msk [vmem:[%s172 + $0x370] sm:$0xff] %vm700, %v682
      %812 = vst.msk [vmem:[%s172 + $0x378] sm:$0xff] %vm700, %v683
      %813 = vst.msk [vmem:[%s172 + $0x380] sm:$0xff] %vm700, %v684
      %814 = vst.msk [vmem:[%s172 + $0x388] sm:$0xff] %vm700, %v685
      %815 = vst.msk [vmem:[%s172 + $0x390] sm:$0xff] %vm700, %v686
      %816 = vst.msk [vmem:[%s172 + $0x398] sm:$0xff] %vm700, %v687
      %817 = vst.msk [vmem:[%s172 + $0x3a0] sm:$0xff] %vm700, %v688
      %818 = vst.msk [vmem:[%s172 + $0x3a8] sm:$0xff] %vm700, %v689
      %819 = vst.msk [vmem:[%s172 + $0x3b0] sm:$0xff] %vm700, %v690
      %820 = vst.msk [vmem:[%s172 + $0x3b8] sm:$0xff] %vm700, %v691
      %821 = vst.msk [vmem:[%s172 + $0x3c0] sm:$0xff] %vm700, %v692
      %822 = vst.msk [vmem:[%s172 + $0x3c8] sm:$0xff] %vm700, %v693
      %823 = vst.msk [vmem:[%s172 + $0x3d0] sm:$0xff] %vm700, %v694
      %824 = vst.msk [vmem:[%s172 + $0x3d8] sm:$0xff] %vm700, %v695
      %825 = vst.msk [vmem:[%s172 + $0x3e0] sm:$0xff] %vm700, %v696
      %826 = vst.msk [vmem:[%s172 + $0x3e8] sm:$0xff] %vm700, %v697
      %827 = vst.msk [vmem:[%s172 + $0x3f0] sm:$0xff] %vm700, %v698
      %828 = vst.msk [vmem:[%s172 + $0x3f8] sm:$0xff] %vm700, %v699
      %s829 = smul.u32 128, %s14
      %p830 = scmp.lt.s32.totalorder %s829, 255
      %s831 = scalar_select %p830, %s829, 255
      %s832 = smul.addr %s831, 8
      %s833 = scalar_lea.vmem %s3, %s832
      // Predicated region
      $region33: #{_generator_forward.16} parent=31 // pred_check
        %p834 = pneg %p100
      $region34: #{_generator_forward.16} parent=31 // pred_check_branch
        %836 = sbr.rel (%p834) target = $region36
      $region35: #{_generator_forward.16} parent=31 // pred_region
        %s837 = smul.u32 128, %s14
      $region36: #{_generator_forward.16} parent=31 // pred_fallthru
        _
    $region32: #{_generator_forward.16} parent=5 // pred_fallthru
      _
    %p838 = scmp.le.s32.totalorder 2, %s9
    // Predicated region
    $region37: #{_generator_forward.16} parent=5 // pred_check
      %p839 = pneg %p838
    $region38: #{_generator_forward.16} parent=5 // pred_check_branch
      %841 = sbr.rel (%p839) target = $region40
    $region39: #{_generator_forward.16} parent=5 // pred_region
      %s842 = ssub.s32 %s9, 2
      // Predicated region
      $region41: #{_generator_forward.16} parent=39 // pred_check
        %p843 = pneg %p106
      $region42: #{_generator_forward.16} parent=39 // pred_check_branch
        %845 = sbr.rel (%p843) target = $region44
      $region43: #{_generator_forward.16} parent=39 // pred_region
        %s846 = smul.u32 128, %s15
        %p847 = scmp.lt.s32.totalorder %s846, 255
        %s848 = scalar_select %p847, %s846, 255
        %s849 = smul.addr %s848, 8
        %s850 = scalar_lea.vmem %s3, %s849
      $region44: #{_generator_forward.16} parent=39 // pred_fallthru
        _
    $region40: #{_generator_forward.16} parent=5 // pred_fallthru
      _
  $region6: #{_generator_forward.16} parent=0 // loop_footer
    %s13 = sadd.s32 1, %s9
  $region7: #{_generator_forward.16} parent=0 // loop_footer_branch
    %8 = sbr.rel target = $region3
  $region8: #{_generator_forward.16} parent=0 // loop_exit
    _

// kernel: _generator_forward.17
$region0: #{_generator_forward.17}
  #allocation0 [shape = 'u32[]', space=smem, size = 0x4, offset = 0x4, fixed_abs, tag = 'smem constant byte address 0x4 - core index']
  #allocation1 [shape = 'u32[144,128]{1,0:T(1,128)}', space=vmem, size = 0x12000, scoped, tag = 'internal scratch']
  %s0 = inlined_call_operand.vmem [shape: bf16[4,2048,32], index: 0, kind: input, shape index: {}]
  %s1 = inlined_call_operand.vmem [shape: bf16[4,32,3], index: 1, kind: input, shape index: {}]
  %s2 = inlined_call_operand.vmem [shape: f32[1,3], index: 2, kind: input, shape index: {}]
  %s3 = inlined_call_operand.vmem [shape: f32[4,2048,3], index: 3, kind: output, shape index: {}]
  %s4 = sld [smem:[#allocation0]]
  $region45: #{_generator_forward.17} parent=0
    _
  %s6 = ssub.s32 1, %s4
  %s7 = scalar_select 0, %s6, %s4
  loop: start=0, step=1, limit=10
  $region2: #{_generator_forward.17} parent=0 // loop_pre_header
    _
  $region3: #{_generator_forward.17} parent=0 // loop_header
    %s9 = sphi 0, %s13
    %p10 = scmp.ge.s32.totalorder %s9, 10
    %s16 = sphi 0, %s28
    %s17 = sphi 0, %s24
    %s18 = sphi 0, %s16
    %s19 = sphi 0, %s17
    %s20 = sphi 0, %s18
    %s21 = sphi 0, %s19
    %s33 = sphi 0, %s35
    %s36 = sphi 0, %s33
    %s37 = sphi 0, %s36
    %s53 = sphi 0, %s37
    %s59 = sphi 0, %s61
    %s62 = sphi 0, %s59
    %s63 = sphi 0, %s62
    %s79 = sphi 0, %s63
    %s83 = sphi 0, %s83
    %s85 = sphi 0, %s83
    %s86 = sphi 0, %s85
    %s100 = sphi 0, %s86
    %s108 = sphi 0, %s110
    %s111 = sphi 0, %s108
    %s112 = sphi 0, %s111
    %s128 = sphi 0, %s112
  $region4: #{_generator_forward.17} parent=0 // loop_header_branch
    %12 = sbr.rel (%p10) target = $region8
  $region5: #{_generator_forward.17} parent=0 // loop_body
    %s14 = ssub.s32 %s9, 1
    %s15 = ssub.s32 %s9, 2
    %s22 = sadd.s32 1, %s17
    %p23 = scmp.ge.s32.totalorder %s22, 2
    %s24 = scalar_select %p23, 0, %s22
    %s25 = sadd.s32 1, %s16
    %s26 = scalar_select %p23, %s25, %s16
    %p27 = scmp.ge.s32.totalorder %s26, 4
    %s28 = scalar_select %p27, 0, %s26
    %s29 = ssub.s32 %s16, %s28
    %s30 = ssub.s32 %s17, %s24
    %s31 = sor.u32 %s29, %s30
    %p32 = scmp.eq.s32.totalorder %s31, 0
    %s34 = sadd.s32 %s33, 1
    %s35 = scalar_select %p32, %s33, %s34
    %p38 = pneg %p32
    %p39 = scmp.eq.s32.totalorder %s9, 7
    %p40 = por %p38, %p39
    %p41 = scmp.ne.s32.totalorder %s33, %s36
    %p42 = scmp.eq.s32.totalorder %s9, 0
    %p43 = por %p41, %p42
    %p44 = scmp.ne.s32.totalorder %s33, %s36
    %p45 = scmp.eq.s32.totalorder %s14, 7
    %p46 = por %p44, %p45
    %p47 = scmp.ne.s32.totalorder %s36, %s37
    %p48 = scmp.eq.s32.totalorder %s14, 0
    %p49 = por %p47, %p48
    %p50 = scmp.ne.s32.totalorder %s36, %s37
    %p51 = scmp.eq.s32.totalorder %s15, 7
    %p52 = por %p50, %p51
    %p54 = scmp.ne.s32.totalorder %s37, %s53
    %p55 = scmp.eq.s32.totalorder %s15, 0
    %p56 = por %p54, %p55
    %s57 = ssub.s32 %s16, %s28
    %p58 = scmp.eq.s32.totalorder %s57, 0
    %s60 = sadd.s32 %s59, 1
    %s61 = scalar_select %p58, %s59, %s60
    %p64 = pneg %p58
    %p65 = scmp.eq.s32.totalorder %s9, 7
    %p66 = por %p64, %p65
    %p67 = scmp.ne.s32.totalorder %s59, %s62
    %p68 = scmp.eq.s32.totalorder %s9, 0
    %p69 = por %p67, %p68
    %p70 = scmp.ne.s32.totalorder %s59, %s62
    %p71 = scmp.eq.s32.totalorder %s14, 7
    %p72 = por %p70, %p71
    %p73 = scmp.ne.s32.totalorder %s62, %s63
    %p74 = scmp.eq.s32.totalorder %s14, 0
    %p75 = por %p73, %p74
    %p76 = scmp.ne.s32.totalorder %s62, %s63
    %p77 = scmp.eq.s32.totalorder %s15, 7
    %p78 = por %p76, %p77
    %p80 = scmp.ne.s32.totalorder %s63, %s79
    %p81 = scmp.eq.s32.totalorder %s15, 0
    %p82 = por %p80, %p81
    %s84 = sadd.s32 %s83, 1
    %p87 = scmp.eq.s32.totalorder %s9, 7
    %p88 = scmp.ne.s32.totalorder %s83, %s85
    %p89 = scmp.eq.s32.totalorder %s9, 0
    %p90 = por %p88, %p89
    %p91 = scmp.ne.s32.totalorder %s83, %s85
    %p92 = scmp.eq.s32.totalorder %s14, 7
    %p93 = por %p91, %p92
    %p94 = scmp.ne.s32.totalorder %s85, %s86
    %p95 = scmp.eq.s32.totalorder %s14, 0
    %p96 = por %p94, %p95
    %p97 = scmp.ne.s32.totalorder %s85, %s86
    %p98 = scmp.eq.s32.totalorder %s15, 7
    %p99 = por %p97, %p98
    %p101 = scmp.ne.s32.totalorder %s86, %s100
    %p102 = scmp.eq.s32.totalorder %s15, 0
    %p103 = por %p101, %p102
    %s104 = ssub.s32 %s16, %s28
    %s105 = ssub.s32 %s17, %s24
    %s106 = sor.u32 %s104, %s105
    %p107 = scmp.eq.s32.totalorder %s106, 0
    %s109 = sadd.s32 %s108, 1
    %s110 = scalar_select %p107, %s108, %s109
    %p113 = pneg %p107
    %p114 = scmp.eq.s32.totalorder %s9, 7
    %p115 = por %p113, %p114
    %p116 = scmp.ne.s32.totalorder %s108, %s111
    %p117 = scmp.eq.s32.totalorder %s9, 0
    %p118 = por %p116, %p117
    %p119 = scmp.ne.s32.totalorder %s108, %s111
    %p120 = scmp.eq.s32.totalorder %s14, 7
    %p121 = por %p119, %p120
    %p122 = scmp.ne.s32.totalorder %s111, %s112
    %p123 = scmp.eq.s32.totalorder %s14, 0
    %p124 = por %p122, %p123
    %p125 = scmp.ne.s32.totalorder %s111, %s112
    %p126 = scmp.eq.s32.totalorder %s15, 7
    %p127 = por %p125, %p126
    %p129 = scmp.ne.s32.totalorder %s112, %s128
    %p130 = scmp.eq.s32.totalorder %s15, 0
    %p131 = por %p129, %p130
    %p132 = scmp.le.s32.totalorder 1, %s9
    %p133 = scmp.lt.s32.totalorder %s9, 9
    %p134 = pnand %p132, %p133
    %p135 = pneg %p134
    // Predicated region
    $region9: #{_generator_forward.17} parent=5 // pred_check
      _
    $region10: #{_generator_forward.17} parent=5 // pred_check_branch
      %137 = sbr.rel (%p134) target = $region12
    $region11: #{_generator_forward.17} parent=5 // pred_region
      %s138 = ssub.s32 %s9, 1
      // Predicated region
      $region13: #{_generator_forward.17} parent=11 // pred_check
        %p139 = pneg %p96
      $region14: #{_generator_forward.17} parent=11 // pred_check_branch
        %141 = sbr.rel (%p139) target = $region16
      $region15: #{_generator_forward.17} parent=11 // pred_region
        _
      $region16: #{_generator_forward.17} parent=11 // pred_fallthru
        _
    $region12: #{_generator_forward.17} parent=5 // pred_fallthru
      _
    %p142 = scmp.lt.s32.totalorder %s9, 8
    // Predicated region
    $region17: #{_generator_forward.17} parent=5 // pred_check
      %p143 = pneg %p142
    $region18: #{_generator_forward.17} parent=5 // pred_check_branch
      %145 = sbr.rel (%p143) target = $region20
    $region19: #{_generator_forward.17} parent=5 // pred_region
      // Predicated region
      $region21: #{_generator_forward.17} parent=19 // pred_check
        %p146 = pneg %p43
      $region22: #{_generator_forward.17} parent=19 // pred_check_branch
        %148 = sbr.rel (%p146) target = $region24
      $region23: #{_generator_forward.17} parent=19 // pred_region
        %s149 = smul.u32 128, %s17
        %p150 = scmp.lt.s32.totalorder %s16, 3
        %s151 = scalar_select %p150, %s16, 3
        %p152 = scmp.lt.s32.totalorder %s149, 255
        %s153 = scalar_select %p152, %s149, 255
        %s154 = smul.addr %s151, 256
        %s155 = sadd.s32 %s153, %s154
        %s156 = smul.addr %s155, 4
        %s157 = scalar_lea.vmem %s0, %s156
        %s158 = smul.u32 128, %s17
      $region24: #{_generator_forward.17} parent=19 // pred_fallthru
        _
      // Predicated region
      $region25: #{_generator_forward.17} parent=19 // pred_check
        %p159 = pneg %p69
      $region26: #{_generator_forward.17} parent=19 // pred_check_branch
        %161 = sbr.rel (%p159) target = $region28
      $region27: #{_generator_forward.17} parent=19 // pred_region
        %p162 = scmp.lt.s32.totalorder %s16, 3
        %s163 = scalar_select %p162, %s16, 3
        %s164 = smul.addr %s163, 4
        %s165 = smul.addr %s164, 4
        %s166 = scalar_lea.vmem %s1, %s165
      $region28: #{_generator_forward.17} parent=19 // pred_fallthru
        _
    $region20: #{_generator_forward.17} parent=5 // pred_fallthru
      _
    %p167 = scmp.le.s32.totalorder 1, %s9
    %p168 = scmp.lt.s32.totalorder %s9, 9
    %p169 = pnand %p167, %p168
    %p170 = pneg %p169
    // Predicated region
    $region29: #{_generator_forward.17} parent=5 // pred_check
      _
    $region30: #{_generator_forward.17} parent=5 // pred_check_branch
      %172 = sbr.rel (%p169) target = $region32
    $region31: #{_generator_forward.17} parent=5 // pred_region
      %s173 = ssub.s32 %s9, 1
      %s174 = smul.u32 128, %s19
      %p175 = scmp.lt.s32.totalorder %s18, 3
      %s176 = scalar_select %p175, %s18, 3
      %p177 = scmp.lt.s32.totalorder %s174, 255
      %s178 = scalar_select %p177, %s174, 255
      %s179 = smul.addr %s176, 256
      %s180 = sadd.s32 %s178, %s179
      %s181 = smul.addr %s180, 4
      %s182 = scalar_lea.vmem %s0, %s181
      %p183 = pneg %p49
      %p184 = pneg %p46
      %p185 = scmp.lt.s32.totalorder %s18, 3
      %s186 = scalar_select %p185, %s18, 3
      %s187 = smul.addr %s186, 4
      %s188 = smul.addr %s187, 4
      %s189 = scalar_lea.vmem %s1, %s188
      %p190 = pneg %p75
      %p191 = pneg %p72
      %p192 = pneg %p96
      %p193 = pneg %p93
      %p194 = pneg %p124
      %p195 = pneg %p121
      %s196 = smul.u32 128, %s19
      %p197 = scmp.lt.s32.totalorder %s18, 3
      %s198 = scalar_select %p197, %s18, 3
      %p199 = scmp.lt.s32.totalorder %s196, 255
      %s200 = scalar_select %p199, %s196, 255
      %s201 = smul.addr %s198, 256
      %s202 = sadd.s32 %s200, %s201
      %s203 = smul.addr %s202, 8
      %s204 = scalar_lea.vmem %s3, %s203
      %s205 = smul.u32 128, %s19
      %p206 = scmp.lt.s32.totalorder %s18, 3
      %s207 = scalar_select %p206, %s18, 3
      %p208 = scmp.lt.s32.totalorder %s205, 255
      %s209 = scalar_select %p208, %s205, 255
      %s210 = smul.addr %s207, 256
      %s211 = sadd.s32 %s209, %s210
      %s212 = smul.addr %s211, 4
      %s213 = scalar_lea.vmem %s0, %s212
      %s214 = smul.u32 128, %s19
      %p215 = scmp.lt.s32.totalorder %s18, 3
      %s216 = scalar_select %p215, %s18, 3
      %s217 = smul.addr %s216, 4
      %s218 = smul.addr %s217, 4
      %s219 = scalar_lea.vmem %s1, %s218
      %s220 = smul.u32 128, %s19
      %p221 = scmp.lt.s32.totalorder %s18, 3
      %s222 = scalar_select %p221, %s18, 3
      %p223 = scmp.lt.s32.totalorder %s220, 255
      %s224 = scalar_select %p223, %s220, 255
      %s225 = smul.addr %s222, 256
      %s226 = sadd.s32 %s224, %s225
      %s227 = smul.addr %s226, 8
      %s228 = scalar_lea.vmem %s3, %s227
      %s229 = smul.u32 128, %s19
      %v231 = vld [vmem:[%s213] sm:$0xf]
      %v232 = vld [vmem:[%s213 + $0x4] sm:$0xf]
      %v233 = vld [vmem:[%s213 + $0x8] sm:$0xf]
      %v234 = vld [vmem:[%s213 + $0xc] sm:$0xf]
      %v235 = vld [vmem:[%s213 + $0x10] sm:$0xf]
      %v236 = vld [vmem:[%s213 + $0x14] sm:$0xf]
      %v237 = vld [vmem:[%s213 + $0x18] sm:$0xf]
      %v238 = vld [vmem:[%s213 + $0x1c] sm:$0xf]
      %v239 = vld [vmem:[%s213 + $0x20] sm:$0xf]
      %v240 = vld [vmem:[%s213 + $0x24] sm:$0xf]
      %v241 = vld [vmem:[%s213 + $0x28] sm:$0xf]
      %v242 = vld [vmem:[%s213 + $0x2c] sm:$0xf]
      %v243 = vld [vmem:[%s213 + $0x30] sm:$0xf]
      %v244 = vld [vmem:[%s213 + $0x34] sm:$0xf]
      %v245 = vld [vmem:[%s213 + $0x38] sm:$0xf]
      %v246 = vld [vmem:[%s213 + $0x3c] sm:$0xf]
      %v247 = vld [vmem:[%s213 + $0x40] sm:$0xf]
      %v248 = vld [vmem:[%s213 + $0x44] sm:$0xf]
      %v249 = vld [vmem:[%s213 + $0x48] sm:$0xf]
      %v250 = vld [vmem:[%s213 + $0x4c] sm:$0xf]
      %v251 = vld [vmem:[%s213 + $0x50] sm:$0xf]
      %v252 = vld [vmem:[%s213 + $0x54] sm:$0xf]
      %v253 = vld [vmem:[%s213 + $0x58] sm:$0xf]
      %v254 = vld [vmem:[%s213 + $0x5c] sm:$0xf]
      %v255 = vld [vmem:[%s213 + $0x60] sm:$0xf]
      %v256 = vld [vmem:[%s213 + $0x64] sm:$0xf]
      %v257 = vld [vmem:[%s213 + $0x68] sm:$0xf]
      %v258 = vld [vmem:[%s213 + $0x6c] sm:$0xf]
      %v259 = vld [vmem:[%s213 + $0x70] sm:$0xf]
      %v260 = vld [vmem:[%s213 + $0x74] sm:$0xf]
      %v261 = vld [vmem:[%s213 + $0x78] sm:$0xf]
      %v262 = vld [vmem:[%s213 + $0x7c] sm:$0xf]
      %v263 = vld [vmem:[%s213 + $0x80] sm:$0xf]
      %v264 = vld [vmem:[%s213 + $0x84] sm:$0xf]
      %v265 = vld [vmem:[%s213 + $0x88] sm:$0xf]
      %v266 = vld [vmem:[%s213 + $0x8c] sm:$0xf]
      %v267 = vld [vmem:[%s213 + $0x90] sm:$0xf]
      %v268 = vld [vmem:[%s213 + $0x94] sm:$0xf]
      %v269 = vld [vmem:[%s213 + $0x98] sm:$0xf]
      %v270 = vld [vmem:[%s213 + $0x9c] sm:$0xf]
      %v271 = vld [vmem:[%s213 + $0xa0] sm:$0xf]
      %v272 = vld [vmem:[%s213 + $0xa4] sm:$0xf]
      %v273 = vld [vmem:[%s213 + $0xa8] sm:$0xf]
      %v274 = vld [vmem:[%s213 + $0xac] sm:$0xf]
      %v275 = vld [vmem:[%s213 + $0xb0] sm:$0xf]
      %v276 = vld [vmem:[%s213 + $0xb4] sm:$0xf]
      %v277 = vld [vmem:[%s213 + $0xb8] sm:$0xf]
      %v278 = vld [vmem:[%s213 + $0xbc] sm:$0xf]
      %v279 = vld [vmem:[%s213 + $0xc0] sm:$0xf]
      %v280 = vld [vmem:[%s213 + $0xc4] sm:$0xf]
      %v281 = vld [vmem:[%s213 + $0xc8] sm:$0xf]
      %v282 = vld [vmem:[%s213 + $0xcc] sm:$0xf]
      %v283 = vld [vmem:[%s213 + $0xd0] sm:$0xf]
      %v284 = vld [vmem:[%s213 + $0xd4] sm:$0xf]
      %v285 = vld [vmem:[%s213 + $0xd8] sm:$0xf]
      %v286 = vld [vmem:[%s213 + $0xdc] sm:$0xf]
      %v287 = vld [vmem:[%s213 + $0xe0] sm:$0xf]
      %v288 = vld [vmem:[%s213 + $0xe4] sm:$0xf]
      %v289 = vld [vmem:[%s213 + $0xe8] sm:$0xf]
      %v290 = vld [vmem:[%s213 + $0xec] sm:$0xf]
      %v291 = vld [vmem:[%s213 + $0xf0] sm:$0xf]
      %v292 = vld [vmem:[%s213 + $0xf4] sm:$0xf]
      %v293 = vld [vmem:[%s213 + $0xf8] sm:$0xf]
      %v294 = vld [vmem:[%s213 + $0xfc] sm:$0xf]
      %v295 = vld [vmem:[%s213 + $0x100] sm:$0xf]
      %v296 = vld [vmem:[%s213 + $0x104] sm:$0xf]
      %v297 = vld [vmem:[%s213 + $0x108] sm:$0xf]
      %v298 = vld [vmem:[%s213 + $0x10c] sm:$0xf]
      %v299 = vld [vmem:[%s213 + $0x110] sm:$0xf]
      %v300 = vld [vmem:[%s213 + $0x114] sm:$0xf]
      %v301 = vld [vmem:[%s213 + $0x118] sm:$0xf]
      %v302 = vld [vmem:[%s213 + $0x11c] sm:$0xf]
      %v303 = vld [vmem:[%s213 + $0x120] sm:$0xf]
      %v304 = vld [vmem:[%s213 + $0x124] sm:$0xf]
      %v305 = vld [vmem:[%s213 + $0x128] sm:$0xf]
      %v306 = vld [vmem:[%s213 + $0x12c] sm:$0xf]
      %v307 = vld [vmem:[%s213 + $0x130] sm:$0xf]
      %v308 = vld [vmem:[%s213 + $0x134] sm:$0xf]
      %v309 = vld [vmem:[%s213 + $0x138] sm:$0xf]
      %v310 = vld [vmem:[%s213 + $0x13c] sm:$0xf]
      %v311 = vld [vmem:[%s213 + $0x140] sm:$0xf]
      %v312 = vld [vmem:[%s213 + $0x144] sm:$0xf]
      %v313 = vld [vmem:[%s213 + $0x148] sm:$0xf]
      %v314 = vld [vmem:[%s213 + $0x14c] sm:$0xf]
      %v315 = vld [vmem:[%s213 + $0x150] sm:$0xf]
      %v316 = vld [vmem:[%s213 + $0x154] sm:$0xf]
      %v317 = vld [vmem:[%s213 + $0x158] sm:$0xf]
      %v318 = vld [vmem:[%s213 + $0x15c] sm:$0xf]
      %v319 = vld [vmem:[%s213 + $0x160] sm:$0xf]
      %v320 = vld [vmem:[%s213 + $0x164] sm:$0xf]
      %v321 = vld [vmem:[%s213 + $0x168] sm:$0xf]
      %v322 = vld [vmem:[%s213 + $0x16c] sm:$0xf]
      %v323 = vld [vmem:[%s213 + $0x170] sm:$0xf]
      %v324 = vld [vmem:[%s213 + $0x174] sm:$0xf]
      %v325 = vld [vmem:[%s213 + $0x178] sm:$0xf]
      %v326 = vld [vmem:[%s213 + $0x17c] sm:$0xf]
      %v327 = vld [vmem:[%s213 + $0x180] sm:$0xf]
      %v328 = vld [vmem:[%s213 + $0x184] sm:$0xf]
      %v329 = vld [vmem:[%s213 + $0x188] sm:$0xf]
      %v330 = vld [vmem:[%s213 + $0x18c] sm:$0xf]
      %v331 = vld [vmem:[%s213 + $0x190] sm:$0xf]
      %v332 = vld [vmem:[%s213 + $0x194] sm:$0xf]
      %v333 = vld [vmem:[%s213 + $0x198] sm:$0xf]
      %v334 = vld [vmem:[%s213 + $0x19c] sm:$0xf]
      %v335 = vld [vmem:[%s213 + $0x1a0] sm:$0xf]
      %v336 = vld [vmem:[%s213 + $0x1a4] sm:$0xf]
      %v337 = vld [vmem:[%s213 + $0x1a8] sm:$0xf]
      %v338 = vld [vmem:[%s213 + $0x1ac] sm:$0xf]
      %v339 = vld [vmem:[%s213 + $0x1b0] sm:$0xf]
      %v340 = vld [vmem:[%s213 + $0x1b4] sm:$0xf]
      %v341 = vld [vmem:[%s213 + $0x1b8] sm:$0xf]
      %v342 = vld [vmem:[%s213 + $0x1bc] sm:$0xf]
      %v343 = vld [vmem:[%s213 + $0x1c0] sm:$0xf]
      %v344 = vld [vmem:[%s213 + $0x1c4] sm:$0xf]
      %v345 = vld [vmem:[%s213 + $0x1c8] sm:$0xf]
      %v346 = vld [vmem:[%s213 + $0x1cc] sm:$0xf]
      %v347 = vld [vmem:[%s213 + $0x1d0] sm:$0xf]
      %v348 = vld [vmem:[%s213 + $0x1d4] sm:$0xf]
      %v349 = vld [vmem:[%s213 + $0x1d8] sm:$0xf]
      %v350 = vld [vmem:[%s213 + $0x1dc] sm:$0xf]
      %v351 = vld [vmem:[%s213 + $0x1e0] sm:$0xf]
      %v352 = vld [vmem:[%s213 + $0x1e4] sm:$0xf]
      %v353 = vld [vmem:[%s213 + $0x1e8] sm:$0xf]
      %v354 = vld [vmem:[%s213 + $0x1ec] sm:$0xf]
      %v355 = vld [vmem:[%s213 + $0x1f0] sm:$0xf]
      %v356 = vld [vmem:[%s213 + $0x1f4] sm:$0xf]
      %v357 = vld [vmem:[%s213 + $0x1f8] sm:$0xf]
      %v358 = vld [vmem:[%s213 + $0x1fc] sm:$0xf]
      %v359 = vld [vmem:[%s219] sm:$0xf]
      %v360 = vld [vmem:[%s219 + $0x4] sm:$0xf]
      %v361 = vld [vmem:[%s219 + $0x8] sm:$0xf]
      %v362 = vld [vmem:[%s219 + $0xc] sm:$0xf]
      %v363 = vld [vmem:[%s2] sm:$0x1]
      %v365 = vlaneseq
      %v366 = vshrl.u32 %v365, 7
      %v367 = vsub.s32 0, %v366
      %v368 = vrot.slane %v363, %v367
      %v498 = vunpack.c.l.b16 %v231
      %v499 = vunpack.c.l.b16 %v232
      %v500 = vunpack.c.l.b16 %v233
      %v501 = vunpack.c.l.b16 %v234
      %v502 = vunpack.c.l.b16 %v235
      %v503 = vunpack.c.l.b16 %v236
      %v504 = vunpack.c.l.b16 %v237
      %v505 = vunpack.c.l.b16 %v238
      %v506 = vunpack.c.l.b16 %v239
      %v507 = vunpack.c.l.b16 %v240
      %v508 = vunpack.c.l.b16 %v241
      %v509 = vunpack.c.l.b16 %v242
      %v510 = vunpack.c.l.b16 %v243
      %v511 = vunpack.c.l.b16 %v244
      %v512 = vunpack.c.l.b16 %v245
      %v513 = vunpack.c.l.b16 %v246
      %v514 = vunpack.c.l.b16 %v247
      %v515 = vunpack.c.l.b16 %v248
      %v516 = vunpack.c.l.b16 %v249
      %v517 = vunpack.c.l.b16 %v250
      %v518 = vunpack.c.l.b16 %v251
      %v519 = vunpack.c.l.b16 %v252
      %v520 = vunpack.c.l.b16 %v253
      %v521 = vunpack.c.l.b16 %v254
      %v522 = vunpack.c.l.b16 %v255
      %v523 = vunpack.c.l.b16 %v256
      %v524 = vunpack.c.l.b16 %v257
      %v525 = vunpack.c.l.b16 %v258
      %v526 = vunpack.c.l.b16 %v259
      %v527 = vunpack.c.l.b16 %v260
      %v528 = vunpack.c.l.b16 %v261
      %v529 = vunpack.c.l.b16 %v262
      %v530 = vunpack.c.l.b16 %v263
      %v531 = vunpack.c.l.b16 %v264
      %v532 = vunpack.c.l.b16 %v265
      %v533 = vunpack.c.l.b16 %v266
      %v534 = vunpack.c.l.b16 %v267
      %v535 = vunpack.c.l.b16 %v268
      %v536 = vunpack.c.l.b16 %v269
      %v537 = vunpack.c.l.b16 %v270
      %v538 = vunpack.c.l.b16 %v271
      %v539 = vunpack.c.l.b16 %v272
      %v540 = vunpack.c.l.b16 %v273
      %v541 = vunpack.c.l.b16 %v274
      %v542 = vunpack.c.l.b16 %v275
      %v543 = vunpack.c.l.b16 %v276
      %v544 = vunpack.c.l.b16 %v277
      %v545 = vunpack.c.l.b16 %v278
      %v546 = vunpack.c.l.b16 %v279
      %v547 = vunpack.c.l.b16 %v280
      %v548 = vunpack.c.l.b16 %v281
      %v549 = vunpack.c.l.b16 %v282
      %v550 = vunpack.c.l.b16 %v283
      %v551 = vunpack.c.l.b16 %v284
      %v552 = vunpack.c.l.b16 %v285
      %v553 = vunpack.c.l.b16 %v286
      %v554 = vunpack.c.l.b16 %v287
      %v555 = vunpack.c.l.b16 %v288
      %v556 = vunpack.c.l.b16 %v289
      %v557 = vunpack.c.l.b16 %v290
      %v558 = vunpack.c.l.b16 %v291
      %v559 = vunpack.c.l.b16 %v292
      %v560 = vunpack.c.l.b16 %v293
      %v561 = vunpack.c.l.b16 %v294
      %v562 = vunpack.c.l.b16 %v295
      %v563 = vunpack.c.l.b16 %v296
      %v564 = vunpack.c.l.b16 %v297
      %v565 = vunpack.c.l.b16 %v298
      %v566 = vunpack.c.l.b16 %v299
      %v567 = vunpack.c.l.b16 %v300
      %v568 = vunpack.c.l.b16 %v301
      %v569 = vunpack.c.l.b16 %v302
      %v570 = vunpack.c.l.b16 %v303
      %v571 = vunpack.c.l.b16 %v304
      %v572 = vunpack.c.l.b16 %v305
      %v573 = vunpack.c.l.b16 %v306
      %v574 = vunpack.c.l.b16 %v307
      %v575 = vunpack.c.l.b16 %v308
      %v576 = vunpack.c.l.b16 %v309
      %v577 = vunpack.c.l.b16 %v310
      %v578 = vunpack.c.l.b16 %v311
      %v579 = vunpack.c.l.b16 %v312
      %v580 = vunpack.c.l.b16 %v313
      %v581 = vunpack.c.l.b16 %v314
      %v582 = vunpack.c.l.b16 %v315
      %v583 = vunpack.c.l.b16 %v316
      %v584 = vunpack.c.l.b16 %v317
      %v585 = vunpack.c.l.b16 %v318
      %v586 = vunpack.c.l.b16 %v319
      %v587 = vunpack.c.l.b16 %v320
      %v588 = vunpack.c.l.b16 %v321
      %v589 = vunpack.c.l.b16 %v322
      %v590 = vunpack.c.l.b16 %v323
      %v591 = vunpack.c.l.b16 %v324
      %v592 = vunpack.c.l.b16 %v325
      %v593 = vunpack.c.l.b16 %v326
      %v594 = vunpack.c.l.b16 %v327
      %v595 = vunpack.c.l.b16 %v328
      %v596 = vunpack.c.l.b16 %v329
      %v597 = vunpack.c.l.b16 %v330
      %v598 = vunpack.c.l.b16 %v331
      %v599 = vunpack.c.l.b16 %v332
      %v600 = vunpack.c.l.b16 %v333
      %v601 = vunpack.c.l.b16 %v334
      %v602 = vunpack.c.l.b16 %v335
      %v603 = vunpack.c.l.b16 %v336
      %v604 = vunpack.c.l.b16 %v337
      %v605 = vunpack.c.l.b16 %v338
      %v606 = vunpack.c.l.b16 %v339
      %v607 = vunpack.c.l.b16 %v340
      %v608 = vunpack.c.l.b16 %v341
      %v609 = vunpack.c.l.b16 %v342
      %v610 = vunpack.c.l.b16 %v343
      %v611 = vunpack.c.l.b16 %v344
      %v612 = vunpack.c.l.b16 %v345
      %v613 = vunpack.c.l.b16 %v346
      %v614 = vunpack.c.l.b16 %v347
      %v615 = vunpack.c.l.b16 %v348
      %v616 = vunpack.c.l.b16 %v349
      %v617 = vunpack.c.l.b16 %v350
      %v618 = vunpack.c.l.b16 %v351
      %v619 = vunpack.c.l.b16 %v352
      %v620 = vunpack.c.l.b16 %v353
      %v621 = vunpack.c.l.b16 %v354
      %v622 = vunpack.c.l.b16 %v355
      %v623 = vunpack.c.l.b16 %v356
      %v624 = vunpack.c.l.b16 %v357
      %v625 = vunpack.c.l.b16 %v358
      %v626 = vpack.c.b16 %v499, %v498
      %v627 = vpack.c.b16 %v501, %v500
      %v628 = vpack.c.b16 %v503, %v502
      %v629 = vpack.c.b16 %v505, %v504
      %v630 = vpack.c.b16 %v507, %v506
      %v631 = vpack.c.b16 %v509, %v508
      %v632 = vpack.c.b16 %v511, %v510
      %v633 = vpack.c.b16 %v513, %v512
      %v634 = vpack.c.b16 %v515, %v514
      %v635 = vpack.c.b16 %v517, %v516
      %v636 = vpack.c.b16 %v519, %v518
      %v637 = vpack.c.b16 %v521, %v520
      %v638 = vpack.c.b16 %v523, %v522
      %v639 = vpack.c.b16 %v525, %v524
      %v640 = vpack.c.b16 %v527, %v526
      %v641 = vpack.c.b16 %v529, %v528
      %v642 = vpack.c.b16 %v531, %v530
      %v643 = vpack.c.b16 %v533, %v532
      %v644 = vpack.c.b16 %v535, %v534
      %v645 = vpack.c.b16 %v537, %v536
      %v646 = vpack.c.b16 %v539, %v538
      %v647 = vpack.c.b16 %v541, %v540
      %v648 = vpack.c.b16 %v543, %v542
      %v649 = vpack.c.b16 %v545, %v544
      %v650 = vpack.c.b16 %v547, %v546
      %v651 = vpack.c.b16 %v549, %v548
      %v652 = vpack.c.b16 %v551, %v550
      %v653 = vpack.c.b16 %v553, %v552
      %v654 = vpack.c.b16 %v555, %v554
      %v655 = vpack.c.b16 %v557, %v556
      %v656 = vpack.c.b16 %v559, %v558
      %v657 = vpack.c.b16 %v561, %v560
      %v658 = vpack.c.b16 %v563, %v562
      %v659 = vpack.c.b16 %v565, %v564
      %v660 = vpack.c.b16 %v567, %v566
      %v661 = vpack.c.b16 %v569, %v568
      %v662 = vpack.c.b16 %v571, %v570
      %v663 = vpack.c.b16 %v573, %v572
      %v664 = vpack.c.b16 %v575, %v574
      %v665 = vpack.c.b16 %v577, %v576
      %v666 = vpack.c.b16 %v579, %v578
      %v667 = vpack.c.b16 %v581, %v580
      %v668 = vpack.c.b16 %v583, %v582
      %v669 = vpack.c.b16 %v585, %v584
      %v670 = vpack.c.b16 %v587, %v586
      %v671 = vpack.c.b16 %v589, %v588
      %v672 = vpack.c.b16 %v591, %v590
      %v673 = vpack.c.b16 %v593, %v592
      %v674 = vpack.c.b16 %v595, %v594
      %v675 = vpack.c.b16 %v597, %v596
      %v676 = vpack.c.b16 %v599, %v598
      %v677 = vpack.c.b16 %v601, %v600
      %v678 = vpack.c.b16 %v603, %v602
      %v679 = vpack.c.b16 %v605, %v604
      %v680 = vpack.c.b16 %v607, %v606
      %v681 = vpack.c.b16 %v609, %v608
      %v682 = vpack.c.b16 %v611, %v610
      %v683 = vpack.c.b16 %v613, %v612
      %v684 = vpack.c.b16 %v615, %v614
      %v685 = vpack.c.b16 %v617, %v616
      %v686 = vpack.c.b16 %v619, %v618
      %v687 = vpack.c.b16 %v621, %v620
      %v688 = vpack.c.b16 %v623, %v622
      %v689 = vpack.c.b16 %v625, %v624
      %v694 = vunpack.c.l.b16 %v359
      %v695 = vunpack.c.l.b16 %v360
      %v696 = vunpack.c.l.b16 %v361
      %v697 = vunpack.c.l.b16 %v362
      %v698 = vpack.c.b16 %v695, %v694
      %v699 = vpack.c.b16 %v697, %v696
      %vm702 = vcmask 261120
      %v704 = vsel %vm702, %v626, 0
      %v707 = vsel %vm702, %v627, 0
      %v710 = vsel %vm702, %v628, 0
      %v713 = vsel %vm702, %v629, 0
      %v716 = vsel %vm702, %v630, 0
      %v719 = vsel %vm702, %v631, 0
      %v722 = vsel %vm702, %v632, 0
      %v725 = vsel %vm702, %v633, 0
      %v728 = vsel %vm702, %v634, 0
      %v731 = vsel %vm702, %v635, 0
      %v734 = vsel %vm702, %v636, 0
      %v737 = vsel %vm702, %v637, 0
      %v740 = vsel %vm702, %v638, 0
      %v743 = vsel %vm702, %v639, 0
      %v746 = vsel %vm702, %v640, 0
      %v749 = vsel %vm702, %v641, 0
      %v752 = vsel %vm702, %v642, 0
      %v755 = vsel %vm702, %v643, 0
      %v758 = vsel %vm702, %v644, 0
      %v761 = vsel %vm702, %v645, 0
      %v764 = vsel %vm702, %v646, 0
      %v767 = vsel %vm702, %v647, 0
      %v770 = vsel %vm702, %v648, 0
      %v773 = vsel %vm702, %v649, 0
      %v776 = vsel %vm702, %v650, 0
      %v779 = vsel %vm702, %v651, 0
      %v782 = vsel %vm702, %v652, 0
      %v785 = vsel %vm702, %v653, 0
      %v788 = vsel %vm702, %v654, 0
      %v791 = vsel %vm702, %v655, 0
      %v794 = vsel %vm702, %v656, 0
      %v797 = vsel %vm702, %v657, 0
      %v800 = vsel %vm702, %v658, 0
      %v803 = vsel %vm702, %v659, 0
      %v806 = vsel %vm702, %v660, 0
      %v809 = vsel %vm702, %v661, 0
      %v812 = vsel %vm702, %v662, 0
      %v815 = vsel %vm702, %v663, 0
      %v818 = vsel %vm702, %v664, 0
      %v821 = vsel %vm702, %v665, 0
      %v824 = vsel %vm702, %v666, 0
      %v827 = vsel %vm702, %v667, 0
      %v830 = vsel %vm702, %v668, 0
      %v833 = vsel %vm702, %v669, 0
      %v836 = vsel %vm702, %v670, 0
      %v839 = vsel %vm702, %v671, 0
      %v842 = vsel %vm702, %v672, 0
      %v845 = vsel %vm702, %v673, 0
      %v848 = vsel %vm702, %v674, 0
      %v851 = vsel %vm702, %v675, 0
      %v854 = vsel %vm702, %v676, 0
      %v857 = vsel %vm702, %v677, 0
      %v860 = vsel %vm702, %v678, 0
      %v863 = vsel %vm702, %v679, 0
      %v866 = vsel %vm702, %v680, 0
      %v869 = vsel %vm702, %v681, 0
      %v872 = vsel %vm702, %v682, 0
      %v875 = vsel %vm702, %v683, 0
      %v878 = vsel %vm702, %v684, 0
      %v881 = vsel %vm702, %v685, 0
      %v884 = vsel %vm702, %v686, 0
      %v887 = vsel %vm702, %v687, 0
      %v890 = vsel %vm702, %v688, 0
      %v893 = vsel %vm702, %v689, 0
      %895 = vmatprep.subr.bf16.mxu0 0
      %896 = vmatpush1.bf16.msra.mxu0 0
      %897 = vmatprep.subr.bf16.mxu0 0
      %898 = vmatpush1.bf16.msra.mxu0 0
      %899 = vmatprep.subr.bf16.mxu0 0
      %900 = vmatpush1.bf16.msra.mxu0 0
      %901 = vmatprep.subr.bf16.mxu0 0
      %902 = vmatpush1.bf16.msra.mxu0 0
      %903 = vmatprep.subr.bf16.mxu0 0
      %904 = vmatpush1.bf16.msra.mxu0 0
      %905 = vmatprep.subr.bf16.mxu0 0
      %906 = vmatpush1.bf16.msra.mxu0 0
      %907 = vmatprep.subr.bf16.mxu0 0
      %908 = vmatpush1.bf16.msra.mxu0 %v699
      %909 = vmatprep.subr.bf16.mxu0 0
      %910 = vmatpush1.bf16.msra.mxu0 %v698
      %911 = vmatprep.subr.bf16.mxu0 0
      %912 = vmatpush2.bf16.msra.mxu0 0
      %913 = vmatprep.subr.bf16.mxu0 0
      %914 = vmatpush2.bf16.msra.mxu0 0
      %915 = vmatprep.subr.bf16.mxu0 0
      %916 = vmatpush2.bf16.msra.mxu0 0
      %917 = vmatprep.subr.bf16.mxu0 0
      %918 = vmatpush2.bf16.msra.mxu0 0
      %919 = vmatprep.subr.bf16.mxu0 0
      %920 = vmatpush2.bf16.msra.mxu0 0
      %921 = vmatprep.subr.bf16.mxu0 0
      %922 = vmatpush2.bf16.msra.mxu0 0
      %923 = vmatprep.subr.bf16.mxu0 0
      %924 = vmatpush2.bf16.msra.mxu0 0
      %925 = vmatprep.subr.bf16.mxu0 0
      %926 = vmatpush2.bf16.msra.mxu0 0
      %927 = vmatprep.mubr.bf16.mxu0 0
      %928 = vmatmul.mubr.bf16.gmra.mxu0 %v704
      %v929 = vpop.f32.mrf.mxu0
      %v930 = vadd.f32 %v368, %v929
      %v931 = vpop.f32.mrf.mxu0
      %v932 = vpop.f32.mrf.mxu0
      %v933 = vadd.f32 %v368, %v932
      %v934 = vpop.f32.mrf.mxu0
      %935 = vmatprep.mubr.bf16.mxu0 0
      %936 = vmatmul.mubr.bf16.gmra.mxu0 %v707
      %v937 = vpop.f32.mrf.mxu0
      %v938 = vadd.f32 %v368, %v937
      %v939 = vpop.f32.mrf.mxu0
      %v940 = vpop.f32.mrf.mxu0
      %v941 = vadd.f32 %v368, %v940
      %v942 = vpop.f32.mrf.mxu0
      %943 = vmatprep.mubr.bf16.mxu0 0
      %944 = vmatmul.mubr.bf16.gmra.mxu0 %v710
      %v945 = vpop.f32.mrf.mxu0
      %v946 = vadd.f32 %v368, %v945
      %v947 = vpop.f32.mrf.mxu0
      %v948 = vpop.f32.mrf.mxu0
      %v949 = vadd.f32 %v368, %v948
      %v950 = vpop.f32.mrf.mxu0
      %951 = vmatprep.mubr.bf16.mxu0 0
      %952 = vmatmul.mubr.bf16.gmra.mxu0 %v713
      %v953 = vpop.f32.mrf.mxu0
      %v954 = vadd.f32 %v368, %v953
      %v955 = vpop.f32.mrf.mxu0
      %v956 = vpop.f32.mrf.mxu0
      %v957 = vadd.f32 %v368, %v956
      %v958 = vpop.f32.mrf.mxu0
      %959 = vmatprep.mubr.bf16.mxu0 0
      %960 = vmatmul.mubr.bf16.gmra.mxu0 %v716
      %v961 = vpop.f32.mrf.mxu0
      %v962 = vadd.f32 %v368, %v961
      %v963 = vpop.f32.mrf.mxu0
      %v964 = vpop.f32.mrf.mxu0
      %v965 = vadd.f32 %v368, %v964
      %v966 = vpop.f32.mrf.mxu0
      %967 = vmatprep.mubr.bf16.mxu0 0
      %968 = vmatmul.mubr.bf16.gmra.mxu0 %v719
      %v969 = vpop.f32.mrf.mxu0
      %v970 = vadd.f32 %v368, %v969
      %v971 = vpop.f32.mrf.mxu0
      %v972 = vpop.f32.mrf.mxu0
      %v973 = vadd.f32 %v368, %v972
      %v974 = vpop.f32.mrf.mxu0
      %975 = vmatprep.mubr.bf16.mxu0 0
      %976 = vmatmul.mubr.bf16.gmra.mxu0 %v722
      %v977 = vpop.f32.mrf.mxu0
      %v978 = vadd.f32 %v368, %v977
      %v979 = vpop.f32.mrf.mxu0
      %v980 = vpop.f32.mrf.mxu0
      %v981 = vadd.f32 %v368, %v980
      %v982 = vpop.f32.mrf.mxu0
      %983 = vmatprep.mubr.bf16.mxu0 0
      %984 = vmatmul.mubr.bf16.gmra.mxu0 %v725
      %v985 = vpop.f32.mrf.mxu0
      %v986 = vadd.f32 %v368, %v985
      %v987 = vpop.f32.mrf.mxu0
      %v988 = vpop.f32.mrf.mxu0
      %v989 = vadd.f32 %v368, %v988
      %v990 = vpop.f32.mrf.mxu0
      %991 = vmatprep.mubr.bf16.mxu0 0
      %992 = vmatmul.mubr.bf16.gmra.mxu0 %v728
      %v993 = vpop.f32.mrf.mxu0
      %v994 = vadd.f32 %v368, %v993
      %v995 = vpop.f32.mrf.mxu0
      %v996 = vpop.f32.mrf.mxu0
      %v997 = vadd.f32 %v368, %v996
      %v998 = vpop.f32.mrf.mxu0
      %999 = vmatprep.mubr.bf16.mxu0 0
      %1000 = vmatmul.mubr.bf16.gmra.mxu0 %v731
      %v1001 = vpop.f32.mrf.mxu0
      %v1002 = vadd.f32 %v368, %v1001
      %v1003 = vpop.f32.mrf.mxu0
      %v1004 = vpop.f32.mrf.mxu0
      %v1005 = vadd.f32 %v368, %v1004
      %v1006 = vpop.f32.mrf.mxu0
      %1007 = vmatprep.mubr.bf16.mxu0 0
      %1008 = vmatmul.mubr.bf16.gmra.mxu0 %v734
      %v1009 = vpop.f32.mrf.mxu0
      %v1010 = vadd.f32 %v368, %v1009
      %v1011 = vpop.f32.mrf.mxu0
      %v1012 = vpop.f32.mrf.mxu0
      %v1013 = vadd.f32 %v368, %v1012
      %v1014 = vpop.f32.mrf.mxu0
      %1015 = vmatprep.mubr.bf16.mxu0 0
      %1016 = vmatmul.mubr.bf16.gmra.mxu0 %v737
      %v1017 = vpop.f32.mrf.mxu0
      %v1018 = vadd.f32 %v368, %v1017
      %v1019 = vpop.f32.mrf.mxu0
      %v1020 = vpop.f32.mrf.mxu0
      %v1021 = vadd.f32 %v368, %v1020
      %v1022 = vpop.f32.mrf.mxu0
      %1023 = vmatprep.mubr.bf16.mxu0 0
      %1024 = vmatmul.mubr.bf16.gmra.mxu0 %v740
      %v1025 = vpop.f32.mrf.mxu0
      %v1026 = vadd.f32 %v368, %v1025
      %v1027 = vpop.f32.mrf.mxu0
      %v1028 = vpop.f32.mrf.mxu0
      %v1029 = vadd.f32 %v368, %v1028
      %v1030 = vpop.f32.mrf.mxu0
      %1031 = vmatprep.mubr.bf16.mxu0 0
      %1032 = vmatmul.mubr.bf16.gmra.mxu0 %v743
      %v1033 = vpop.f32.mrf.mxu0
      %v1034 = vadd.f32 %v368, %v1033
      %v1035 = vpop.f32.mrf.mxu0
      %v1036 = vpop.f32.mrf.mxu0
      %v1037 = vadd.f32 %v368, %v1036
      %v1038 = vpop.f32.mrf.mxu0
      %1039 = vmatprep.mubr.bf16.mxu0 0
      %1040 = vmatmul.mubr.bf16.gmra.mxu0 %v746
      %v1041 = vpop.f32.mrf.mxu0
      %v1042 = vadd.f32 %v368, %v1041
      %v1043 = vpop.f32.mrf.mxu0
      %v1044 = vpop.f32.mrf.mxu0
      %v1045 = vadd.f32 %v368, %v1044
      %v1046 = vpop.f32.mrf.mxu0
      %1047 = vmatprep.mubr.bf16.mxu0 0
      %1048 = vmatmul.mubr.bf16.gmra.mxu0 %v749
      %v1049 = vpop.f32.mrf.mxu0
      %v1050 = vadd.f32 %v368, %v1049
      %v1051 = vpop.f32.mrf.mxu0
      %v1052 = vpop.f32.mrf.mxu0
      %v1053 = vadd.f32 %v368, %v1052
      %v1054 = vpop.f32.mrf.mxu0
      %1055 = vmatprep.mubr.bf16.mxu0 0
      %1056 = vmatmul.mubr.bf16.gmra.mxu0 %v752
      %v1057 = vpop.f32.mrf.mxu0
      %v1058 = vadd.f32 %v368, %v1057
      %v1059 = vpop.f32.mrf.mxu0
      %v1060 = vpop.f32.mrf.mxu0
      %v1061 = vadd.f32 %v368, %v1060
      %v1062 = vpop.f32.mrf.mxu0
      %1063 = vmatprep.mubr.bf16.mxu0 0
      %1064 = vmatmul.mubr.bf16.gmra.mxu0 %v755
      %v1065 = vpop.f32.mrf.mxu0
      %v1066 = vadd.f32 %v368, %v1065
      %v1067 = vpop.f32.mrf.mxu0
      %v1068 = vpop.f32.mrf.mxu0
      %v1069 = vadd.f32 %v368, %v1068
      %v1070 = vpop.f32.mrf.mxu0
      %1071 = vmatprep.mubr.bf16.mxu0 0
      %1072 = vmatmul.mubr.bf16.gmra.mxu0 %v758
      %v1073 = vpop.f32.mrf.mxu0
      %v1074 = vadd.f32 %v368, %v1073
      %v1075 = vpop.f32.mrf.mxu0
      %v1076 = vpop.f32.mrf.mxu0
      %v1077 = vadd.f32 %v368, %v1076
      %v1078 = vpop.f32.mrf.mxu0
      %1079 = vmatprep.mubr.bf16.mxu0 0
      %1080 = vmatmul.mubr.bf16.gmra.mxu0 %v761
      %v1081 = vpop.f32.mrf.mxu0
      %v1082 = vadd.f32 %v368, %v1081
      %v1083 = vpop.f32.mrf.mxu0
      %v1084 = vpop.f32.mrf.mxu0
      %v1085 = vadd.f32 %v368, %v1084
      %v1086 = vpop.f32.mrf.mxu0
      %1087 = vmatprep.mubr.bf16.mxu0 0
      %1088 = vmatmul.mubr.bf16.gmra.mxu0 %v764
      %v1089 = vpop.f32.mrf.mxu0
      %v1090 = vadd.f32 %v368, %v1089
      %v1091 = vpop.f32.mrf.mxu0
      %v1092 = vpop.f32.mrf.mxu0
      %v1093 = vadd.f32 %v368, %v1092
      %v1094 = vpop.f32.mrf.mxu0
      %1095 = vmatprep.mubr.bf16.mxu0 0
      %1096 = vmatmul.mubr.bf16.gmra.mxu0 %v767
      %v1097 = vpop.f32.mrf.mxu0
      %v1098 = vadd.f32 %v368, %v1097
      %v1099 = vpop.f32.mrf.mxu0
      %v1100 = vpop.f32.mrf.mxu0
      %v1101 = vadd.f32 %v368, %v1100
      %v1102 = vpop.f32.mrf.mxu0
      %1103 = vmatprep.mubr.bf16.mxu0 0
      %1104 = vmatmul.mubr.bf16.gmra.mxu0 %v770
      %v1105 = vpop.f32.mrf.mxu0
      %v1106 = vadd.f32 %v368, %v1105
      %v1107 = vpop.f32.mrf.mxu0
      %v1108 = vpop.f32.mrf.mxu0
      %v1109 = vadd.f32 %v368, %v1108
      %v1110 = vpop.f32.mrf.mxu0
      %1111 = vmatprep.mubr.bf16.mxu0 0
      %1112 = vmatmul.mubr.bf16.gmra.mxu0 %v773
      %v1113 = vpop.f32.mrf.mxu0
      %v1114 = vadd.f32 %v368, %v1113
      %v1115 = vpop.f32.mrf.mxu0
      %v1116 = vpop.f32.mrf.mxu0
      %v1117 = vadd.f32 %v368, %v1116
      %v1118 = vpop.f32.mrf.mxu0
      %1119 = vmatprep.mubr.bf16.mxu0 0
      %1120 = vmatmul.mubr.bf16.gmra.mxu0 %v776
      %v1121 = vpop.f32.mrf.mxu0
      %v1122 = vadd.f32 %v368, %v1121
      %v1123 = vpop.f32.mrf.mxu0
      %v1124 = vpop.f32.mrf.mxu0
      %v1125 = vadd.f32 %v368, %v1124
      %v1126 = vpop.f32.mrf.mxu0
      %1127 = vmatprep.mubr.bf16.mxu0 0
      %1128 = vmatmul.mubr.bf16.gmra.mxu0 %v779
      %v1129 = vpop.f32.mrf.mxu0
      %v1130 = vadd.f32 %v368, %v1129
      %v1131 = vpop.f32.mrf.mxu0
      %v1132 = vpop.f32.mrf.mxu0
      %v1133 = vadd.f32 %v368, %v1132
      %v1134 = vpop.f32.mrf.mxu0
      %1135 = vmatprep.mubr.bf16.mxu0 0
      %1136 = vmatmul.mubr.bf16.gmra.mxu0 %v782
      %v1137 = vpop.f32.mrf.mxu0
      %v1138 = vadd.f32 %v368, %v1137
      %v1139 = vpop.f32.mrf.mxu0
      %v1140 = vpop.f32.mrf.mxu0
      %v1141 = vadd.f32 %v368, %v1140
      %v1142 = vpop.f32.mrf.mxu0
      %1143 = vmatprep.mubr.bf16.mxu0 0
      %1144 = vmatmul.mubr.bf16.gmra.mxu0 %v785
      %v1145 = vpop.f32.mrf.mxu0
      %v1146 = vadd.f32 %v368, %v1145
      %v1147 = vpop.f32.mrf.mxu0
      %v1148 = vpop.f32.mrf.mxu0
      %v1149 = vadd.f32 %v368, %v1148
      %v1150 = vpop.f32.mrf.mxu0
      %1151 = vmatprep.mubr.bf16.mxu0 0
      %1152 = vmatmul.mubr.bf16.gmra.mxu0 %v788
      %v1153 = vpop.f32.mrf.mxu0
      %v1154 = vadd.f32 %v368, %v1153
      %v1155 = vpop.f32.mrf.mxu0
      %v1156 = vpop.f32.mrf.mxu0
      %v1157 = vadd.f32 %v368, %v1156
      %v1158 = vpop.f32.mrf.mxu0
      %1159 = vmatprep.mubr.bf16.mxu0 0
      %1160 = vmatmul.mubr.bf16.gmra.mxu0 %v791
      %v1161 = vpop.f32.mrf.mxu0
      %v1162 = vadd.f32 %v368, %v1161
      %v1163 = vpop.f32.mrf.mxu0
      %v1164 = vpop.f32.mrf.mxu0
      %v1165 = vadd.f32 %v368, %v1164
      %v1166 = vpop.f32.mrf.mxu0
      %1167 = vmatprep.mubr.bf16.mxu0 0
      %1168 = vmatmul.mubr.bf16.gmra.mxu0 %v794
      %v1169 = vpop.f32.mrf.mxu0
      %v1170 = vadd.f32 %v368, %v1169
      %v1171 = vpop.f32.mrf.mxu0
      %v1172 = vpop.f32.mrf.mxu0
      %v1173 = vadd.f32 %v368, %v1172
      %v1174 = vpop.f32.mrf.mxu0
      %1175 = vmatprep.mubr.bf16.mxu0 0
      %1176 = vmatmul.mubr.bf16.gmra.mxu0 %v797
      %v1177 = vpop.f32.mrf.mxu0
      %v1178 = vadd.f32 %v368, %v1177
      %v1179 = vpop.f32.mrf.mxu0
      %v1180 = vpop.f32.mrf.mxu0
      %v1181 = vadd.f32 %v368, %v1180
      %v1182 = vpop.f32.mrf.mxu0
      %1183 = vmatprep.mubr.bf16.mxu0 0
      %1184 = vmatmul.mubr.bf16.gmra.mxu0 %v800
      %v1185 = vpop.f32.mrf.mxu0
      %v1186 = vadd.f32 %v368, %v1185
      %v1187 = vpop.f32.mrf.mxu0
      %v1188 = vpop.f32.mrf.mxu0
      %v1189 = vadd.f32 %v368, %v1188
      %v1190 = vpop.f32.mrf.mxu0
      %1191 = vmatprep.mubr.bf16.mxu0 0
      %1192 = vmatmul.mubr.bf16.gmra.mxu0 %v803
      %v1193 = vpop.f32.mrf.mxu0
      %v1194 = vadd.f32 %v368, %v1193
      %v1195 = vpop.f32.mrf.mxu0
      %v1196 = vpop.f32.mrf.mxu0
      %v1197 = vadd.f32 %v368, %v1196
      %v1198 = vpop.f32.mrf.mxu0
      %1199 = vmatprep.mubr.bf16.mxu0 0
      %1200 = vmatmul.mubr.bf16.gmra.mxu0 %v806
      %v1201 = vpop.f32.mrf.mxu0
      %v1202 = vadd.f32 %v368, %v1201
      %v1203 = vpop.f32.mrf.mxu0
      %v1204 = vpop.f32.mrf.mxu0
      %v1205 = vadd.f32 %v368, %v1204
      %v1206 = vpop.f32.mrf.mxu0
      %1207 = vmatprep.mubr.bf16.mxu0 0
      %1208 = vmatmul.mubr.bf16.gmra.mxu0 %v809
      %v1209 = vpop.f32.mrf.mxu0
      %v1210 = vadd.f32 %v368, %v1209
      %v1211 = vpop.f32.mrf.mxu0
      %v1212 = vpop.f32.mrf.mxu0
      %v1213 = vadd.f32 %v368, %v1212
      %v1214 = vpop.f32.mrf.mxu0
      %1215 = vmatprep.mubr.bf16.mxu0 0
      %1216 = vmatmul.mubr.bf16.gmra.mxu0 %v812
      %v1217 = vpop.f32.mrf.mxu0
      %v1218 = vadd.f32 %v368, %v1217
      %v1219 = vpop.f32.mrf.mxu0
      %v1220 = vpop.f32.mrf.mxu0
      %v1221 = vadd.f32 %v368, %v1220
      %v1222 = vpop.f32.mrf.mxu0
      %1223 = vmatprep.mubr.bf16.mxu0 0
      %1224 = vmatmul.mubr.bf16.gmra.mxu0 %v815
      %v1225 = vpop.f32.mrf.mxu0
      %v1226 = vadd.f32 %v368, %v1225
      %v1227 = vpop.f32.mrf.mxu0
      %v1228 = vpop.f32.mrf.mxu0
      %v1229 = vadd.f32 %v368, %v1228
      %v1230 = vpop.f32.mrf.mxu0
      %1231 = vmatprep.mubr.bf16.mxu0 0
      %1232 = vmatmul.mubr.bf16.gmra.mxu0 %v818
      %v1233 = vpop.f32.mrf.mxu0
      %v1234 = vadd.f32 %v368, %v1233
      %v1235 = vpop.f32.mrf.mxu0
      %v1236 = vpop.f32.mrf.mxu0
      %v1237 = vadd.f32 %v368, %v1236
      %v1238 = vpop.f32.mrf.mxu0
      %1239 = vmatprep.mubr.bf16.mxu0 0
      %1240 = vmatmul.mubr.bf16.gmra.mxu0 %v821
      %v1241 = vpop.f32.mrf.mxu0
      %v1242 = vadd.f32 %v368, %v1241
      %v1243 = vpop.f32.mrf.mxu0
      %v1244 = vpop.f32.mrf.mxu0
      %v1245 = vadd.f32 %v368, %v1244
      %v1246 = vpop.f32.mrf.mxu0
      %1247 = vmatprep.mubr.bf16.mxu0 0
      %1248 = vmatmul.mubr.bf16.gmra.mxu0 %v824
      %v1249 = vpop.f32.mrf.mxu0
      %v1250 = vadd.f32 %v368, %v1249
      %v1251 = vpop.f32.mrf.mxu0
      %v1252 = vpop.f32.mrf.mxu0
      %v1253 = vadd.f32 %v368, %v1252
      %v1254 = vpop.f32.mrf.mxu0
      %1255 = vmatprep.mubr.bf16.mxu0 0
      %1256 = vmatmul.mubr.bf16.gmra.mxu0 %v827
      %v1257 = vpop.f32.mrf.mxu0
      %v1258 = vadd.f32 %v368, %v1257
      %v1259 = vpop.f32.mrf.mxu0
      %v1260 = vpop.f32.mrf.mxu0
      %v1261 = vadd.f32 %v368, %v1260
      %v1262 = vpop.f32.mrf.mxu0
      %1263 = vmatprep.mubr.bf16.mxu0 0
      %1264 = vmatmul.mubr.bf16.gmra.mxu0 %v830
      %v1265 = vpop.f32.mrf.mxu0
      %v1266 = vadd.f32 %v368, %v1265
      %v1267 = vpop.f32.mrf.mxu0
      %v1268 = vpop.f32.mrf.mxu0
      %v1269 = vadd.f32 %v368, %v1268
      %v1270 = vpop.f32.mrf.mxu0
      %1271 = vmatprep.mubr.bf16.mxu0 0
      %1272 = vmatmul.mubr.bf16.gmra.mxu0 %v833
      %v1273 = vpop.f32.mrf.mxu0
      %v1274 = vadd.f32 %v368, %v1273
      %v1275 = vpop.f32.mrf.mxu0
      %v1276 = vpop.f32.mrf.mxu0
      %v1277 = vadd.f32 %v368, %v1276
      %v1278 = vpop.f32.mrf.mxu0
      %1279 = vmatprep.mubr.bf16.mxu0 0
      %1280 = vmatmul.mubr.bf16.gmra.mxu0 %v836
      %v1281 = vpop.f32.mrf.mxu0
      %v1282 = vadd.f32 %v368, %v1281
      %v1283 = vpop.f32.mrf.mxu0
      %v1284 = vpop.f32.mrf.mxu0
      %v1285 = vadd.f32 %v368, %v1284
      %v1286 = vpop.f32.mrf.mxu0
      %1287 = vmatprep.mubr.bf16.mxu0 0
      %1288 = vmatmul.mubr.bf16.gmra.mxu0 %v839
      %v1289 = vpop.f32.mrf.mxu0
      %v1290 = vadd.f32 %v368, %v1289
      %v1291 = vpop.f32.mrf.mxu0
      %v1292 = vpop.f32.mrf.mxu0
      %v1293 = vadd.f32 %v368, %v1292
      %v1294 = vpop.f32.mrf.mxu0
      %1295 = vmatprep.mubr.bf16.mxu0 0
      %1296 = vmatmul.mubr.bf16.gmra.mxu0 %v842
      %v1297 = vpop.f32.mrf.mxu0
      %v1298 = vadd.f32 %v368, %v1297
      %v1299 = vpop.f32.mrf.mxu0
      %v1300 = vpop.f32.mrf.mxu0
      %v1301 = vadd.f32 %v368, %v1300
      %v1302 = vpop.f32.mrf.mxu0
      %1303 = vmatprep.mubr.bf16.mxu0 0
      %1304 = vmatmul.mubr.bf16.gmra.mxu0 %v845
      %v1305 = vpop.f32.mrf.mxu0
      %v1306 = vadd.f32 %v368, %v1305
      %v1307 = vpop.f32.mrf.mxu0
      %v1308 = vpop.f32.mrf.mxu0
      %v1309 = vadd.f32 %v368, %v1308
      %v1310 = vpop.f32.mrf.mxu0
      %1311 = vmatprep.mubr.bf16.mxu0 0
      %1312 = vmatmul.mubr.bf16.gmra.mxu0 %v848
      %v1313 = vpop.f32.mrf.mxu0
      %v1314 = vadd.f32 %v368, %v1313
      %v1315 = vpop.f32.mrf.mxu0
      %v1316 = vpop.f32.mrf.mxu0
      %v1317 = vadd.f32 %v368, %v1316
      %v1318 = vpop.f32.mrf.mxu0
      %1319 = vmatprep.mubr.bf16.mxu0 0
      %1320 = vmatmul.mubr.bf16.gmra.mxu0 %v851
      %v1321 = vpop.f32.mrf.mxu0
      %v1322 = vadd.f32 %v368, %v1321
      %v1323 = vpop.f32.mrf.mxu0
      %v1324 = vpop.f32.mrf.mxu0
      %v1325 = vadd.f32 %v368, %v1324
      %v1326 = vpop.f32.mrf.mxu0
      %1327 = vmatprep.mubr.bf16.mxu0 0
      %1328 = vmatmul.mubr.bf16.gmra.mxu0 %v854
      %v1329 = vpop.f32.mrf.mxu0
      %v1330 = vadd.f32 %v368, %v1329
      %v1331 = vpop.f32.mrf.mxu0
      %v1332 = vpop.f32.mrf.mxu0
      %v1333 = vadd.f32 %v368, %v1332
      %v1334 = vpop.f32.mrf.mxu0
      %1335 = vmatprep.mubr.bf16.mxu0 0
      %1336 = vmatmul.mubr.bf16.gmra.mxu0 %v857
      %v1337 = vpop.f32.mrf.mxu0
      %v1338 = vadd.f32 %v368, %v1337
      %v1339 = vpop.f32.mrf.mxu0
      %v1340 = vpop.f32.mrf.mxu0
      %v1341 = vadd.f32 %v368, %v1340
      %v1342 = vpop.f32.mrf.mxu0
      %1343 = vmatprep.mubr.bf16.mxu0 0
      %1344 = vmatmul.mubr.bf16.gmra.mxu0 %v860
      %v1345 = vpop.f32.mrf.mxu0
      %v1346 = vadd.f32 %v368, %v1345
      %v1347 = vpop.f32.mrf.mxu0
      %v1348 = vpop.f32.mrf.mxu0
      %v1349 = vadd.f32 %v368, %v1348
      %v1350 = vpop.f32.mrf.mxu0
      %1351 = vmatprep.mubr.bf16.mxu0 0
      %1352 = vmatmul.mubr.bf16.gmra.mxu0 %v863
      %v1353 = vpop.f32.mrf.mxu0
      %v1354 = vadd.f32 %v368, %v1353
      %v1355 = vpop.f32.mrf.mxu0
      %v1356 = vpop.f32.mrf.mxu0
      %v1357 = vadd.f32 %v368, %v1356
      %v1358 = vpop.f32.mrf.mxu0
      %1359 = vmatprep.mubr.bf16.mxu0 0
      %1360 = vmatmul.mubr.bf16.gmra.mxu0 %v866
      %v1361 = vpop.f32.mrf.mxu0
      %v1362 = vadd.f32 %v368, %v1361
      %v1363 = vpop.f32.mrf.mxu0
      %v1364 = vpop.f32.mrf.mxu0
      %v1365 = vadd.f32 %v368, %v1364
      %v1366 = vpop.f32.mrf.mxu0
      %1367 = vmatprep.mubr.bf16.mxu0 0
      %1368 = vmatmul.mubr.bf16.gmra.mxu0 %v869
      %v1369 = vpop.f32.mrf.mxu0
      %v1370 = vadd.f32 %v368, %v1369
      %v1371 = vpop.f32.mrf.mxu0
      %v1372 = vpop.f32.mrf.mxu0
      %v1373 = vadd.f32 %v368, %v1372
      %v1374 = vpop.f32.mrf.mxu0
      %1375 = vmatprep.mubr.bf16.mxu0 0
      %1376 = vmatmul.mubr.bf16.gmra.mxu0 %v872
      %v1377 = vpop.f32.mrf.mxu0
      %v1378 = vadd.f32 %v368, %v1377
      %v1379 = vpop.f32.mrf.mxu0
      %v1380 = vpop.f32.mrf.mxu0
      %v1381 = vadd.f32 %v368, %v1380
      %v1382 = vpop.f32.mrf.mxu0
      %1383 = vmatprep.mubr.bf16.mxu0 0
      %1384 = vmatmul.mubr.bf16.gmra.mxu0 %v875
      %v1385 = vpop.f32.mrf.mxu0
      %v1386 = vadd.f32 %v368, %v1385
      %v1387 = vpop.f32.mrf.mxu0
      %v1388 = vpop.f32.mrf.mxu0
      %v1389 = vadd.f32 %v368, %v1388
      %v1390 = vpop.f32.mrf.mxu0
      %1391 = vmatprep.mubr.bf16.mxu0 0
      %1392 = vmatmul.mubr.bf16.gmra.mxu0 %v878
      %v1393 = vpop.f32.mrf.mxu0
      %v1394 = vadd.f32 %v368, %v1393
      %v1395 = vpop.f32.mrf.mxu0
      %v1396 = vpop.f32.mrf.mxu0
      %v1397 = vadd.f32 %v368, %v1396
      %v1398 = vpop.f32.mrf.mxu0
      %1399 = vmatprep.mubr.bf16.mxu0 0
      %1400 = vmatmul.mubr.bf16.gmra.mxu0 %v881
      %v1401 = vpop.f32.mrf.mxu0
      %v1402 = vadd.f32 %v368, %v1401
      %v1403 = vpop.f32.mrf.mxu0
      %v1404 = vpop.f32.mrf.mxu0
      %v1405 = vadd.f32 %v368, %v1404
      %v1406 = vpop.f32.mrf.mxu0
      %1407 = vmatprep.mubr.bf16.mxu0 0
      %1408 = vmatmul.mubr.bf16.gmra.mxu0 %v884
      %v1409 = vpop.f32.mrf.mxu0
      %v1410 = vadd.f32 %v368, %v1409
      %v1411 = vpop.f32.mrf.mxu0
      %v1412 = vpop.f32.mrf.mxu0
      %v1413 = vadd.f32 %v368, %v1412
      %v1414 = vpop.f32.mrf.mxu0
      %1415 = vmatprep.mubr.bf16.mxu0 0
      %1416 = vmatmul.mubr.bf16.gmra.mxu0 %v887
      %v1417 = vpop.f32.mrf.mxu0
      %v1418 = vadd.f32 %v368, %v1417
      %v1419 = vpop.f32.mrf.mxu0
      %v1420 = vpop.f32.mrf.mxu0
      %v1421 = vadd.f32 %v368, %v1420
      %v1422 = vpop.f32.mrf.mxu0
      %1423 = vmatprep.mubr.bf16.mxu0 0
      %1424 = vmatmul.mubr.bf16.gmra.mxu0 %v890
      %v1425 = vpop.f32.mrf.mxu0
      %v1426 = vadd.f32 %v368, %v1425
      %v1427 = vpop.f32.mrf.mxu0
      %v1428 = vpop.f32.mrf.mxu0
      %v1429 = vadd.f32 %v368, %v1428
      %v1430 = vpop.f32.mrf.mxu0
      %1431 = vmatprep.mubr.bf16.mxu0 0
      %1432 = vmatmul.mubr.bf16.gmra.mxu0 %v893
      %v1433 = vpop.f32.mrf.mxu0
      %v1434 = vadd.f32 %v368, %v1433
      %v1435 = vpop.f32.mrf.mxu0
      %v1436 = vpop.f32.mrf.mxu0
      %v1437 = vadd.f32 %v368, %v1436
      %v1438 = vpop.f32.mrf.mxu0
      %1439 = vdwg.mxu0
      %v1440 = vtanh.pop %v930
      %v1441 = vtanh.pop %v933
      %v1442 = vtanh.pop %v938
      %v1443 = vtanh.pop %v941
      %v1444 = vtanh.pop %v946
      %v1445 = vtanh.pop %v949
      %v1446 = vtanh.pop %v954
      %v1447 = vtanh.pop %v957
      %v1448 = vtanh.pop %v962
      %v1449 = vtanh.pop %v965
      %v1450 = vtanh.pop %v970
      %v1451 = vtanh.pop %v973
      %v1452 = vtanh.pop %v978
      %v1453 = vtanh.pop %v981
      %v1454 = vtanh.pop %v986
      %v1455 = vtanh.pop %v989
      %v1456 = vtanh.pop %v994
      %v1457 = vtanh.pop %v997
      %v1458 = vtanh.pop %v1002
      %v1459 = vtanh.pop %v1005
      %v1460 = vtanh.pop %v1010
      %v1461 = vtanh.pop %v1013
      %v1462 = vtanh.pop %v1018
      %v1463 = vtanh.pop %v1021
      %v1464 = vtanh.pop %v1026
      %v1465 = vtanh.pop %v1029
      %v1466 = vtanh.pop %v1034
      %v1467 = vtanh.pop %v1037
      %v1468 = vtanh.pop %v1042
      %v1469 = vtanh.pop %v1045
      %v1470 = vtanh.pop %v1050
      %v1471 = vtanh.pop %v1053
      %v1472 = vtanh.pop %v1058
      %v1473 = vtanh.pop %v1061
      %v1474 = vtanh.pop %v1066
      %v1475 = vtanh.pop %v1069
      %v1476 = vtanh.pop %v1074
      %v1477 = vtanh.pop %v1077
      %v1478 = vtanh.pop %v1082
      %v1479 = vtanh.pop %v1085
      %v1480 = vtanh.pop %v1090
      %v1481 = vtanh.pop %v1093
      %v1482 = vtanh.pop %v1098
      %v1483 = vtanh.pop %v1101
      %v1484 = vtanh.pop %v1106
      %v1485 = vtanh.pop %v1109
      %v1486 = vtanh.pop %v1114
      %v1487 = vtanh.pop %v1117
      %v1488 = vtanh.pop %v1122
      %v1489 = vtanh.pop %v1125
      %v1490 = vtanh.pop %v1130
      %v1491 = vtanh.pop %v1133
      %v1492 = vtanh.pop %v1138
      %v1493 = vtanh.pop %v1141
      %v1494 = vtanh.pop %v1146
      %v1495 = vtanh.pop %v1149
      %v1496 = vtanh.pop %v1154
      %v1497 = vtanh.pop %v1157
      %v1498 = vtanh.pop %v1162
      %v1499 = vtanh.pop %v1165
      %v1500 = vtanh.pop %v1170
      %v1501 = vtanh.pop %v1173
      %v1502 = vtanh.pop %v1178
      %v1503 = vtanh.pop %v1181
      %v1504 = vtanh.pop %v1186
      %v1505 = vtanh.pop %v1189
      %v1506 = vtanh.pop %v1194
      %v1507 = vtanh.pop %v1197
      %v1508 = vtanh.pop %v1202
      %v1509 = vtanh.pop %v1205
      %v1510 = vtanh.pop %v1210
      %v1511 = vtanh.pop %v1213
      %v1512 = vtanh.pop %v1218
      %v1513 = vtanh.pop %v1221
      %v1514 = vtanh.pop %v1226
      %v1515 = vtanh.pop %v1229
      %v1516 = vtanh.pop %v1234
      %v1517 = vtanh.pop %v1237
      %v1518 = vtanh.pop %v1242
      %v1519 = vtanh.pop %v1245
      %v1520 = vtanh.pop %v1250
      %v1521 = vtanh.pop %v1253
      %v1522 = vtanh.pop %v1258
      %v1523 = vtanh.pop %v1261
      %v1524 = vtanh.pop %v1266
      %v1525 = vtanh.pop %v1269
      %v1526 = vtanh.pop %v1274
      %v1527 = vtanh.pop %v1277
      %v1528 = vtanh.pop %v1282
      %v1529 = vtanh.pop %v1285
      %v1530 = vtanh.pop %v1290
      %v1531 = vtanh.pop %v1293
      %v1532 = vtanh.pop %v1298
      %v1533 = vtanh.pop %v1301
      %v1534 = vtanh.pop %v1306
      %v1535 = vtanh.pop %v1309
      %v1536 = vtanh.pop %v1314
      %v1537 = vtanh.pop %v1317
      %v1538 = vtanh.pop %v1322
      %v1539 = vtanh.pop %v1325
      %v1540 = vtanh.pop %v1330
      %v1541 = vtanh.pop %v1333
      %v1542 = vtanh.pop %v1338
      %v1543 = vtanh.pop %v1341
      %v1544 = vtanh.pop %v1346
      %v1545 = vtanh.pop %v1349
      %v1546 = vtanh.pop %v1354
      %v1547 = vtanh.pop %v1357
      %v1548 = vtanh.pop %v1362
      %v1549 = vtanh.pop %v1365
      %v1550 = vtanh.pop %v1370
      %v1551 = vtanh.pop %v1373
      %v1552 = vtanh.pop %v1378
      %v1553 = vtanh.pop %v1381
      %v1554 = vtanh.pop %v1386
      %v1555 = vtanh.pop %v1389
      %v1556 = vtanh.pop %v1394
      %v1557 = vtanh.pop %v1397
      %v1558 = vtanh.pop %v1402
      %v1559 = vtanh.pop %v1405
      %v1560 = vtanh.pop %v1410
      %v1561 = vtanh.pop %v1413
      %v1562 = vtanh.pop %v1418
      %v1563 = vtanh.pop %v1421
      %v1564 = vtanh.pop %v1426
      %v1565 = vtanh.pop %v1429
      %v1566 = vtanh.pop %v1434
      %v1567 = vtanh.pop %v1437
      %vm1568 = vcmask 23552
      %1569 = vst.msk [vmem:[%s228] sm:$0xff] %vm1568, %v1440
      %1570 = vst.msk [vmem:[%s228 + $0x8] sm:$0xff] %vm1568, %v1441
      %1571 = vst.msk [vmem:[%s228 + $0x10] sm:$0xff] %vm1568, %v1442
      %1572 = vst.msk [vmem:[%s228 + $0x18] sm:$0xff] %vm1568, %v1443
      %1573 = vst.msk [vmem:[%s228 + $0x20] sm:$0xff] %vm1568, %v1444
      %1574 = vst.msk [vmem:[%s228 + $0x28] sm:$0xff] %vm1568, %v1445
      %1575 = vst.msk [vmem:[%s228 + $0x30] sm:$0xff] %vm1568, %v1446
      %1576 = vst.msk [vmem:[%s228 + $0x38] sm:$0xff] %vm1568, %v1447
      %1577 = vst.msk [vmem:[%s228 + $0x40] sm:$0xff] %vm1568, %v1448
      %1578 = vst.msk [vmem:[%s228 + $0x48] sm:$0xff] %vm1568, %v1449
      %1579 = vst.msk [vmem:[%s228 + $0x50] sm:$0xff] %vm1568, %v1450
      %1580 = vst.msk [vmem:[%s228 + $0x58] sm:$0xff] %vm1568, %v1451
      %1581 = vst.msk [vmem:[%s228 + $0x60] sm:$0xff] %vm1568, %v1452
      %1582 = vst.msk [vmem:[%s228 + $0x68] sm:$0xff] %vm1568, %v1453
      %1583 = vst.msk [vmem:[%s228 + $0x70] sm:$0xff] %vm1568, %v1454
      %1584 = vst.msk [vmem:[%s228 + $0x78] sm:$0xff] %vm1568, %v1455
      %1585 = vst.msk [vmem:[%s228 + $0x80] sm:$0xff] %vm1568, %v1456
      %1586 = vst.msk [vmem:[%s228 + $0x88] sm:$0xff] %vm1568, %v1457
      %1587 = vst.msk [vmem:[%s228 + $0x90] sm:$0xff] %vm1568, %v1458
      %1588 = vst.msk [vmem:[%s228 + $0x98] sm:$0xff] %vm1568, %v1459
      %1589 = vst.msk [vmem:[%s228 + $0xa0] sm:$0xff] %vm1568, %v1460
      %1590 = vst.msk [vmem:[%s228 + $0xa8] sm:$0xff] %vm1568, %v1461
      %1591 = vst.msk [vmem:[%s228 + $0xb0] sm:$0xff] %vm1568, %v1462
      %1592 = vst.msk [vmem:[%s228 + $0xb8] sm:$0xff] %vm1568, %v1463
      %1593 = vst.msk [vmem:[%s228 + $0xc0] sm:$0xff] %vm1568, %v1464
      %1594 = vst.msk [vmem:[%s228 + $0xc8] sm:$0xff] %vm1568, %v1465
      %1595 = vst.msk [vmem:[%s228 + $0xd0] sm:$0xff] %vm1568, %v1466
      %1596 = vst.msk [vmem:[%s228 + $0xd8] sm:$0xff] %vm1568, %v1467
      %1597 = vst.msk [vmem:[%s228 + $0xe0] sm:$0xff] %vm1568, %v1468
      %1598 = vst.msk [vmem:[%s228 + $0xe8] sm:$0xff] %vm1568, %v1469
      %1599 = vst.msk [vmem:[%s228 + $0xf0] sm:$0xff] %vm1568, %v1470
      %1600 = vst.msk [vmem:[%s228 + $0xf8] sm:$0xff] %vm1568, %v1471
      %1601 = vst.msk [vmem:[%s228 + $0x100] sm:$0xff] %vm1568, %v1472
      %1602 = vst.msk [vmem:[%s228 + $0x108] sm:$0xff] %vm1568, %v1473
      %1603 = vst.msk [vmem:[%s228 + $0x110] sm:$0xff] %vm1568, %v1474
      %1604 = vst.msk [vmem:[%s228 + $0x118] sm:$0xff] %vm1568, %v1475
      %1605 = vst.msk [vmem:[%s228 + $0x120] sm:$0xff] %vm1568, %v1476
      %1606 = vst.msk [vmem:[%s228 + $0x128] sm:$0xff] %vm1568, %v1477
      %1607 = vst.msk [vmem:[%s228 + $0x130] sm:$0xff] %vm1568, %v1478
      %1608 = vst.msk [vmem:[%s228 + $0x138] sm:$0xff] %vm1568, %v1479
      %1609 = vst.msk [vmem:[%s228 + $0x140] sm:$0xff] %vm1568, %v1480
      %1610 = vst.msk [vmem:[%s228 + $0x148] sm:$0xff] %vm1568, %v1481
      %1611 = vst.msk [vmem:[%s228 + $0x150] sm:$0xff] %vm1568, %v1482
      %1612 = vst.msk [vmem:[%s228 + $0x158] sm:$0xff] %vm1568, %v1483
      %1613 = vst.msk [vmem:[%s228 + $0x160] sm:$0xff] %vm1568, %v1484
      %1614 = vst.msk [vmem:[%s228 + $0x168] sm:$0xff] %vm1568, %v1485
      %1615 = vst.msk [vmem:[%s228 + $0x170] sm:$0xff] %vm1568, %v1486
      %1616 = vst.msk [vmem:[%s228 + $0x178] sm:$0xff] %vm1568, %v1487
      %1617 = vst.msk [vmem:[%s228 + $0x180] sm:$0xff] %vm1568, %v1488
      %1618 = vst.msk [vmem:[%s228 + $0x188] sm:$0xff] %vm1568, %v1489
      %1619 = vst.msk [vmem:[%s228 + $0x190] sm:$0xff] %vm1568, %v1490
      %1620 = vst.msk [vmem:[%s228 + $0x198] sm:$0xff] %vm1568, %v1491
      %1621 = vst.msk [vmem:[%s228 + $0x1a0] sm:$0xff] %vm1568, %v1492
      %1622 = vst.msk [vmem:[%s228 + $0x1a8] sm:$0xff] %vm1568, %v1493
      %1623 = vst.msk [vmem:[%s228 + $0x1b0] sm:$0xff] %vm1568, %v1494
      %1624 = vst.msk [vmem:[%s228 + $0x1b8] sm:$0xff] %vm1568, %v1495
      %1625 = vst.msk [vmem:[%s228 + $0x1c0] sm:$0xff] %vm1568, %v1496
      %1626 = vst.msk [vmem:[%s228 + $0x1c8] sm:$0xff] %vm1568, %v1497
      %1627 = vst.msk [vmem:[%s228 + $0x1d0] sm:$0xff] %vm1568, %v1498
      %1628 = vst.msk [vmem:[%s228 + $0x1d8] sm:$0xff] %vm1568, %v1499
      %1629 = vst.msk [vmem:[%s228 + $0x1e0] sm:$0xff] %vm1568, %v1500
      %1630 = vst.msk [vmem:[%s228 + $0x1e8] sm:$0xff] %vm1568, %v1501
      %1631 = vst.msk [vmem:[%s228 + $0x1f0] sm:$0xff] %vm1568, %v1502
      %1632 = vst.msk [vmem:[%s228 + $0x1f8] sm:$0xff] %vm1568, %v1503
      %1633 = vst.msk [vmem:[%s228 + $0x200] sm:$0xff] %vm1568, %v1504
      %1634 = vst.msk [vmem:[%s228 + $0x208] sm:$0xff] %vm1568, %v1505
      %1635 = vst.msk [vmem:[%s228 + $0x210] sm:$0xff] %vm1568, %v1506
      %1636 = vst.msk [vmem:[%s228 + $0x218] sm:$0xff] %vm1568, %v1507
      %1637 = vst.msk [vmem:[%s228 + $0x220] sm:$0xff] %vm1568, %v1508
      %1638 = vst.msk [vmem:[%s228 + $0x228] sm:$0xff] %vm1568, %v1509
      %1639 = vst.msk [vmem:[%s228 + $0x230] sm:$0xff] %vm1568, %v1510
      %1640 = vst.msk [vmem:[%s228 + $0x238] sm:$0xff] %vm1568, %v1511
      %1641 = vst.msk [vmem:[%s228 + $0x240] sm:$0xff] %vm1568, %v1512
      %1642 = vst.msk [vmem:[%s228 + $0x248] sm:$0xff] %vm1568, %v1513
      %1643 = vst.msk [vmem:[%s228 + $0x250] sm:$0xff] %vm1568, %v1514
      %1644 = vst.msk [vmem:[%s228 + $0x258] sm:$0xff] %vm1568, %v1515
      %1645 = vst.msk [vmem:[%s228 + $0x260] sm:$0xff] %vm1568, %v1516
      %1646 = vst.msk [vmem:[%s228 + $0x268] sm:$0xff] %vm1568, %v1517
      %1647 = vst.msk [vmem:[%s228 + $0x270] sm:$0xff] %vm1568, %v1518
      %1648 = vst.msk [vmem:[%s228 + $0x278] sm:$0xff] %vm1568, %v1519
      %1649 = vst.msk [vmem:[%s228 + $0x280] sm:$0xff] %vm1568, %v1520
      %1650 = vst.msk [vmem:[%s228 + $0x288] sm:$0xff] %vm1568, %v1521
      %1651 = vst.msk [vmem:[%s228 + $0x290] sm:$0xff] %vm1568, %v1522
      %1652 = vst.msk [vmem:[%s228 + $0x298] sm:$0xff] %vm1568, %v1523
      %1653 = vst.msk [vmem:[%s228 + $0x2a0] sm:$0xff] %vm1568, %v1524
      %1654 = vst.msk [vmem:[%s228 + $0x2a8] sm:$0xff] %vm1568, %v1525
      %1655 = vst.msk [vmem:[%s228 + $0x2b0] sm:$0xff] %vm1568, %v1526
      %1656 = vst.msk [vmem:[%s228 + $0x2b8] sm:$0xff] %vm1568, %v1527
      %1657 = vst.msk [vmem:[%s228 + $0x2c0] sm:$0xff] %vm1568, %v1528
      %1658 = vst.msk [vmem:[%s228 + $0x2c8] sm:$0xff] %vm1568, %v1529
      %1659 = vst.msk [vmem:[%s228 + $0x2d0] sm:$0xff] %vm1568, %v1530
      %1660 = vst.msk [vmem:[%s228 + $0x2d8] sm:$0xff] %vm1568, %v1531
      %1661 = vst.msk [vmem:[%s228 + $0x2e0] sm:$0xff] %vm1568, %v1532
      %1662 = vst.msk [vmem:[%s228 + $0x2e8] sm:$0xff] %vm1568, %v1533
      %1663 = vst.msk [vmem:[%s228 + $0x2f0] sm:$0xff] %vm1568, %v1534
      %1664 = vst.msk [vmem:[%s228 + $0x2f8] sm:$0xff] %vm1568, %v1535
      %1665 = vst.msk [vmem:[%s228 + $0x300] sm:$0xff] %vm1568, %v1536
      %1666 = vst.msk [vmem:[%s228 + $0x308] sm:$0xff] %vm1568, %v1537
      %1667 = vst.msk [vmem:[%s228 + $0x310] sm:$0xff] %vm1568, %v1538
      %1668 = vst.msk [vmem:[%s228 + $0x318] sm:$0xff] %vm1568, %v1539
      %1669 = vst.msk [vmem:[%s228 + $0x320] sm:$0xff] %vm1568, %v1540
      %1670 = vst.msk [vmem:[%s228 + $0x328] sm:$0xff] %vm1568, %v1541
      %1671 = vst.msk [vmem:[%s228 + $0x330] sm:$0xff] %vm1568, %v1542
      %1672 = vst.msk [vmem:[%s228 + $0x338] sm:$0xff] %vm1568, %v1543
      %1673 = vst.msk [vmem:[%s228 + $0x340] sm:$0xff] %vm1568, %v1544
      %1674 = vst.msk [vmem:[%s228 + $0x348] sm:$0xff] %vm1568, %v1545
      %1675 = vst.msk [vmem:[%s228 + $0x350] sm:$0xff] %vm1568, %v1546
      %1676 = vst.msk [vmem:[%s228 + $0x358] sm:$0xff] %vm1568, %v1547
      %1677 = vst.msk [vmem:[%s228 + $0x360] sm:$0xff] %vm1568, %v1548
      %1678 = vst.msk [vmem:[%s228 + $0x368] sm:$0xff] %vm1568, %v1549
      %1679 = vst.msk [vmem:[%s228 + $0x370] sm:$0xff] %vm1568, %v1550
      %1680 = vst.msk [vmem:[%s228 + $0x378] sm:$0xff] %vm1568, %v1551
      %1681 = vst.msk [vmem:[%s228 + $0x380] sm:$0xff] %vm1568, %v1552
      %1682 = vst.msk [vmem:[%s228 + $0x388] sm:$0xff] %vm1568, %v1553
      %1683 = vst.msk [vmem:[%s228 + $0x390] sm:$0xff] %vm1568, %v1554
      %1684 = vst.msk [vmem:[%s228 + $0x398] sm:$0xff] %vm1568, %v1555
      %1685 = vst.msk [vmem:[%s228 + $0x3a0] sm:$0xff] %vm1568, %v1556
      %1686 = vst.msk [vmem:[%s228 + $0x3a8] sm:$0xff] %vm1568, %v1557
      %1687 = vst.msk [vmem:[%s228 + $0x3b0] sm:$0xff] %vm1568, %v1558
      %1688 = vst.msk [vmem:[%s228 + $0x3b8] sm:$0xff] %vm1568, %v1559
      %1689 = vst.msk [vmem:[%s228 + $0x3c0] sm:$0xff] %vm1568, %v1560
      %1690 = vst.msk [vmem:[%s228 + $0x3c8] sm:$0xff] %vm1568, %v1561
      %1691 = vst.msk [vmem:[%s228 + $0x3d0] sm:$0xff] %vm1568, %v1562
      %1692 = vst.msk [vmem:[%s228 + $0x3d8] sm:$0xff] %vm1568, %v1563
      %1693 = vst.msk [vmem:[%s228 + $0x3e0] sm:$0xff] %vm1568, %v1564
      %1694 = vst.msk [vmem:[%s228 + $0x3e8] sm:$0xff] %vm1568, %v1565
      %1695 = vst.msk [vmem:[%s228 + $0x3f0] sm:$0xff] %vm1568, %v1566
      %1696 = vst.msk [vmem:[%s228 + $0x3f8] sm:$0xff] %vm1568, %v1567
      %s1697 = smul.u32 128, %s19
      %p1698 = scmp.lt.s32.totalorder %s18, 3
      %s1699 = scalar_select %p1698, %s18, 3
      %p1700 = scmp.lt.s32.totalorder %s1697, 255
      %s1701 = scalar_select %p1700, %s1697, 255
      %s1702 = smul.addr %s1699, 256
      %s1703 = sadd.s32 %s1701, %s1702
      %s1704 = smul.addr %s1703, 8
      %s1705 = scalar_lea.vmem %s3, %s1704
      // Predicated region
      $region33: #{_generator_forward.17} parent=31 // pred_check
        %p1706 = pneg %p121
      $region34: #{_generator_forward.17} parent=31 // pred_check_branch
        %1708 = sbr.rel (%p1706) target = $region36
      $region35: #{_generator_forward.17} parent=31 // pred_region
        %s1709 = smul.u32 128, %s19
      $region36: #{_generator_forward.17} parent=31 // pred_fallthru
        _
    $region32: #{_generator_forward.17} parent=5 // pred_fallthru
      _
    %p1710 = scmp.le.s32.totalorder 2, %s9
    // Predicated region
    $region37: #{_generator_forward.17} parent=5 // pred_check
      %p1711 = pneg %p1710
    $region38: #{_generator_forward.17} parent=5 // pred_check_branch
      %1713 = sbr.rel (%p1711) target = $region40
    $region39: #{_generator_forward.17} parent=5 // pred_region
      %s1714 = ssub.s32 %s9, 2
      // Predicated region
      $region41: #{_generator_forward.17} parent=39 // pred_check
        %p1715 = pneg %p127
      $region42: #{_generator_forward.17} parent=39 // pred_check_branch
        %1717 = sbr.rel (%p1715) target = $region44
      $region43: #{_generator_forward.17} parent=39 // pred_region
        %s1718 = smul.u32 128, %s21
        %p1719 = scmp.lt.s32.totalorder %s20, 3
        %s1720 = scalar_select %p1719, %s20, 3
        %p1721 = scmp.lt.s32.totalorder %s1718, 255
        %s1722 = scalar_select %p1721, %s1718, 255
        %s1723 = smul.addr %s1720, 256
        %s1724 = sadd.s32 %s1722, %s1723
        %s1725 = smul.addr %s1724, 8
        %s1726 = scalar_lea.vmem %s3, %s1725
      $region44: #{_generator_forward.17} parent=39 // pred_fallthru
        _
    $region40: #{_generator_forward.17} parent=5 // pred_fallthru
      _
  $region6: #{_generator_forward.17} parent=0 // loop_footer
    %s13 = sadd.s32 1, %s9
  $region7: #{_generator_forward.17} parent=0 // loop_footer_branch
    %8 = sbr.rel target = $region3
  $region8: #{_generator_forward.17} parent=0 // loop_exit
    _

</llo_original>
